<compile_context>
chip_gen: v6e
topology: v6e:2x2x1
jax: 0.10.0
libtpu: 0.0.40
codegen_flags: <defaults>
</compile_context>

<pallas_src>
import functools

import jax
import jax.numpy as jnp
from jax.experimental import pallas as pl
from jax.experimental.pallas import tpu as pltpu


def _confidence_kernel(x_ref, w_ref, b_ref, o_ref, maxacc_ref, *, hw_total, hw_tile):
    # x_ref:      (n_tile, C, hw_tile)  native-NCHW block (HW on lanes)
    # w_ref:      (O, C)                lane-dense linear weight (resident)
    # b_ref:      (1, O)                bias (resident)
    # o_ref:      (n_tile, 1, O)        sigmoid output block
    # maxacc_ref: (n_tile, C) f32       running max across spatial chunks
    k = pl.program_id(1)

    @pl.when(k == 0)
    def _():
        maxacc_ref[...] = jnp.full(maxacc_ref.shape, -jnp.inf, maxacc_ref.dtype)

    x = x_ref[...].astype(jnp.float32)
    if hw_total % hw_tile != 0:
        # Tail spatial chunk: mask out-of-range columns before the max.
        col = k * hw_tile + jax.lax.broadcasted_iota(jnp.int32, x.shape, 2)
        x = jnp.where(col < hw_total, x, -jnp.inf)

    # Cross-lane max -> XLU (free slot; kernel is HBM-bandwidth bound).
    chunk_max = jnp.max(x, axis=-1)                               # (n_tile, C)
    maxacc_ref[...] = jnp.maximum(maxacc_ref[...], chunk_max)

    @pl.when(k == pl.num_programs(1) - 1)
    def _():
        pooled = maxacc_ref[...]                                  # (n_tile, C)
        # Dropout: eval-mode identity (see TODO above).
        logits = jax.lax.dot_general(                             # (n_tile, O) on MXU
            pooled, w_ref[...],
            dimension_numbers=(((1,), (1,)), ((), ())),
            preferred_element_type=jnp.float32)
        logits = logits + b_ref[...]
        o_ref[...] = jax.nn.sigmoid(logits)[:, None, :].astype(o_ref.dtype)


_LANE = 128
_TARGET_BLOCK_BYTES = 8 * 1024 * 1024   # ~8 MiB x-block -> 16 MiB double-buffered


def _round_up(x, m):
    return (x + m - 1) // m * m


def _plan_tiles(N, C, HW, itemsize):
    """Pick (n_tile, hw_tile) so one x block is <= ~8 MiB of *padded* VMEM."""
    padded_slab = C * _round_up(HW, _LANE) * itemsize   # one batch element in VMEM
    if padded_slab <= _TARGET_BLOCK_BYTES:
        # Small/moderate HW: full spatial extent per block, tile the batch dim.
        hw_tile = HW
        n_tile = max(1, min(N, _TARGET_BLOCK_BYTES // padded_slab))
        if N >= 2:
            # Keep at least two batch blocks so both v7x TensorCores get work
            # (no-op cost on v5e/v6e: just an extra grid step).
            n_tile = min(n_tile, pl.cdiv(N, 2))
    else:
        # Large HW: one batch element per block, chunk HW in multiples of 128.
        n_tile = 1
        hw_tile = max(_LANE,
                      (_TARGET_BLOCK_BYTES // (C * itemsize)) // _LANE * _LANE)
        hw_tile = min(hw_tile, _round_up(HW, _LANE))
    return n_tile, hw_tile


@jax.jit
def confidence_forward(x_nchw, weight, bias):
    """Matches the PyTorch module: NCHW input -> (N, O) sigmoid probabilities.

    weight: (O, C) -- PyTorch nn.Linear layout, used lane-dense as-is.
    bias:   (O,)
    """
    N, C, H, W = x_nchw.shape
    O, C_w = weight.shape
    assert C == C_w, "channel count must match Linear in_features"
    HW = H * W

    # Free reshape (collapses contiguous trailing dims) -- no HBM round trip.
    x = x_nchw.reshape(N, C, HW)

    n_tile, hw_tile = _plan_tiles(N, C, HW, x.dtype.itemsize)
    n_hw = pl.cdiv(HW, hw_tile)

    kernel = functools.partial(_confidence_kernel, hw_total=HW, hw_tile=hw_tile)

    out = pl.pallas_call(
        kernel,
        out_shape=jax.ShapeDtypeStruct((N, 1, O), jnp.float32),
        grid_spec=pltpu.PrefetchScalarGridSpec(
            num_scalar_prefetch=0,
            grid=(pl.cdiv(N, n_tile), n_hw),            # reduction (HW) axis last
            in_specs=[
                pl.BlockSpec((n_tile, C, hw_tile), lambda i, k: (i, 0, k)),
                pl.BlockSpec((O, C), lambda i, k: (0, 0)),   # resident weight
                pl.BlockSpec((1, O), lambda i, k: (0, 0)),   # resident bias
            ],
            out_specs=pl.BlockSpec((n_tile, 1, O), lambda i, k: (i, 0, 0)),
            scratch_shapes=[pltpu.VMEM((n_tile, C), jnp.float32)],  # running max
        ),
        compiler_params=pltpu.CompilerParams(
            # Batch blocks parallel (megacore on v7x); spatial chunks arbitrary
            # (running-max accumulator across them).
            dimension_semantics=("parallel", "arbitrary"),
            # Covers 2 x 8 MiB double-buffered x blocks + weight/bias/out/scratch
            # on every generation (v5e scoped default is only 16 MiB) while
            # staying inside v7x's 64 MiB physical VMEM.
            vmem_limit_bytes=40 * 1024 * 1024,
        ),
    )(x, weight, bias.reshape(1, O))
    return out.reshape(N, O)


if __name__ == "__main__":
    key = jax.random.PRNGKey(0)
    kx, kw, kb = jax.random.split(key, 3)

    N, C, H, W = 2, 1024, 8, 8       # C must be 1024 (Linear in_features=1024)
    out_features = 8

    x = jax.random.normal(kx, (N, C, H, W), dtype=jnp.float32)
    # Deterministic parameter init (roughly matches nn.Linear's uniform scale).
    bound = 1.0 / (C ** 0.5)
    weight = jax.random.uniform(kw, (out_features, C), jnp.float32, -bound, bound)
    bias = jax.random.uniform(kb, (out_features,), jnp.float32, -bound, bound)

    out = confidence_forward(x, weight, bias)
    out = jax.block_until_ready(out)

    # Cross-check against a pure-JAX reference of the same forward pass.
    ref = jax.nn.sigmoid(jnp.max(x, axis=(2, 3)) @ weight.T + bias)
    assert out.shape == (N, out_features)
    assert jnp.allclose(out, ref, atol=1e-5, rtol=1e-5)

    print("KERNEL_OK")
</pallas_src>

<mosaic_0001>
module attributes {stable_mosaic.version = 11 : i64} {
  func.func @_confidence_kernel(%arg0: i32, %arg1: i32, %arg2: memref<1x1024x64xf32, #tpu.memory_space<vmem>>, %arg3: memref<8x1024xf32, #tpu.memory_space<vmem>>, %arg4: memref<1x8xf32, #tpu.memory_space<vmem>>, %arg5: memref<1x1x8xf32, #tpu.memory_space<vmem>>, %arg6: memref<1x1024xf32, #tpu.memory_space<vmem>>) attributes {dimension_semantics = [#tpu.dimension_semantics<parallel>, #tpu.dimension_semantics<arbitrary>], iteration_bounds = array<i64: 2, 1>, scalar_prefetch = 0 : i64, scratch_operands = 1 : i64, tpu.core_type = #tpu.core_type<tc>, window_params = [{transform_indices = @transform_0, window_bounds = array<i64: 1, 1024, 64>}, {pipeline_mode = #tpu.pipeline_mode<synchronous>, transform_indices = @transform_1, window_bounds = array<i64: 8, 1024>}, {pipeline_mode = #tpu.pipeline_mode<synchronous>, transform_indices = @transform_2, window_bounds = array<i64: 1, 8>}, {transform_indices = @transform_3, window_bounds = array<i64: 1, 1, 8>}]} {
    %c0_i32 = arith.constant 0 : i32
    %0 = arith.cmpi eq, %arg1, %c0_i32 : i32
    %1 = arith.extui %0 : i1 to i32
    %c0_i32_0 = arith.constant 0 : i32
    %2 = arith.cmpi ne, %1, %c0_i32_0 : i32
    scf.if %2 {
      %cst_9 = arith.constant 0xFF800000 : f32
      %11 = vector.broadcast %cst_9 : f32 to vector<1x1024xf32>
      %c0_10 = arith.constant 0 : index
      %c0_11 = arith.constant 0 : index
      %12 = vector.load %arg6[%c0_10, %c0_11] : memref<1x1024xf32, #tpu.memory_space<vmem>>, vector<1x1024xf32>
      tpu.vector_store %arg6[%c0_10, %c0_11], %11 {strides = array<i32>} : memref<1x1024xf32, #tpu.memory_space<vmem>>, vector<1x1024xf32>,
    } else {
    }
    %c0 = arith.constant 0 : index
    %c0_1 = arith.constant 0 : index
    %c0_2 = arith.constant 0 : index
    %3 = vector.load %arg2[%c0, %c0_1, %c0_2] : memref<1x1024x64xf32, #tpu.memory_space<vmem>>, vector<1x1024x64xf32>
    %cst = arith.constant dense<0xFF800000> : vector<1x1024xf32>
    %4 = vector.multi_reduction <maximumf>, %3, %cst [2] : vector<1x1024x64xf32> to vector<1x1024xf32>
    %c0_3 = arith.constant 0 : index
    %c0_4 = arith.constant 0 : index
    %5 = vector.load %arg6[%c0_3, %c0_4] : memref<1x1024xf32, #tpu.memory_space<vmem>>, vector<1x1024xf32>
    %6 = arith.maximumf %5, %4 : vector<1x1024xf32>
    %c0_5 = arith.constant 0 : index
    %c0_6 = arith.constant 0 : index
    %7 = vector.load %arg6[%c0_5, %c0_6] : memref<1x1024xf32, #tpu.memory_space<vmem>>, vector<1x1024xf32>
    tpu.vector_store %arg6[%c0_5, %c0_6], %6 {strides = array<i32>} : memref<1x1024xf32, #tpu.memory_space<vmem>>, vector<1x1024xf32>,
    %c0_i32_7 = arith.constant 0 : i32
    %8 = arith.cmpi eq, %arg1, %c0_i32_7 : i32
    %9 = arith.extui %8 : i1 to i32
    %c0_i32_8 = arith.constant 0 : i32
    %10 = arith.cmpi ne, %9, %c0_i32_8 : i32
    scf.if %10 {
      %c0_9 = arith.constant 0 : index
      %c0_10 = arith.constant 0 : index
      %11 = vector.load %arg6[%c0_9, %c0_10] : memref<1x1024xf32, #tpu.memory_space<vmem>>, vector<1x1024xf32>
      %c0_11 = arith.constant 0 : index
      %c0_12 = arith.constant 0 : index
      %12 = vector.load %arg3[%c0_11, %c0_12] : memref<8x1024xf32, #tpu.memory_space<vmem>>, vector<8x1024xf32>
      %cst_13 = arith.constant dense<0.000000e+00> : vector<1x8xf32>
      %13 = tpu.matmul %11, %12, %cst_13 {dimension_numbers = #tpu.dot_dimension_numbers<[1], [1], [0], [0], [0, 0, 1, 0], [], []>} : vector<1x1024xf32>, vector<8x1024xf32>, vector<1x8xf32> -> vector<1x8xf32>
      %c0_14 = arith.constant 0 : index
      %c0_15 = arith.constant 0 : index
      %14 = vector.load %arg4[%c0_14, %c0_15] : memref<1x8xf32, #tpu.memory_space<vmem>>, vector<1x8xf32>
      %15 = arith.addf %13, %14 : vector<1x8xf32>
      %16 = arith.negf %15 : vector<1x8xf32>
      %17 = math.exp %16 : vector<1x8xf32>
      %cst_16 = arith.constant 1.000000e+00 : f32
      %18 = vector.broadcast %cst_16 : f32 to vector<1x8xf32>
      %19 = arith.addf %18, %17 : vector<1x8xf32>
      %20 = arith.divf %18, %19 : vector<1x8xf32>
      %21 = vector.shape_cast %20 : vector<1x8xf32> to vector<1x1x8xf32>
      %c0_17 = arith.constant 0 : index
      %c0_18 = arith.constant 0 : index
      %c0_19 = arith.constant 0 : index
      %22 = vector.load %arg5[%c0_17, %c0_18, %c0_19] : memref<1x1x8xf32, #tpu.memory_space<vmem>>, vector<1x1x8xf32>
      tpu.vector_store %arg5[%c0_17, %c0_18, %c0_19], %21 {strides = array<i32>} : memref<1x1x8xf32, #tpu.memory_space<vmem>>, vector<1x1x8xf32>,
    } else {
    }
    return
  }
  func.func @transform_0(%arg0: i32, %arg1: i32) -> (i32, i32, i32) {
    %c0_i32 = arith.constant 0 : i32
    %c0_i32_0 = arith.constant 0 : i32
    return %arg0, %c0_i32, %arg1 : i32, i32, i32
  }
  func.func @transform_1(%arg0: i32, %arg1: i32) -> (i32, i32) {
    %c0_i32 = arith.constant 0 : i32
    %c0_i32_0 = arith.constant 0 : i32
    %c0_i32_1 = arith.constant 0 : i32
    return %c0_i32, %c0_i32_0 : i32, i32
  }
  func.func @transform_2(%arg0: i32, %arg1: i32) -> (i32, i32) {
    %c0_i32 = arith.constant 0 : i32
    %c0_i32_0 = arith.constant 0 : i32
    %c0_i32_1 = arith.constant 0 : i32
    return %c0_i32, %c0_i32_0 : i32, i32
  }
  func.func @transform_3(%arg0: i32, %arg1: i32) -> (i32, i32, i32) {
    %c0_i32 = arith.constant 0 : i32
    %c0_i32_0 = arith.constant 0 : i32
    %c0_i32_1 = arith.constant 0 : i32
    return %arg0, %c0_i32, %c0_i32_0 : i32, i32, i32
  }
}

</mosaic_0001>

<llo_original>
// kernel: confidence_forward.1
$region0: #{confidence_forward.1}
  #allocation0 [shape = 'u32[]', space=smem, size = 0x4, offset = 0x4, fixed_abs, tag = 'smem constant byte address 0x4 - core index']
  #allocation1 [shape = 'u32[144,128]{1,0:T(1,128)}', space=vmem, size = 0x12000, scoped, tag = 'internal scratch']
  #allocation2 [shape = 'f32[1,1024]{1,0:T(1,128)}', space=vmem, size = 0x1000, scoped, tag = 'scratch operand']
  %s0 = inlined_call_operand.vmem [shape: f32[2,1024,64], index: 0, kind: input, shape index: {}]
  %s1 = inlined_call_operand.vmem [shape: f32[8,1024], index: 1, kind: input, shape index: {}]
  %s2 = inlined_call_operand.vmem [shape: f32[1,8], index: 2, kind: input, shape index: {}]
  %s3 = inlined_call_operand.hbm [shape: f32[2,1,8], index: 3, kind: output, shape index: {}]
  %s4 = sld [smem:[#allocation0]]
  $region53: #{confidence_forward.1} parent=0
    _
  %s6 = ssub.s32 1, %s4
  %s7 = scalar_select 0, %s6, %s4
  $region1: #{confidence_forward.1} parent=0
    #allocation3 [shape = 'u8[1024]{0}', space=vmem, size = 0x400, scoped, tag = 'output window, operand 0']
    #allocation4 [shape = 's32[2]{0}', space=sflag, size = 0x8, scoped, tag = 'scoped memory for confidence_forward.1']
    %8 = vsyncpa [#allocation4], 0
    %s9 = scalar_lea.sflag [#allocation4], 1
    %10 = vsyncpa %s9, 0
    loop: start=0, step=1, limit=4
    $region2: #{confidence_forward.1} parent=1 // loop_pre_header
      _
    $region3: #{confidence_forward.1} parent=1 // loop_header
      %s12 = sphi 0, %s16
      %p13 = scmp.ge.s32.totalorder %s12, 4
      %s19 = sphi 0, %s31
      %s20 = sphi 0, %s27
      %s21 = sphi 0, %s19
      %s22 = sphi 0, %s20
      %s23 = sphi 0, %s21
      %s24 = sphi 0, %s22
      %s36 = sphi 0, %s38
      %s39 = sphi 0, %s36
      %s40 = sphi 0, %s39
      %s56 = sphi 0, %s40
      %s60 = sphi 0, %s60
      %s62 = sphi 0, %s60
      %s63 = sphi 0, %s62
      %s77 = sphi 0, %s63
      %s81 = sphi 0, %s81
      %s83 = sphi 0, %s81
      %s84 = sphi 0, %s83
      %s98 = sphi 0, %s84
      %s104 = sphi 0, %s106
      %s107 = sphi 0, %s104
      %s108 = sphi 0, %s107
      %s124 = sphi 0, %s108
    $region4: #{confidence_forward.1} parent=1 // loop_header_branch
      %15 = sbr.rel (%p13) target = $region8
    $region5: #{confidence_forward.1} parent=1 // loop_body
      %s17 = ssub.s32 %s12, 1
      %s18 = ssub.s32 %s12, 2
      %s25 = sadd.s32 1, %s20
      %p26 = scmp.ge.s32.totalorder %s25, 1
      %s27 = scalar_select %p26, 0, %s25
      %s28 = sadd.s32 1, %s19
      %s29 = scalar_select %p26, %s28, %s19
      %p30 = scmp.ge.s32.totalorder %s29, 2
      %s31 = scalar_select %p30, 0, %s29
      %s32 = ssub.s32 %s19, %s31
      %s33 = ssub.s32 %s20, %s27
      %s34 = sor.u32 %s32, %s33
      %p35 = scmp.eq.s32.totalorder %s34, 0
      %s37 = sadd.s32 %s36, 1
      %s38 = scalar_select %p35, %s36, %s37
      %p41 = pneg %p35
      %p42 = scmp.eq.s32.totalorder %s12, 1
      %p43 = por %p41, %p42
      %p44 = scmp.ne.s32.totalorder %s36, %s39
      %p45 = scmp.eq.s32.totalorder %s12, 0
      %p46 = por %p44, %p45
      %p47 = scmp.ne.s32.totalorder %s36, %s39
      %p48 = scmp.eq.s32.totalorder %s17, 1
      %p49 = por %p47, %p48
      %p50 = scmp.ne.s32.totalorder %s39, %s40
      %p51 = scmp.eq.s32.totalorder %s17, 0
      %p52 = por %p50, %p51
      %p53 = scmp.ne.s32.totalorder %s39, %s40
      %p54 = scmp.eq.s32.totalorder %s18, 1
      %p55 = por %p53, %p54
      %p57 = scmp.ne.s32.totalorder %s40, %s56
      %p58 = scmp.eq.s32.totalorder %s18, 0
      %p59 = por %p57, %p58
      %s61 = sadd.s32 %s60, 1
      %p64 = scmp.eq.s32.totalorder %s12, 1
      %p65 = scmp.ne.s32.totalorder %s60, %s62
      %p66 = scmp.eq.s32.totalorder %s12, 0
      %p67 = por %p65, %p66
      %p68 = scmp.ne.s32.totalorder %s60, %s62
      %p69 = scmp.eq.s32.totalorder %s17, 1
      %p70 = por %p68, %p69
      %p71 = scmp.ne.s32.totalorder %s62, %s63
      %p72 = scmp.eq.s32.totalorder %s17, 0
      %p73 = por %p71, %p72
      %p74 = scmp.ne.s32.totalorder %s62, %s63
      %p75 = scmp.eq.s32.totalorder %s18, 1
      %p76 = por %p74, %p75
      %p78 = scmp.ne.s32.totalorder %s63, %s77
      %p79 = scmp.eq.s32.totalorder %s18, 0
      %p80 = por %p78, %p79
      %s82 = sadd.s32 %s81, 1
      %p85 = scmp.eq.s32.totalorder %s12, 1
      %p86 = scmp.ne.s32.totalorder %s81, %s83
      %p87 = scmp.eq.s32.totalorder %s12, 0
      %p88 = por %p86, %p87
      %p89 = scmp.ne.s32.totalorder %s81, %s83
      %p90 = scmp.eq.s32.totalorder %s17, 1
      %p91 = por %p89, %p90
      %p92 = scmp.ne.s32.totalorder %s83, %s84
      %p93 = scmp.eq.s32.totalorder %s17, 0
      %p94 = por %p92, %p93
      %p95 = scmp.ne.s32.totalorder %s83, %s84
      %p96 = scmp.eq.s32.totalorder %s18, 1
      %p97 = por %p95, %p96
      %p99 = scmp.ne.s32.totalorder %s84, %s98
      %p100 = scmp.eq.s32.totalorder %s18, 0
      %p101 = por %p99, %p100
      %s102 = ssub.s32 %s19, %s31
      %p103 = scmp.eq.s32.totalorder %s102, 0
      %s105 = sadd.s32 %s104, 1
      %s106 = scalar_select %p103, %s104, %s105
      %p109 = pneg %p103
      %p110 = scmp.eq.s32.totalorder %s12, 1
      %p111 = por %p109, %p110
      %p112 = scmp.ne.s32.totalorder %s104, %s107
      %p113 = scmp.eq.s32.totalorder %s12, 0
      %p114 = por %p112, %p113
      %p115 = scmp.ne.s32.totalorder %s104, %s107
      %p116 = scmp.eq.s32.totalorder %s17, 1
      %p117 = por %p115, %p116
      %p118 = scmp.ne.s32.totalorder %s107, %s108
      %p119 = scmp.eq.s32.totalorder %s17, 0
      %p120 = por %p118, %p119
      %p121 = scmp.ne.s32.totalorder %s107, %s108
      %p122 = scmp.eq.s32.totalorder %s18, 1
      %p123 = por %p121, %p122
      %p125 = scmp.ne.s32.totalorder %s108, %s124
      %p126 = scmp.eq.s32.totalorder %s18, 0
      %p127 = por %p125, %p126
      %p128 = scmp.le.s32.totalorder 1, %s12
      %p129 = scmp.lt.s32.totalorder %s12, 3
      %p130 = pnand %p128, %p129
      %p131 = pneg %p130
      // Predicated region
      $region9: #{confidence_forward.1} parent=5 // pred_check
        _
      $region10: #{confidence_forward.1} parent=5 // pred_check_branch
        %133 = sbr.rel (%p130) target = $region12
      $region11: #{confidence_forward.1} parent=5 // pred_region
        %s134 = ssub.s32 %s12, 1
        // Predicated region
        $region13: #{confidence_forward.1} parent=11 // pred_check
          %p135 = pneg %p73
        $region14: #{confidence_forward.1} parent=11 // pred_check_branch
          %137 = sbr.rel (%p135) target = $region16
        $region15: #{confidence_forward.1} parent=11 // pred_region
          _
        $region16: #{confidence_forward.1} parent=11 // pred_fallthru
          _
        // Predicated region
        $region17: #{confidence_forward.1} parent=11 // pred_check
          %p138 = pneg %p94
        $region18: #{confidence_forward.1} parent=11 // pred_check_branch
          %140 = sbr.rel (%p138) target = $region20
        $region19: #{confidence_forward.1} parent=11 // pred_region
          _
        $region20: #{confidence_forward.1} parent=11 // pred_fallthru
          _
      $region12: #{confidence_forward.1} parent=5 // pred_fallthru
        _
      %p141 = scmp.lt.s32.totalorder %s12, 2
      // Predicated region
      $region21: #{confidence_forward.1} parent=5 // pred_check
        %p142 = pneg %p141
      $region22: #{confidence_forward.1} parent=5 // pred_check_branch
        %144 = sbr.rel (%p142) target = $region24
      $region23: #{confidence_forward.1} parent=5 // pred_region
        // Predicated region
        $region25: #{confidence_forward.1} parent=23 // pred_check
          %p145 = pneg %p46
        $region26: #{confidence_forward.1} parent=23 // pred_check_branch
          %147 = sbr.rel (%p145) target = $region28
        $region27: #{confidence_forward.1} parent=23 // pred_region
          %p148 = scmp.lt.s32.totalorder %s19, 1
          %s149 = scalar_select %p148, %s19, 1
          %p150 = scmp.lt.s32.totalorder %s20, 0
          %s151 = scalar_select %p150, %s20, 0
          %s152 = smul.addr %s149, 128
          %s153 = sadd.s32 %s151, %s152
          %s154 = smul.addr %s153, 8
          %s155 = scalar_lea.vmem %s0, %s154
        $region28: #{confidence_forward.1} parent=23 // pred_fallthru
          _
      $region24: #{confidence_forward.1} parent=5 // pred_fallthru
        _
      %p156 = scmp.le.s32.totalorder 1, %s12
      %p157 = scmp.lt.s32.totalorder %s12, 3
      %p158 = pnand %p156, %p157
      %p159 = pneg %p158
      // Predicated region
      $region29: #{confidence_forward.1} parent=5 // pred_check
        _
      $region30: #{confidence_forward.1} parent=5 // pred_check_branch
        %161 = sbr.rel (%p158) target = $region32
      $region31: #{confidence_forward.1} parent=5 // pred_region
        %s162 = ssub.s32 %s12, 1
        %p163 = scmp.lt.s32.totalorder %s21, 1
        %s164 = scalar_select %p163, %s21, 1
        %p165 = scmp.lt.s32.totalorder %s22, 0
        %s166 = scalar_select %p165, %s22, 0
        %s167 = smul.addr %s164, 128
        %s168 = sadd.s32 %s166, %s167
        %s169 = smul.addr %s168, 8
        %s170 = scalar_lea.vmem %s0, %s169
        %p171 = pneg %p52
        %p172 = pneg %p49
        %p173 = pneg %p73
        %p174 = pneg %p70
        %p175 = pneg %p94
        %p176 = pneg %p91
        %p177 = pneg %p120
        %p178 = pneg %p117
        %s179 = sand.u32 %s107, 1
        %s180 = scalar_lea.sflag [#allocation4], %s179
        %s181 = sand.u32 %s107, 1
        %s182 = scalar_lea.vmem [#allocation3], %s181
        %p183 = scmp.lt.s32.totalorder %s21, 1
        %s184 = scalar_select %p183, %s21, 1
        %p185 = scmp.lt.s32.totalorder %s22, 0
        %s186 = scalar_select %p185, %s22, 0
        %s187 = smul.addr %s184, 128
        %s188 = sadd.s32 %s186, %s187
        %s189 = smul.addr %s188, 8
        %s190 = scalar_lea.vmem %s0, %s189
        %p191 = scmp.eq.s32.totalorder %s22, 0
        // Predicated region
        $region33: #{confidence_forward.1} parent=31 // pred_check
          %p192 = pneg %p191
        $region34: #{confidence_forward.1} parent=31 // pred_check_branch
          %194 = sbr.rel (%p192) target = $region36
        $region35: #{confidence_forward.1} parent=31 // pred_region
          %195 = vst [vmem:[#allocation2] sm:$0xff] -inf
        $region36: #{confidence_forward.1} parent=31 // pred_fallthru
          _
        %v196 = vld [vmem:[%s190] sm:$0xff]
        %v197 = vld [vmem:[%s190 + $0x8] sm:$0xff]
        %v198 = vld [vmem:[%s190 + $0x10] sm:$0xff]
        %v199 = vld [vmem:[%s190 + $0x18] sm:$0xff]
        %v200 = vld [vmem:[%s190 + $0x20] sm:$0xff]
        %v201 = vld [vmem:[%s190 + $0x28] sm:$0xff]
        %v202 = vld [vmem:[%s190 + $0x30] sm:$0xff]
        %v203 = vld [vmem:[%s190 + $0x38] sm:$0xff]
        %v204 = vld [vmem:[%s190 + $0x40] sm:$0xff]
        %v205 = vld [vmem:[%s190 + $0x48] sm:$0xff]
        %v206 = vld [vmem:[%s190 + $0x50] sm:$0xff]
        %v207 = vld [vmem:[%s190 + $0x58] sm:$0xff]
        %v208 = vld [vmem:[%s190 + $0x60] sm:$0xff]
        %v209 = vld [vmem:[%s190 + $0x68] sm:$0xff]
        %v210 = vld [vmem:[%s190 + $0x70] sm:$0xff]
        %v211 = vld [vmem:[%s190 + $0x78] sm:$0xff]
        %v212 = vld [vmem:[%s190 + $0x80] sm:$0xff]
        %v213 = vld [vmem:[%s190 + $0x88] sm:$0xff]
        %v214 = vld [vmem:[%s190 + $0x90] sm:$0xff]
        %v215 = vld [vmem:[%s190 + $0x98] sm:$0xff]
        %v216 = vld [vmem:[%s190 + $0xa0] sm:$0xff]
        %v217 = vld [vmem:[%s190 + $0xa8] sm:$0xff]
        %v218 = vld [vmem:[%s190 + $0xb0] sm:$0xff]
        %v219 = vld [vmem:[%s190 + $0xb8] sm:$0xff]
        %v220 = vld [vmem:[%s190 + $0xc0] sm:$0xff]
        %v221 = vld [vmem:[%s190 + $0xc8] sm:$0xff]
        %v222 = vld [vmem:[%s190 + $0xd0] sm:$0xff]
        %v223 = vld [vmem:[%s190 + $0xd8] sm:$0xff]
        %v224 = vld [vmem:[%s190 + $0xe0] sm:$0xff]
        %v225 = vld [vmem:[%s190 + $0xe8] sm:$0xff]
        %v226 = vld [vmem:[%s190 + $0xf0] sm:$0xff]
        %v227 = vld [vmem:[%s190 + $0xf8] sm:$0xff]
        %v228 = vld [vmem:[%s190 + $0x100] sm:$0xff]
        %v229 = vld [vmem:[%s190 + $0x108] sm:$0xff]
        %v230 = vld [vmem:[%s190 + $0x110] sm:$0xff]
        %v231 = vld [vmem:[%s190 + $0x118] sm:$0xff]
        %v232 = vld [vmem:[%s190 + $0x120] sm:$0xff]
        %v233 = vld [vmem:[%s190 + $0x128] sm:$0xff]
        %v234 = vld [vmem:[%s190 + $0x130] sm:$0xff]
        %v235 = vld [vmem:[%s190 + $0x138] sm:$0xff]
        %v236 = vld [vmem:[%s190 + $0x140] sm:$0xff]
        %v237 = vld [vmem:[%s190 + $0x148] sm:$0xff]
        %v238 = vld [vmem:[%s190 + $0x150] sm:$0xff]
        %v239 = vld [vmem:[%s190 + $0x158] sm:$0xff]
        %v240 = vld [vmem:[%s190 + $0x160] sm:$0xff]
        %v241 = vld [vmem:[%s190 + $0x168] sm:$0xff]
        %v242 = vld [vmem:[%s190 + $0x170] sm:$0xff]
        %v243 = vld [vmem:[%s190 + $0x178] sm:$0xff]
        %v244 = vld [vmem:[%s190 + $0x180] sm:$0xff]
        %v245 = vld [vmem:[%s190 + $0x188] sm:$0xff]
        %v246 = vld [vmem:[%s190 + $0x190] sm:$0xff]
        %v247 = vld [vmem:[%s190 + $0x198] sm:$0xff]
        %v248 = vld [vmem:[%s190 + $0x1a0] sm:$0xff]
        %v249 = vld [vmem:[%s190 + $0x1a8] sm:$0xff]
        %v250 = vld [vmem:[%s190 + $0x1b0] sm:$0xff]
        %v251 = vld [vmem:[%s190 + $0x1b8] sm:$0xff]
        %v252 = vld [vmem:[%s190 + $0x1c0] sm:$0xff]
        %v253 = vld [vmem:[%s190 + $0x1c8] sm:$0xff]
        %v254 = vld [vmem:[%s190 + $0x1d0] sm:$0xff]
        %v255 = vld [vmem:[%s190 + $0x1d8] sm:$0xff]
        %v256 = vld [vmem:[%s190 + $0x1e0] sm:$0xff]
        %v257 = vld [vmem:[%s190 + $0x1e8] sm:$0xff]
        %v258 = vld [vmem:[%s190 + $0x1f0] sm:$0xff]
        %v259 = vld [vmem:[%s190 + $0x1f8] sm:$0xff]
        %v260 = vld [vmem:[%s190 + $0x200] sm:$0xff]
        %v261 = vld [vmem:[%s190 + $0x208] sm:$0xff]
        %v262 = vld [vmem:[%s190 + $0x210] sm:$0xff]
        %v263 = vld [vmem:[%s190 + $0x218] sm:$0xff]
        %v264 = vld [vmem:[%s190 + $0x220] sm:$0xff]
        %v265 = vld [vmem:[%s190 + $0x228] sm:$0xff]
        %v266 = vld [vmem:[%s190 + $0x230] sm:$0xff]
        %v267 = vld [vmem:[%s190 + $0x238] sm:$0xff]
        %v268 = vld [vmem:[%s190 + $0x240] sm:$0xff]
        %v269 = vld [vmem:[%s190 + $0x248] sm:$0xff]
        %v270 = vld [vmem:[%s190 + $0x250] sm:$0xff]
        %v271 = vld [vmem:[%s190 + $0x258] sm:$0xff]
        %v272 = vld [vmem:[%s190 + $0x260] sm:$0xff]
        %v273 = vld [vmem:[%s190 + $0x268] sm:$0xff]
        %v274 = vld [vmem:[%s190 + $0x270] sm:$0xff]
        %v275 = vld [vmem:[%s190 + $0x278] sm:$0xff]
        %v276 = vld [vmem:[%s190 + $0x280] sm:$0xff]
        %v277 = vld [vmem:[%s190 + $0x288] sm:$0xff]
        %v278 = vld [vmem:[%s190 + $0x290] sm:$0xff]
        %v279 = vld [vmem:[%s190 + $0x298] sm:$0xff]
        %v280 = vld [vmem:[%s190 + $0x2a0] sm:$0xff]
        %v281 = vld [vmem:[%s190 + $0x2a8] sm:$0xff]
        %v282 = vld [vmem:[%s190 + $0x2b0] sm:$0xff]
        %v283 = vld [vmem:[%s190 + $0x2b8] sm:$0xff]
        %v284 = vld [vmem:[%s190 + $0x2c0] sm:$0xff]
        %v285 = vld [vmem:[%s190 + $0x2c8] sm:$0xff]
        %v286 = vld [vmem:[%s190 + $0x2d0] sm:$0xff]
        %v287 = vld [vmem:[%s190 + $0x2d8] sm:$0xff]
        %v288 = vld [vmem:[%s190 + $0x2e0] sm:$0xff]
        %v289 = vld [vmem:[%s190 + $0x2e8] sm:$0xff]
        %v290 = vld [vmem:[%s190 + $0x2f0] sm:$0xff]
        %v291 = vld [vmem:[%s190 + $0x2f8] sm:$0xff]
        %v292 = vld [vmem:[%s190 + $0x300] sm:$0xff]
        %v293 = vld [vmem:[%s190 + $0x308] sm:$0xff]
        %v294 = vld [vmem:[%s190 + $0x310] sm:$0xff]
        %v295 = vld [vmem:[%s190 + $0x318] sm:$0xff]
        %v296 = vld [vmem:[%s190 + $0x320] sm:$0xff]
        %v297 = vld [vmem:[%s190 + $0x328] sm:$0xff]
        %v298 = vld [vmem:[%s190 + $0x330] sm:$0xff]
        %v299 = vld [vmem:[%s190 + $0x338] sm:$0xff]
        %v300 = vld [vmem:[%s190 + $0x340] sm:$0xff]
        %v301 = vld [vmem:[%s190 + $0x348] sm:$0xff]
        %v302 = vld [vmem:[%s190 + $0x350] sm:$0xff]
        %v303 = vld [vmem:[%s190 + $0x358] sm:$0xff]
        %v304 = vld [vmem:[%s190 + $0x360] sm:$0xff]
        %v305 = vld [vmem:[%s190 + $0x368] sm:$0xff]
        %v306 = vld [vmem:[%s190 + $0x370] sm:$0xff]
        %v307 = vld [vmem:[%s190 + $0x378] sm:$0xff]
        %v308 = vld [vmem:[%s190 + $0x380] sm:$0xff]
        %v309 = vld [vmem:[%s190 + $0x388] sm:$0xff]
        %v310 = vld [vmem:[%s190 + $0x390] sm:$0xff]
        %v311 = vld [vmem:[%s190 + $0x398] sm:$0xff]
        %v312 = vld [vmem:[%s190 + $0x3a0] sm:$0xff]
        %v313 = vld [vmem:[%s190 + $0x3a8] sm:$0xff]
        %v314 = vld [vmem:[%s190 + $0x3b0] sm:$0xff]
        %v315 = vld [vmem:[%s190 + $0x3b8] sm:$0xff]
        %v316 = vld [vmem:[%s190 + $0x3c0] sm:$0xff]
        %v317 = vld [vmem:[%s190 + $0x3c8] sm:$0xff]
        %v318 = vld [vmem:[%s190 + $0x3d0] sm:$0xff]
        %v319 = vld [vmem:[%s190 + $0x3d8] sm:$0xff]
        %v320 = vld [vmem:[%s190 + $0x3e0] sm:$0xff]
        %v321 = vld [vmem:[%s190 + $0x3e8] sm:$0xff]
        %v322 = vld [vmem:[%s190 + $0x3f0] sm:$0xff]
        %v323 = vld [vmem:[%s190 + $0x3f8] sm:$0xff]
        %vm324 = vcmask 523264
        %v325 = vsel %vm324, %v196, -inf
        %326 = vmax.xlane.f32.xlu0 %v325
        %v327 = vpop.xlane.xlu0 %326
        %v328 = vsel %vm324, %v197, -inf
        %329 = vmax.xlane.f32.xlu0 %v328
        %v330 = vpop.xlane.xlu0 %329
        %v331 = vsel %vm324, %v198, -inf
        %332 = vmax.xlane.f32.xlu0 %v331
        %v333 = vpop.xlane.xlu0 %332
        %v334 = vsel %vm324, %v199, -inf
        %335 = vmax.xlane.f32.xlu0 %v334
        %v336 = vpop.xlane.xlu0 %335
        %v337 = vsel %vm324, %v200, -inf
        %338 = vmax.xlane.f32.xlu0 %v337
        %v339 = vpop.xlane.xlu0 %338
        %v340 = vsel %vm324, %v201, -inf
        %341 = vmax.xlane.f32.xlu0 %v340
        %v342 = vpop.xlane.xlu0 %341
        %v343 = vsel %vm324, %v202, -inf
        %344 = vmax.xlane.f32.xlu0 %v343
        %v345 = vpop.xlane.xlu0 %344
        %v346 = vsel %vm324, %v203, -inf
        %347 = vmax.xlane.f32.xlu0 %v346
        %v348 = vpop.xlane.xlu0 %347
        %v349 = vsel %vm324, %v204, -inf
        %350 = vmax.xlane.f32.xlu0 %v349
        %v351 = vpop.xlane.xlu0 %350
        %v352 = vsel %vm324, %v205, -inf
        %353 = vmax.xlane.f32.xlu0 %v352
        %v354 = vpop.xlane.xlu0 %353
        %v355 = vsel %vm324, %v206, -inf
        %356 = vmax.xlane.f32.xlu0 %v355
        %v357 = vpop.xlane.xlu0 %356
        %v358 = vsel %vm324, %v207, -inf
        %359 = vmax.xlane.f32.xlu0 %v358
        %v360 = vpop.xlane.xlu0 %359
        %v361 = vsel %vm324, %v208, -inf
        %362 = vmax.xlane.f32.xlu0 %v361
        %v363 = vpop.xlane.xlu0 %362
        %v364 = vsel %vm324, %v209, -inf
        %365 = vmax.xlane.f32.xlu0 %v364
        %v366 = vpop.xlane.xlu0 %365
        %v367 = vsel %vm324, %v210, -inf
        %368 = vmax.xlane.f32.xlu0 %v367
        %v369 = vpop.xlane.xlu0 %368
        %v370 = vsel %vm324, %v211, -inf
        %371 = vmax.xlane.f32.xlu0 %v370
        %v372 = vpop.xlane.xlu0 %371
        %v373 = vsel %vm324, %v212, -inf
        %374 = vmax.xlane.f32.xlu0 %v373
        %v375 = vpop.xlane.xlu0 %374
        %v376 = vsel %vm324, %v213, -inf
        %377 = vmax.xlane.f32.xlu0 %v376
        %v378 = vpop.xlane.xlu0 %377
        %v379 = vsel %vm324, %v214, -inf
        %380 = vmax.xlane.f32.xlu0 %v379
        %v381 = vpop.xlane.xlu0 %380
        %v382 = vsel %vm324, %v215, -inf
        %383 = vmax.xlane.f32.xlu0 %v382
        %v384 = vpop.xlane.xlu0 %383
        %v385 = vsel %vm324, %v216, -inf
        %386 = vmax.xlane.f32.xlu0 %v385
        %v387 = vpop.xlane.xlu0 %386
        %v388 = vsel %vm324, %v217, -inf
        %389 = vmax.xlane.f32.xlu0 %v388
        %v390 = vpop.xlane.xlu0 %389
        %v391 = vsel %vm324, %v218, -inf
        %392 = vmax.xlane.f32.xlu0 %v391
        %v393 = vpop.xlane.xlu0 %392
        %v394 = vsel %vm324, %v219, -inf
        %395 = vmax.xlane.f32.xlu0 %v394
        %v396 = vpop.xlane.xlu0 %395
        %v397 = vsel %vm324, %v220, -inf
        %398 = vmax.xlane.f32.xlu0 %v397
        %v399 = vpop.xlane.xlu0 %398
        %v400 = vsel %vm324, %v221, -inf
        %401 = vmax.xlane.f32.xlu0 %v400
        %v402 = vpop.xlane.xlu0 %401
        %v403 = vsel %vm324, %v222, -inf
        %404 = vmax.xlane.f32.xlu0 %v403
        %v405 = vpop.xlane.xlu0 %404
        %v406 = vsel %vm324, %v223, -inf
        %407 = vmax.xlane.f32.xlu0 %v406
        %v408 = vpop.xlane.xlu0 %407
        %v409 = vsel %vm324, %v224, -inf
        %410 = vmax.xlane.f32.xlu0 %v409
        %v411 = vpop.xlane.xlu0 %410
        %v412 = vsel %vm324, %v225, -inf
        %413 = vmax.xlane.f32.xlu0 %v412
        %v414 = vpop.xlane.xlu0 %413
        %v415 = vsel %vm324, %v226, -inf
        %416 = vmax.xlane.f32.xlu0 %v415
        %v417 = vpop.xlane.xlu0 %416
        %v418 = vsel %vm324, %v227, -inf
        %419 = vmax.xlane.f32.xlu0 %v418
        %v420 = vpop.xlane.xlu0 %419
        %v421 = vsel %vm324, %v228, -inf
        %422 = vmax.xlane.f32.xlu0 %v421
        %v423 = vpop.xlane.xlu0 %422
        %v424 = vsel %vm324, %v229, -inf
        %425 = vmax.xlane.f32.xlu0 %v424
        %v426 = vpop.xlane.xlu0 %425
        %v427 = vsel %vm324, %v230, -inf
        %428 = vmax.xlane.f32.xlu0 %v427
        %v429 = vpop.xlane.xlu0 %428
        %v430 = vsel %vm324, %v231, -inf
        %431 = vmax.xlane.f32.xlu0 %v430
        %v432 = vpop.xlane.xlu0 %431
        %v433 = vsel %vm324, %v232, -inf
        %434 = vmax.xlane.f32.xlu0 %v433
        %v435 = vpop.xlane.xlu0 %434
        %v436 = vsel %vm324, %v233, -inf
        %437 = vmax.xlane.f32.xlu0 %v436
        %v438 = vpop.xlane.xlu0 %437
        %v439 = vsel %vm324, %v234, -inf
        %440 = vmax.xlane.f32.xlu0 %v439
        %v441 = vpop.xlane.xlu0 %440
        %v442 = vsel %vm324, %v235, -inf
        %443 = vmax.xlane.f32.xlu0 %v442
        %v444 = vpop.xlane.xlu0 %443
        %v445 = vsel %vm324, %v236, -inf
        %446 = vmax.xlane.f32.xlu0 %v445
        %v447 = vpop.xlane.xlu0 %446
        %v448 = vsel %vm324, %v237, -inf
        %449 = vmax.xlane.f32.xlu0 %v448
        %v450 = vpop.xlane.xlu0 %449
        %v451 = vsel %vm324, %v238, -inf
        %452 = vmax.xlane.f32.xlu0 %v451
        %v453 = vpop.xlane.xlu0 %452
        %v454 = vsel %vm324, %v239, -inf
        %455 = vmax.xlane.f32.xlu0 %v454
        %v456 = vpop.xlane.xlu0 %455
        %v457 = vsel %vm324, %v240, -inf
        %458 = vmax.xlane.f32.xlu0 %v457
        %v459 = vpop.xlane.xlu0 %458
        %v460 = vsel %vm324, %v241, -inf
        %461 = vmax.xlane.f32.xlu0 %v460
        %v462 = vpop.xlane.xlu0 %461
        %v463 = vsel %vm324, %v242, -inf
        %464 = vmax.xlane.f32.xlu0 %v463
        %v465 = vpop.xlane.xlu0 %464
        %v466 = vsel %vm324, %v243, -inf
        %467 = vmax.xlane.f32.xlu0 %v466
        %v468 = vpop.xlane.xlu0 %467
        %v469 = vsel %vm324, %v244, -inf
        %470 = vmax.xlane.f32.xlu0 %v469
        %v471 = vpop.xlane.xlu0 %470
        %v472 = vsel %vm324, %v245, -inf
        %473 = vmax.xlane.f32.xlu0 %v472
        %v474 = vpop.xlane.xlu0 %473
        %v475 = vsel %vm324, %v246, -inf
        %476 = vmax.xlane.f32.xlu0 %v475
        %v477 = vpop.xlane.xlu0 %476
        %v478 = vsel %vm324, %v247, -inf
        %479 = vmax.xlane.f32.xlu0 %v478
        %v480 = vpop.xlane.xlu0 %479
        %v481 = vsel %vm324, %v248, -inf
        %482 = vmax.xlane.f32.xlu0 %v481
        %v483 = vpop.xlane.xlu0 %482
        %v484 = vsel %vm324, %v249, -inf
        %485 = vmax.xlane.f32.xlu0 %v484
        %v486 = vpop.xlane.xlu0 %485
        %v487 = vsel %vm324, %v250, -inf
        %488 = vmax.xlane.f32.xlu0 %v487
        %v489 = vpop.xlane.xlu0 %488
        %v490 = vsel %vm324, %v251, -inf
        %491 = vmax.xlane.f32.xlu0 %v490
        %v492 = vpop.xlane.xlu0 %491
        %v493 = vsel %vm324, %v252, -inf
        %494 = vmax.xlane.f32.xlu0 %v493
        %v495 = vpop.xlane.xlu0 %494
        %v496 = vsel %vm324, %v253, -inf
        %497 = vmax.xlane.f32.xlu0 %v496
        %v498 = vpop.xlane.xlu0 %497
        %v499 = vsel %vm324, %v254, -inf
        %500 = vmax.xlane.f32.xlu0 %v499
        %v501 = vpop.xlane.xlu0 %500
        %v502 = vsel %vm324, %v255, -inf
        %503 = vmax.xlane.f32.xlu0 %v502
        %v504 = vpop.xlane.xlu0 %503
        %v505 = vsel %vm324, %v256, -inf
        %506 = vmax.xlane.f32.xlu0 %v505
        %v507 = vpop.xlane.xlu0 %506
        %v508 = vsel %vm324, %v257, -inf
        %509 = vmax.xlane.f32.xlu0 %v508
        %v510 = vpop.xlane.xlu0 %509
        %v511 = vsel %vm324, %v258, -inf
        %512 = vmax.xlane.f32.xlu0 %v511
        %v513 = vpop.xlane.xlu0 %512
        %v514 = vsel %vm324, %v259, -inf
        %515 = vmax.xlane.f32.xlu0 %v514
        %v516 = vpop.xlane.xlu0 %515
        %v517 = vsel %vm324, %v260, -inf
        %518 = vmax.xlane.f32.xlu0 %v517
        %v519 = vpop.xlane.xlu0 %518
        %v520 = vsel %vm324, %v261, -inf
        %521 = vmax.xlane.f32.xlu0 %v520
        %v522 = vpop.xlane.xlu0 %521
        %v523 = vsel %vm324, %v262, -inf
        %524 = vmax.xlane.f32.xlu0 %v523
        %v525 = vpop.xlane.xlu0 %524
        %v526 = vsel %vm324, %v263, -inf
        %527 = vmax.xlane.f32.xlu0 %v526
        %v528 = vpop.xlane.xlu0 %527
        %v529 = vsel %vm324, %v264, -inf
        %530 = vmax.xlane.f32.xlu0 %v529
        %v531 = vpop.xlane.xlu0 %530
        %v532 = vsel %vm324, %v265, -inf
        %533 = vmax.xlane.f32.xlu0 %v532
        %v534 = vpop.xlane.xlu0 %533
        %v535 = vsel %vm324, %v266, -inf
        %536 = vmax.xlane.f32.xlu0 %v535
        %v537 = vpop.xlane.xlu0 %536
        %v538 = vsel %vm324, %v267, -inf
        %539 = vmax.xlane.f32.xlu0 %v538
        %v540 = vpop.xlane.xlu0 %539
        %v541 = vsel %vm324, %v268, -inf
        %542 = vmax.xlane.f32.xlu0 %v541
        %v543 = vpop.xlane.xlu0 %542
        %v544 = vsel %vm324, %v269, -inf
        %545 = vmax.xlane.f32.xlu0 %v544
        %v546 = vpop.xlane.xlu0 %545
        %v547 = vsel %vm324, %v270, -inf
        %548 = vmax.xlane.f32.xlu0 %v547
        %v549 = vpop.xlane.xlu0 %548
        %v550 = vsel %vm324, %v271, -inf
        %551 = vmax.xlane.f32.xlu0 %v550
        %v552 = vpop.xlane.xlu0 %551
        %v553 = vsel %vm324, %v272, -inf
        %554 = vmax.xlane.f32.xlu0 %v553
        %v555 = vpop.xlane.xlu0 %554
        %v556 = vsel %vm324, %v273, -inf
        %557 = vmax.xlane.f32.xlu0 %v556
        %v558 = vpop.xlane.xlu0 %557
        %v559 = vsel %vm324, %v274, -inf
        %560 = vmax.xlane.f32.xlu0 %v559
        %v561 = vpop.xlane.xlu0 %560
        %v562 = vsel %vm324, %v275, -inf
        %563 = vmax.xlane.f32.xlu0 %v562
        %v564 = vpop.xlane.xlu0 %563
        %v565 = vsel %vm324, %v276, -inf
        %566 = vmax.xlane.f32.xlu0 %v565
        %v567 = vpop.xlane.xlu0 %566
        %v568 = vsel %vm324, %v277, -inf
        %569 = vmax.xlane.f32.xlu0 %v568
        %v570 = vpop.xlane.xlu0 %569
        %v571 = vsel %vm324, %v278, -inf
        %572 = vmax.xlane.f32.xlu0 %v571
        %v573 = vpop.xlane.xlu0 %572
        %v574 = vsel %vm324, %v279, -inf
        %575 = vmax.xlane.f32.xlu0 %v574
        %v576 = vpop.xlane.xlu0 %575
        %v577 = vsel %vm324, %v280, -inf
        %578 = vmax.xlane.f32.xlu0 %v577
        %v579 = vpop.xlane.xlu0 %578
        %v580 = vsel %vm324, %v281, -inf
        %581 = vmax.xlane.f32.xlu0 %v580
        %v582 = vpop.xlane.xlu0 %581
        %v583 = vsel %vm324, %v282, -inf
        %584 = vmax.xlane.f32.xlu0 %v583
        %v585 = vpop.xlane.xlu0 %584
        %v586 = vsel %vm324, %v283, -inf
        %587 = vmax.xlane.f32.xlu0 %v586
        %v588 = vpop.xlane.xlu0 %587
        %v589 = vsel %vm324, %v284, -inf
        %590 = vmax.xlane.f32.xlu0 %v589
        %v591 = vpop.xlane.xlu0 %590
        %v592 = vsel %vm324, %v285, -inf
        %593 = vmax.xlane.f32.xlu0 %v592
        %v594 = vpop.xlane.xlu0 %593
        %v595 = vsel %vm324, %v286, -inf
        %596 = vmax.xlane.f32.xlu0 %v595
        %v597 = vpop.xlane.xlu0 %596
        %v598 = vsel %vm324, %v287, -inf
        %599 = vmax.xlane.f32.xlu0 %v598
        %v600 = vpop.xlane.xlu0 %599
        %v601 = vsel %vm324, %v288, -inf
        %602 = vmax.xlane.f32.xlu0 %v601
        %v603 = vpop.xlane.xlu0 %602
        %v604 = vsel %vm324, %v289, -inf
        %605 = vmax.xlane.f32.xlu0 %v604
        %v606 = vpop.xlane.xlu0 %605
        %v607 = vsel %vm324, %v290, -inf
        %608 = vmax.xlane.f32.xlu0 %v607
        %v609 = vpop.xlane.xlu0 %608
        %v610 = vsel %vm324, %v291, -inf
        %611 = vmax.xlane.f32.xlu0 %v610
        %v612 = vpop.xlane.xlu0 %611
        %v613 = vsel %vm324, %v292, -inf
        %614 = vmax.xlane.f32.xlu0 %v613
        %v615 = vpop.xlane.xlu0 %614
        %v616 = vsel %vm324, %v293, -inf
        %617 = vmax.xlane.f32.xlu0 %v616
        %v618 = vpop.xlane.xlu0 %617
        %v619 = vsel %vm324, %v294, -inf
        %620 = vmax.xlane.f32.xlu0 %v619
        %v621 = vpop.xlane.xlu0 %620
        %v622 = vsel %vm324, %v295, -inf
        %623 = vmax.xlane.f32.xlu0 %v622
        %v624 = vpop.xlane.xlu0 %623
        %v625 = vsel %vm324, %v296, -inf
        %626 = vmax.xlane.f32.xlu0 %v625
        %v627 = vpop.xlane.xlu0 %626
        %v628 = vsel %vm324, %v297, -inf
        %629 = vmax.xlane.f32.xlu0 %v628
        %v630 = vpop.xlane.xlu0 %629
        %v631 = vsel %vm324, %v298, -inf
        %632 = vmax.xlane.f32.xlu0 %v631
        %v633 = vpop.xlane.xlu0 %632
        %v634 = vsel %vm324, %v299, -inf
        %635 = vmax.xlane.f32.xlu0 %v634
        %v636 = vpop.xlane.xlu0 %635
        %v637 = vsel %vm324, %v300, -inf
        %638 = vmax.xlane.f32.xlu0 %v637
        %v639 = vpop.xlane.xlu0 %638
        %v640 = vsel %vm324, %v301, -inf
        %641 = vmax.xlane.f32.xlu0 %v640
        %v642 = vpop.xlane.xlu0 %641
        %v643 = vsel %vm324, %v302, -inf
        %644 = vmax.xlane.f32.xlu0 %v643
        %v645 = vpop.xlane.xlu0 %644
        %v646 = vsel %vm324, %v303, -inf
        %647 = vmax.xlane.f32.xlu0 %v646
        %v648 = vpop.xlane.xlu0 %647
        %v649 = vsel %vm324, %v304, -inf
        %650 = vmax.xlane.f32.xlu0 %v649
        %v651 = vpop.xlane.xlu0 %650
        %v652 = vsel %vm324, %v305, -inf
        %653 = vmax.xlane.f32.xlu0 %v652
        %v654 = vpop.xlane.xlu0 %653
        %v655 = vsel %vm324, %v306, -inf
        %656 = vmax.xlane.f32.xlu0 %v655
        %v657 = vpop.xlane.xlu0 %656
        %v658 = vsel %vm324, %v307, -inf
        %659 = vmax.xlane.f32.xlu0 %v658
        %v660 = vpop.xlane.xlu0 %659
        %v661 = vsel %vm324, %v308, -inf
        %662 = vmax.xlane.f32.xlu0 %v661
        %v663 = vpop.xlane.xlu0 %662
        %v664 = vsel %vm324, %v309, -inf
        %665 = vmax.xlane.f32.xlu0 %v664
        %v666 = vpop.xlane.xlu0 %665
        %v667 = vsel %vm324, %v310, -inf
        %668 = vmax.xlane.f32.xlu0 %v667
        %v669 = vpop.xlane.xlu0 %668
        %v670 = vsel %vm324, %v311, -inf
        %671 = vmax.xlane.f32.xlu0 %v670
        %v672 = vpop.xlane.xlu0 %671
        %v673 = vsel %vm324, %v312, -inf
        %674 = vmax.xlane.f32.xlu0 %v673
        %v675 = vpop.xlane.xlu0 %674
        %v676 = vsel %vm324, %v313, -inf
        %677 = vmax.xlane.f32.xlu0 %v676
        %v678 = vpop.xlane.xlu0 %677
        %v679 = vsel %vm324, %v314, -inf
        %680 = vmax.xlane.f32.xlu0 %v679
        %v681 = vpop.xlane.xlu0 %680
        %v682 = vsel %vm324, %v315, -inf
        %683 = vmax.xlane.f32.xlu0 %v682
        %v684 = vpop.xlane.xlu0 %683
        %v685 = vsel %vm324, %v316, -inf
        %686 = vmax.xlane.f32.xlu0 %v685
        %v687 = vpop.xlane.xlu0 %686
        %v688 = vsel %vm324, %v317, -inf
        %689 = vmax.xlane.f32.xlu0 %v688
        %v690 = vpop.xlane.xlu0 %689
        %v691 = vsel %vm324, %v318, -inf
        %692 = vmax.xlane.f32.xlu0 %v691
        %v693 = vpop.xlane.xlu0 %692
        %v694 = vsel %vm324, %v319, -inf
        %695 = vmax.xlane.f32.xlu0 %v694
        %v696 = vpop.xlane.xlu0 %695
        %v697 = vsel %vm324, %v320, -inf
        %698 = vmax.xlane.f32.xlu0 %v697
        %v699 = vpop.xlane.xlu0 %698
        %v700 = vsel %vm324, %v321, -inf
        %701 = vmax.xlane.f32.xlu0 %v700
        %v702 = vpop.xlane.xlu0 %701
        %v703 = vsel %vm324, %v322, -inf
        %704 = vmax.xlane.f32.xlu0 %v703
        %v705 = vpop.xlane.xlu0 %704
        %v706 = vsel %vm324, %v323, -inf
        %707 = vmax.xlane.f32.xlu0 %v706
        %v708 = vpop.xlane.xlu0 %707
        %v709 = vld [vmem:[#allocation2] sm:$0xff]
        %v838 = vlaneseq
        %v839 = vshrl.u32 %v838, 7
        %v840 = vsub.s32 0, %v839
        %v841 = vrot.slane %v327, %v840
        %v842 = vlaneseq
        %v843 = vshrl.u32 %v842, 7
        %v844 = vsub.s32 1, %v843
        %v845 = vrot.slane %v327, %v844
        %v846 = vlaneseq
        %v847 = vshrl.u32 %v846, 7
        %v848 = vsub.s32 2, %v847
        %v849 = vrot.slane %v327, %v848
        %v850 = vlaneseq
        %v851 = vshrl.u32 %v850, 7
        %v852 = vsub.s32 3, %v851
        %v853 = vrot.slane %v327, %v852
        %v854 = vlaneseq
        %v855 = vshrl.u32 %v854, 7
        %v856 = vsub.s32 4, %v855
        %v857 = vrot.slane %v327, %v856
        %v858 = vlaneseq
        %v859 = vshrl.u32 %v858, 7
        %v860 = vsub.s32 5, %v859
        %v861 = vrot.slane %v327, %v860
        %v862 = vlaneseq
        %v863 = vshrl.u32 %v862, 7
        %v864 = vsub.s32 6, %v863
        %v865 = vrot.slane %v327, %v864
        %v866 = vlaneseq
        %v867 = vshrl.u32 %v866, 7
        %v868 = vsub.s32 7, %v867
        %v869 = vrot.slane %v327, %v868
        %v870 = vlaneseq
        %v871 = vshrl.u32 %v870, 7
        %v872 = vsub.s32 0, %v871
        %v873 = vrot.slane %v330, %v872
        %v874 = vlaneseq
        %v875 = vshrl.u32 %v874, 7
        %v876 = vsub.s32 1, %v875
        %v877 = vrot.slane %v330, %v876
        %v878 = vlaneseq
        %v879 = vshrl.u32 %v878, 7
        %v880 = vsub.s32 2, %v879
        %v881 = vrot.slane %v330, %v880
        %v882 = vlaneseq
        %v883 = vshrl.u32 %v882, 7
        %v884 = vsub.s32 3, %v883
        %v885 = vrot.slane %v330, %v884
        %v886 = vlaneseq
        %v887 = vshrl.u32 %v886, 7
        %v888 = vsub.s32 4, %v887
        %v889 = vrot.slane %v330, %v888
        %v890 = vlaneseq
        %v891 = vshrl.u32 %v890, 7
        %v892 = vsub.s32 5, %v891
        %v893 = vrot.slane %v330, %v892
        %v894 = vlaneseq
        %v895 = vshrl.u32 %v894, 7
        %v896 = vsub.s32 6, %v895
        %v897 = vrot.slane %v330, %v896
        %v898 = vlaneseq
        %v899 = vshrl.u32 %v898, 7
        %v900 = vsub.s32 7, %v899
        %v901 = vrot.slane %v330, %v900
        %v902 = vlaneseq
        %v903 = vshrl.u32 %v902, 7
        %v904 = vsub.s32 0, %v903
        %v905 = vrot.slane %v333, %v904
        %v906 = vlaneseq
        %v907 = vshrl.u32 %v906, 7
        %v908 = vsub.s32 1, %v907
        %v909 = vrot.slane %v333, %v908
        %v910 = vlaneseq
        %v911 = vshrl.u32 %v910, 7
        %v912 = vsub.s32 2, %v911
        %v913 = vrot.slane %v333, %v912
        %v914 = vlaneseq
        %v915 = vshrl.u32 %v914, 7
        %v916 = vsub.s32 3, %v915
        %v917 = vrot.slane %v333, %v916
        %v918 = vlaneseq
        %v919 = vshrl.u32 %v918, 7
        %v920 = vsub.s32 4, %v919
        %v921 = vrot.slane %v333, %v920
        %v922 = vlaneseq
        %v923 = vshrl.u32 %v922, 7
        %v924 = vsub.s32 5, %v923
        %v925 = vrot.slane %v333, %v924
        %v926 = vlaneseq
        %v927 = vshrl.u32 %v926, 7
        %v928 = vsub.s32 6, %v927
        %v929 = vrot.slane %v333, %v928
        %v930 = vlaneseq
        %v931 = vshrl.u32 %v930, 7
        %v932 = vsub.s32 7, %v931
        %v933 = vrot.slane %v333, %v932
        %v934 = vlaneseq
        %v935 = vshrl.u32 %v934, 7
        %v936 = vsub.s32 0, %v935
        %v937 = vrot.slane %v336, %v936
        %v938 = vlaneseq
        %v939 = vshrl.u32 %v938, 7
        %v940 = vsub.s32 1, %v939
        %v941 = vrot.slane %v336, %v940
        %v942 = vlaneseq
        %v943 = vshrl.u32 %v942, 7
        %v944 = vsub.s32 2, %v943
        %v945 = vrot.slane %v336, %v944
        %v946 = vlaneseq
        %v947 = vshrl.u32 %v946, 7
        %v948 = vsub.s32 3, %v947
        %v949 = vrot.slane %v336, %v948
        %v950 = vlaneseq
        %v951 = vshrl.u32 %v950, 7
        %v952 = vsub.s32 4, %v951
        %v953 = vrot.slane %v336, %v952
        %v954 = vlaneseq
        %v955 = vshrl.u32 %v954, 7
        %v956 = vsub.s32 5, %v955
        %v957 = vrot.slane %v336, %v956
        %v958 = vlaneseq
        %v959 = vshrl.u32 %v958, 7
        %v960 = vsub.s32 6, %v959
        %v961 = vrot.slane %v336, %v960
        %v962 = vlaneseq
        %v963 = vshrl.u32 %v962, 7
        %v964 = vsub.s32 7, %v963
        %v965 = vrot.slane %v336, %v964
        %v966 = vlaneseq
        %v967 = vshrl.u32 %v966, 7
        %v968 = vsub.s32 0, %v967
        %v969 = vrot.slane %v339, %v968
        %v970 = vlaneseq
        %v971 = vshrl.u32 %v970, 7
        %v972 = vsub.s32 1, %v971
        %v973 = vrot.slane %v339, %v972
        %v974 = vlaneseq
        %v975 = vshrl.u32 %v974, 7
        %v976 = vsub.s32 2, %v975
        %v977 = vrot.slane %v339, %v976
        %v978 = vlaneseq
        %v979 = vshrl.u32 %v978, 7
        %v980 = vsub.s32 3, %v979
        %v981 = vrot.slane %v339, %v980
        %v982 = vlaneseq
        %v983 = vshrl.u32 %v982, 7
        %v984 = vsub.s32 4, %v983
        %v985 = vrot.slane %v339, %v984
        %v986 = vlaneseq
        %v987 = vshrl.u32 %v986, 7
        %v988 = vsub.s32 5, %v987
        %v989 = vrot.slane %v339, %v988
        %v990 = vlaneseq
        %v991 = vshrl.u32 %v990, 7
        %v992 = vsub.s32 6, %v991
        %v993 = vrot.slane %v339, %v992
        %v994 = vlaneseq
        %v995 = vshrl.u32 %v994, 7
        %v996 = vsub.s32 7, %v995
        %v997 = vrot.slane %v339, %v996
        %v998 = vlaneseq
        %v999 = vshrl.u32 %v998, 7
        %v1000 = vsub.s32 0, %v999
        %v1001 = vrot.slane %v342, %v1000
        %v1002 = vlaneseq
        %v1003 = vshrl.u32 %v1002, 7
        %v1004 = vsub.s32 1, %v1003
        %v1005 = vrot.slane %v342, %v1004
        %v1006 = vlaneseq
        %v1007 = vshrl.u32 %v1006, 7
        %v1008 = vsub.s32 2, %v1007
        %v1009 = vrot.slane %v342, %v1008
        %v1010 = vlaneseq
        %v1011 = vshrl.u32 %v1010, 7
        %v1012 = vsub.s32 3, %v1011
        %v1013 = vrot.slane %v342, %v1012
        %v1014 = vlaneseq
        %v1015 = vshrl.u32 %v1014, 7
        %v1016 = vsub.s32 4, %v1015
        %v1017 = vrot.slane %v342, %v1016
        %v1018 = vlaneseq
        %v1019 = vshrl.u32 %v1018, 7
        %v1020 = vsub.s32 5, %v1019
        %v1021 = vrot.slane %v342, %v1020
        %v1022 = vlaneseq
        %v1023 = vshrl.u32 %v1022, 7
        %v1024 = vsub.s32 6, %v1023
        %v1025 = vrot.slane %v342, %v1024
        %v1026 = vlaneseq
        %v1027 = vshrl.u32 %v1026, 7
        %v1028 = vsub.s32 7, %v1027
        %v1029 = vrot.slane %v342, %v1028
        %v1030 = vlaneseq
        %v1031 = vshrl.u32 %v1030, 7
        %v1032 = vsub.s32 0, %v1031
        %v1033 = vrot.slane %v345, %v1032
        %v1034 = vlaneseq
        %v1035 = vshrl.u32 %v1034, 7
        %v1036 = vsub.s32 1, %v1035
        %v1037 = vrot.slane %v345, %v1036
        %v1038 = vlaneseq
        %v1039 = vshrl.u32 %v1038, 7
        %v1040 = vsub.s32 2, %v1039
        %v1041 = vrot.slane %v345, %v1040
        %v1042 = vlaneseq
        %v1043 = vshrl.u32 %v1042, 7
        %v1044 = vsub.s32 3, %v1043
        %v1045 = vrot.slane %v345, %v1044
        %v1046 = vlaneseq
        %v1047 = vshrl.u32 %v1046, 7
        %v1048 = vsub.s32 4, %v1047
        %v1049 = vrot.slane %v345, %v1048
        %v1050 = vlaneseq
        %v1051 = vshrl.u32 %v1050, 7
        %v1052 = vsub.s32 5, %v1051
        %v1053 = vrot.slane %v345, %v1052
        %v1054 = vlaneseq
        %v1055 = vshrl.u32 %v1054, 7
        %v1056 = vsub.s32 6, %v1055
        %v1057 = vrot.slane %v345, %v1056
        %v1058 = vlaneseq
        %v1059 = vshrl.u32 %v1058, 7
        %v1060 = vsub.s32 7, %v1059
        %v1061 = vrot.slane %v345, %v1060
        %v1062 = vlaneseq
        %v1063 = vshrl.u32 %v1062, 7
        %v1064 = vsub.s32 0, %v1063
        %v1065 = vrot.slane %v348, %v1064
        %v1066 = vlaneseq
        %v1067 = vshrl.u32 %v1066, 7
        %v1068 = vsub.s32 1, %v1067
        %v1069 = vrot.slane %v348, %v1068
        %v1070 = vlaneseq
        %v1071 = vshrl.u32 %v1070, 7
        %v1072 = vsub.s32 2, %v1071
        %v1073 = vrot.slane %v348, %v1072
        %v1074 = vlaneseq
        %v1075 = vshrl.u32 %v1074, 7
        %v1076 = vsub.s32 3, %v1075
        %v1077 = vrot.slane %v348, %v1076
        %v1078 = vlaneseq
        %v1079 = vshrl.u32 %v1078, 7
        %v1080 = vsub.s32 4, %v1079
        %v1081 = vrot.slane %v348, %v1080
        %v1082 = vlaneseq
        %v1083 = vshrl.u32 %v1082, 7
        %v1084 = vsub.s32 5, %v1083
        %v1085 = vrot.slane %v348, %v1084
        %v1086 = vlaneseq
        %v1087 = vshrl.u32 %v1086, 7
        %v1088 = vsub.s32 6, %v1087
        %v1089 = vrot.slane %v348, %v1088
        %v1090 = vlaneseq
        %v1091 = vshrl.u32 %v1090, 7
        %v1092 = vsub.s32 7, %v1091
        %v1093 = vrot.slane %v348, %v1092
        %v1094 = vlaneseq
        %v1095 = vshrl.u32 %v1094, 7
        %v1096 = vsub.s32 0, %v1095
        %v1097 = vrot.slane %v351, %v1096
        %v1098 = vlaneseq
        %v1099 = vshrl.u32 %v1098, 7
        %v1100 = vsub.s32 1, %v1099
        %v1101 = vrot.slane %v351, %v1100
        %v1102 = vlaneseq
        %v1103 = vshrl.u32 %v1102, 7
        %v1104 = vsub.s32 2, %v1103
        %v1105 = vrot.slane %v351, %v1104
        %v1106 = vlaneseq
        %v1107 = vshrl.u32 %v1106, 7
        %v1108 = vsub.s32 3, %v1107
        %v1109 = vrot.slane %v351, %v1108
        %v1110 = vlaneseq
        %v1111 = vshrl.u32 %v1110, 7
        %v1112 = vsub.s32 4, %v1111
        %v1113 = vrot.slane %v351, %v1112
        %v1114 = vlaneseq
        %v1115 = vshrl.u32 %v1114, 7
        %v1116 = vsub.s32 5, %v1115
        %v1117 = vrot.slane %v351, %v1116
        %v1118 = vlaneseq
        %v1119 = vshrl.u32 %v1118, 7
        %v1120 = vsub.s32 6, %v1119
        %v1121 = vrot.slane %v351, %v1120
        %v1122 = vlaneseq
        %v1123 = vshrl.u32 %v1122, 7
        %v1124 = vsub.s32 7, %v1123
        %v1125 = vrot.slane %v351, %v1124
        %v1126 = vlaneseq
        %v1127 = vshrl.u32 %v1126, 7
        %v1128 = vsub.s32 0, %v1127
        %v1129 = vrot.slane %v354, %v1128
        %v1130 = vlaneseq
        %v1131 = vshrl.u32 %v1130, 7
        %v1132 = vsub.s32 1, %v1131
        %v1133 = vrot.slane %v354, %v1132
        %v1134 = vlaneseq
        %v1135 = vshrl.u32 %v1134, 7
        %v1136 = vsub.s32 2, %v1135
        %v1137 = vrot.slane %v354, %v1136
        %v1138 = vlaneseq
        %v1139 = vshrl.u32 %v1138, 7
        %v1140 = vsub.s32 3, %v1139
        %v1141 = vrot.slane %v354, %v1140
        %v1142 = vlaneseq
        %v1143 = vshrl.u32 %v1142, 7
        %v1144 = vsub.s32 4, %v1143
        %v1145 = vrot.slane %v354, %v1144
        %v1146 = vlaneseq
        %v1147 = vshrl.u32 %v1146, 7
        %v1148 = vsub.s32 5, %v1147
        %v1149 = vrot.slane %v354, %v1148
        %v1150 = vlaneseq
        %v1151 = vshrl.u32 %v1150, 7
        %v1152 = vsub.s32 6, %v1151
        %v1153 = vrot.slane %v354, %v1152
        %v1154 = vlaneseq
        %v1155 = vshrl.u32 %v1154, 7
        %v1156 = vsub.s32 7, %v1155
        %v1157 = vrot.slane %v354, %v1156
        %v1158 = vlaneseq
        %v1159 = vshrl.u32 %v1158, 7
        %v1160 = vsub.s32 0, %v1159
        %v1161 = vrot.slane %v357, %v1160
        %v1162 = vlaneseq
        %v1163 = vshrl.u32 %v1162, 7
        %v1164 = vsub.s32 1, %v1163
        %v1165 = vrot.slane %v357, %v1164
        %v1166 = vlaneseq
        %v1167 = vshrl.u32 %v1166, 7
        %v1168 = vsub.s32 2, %v1167
        %v1169 = vrot.slane %v357, %v1168
        %v1170 = vlaneseq
        %v1171 = vshrl.u32 %v1170, 7
        %v1172 = vsub.s32 3, %v1171
        %v1173 = vrot.slane %v357, %v1172
        %v1174 = vlaneseq
        %v1175 = vshrl.u32 %v1174, 7
        %v1176 = vsub.s32 4, %v1175
        %v1177 = vrot.slane %v357, %v1176
        %v1178 = vlaneseq
        %v1179 = vshrl.u32 %v1178, 7
        %v1180 = vsub.s32 5, %v1179
        %v1181 = vrot.slane %v357, %v1180
        %v1182 = vlaneseq
        %v1183 = vshrl.u32 %v1182, 7
        %v1184 = vsub.s32 6, %v1183
        %v1185 = vrot.slane %v357, %v1184
        %v1186 = vlaneseq
        %v1187 = vshrl.u32 %v1186, 7
        %v1188 = vsub.s32 7, %v1187
        %v1189 = vrot.slane %v357, %v1188
        %v1190 = vlaneseq
        %v1191 = vshrl.u32 %v1190, 7
        %v1192 = vsub.s32 0, %v1191
        %v1193 = vrot.slane %v360, %v1192
        %v1194 = vlaneseq
        %v1195 = vshrl.u32 %v1194, 7
        %v1196 = vsub.s32 1, %v1195
        %v1197 = vrot.slane %v360, %v1196
        %v1198 = vlaneseq
        %v1199 = vshrl.u32 %v1198, 7
        %v1200 = vsub.s32 2, %v1199
        %v1201 = vrot.slane %v360, %v1200
        %v1202 = vlaneseq
        %v1203 = vshrl.u32 %v1202, 7
        %v1204 = vsub.s32 3, %v1203
        %v1205 = vrot.slane %v360, %v1204
        %v1206 = vlaneseq
        %v1207 = vshrl.u32 %v1206, 7
        %v1208 = vsub.s32 4, %v1207
        %v1209 = vrot.slane %v360, %v1208
        %v1210 = vlaneseq
        %v1211 = vshrl.u32 %v1210, 7
        %v1212 = vsub.s32 5, %v1211
        %v1213 = vrot.slane %v360, %v1212
        %v1214 = vlaneseq
        %v1215 = vshrl.u32 %v1214, 7
        %v1216 = vsub.s32 6, %v1215
        %v1217 = vrot.slane %v360, %v1216
        %v1218 = vlaneseq
        %v1219 = vshrl.u32 %v1218, 7
        %v1220 = vsub.s32 7, %v1219
        %v1221 = vrot.slane %v360, %v1220
        %v1222 = vlaneseq
        %v1223 = vshrl.u32 %v1222, 7
        %v1224 = vsub.s32 0, %v1223
        %v1225 = vrot.slane %v363, %v1224
        %v1226 = vlaneseq
        %v1227 = vshrl.u32 %v1226, 7
        %v1228 = vsub.s32 1, %v1227
        %v1229 = vrot.slane %v363, %v1228
        %v1230 = vlaneseq
        %v1231 = vshrl.u32 %v1230, 7
        %v1232 = vsub.s32 2, %v1231
        %v1233 = vrot.slane %v363, %v1232
        %v1234 = vlaneseq
        %v1235 = vshrl.u32 %v1234, 7
        %v1236 = vsub.s32 3, %v1235
        %v1237 = vrot.slane %v363, %v1236
        %v1238 = vlaneseq
        %v1239 = vshrl.u32 %v1238, 7
        %v1240 = vsub.s32 4, %v1239
        %v1241 = vrot.slane %v363, %v1240
        %v1242 = vlaneseq
        %v1243 = vshrl.u32 %v1242, 7
        %v1244 = vsub.s32 5, %v1243
        %v1245 = vrot.slane %v363, %v1244
        %v1246 = vlaneseq
        %v1247 = vshrl.u32 %v1246, 7
        %v1248 = vsub.s32 6, %v1247
        %v1249 = vrot.slane %v363, %v1248
        %v1250 = vlaneseq
        %v1251 = vshrl.u32 %v1250, 7
        %v1252 = vsub.s32 7, %v1251
        %v1253 = vrot.slane %v363, %v1252
        %v1254 = vlaneseq
        %v1255 = vshrl.u32 %v1254, 7
        %v1256 = vsub.s32 0, %v1255
        %v1257 = vrot.slane %v366, %v1256
        %v1258 = vlaneseq
        %v1259 = vshrl.u32 %v1258, 7
        %v1260 = vsub.s32 1, %v1259
        %v1261 = vrot.slane %v366, %v1260
        %v1262 = vlaneseq
        %v1263 = vshrl.u32 %v1262, 7
        %v1264 = vsub.s32 2, %v1263
        %v1265 = vrot.slane %v366, %v1264
        %v1266 = vlaneseq
        %v1267 = vshrl.u32 %v1266, 7
        %v1268 = vsub.s32 3, %v1267
        %v1269 = vrot.slane %v366, %v1268
        %v1270 = vlaneseq
        %v1271 = vshrl.u32 %v1270, 7
        %v1272 = vsub.s32 4, %v1271
        %v1273 = vrot.slane %v366, %v1272
        %v1274 = vlaneseq
        %v1275 = vshrl.u32 %v1274, 7
        %v1276 = vsub.s32 5, %v1275
        %v1277 = vrot.slane %v366, %v1276
        %v1278 = vlaneseq
        %v1279 = vshrl.u32 %v1278, 7
        %v1280 = vsub.s32 6, %v1279
        %v1281 = vrot.slane %v366, %v1280
        %v1282 = vlaneseq
        %v1283 = vshrl.u32 %v1282, 7
        %v1284 = vsub.s32 7, %v1283
        %v1285 = vrot.slane %v366, %v1284
        %v1286 = vlaneseq
        %v1287 = vshrl.u32 %v1286, 7
        %v1288 = vsub.s32 0, %v1287
        %v1289 = vrot.slane %v369, %v1288
        %v1290 = vlaneseq
        %v1291 = vshrl.u32 %v1290, 7
        %v1292 = vsub.s32 1, %v1291
        %v1293 = vrot.slane %v369, %v1292
        %v1294 = vlaneseq
        %v1295 = vshrl.u32 %v1294, 7
        %v1296 = vsub.s32 2, %v1295
        %v1297 = vrot.slane %v369, %v1296
        %v1298 = vlaneseq
        %v1299 = vshrl.u32 %v1298, 7
        %v1300 = vsub.s32 3, %v1299
        %v1301 = vrot.slane %v369, %v1300
        %v1302 = vlaneseq
        %v1303 = vshrl.u32 %v1302, 7
        %v1304 = vsub.s32 4, %v1303
        %v1305 = vrot.slane %v369, %v1304
        %v1306 = vlaneseq
        %v1307 = vshrl.u32 %v1306, 7
        %v1308 = vsub.s32 5, %v1307
        %v1309 = vrot.slane %v369, %v1308
        %v1310 = vlaneseq
        %v1311 = vshrl.u32 %v1310, 7
        %v1312 = vsub.s32 6, %v1311
        %v1313 = vrot.slane %v369, %v1312
        %v1314 = vlaneseq
        %v1315 = vshrl.u32 %v1314, 7
        %v1316 = vsub.s32 7, %v1315
        %v1317 = vrot.slane %v369, %v1316
        %v1318 = vlaneseq
        %v1319 = vshrl.u32 %v1318, 7
        %v1320 = vsub.s32 0, %v1319
        %v1321 = vrot.slane %v372, %v1320
        %v1322 = vlaneseq
        %v1323 = vshrl.u32 %v1322, 7
        %v1324 = vsub.s32 1, %v1323
        %v1325 = vrot.slane %v372, %v1324
        %v1326 = vlaneseq
        %v1327 = vshrl.u32 %v1326, 7
        %v1328 = vsub.s32 2, %v1327
        %v1329 = vrot.slane %v372, %v1328
        %v1330 = vlaneseq
        %v1331 = vshrl.u32 %v1330, 7
        %v1332 = vsub.s32 3, %v1331
        %v1333 = vrot.slane %v372, %v1332
        %v1334 = vlaneseq
        %v1335 = vshrl.u32 %v1334, 7
        %v1336 = vsub.s32 4, %v1335
        %v1337 = vrot.slane %v372, %v1336
        %v1338 = vlaneseq
        %v1339 = vshrl.u32 %v1338, 7
        %v1340 = vsub.s32 5, %v1339
        %v1341 = vrot.slane %v372, %v1340
        %v1342 = vlaneseq
        %v1343 = vshrl.u32 %v1342, 7
        %v1344 = vsub.s32 6, %v1343
        %v1345 = vrot.slane %v372, %v1344
        %v1346 = vlaneseq
        %v1347 = vshrl.u32 %v1346, 7
        %v1348 = vsub.s32 7, %v1347
        %v1349 = vrot.slane %v372, %v1348
        %v1350 = vlaneseq
        %v1351 = vshrl.u32 %v1350, 7
        %v1352 = vsub.s32 0, %v1351
        %v1353 = vrot.slane %v375, %v1352
        %v1354 = vlaneseq
        %v1355 = vshrl.u32 %v1354, 7
        %v1356 = vsub.s32 1, %v1355
        %v1357 = vrot.slane %v375, %v1356
        %v1358 = vlaneseq
        %v1359 = vshrl.u32 %v1358, 7
        %v1360 = vsub.s32 2, %v1359
        %v1361 = vrot.slane %v375, %v1360
        %v1362 = vlaneseq
        %v1363 = vshrl.u32 %v1362, 7
        %v1364 = vsub.s32 3, %v1363
        %v1365 = vrot.slane %v375, %v1364
        %v1366 = vlaneseq
        %v1367 = vshrl.u32 %v1366, 7
        %v1368 = vsub.s32 4, %v1367
        %v1369 = vrot.slane %v375, %v1368
        %v1370 = vlaneseq
        %v1371 = vshrl.u32 %v1370, 7
        %v1372 = vsub.s32 5, %v1371
        %v1373 = vrot.slane %v375, %v1372
        %v1374 = vlaneseq
        %v1375 = vshrl.u32 %v1374, 7
        %v1376 = vsub.s32 6, %v1375
        %v1377 = vrot.slane %v375, %v1376
        %v1378 = vlaneseq
        %v1379 = vshrl.u32 %v1378, 7
        %v1380 = vsub.s32 7, %v1379
        %v1381 = vrot.slane %v375, %v1380
        %v1382 = vlaneseq
        %v1383 = vshrl.u32 %v1382, 7
        %v1384 = vsub.s32 0, %v1383
        %v1385 = vrot.slane %v378, %v1384
        %v1386 = vlaneseq
        %v1387 = vshrl.u32 %v1386, 7
        %v1388 = vsub.s32 1, %v1387
        %v1389 = vrot.slane %v378, %v1388
        %v1390 = vlaneseq
        %v1391 = vshrl.u32 %v1390, 7
        %v1392 = vsub.s32 2, %v1391
        %v1393 = vrot.slane %v378, %v1392
        %v1394 = vlaneseq
        %v1395 = vshrl.u32 %v1394, 7
        %v1396 = vsub.s32 3, %v1395
        %v1397 = vrot.slane %v378, %v1396
        %v1398 = vlaneseq
        %v1399 = vshrl.u32 %v1398, 7
        %v1400 = vsub.s32 4, %v1399
        %v1401 = vrot.slane %v378, %v1400
        %v1402 = vlaneseq
        %v1403 = vshrl.u32 %v1402, 7
        %v1404 = vsub.s32 5, %v1403
        %v1405 = vrot.slane %v378, %v1404
        %v1406 = vlaneseq
        %v1407 = vshrl.u32 %v1406, 7
        %v1408 = vsub.s32 6, %v1407
        %v1409 = vrot.slane %v378, %v1408
        %v1410 = vlaneseq
        %v1411 = vshrl.u32 %v1410, 7
        %v1412 = vsub.s32 7, %v1411
        %v1413 = vrot.slane %v378, %v1412
        %v1414 = vlaneseq
        %v1415 = vshrl.u32 %v1414, 7
        %v1416 = vsub.s32 0, %v1415
        %v1417 = vrot.slane %v381, %v1416
        %v1418 = vlaneseq
        %v1419 = vshrl.u32 %v1418, 7
        %v1420 = vsub.s32 1, %v1419
        %v1421 = vrot.slane %v381, %v1420
        %v1422 = vlaneseq
        %v1423 = vshrl.u32 %v1422, 7
        %v1424 = vsub.s32 2, %v1423
        %v1425 = vrot.slane %v381, %v1424
        %v1426 = vlaneseq
        %v1427 = vshrl.u32 %v1426, 7
        %v1428 = vsub.s32 3, %v1427
        %v1429 = vrot.slane %v381, %v1428
        %v1430 = vlaneseq
        %v1431 = vshrl.u32 %v1430, 7
        %v1432 = vsub.s32 4, %v1431
        %v1433 = vrot.slane %v381, %v1432
        %v1434 = vlaneseq
        %v1435 = vshrl.u32 %v1434, 7
        %v1436 = vsub.s32 5, %v1435
        %v1437 = vrot.slane %v381, %v1436
        %v1438 = vlaneseq
        %v1439 = vshrl.u32 %v1438, 7
        %v1440 = vsub.s32 6, %v1439
        %v1441 = vrot.slane %v381, %v1440
        %v1442 = vlaneseq
        %v1443 = vshrl.u32 %v1442, 7
        %v1444 = vsub.s32 7, %v1443
        %v1445 = vrot.slane %v381, %v1444
        %v1446 = vlaneseq
        %v1447 = vshrl.u32 %v1446, 7
        %v1448 = vsub.s32 0, %v1447
        %v1449 = vrot.slane %v384, %v1448
        %v1450 = vlaneseq
        %v1451 = vshrl.u32 %v1450, 7
        %v1452 = vsub.s32 1, %v1451
        %v1453 = vrot.slane %v384, %v1452
        %v1454 = vlaneseq
        %v1455 = vshrl.u32 %v1454, 7
        %v1456 = vsub.s32 2, %v1455
        %v1457 = vrot.slane %v384, %v1456
        %v1458 = vlaneseq
        %v1459 = vshrl.u32 %v1458, 7
        %v1460 = vsub.s32 3, %v1459
        %v1461 = vrot.slane %v384, %v1460
        %v1462 = vlaneseq
        %v1463 = vshrl.u32 %v1462, 7
        %v1464 = vsub.s32 4, %v1463
        %v1465 = vrot.slane %v384, %v1464
        %v1466 = vlaneseq
        %v1467 = vshrl.u32 %v1466, 7
        %v1468 = vsub.s32 5, %v1467
        %v1469 = vrot.slane %v384, %v1468
        %v1470 = vlaneseq
        %v1471 = vshrl.u32 %v1470, 7
        %v1472 = vsub.s32 6, %v1471
        %v1473 = vrot.slane %v384, %v1472
        %v1474 = vlaneseq
        %v1475 = vshrl.u32 %v1474, 7
        %v1476 = vsub.s32 7, %v1475
        %v1477 = vrot.slane %v384, %v1476
        %v1478 = vlaneseq
        %v1479 = vshrl.u32 %v1478, 7
        %v1480 = vsub.s32 0, %v1479
        %v1481 = vrot.slane %v387, %v1480
        %v1482 = vlaneseq
        %v1483 = vshrl.u32 %v1482, 7
        %v1484 = vsub.s32 1, %v1483
        %v1485 = vrot.slane %v387, %v1484
        %v1486 = vlaneseq
        %v1487 = vshrl.u32 %v1486, 7
        %v1488 = vsub.s32 2, %v1487
        %v1489 = vrot.slane %v387, %v1488
        %v1490 = vlaneseq
        %v1491 = vshrl.u32 %v1490, 7
        %v1492 = vsub.s32 3, %v1491
        %v1493 = vrot.slane %v387, %v1492
        %v1494 = vlaneseq
        %v1495 = vshrl.u32 %v1494, 7
        %v1496 = vsub.s32 4, %v1495
        %v1497 = vrot.slane %v387, %v1496
        %v1498 = vlaneseq
        %v1499 = vshrl.u32 %v1498, 7
        %v1500 = vsub.s32 5, %v1499
        %v1501 = vrot.slane %v387, %v1500
        %v1502 = vlaneseq
        %v1503 = vshrl.u32 %v1502, 7
        %v1504 = vsub.s32 6, %v1503
        %v1505 = vrot.slane %v387, %v1504
        %v1506 = vlaneseq
        %v1507 = vshrl.u32 %v1506, 7
        %v1508 = vsub.s32 7, %v1507
        %v1509 = vrot.slane %v387, %v1508
        %v1510 = vlaneseq
        %v1511 = vshrl.u32 %v1510, 7
        %v1512 = vsub.s32 0, %v1511
        %v1513 = vrot.slane %v390, %v1512
        %v1514 = vlaneseq
        %v1515 = vshrl.u32 %v1514, 7
        %v1516 = vsub.s32 1, %v1515
        %v1517 = vrot.slane %v390, %v1516
        %v1518 = vlaneseq
        %v1519 = vshrl.u32 %v1518, 7
        %v1520 = vsub.s32 2, %v1519
        %v1521 = vrot.slane %v390, %v1520
        %v1522 = vlaneseq
        %v1523 = vshrl.u32 %v1522, 7
        %v1524 = vsub.s32 3, %v1523
        %v1525 = vrot.slane %v390, %v1524
        %v1526 = vlaneseq
        %v1527 = vshrl.u32 %v1526, 7
        %v1528 = vsub.s32 4, %v1527
        %v1529 = vrot.slane %v390, %v1528
        %v1530 = vlaneseq
        %v1531 = vshrl.u32 %v1530, 7
        %v1532 = vsub.s32 5, %v1531
        %v1533 = vrot.slane %v390, %v1532
        %v1534 = vlaneseq
        %v1535 = vshrl.u32 %v1534, 7
        %v1536 = vsub.s32 6, %v1535
        %v1537 = vrot.slane %v390, %v1536
        %v1538 = vlaneseq
        %v1539 = vshrl.u32 %v1538, 7
        %v1540 = vsub.s32 7, %v1539
        %v1541 = vrot.slane %v390, %v1540
        %v1542 = vlaneseq
        %v1543 = vshrl.u32 %v1542, 7
        %v1544 = vsub.s32 0, %v1543
        %v1545 = vrot.slane %v393, %v1544
        %v1546 = vlaneseq
        %v1547 = vshrl.u32 %v1546, 7
        %v1548 = vsub.s32 1, %v1547
        %v1549 = vrot.slane %v393, %v1548
        %v1550 = vlaneseq
        %v1551 = vshrl.u32 %v1550, 7
        %v1552 = vsub.s32 2, %v1551
        %v1553 = vrot.slane %v393, %v1552
        %v1554 = vlaneseq
        %v1555 = vshrl.u32 %v1554, 7
        %v1556 = vsub.s32 3, %v1555
        %v1557 = vrot.slane %v393, %v1556
        %v1558 = vlaneseq
        %v1559 = vshrl.u32 %v1558, 7
        %v1560 = vsub.s32 4, %v1559
        %v1561 = vrot.slane %v393, %v1560
        %v1562 = vlaneseq
        %v1563 = vshrl.u32 %v1562, 7
        %v1564 = vsub.s32 5, %v1563
        %v1565 = vrot.slane %v393, %v1564
        %v1566 = vlaneseq
        %v1567 = vshrl.u32 %v1566, 7
        %v1568 = vsub.s32 6, %v1567
        %v1569 = vrot.slane %v393, %v1568
        %v1570 = vlaneseq
        %v1571 = vshrl.u32 %v1570, 7
        %v1572 = vsub.s32 7, %v1571
        %v1573 = vrot.slane %v393, %v1572
        %v1574 = vlaneseq
        %v1575 = vshrl.u32 %v1574, 7
        %v1576 = vsub.s32 0, %v1575
        %v1577 = vrot.slane %v396, %v1576
        %v1578 = vlaneseq
        %v1579 = vshrl.u32 %v1578, 7
        %v1580 = vsub.s32 1, %v1579
        %v1581 = vrot.slane %v396, %v1580
        %v1582 = vlaneseq
        %v1583 = vshrl.u32 %v1582, 7
        %v1584 = vsub.s32 2, %v1583
        %v1585 = vrot.slane %v396, %v1584
        %v1586 = vlaneseq
        %v1587 = vshrl.u32 %v1586, 7
        %v1588 = vsub.s32 3, %v1587
        %v1589 = vrot.slane %v396, %v1588
        %v1590 = vlaneseq
        %v1591 = vshrl.u32 %v1590, 7
        %v1592 = vsub.s32 4, %v1591
        %v1593 = vrot.slane %v396, %v1592
        %v1594 = vlaneseq
        %v1595 = vshrl.u32 %v1594, 7
        %v1596 = vsub.s32 5, %v1595
        %v1597 = vrot.slane %v396, %v1596
        %v1598 = vlaneseq
        %v1599 = vshrl.u32 %v1598, 7
        %v1600 = vsub.s32 6, %v1599
        %v1601 = vrot.slane %v396, %v1600
        %v1602 = vlaneseq
        %v1603 = vshrl.u32 %v1602, 7
        %v1604 = vsub.s32 7, %v1603
        %v1605 = vrot.slane %v396, %v1604
        %v1606 = vlaneseq
        %v1607 = vshrl.u32 %v1606, 7
        %v1608 = vsub.s32 0, %v1607
        %v1609 = vrot.slane %v399, %v1608
        %v1610 = vlaneseq
        %v1611 = vshrl.u32 %v1610, 7
        %v1612 = vsub.s32 1, %v1611
        %v1613 = vrot.slane %v399, %v1612
        %v1614 = vlaneseq
        %v1615 = vshrl.u32 %v1614, 7
        %v1616 = vsub.s32 2, %v1615
        %v1617 = vrot.slane %v399, %v1616
        %v1618 = vlaneseq
        %v1619 = vshrl.u32 %v1618, 7
        %v1620 = vsub.s32 3, %v1619
        %v1621 = vrot.slane %v399, %v1620
        %v1622 = vlaneseq
        %v1623 = vshrl.u32 %v1622, 7
        %v1624 = vsub.s32 4, %v1623
        %v1625 = vrot.slane %v399, %v1624
        %v1626 = vlaneseq
        %v1627 = vshrl.u32 %v1626, 7
        %v1628 = vsub.s32 5, %v1627
        %v1629 = vrot.slane %v399, %v1628
        %v1630 = vlaneseq
        %v1631 = vshrl.u32 %v1630, 7
        %v1632 = vsub.s32 6, %v1631
        %v1633 = vrot.slane %v399, %v1632
        %v1634 = vlaneseq
        %v1635 = vshrl.u32 %v1634, 7
        %v1636 = vsub.s32 7, %v1635
        %v1637 = vrot.slane %v399, %v1636
        %v1638 = vlaneseq
        %v1639 = vshrl.u32 %v1638, 7
        %v1640 = vsub.s32 0, %v1639
        %v1641 = vrot.slane %v402, %v1640
        %v1642 = vlaneseq
        %v1643 = vshrl.u32 %v1642, 7
        %v1644 = vsub.s32 1, %v1643
        %v1645 = vrot.slane %v402, %v1644
        %v1646 = vlaneseq
        %v1647 = vshrl.u32 %v1646, 7
        %v1648 = vsub.s32 2, %v1647
        %v1649 = vrot.slane %v402, %v1648
        %v1650 = vlaneseq
        %v1651 = vshrl.u32 %v1650, 7
        %v1652 = vsub.s32 3, %v1651
        %v1653 = vrot.slane %v402, %v1652
        %v1654 = vlaneseq
        %v1655 = vshrl.u32 %v1654, 7
        %v1656 = vsub.s32 4, %v1655
        %v1657 = vrot.slane %v402, %v1656
        %v1658 = vlaneseq
        %v1659 = vshrl.u32 %v1658, 7
        %v1660 = vsub.s32 5, %v1659
        %v1661 = vrot.slane %v402, %v1660
        %v1662 = vlaneseq
        %v1663 = vshrl.u32 %v1662, 7
        %v1664 = vsub.s32 6, %v1663
        %v1665 = vrot.slane %v402, %v1664
        %v1666 = vlaneseq
        %v1667 = vshrl.u32 %v1666, 7
        %v1668 = vsub.s32 7, %v1667
        %v1669 = vrot.slane %v402, %v1668
        %v1670 = vlaneseq
        %v1671 = vshrl.u32 %v1670, 7
        %v1672 = vsub.s32 0, %v1671
        %v1673 = vrot.slane %v405, %v1672
        %v1674 = vlaneseq
        %v1675 = vshrl.u32 %v1674, 7
        %v1676 = vsub.s32 1, %v1675
        %v1677 = vrot.slane %v405, %v1676
        %v1678 = vlaneseq
        %v1679 = vshrl.u32 %v1678, 7
        %v1680 = vsub.s32 2, %v1679
        %v1681 = vrot.slane %v405, %v1680
        %v1682 = vlaneseq
        %v1683 = vshrl.u32 %v1682, 7
        %v1684 = vsub.s32 3, %v1683
        %v1685 = vrot.slane %v405, %v1684
        %v1686 = vlaneseq
        %v1687 = vshrl.u32 %v1686, 7
        %v1688 = vsub.s32 4, %v1687
        %v1689 = vrot.slane %v405, %v1688
        %v1690 = vlaneseq
        %v1691 = vshrl.u32 %v1690, 7
        %v1692 = vsub.s32 5, %v1691
        %v1693 = vrot.slane %v405, %v1692
        %v1694 = vlaneseq
        %v1695 = vshrl.u32 %v1694, 7
        %v1696 = vsub.s32 6, %v1695
        %v1697 = vrot.slane %v405, %v1696
        %v1698 = vlaneseq
        %v1699 = vshrl.u32 %v1698, 7
        %v1700 = vsub.s32 7, %v1699
        %v1701 = vrot.slane %v405, %v1700
        %v1702 = vlaneseq
        %v1703 = vshrl.u32 %v1702, 7
        %v1704 = vsub.s32 0, %v1703
        %v1705 = vrot.slane %v408, %v1704
        %v1706 = vlaneseq
        %v1707 = vshrl.u32 %v1706, 7
        %v1708 = vsub.s32 1, %v1707
        %v1709 = vrot.slane %v408, %v1708
        %v1710 = vlaneseq
        %v1711 = vshrl.u32 %v1710, 7
        %v1712 = vsub.s32 2, %v1711
        %v1713 = vrot.slane %v408, %v1712
        %v1714 = vlaneseq
        %v1715 = vshrl.u32 %v1714, 7
        %v1716 = vsub.s32 3, %v1715
        %v1717 = vrot.slane %v408, %v1716
        %v1718 = vlaneseq
        %v1719 = vshrl.u32 %v1718, 7
        %v1720 = vsub.s32 4, %v1719
        %v1721 = vrot.slane %v408, %v1720
        %v1722 = vlaneseq
        %v1723 = vshrl.u32 %v1722, 7
        %v1724 = vsub.s32 5, %v1723
        %v1725 = vrot.slane %v408, %v1724
        %v1726 = vlaneseq
        %v1727 = vshrl.u32 %v1726, 7
        %v1728 = vsub.s32 6, %v1727
        %v1729 = vrot.slane %v408, %v1728
        %v1730 = vlaneseq
        %v1731 = vshrl.u32 %v1730, 7
        %v1732 = vsub.s32 7, %v1731
        %v1733 = vrot.slane %v408, %v1732
        %v1734 = vlaneseq
        %v1735 = vshrl.u32 %v1734, 7
        %v1736 = vsub.s32 0, %v1735
        %v1737 = vrot.slane %v411, %v1736
        %v1738 = vlaneseq
        %v1739 = vshrl.u32 %v1738, 7
        %v1740 = vsub.s32 1, %v1739
        %v1741 = vrot.slane %v411, %v1740
        %v1742 = vlaneseq
        %v1743 = vshrl.u32 %v1742, 7
        %v1744 = vsub.s32 2, %v1743
        %v1745 = vrot.slane %v411, %v1744
        %v1746 = vlaneseq
        %v1747 = vshrl.u32 %v1746, 7
        %v1748 = vsub.s32 3, %v1747
        %v1749 = vrot.slane %v411, %v1748
        %v1750 = vlaneseq
        %v1751 = vshrl.u32 %v1750, 7
        %v1752 = vsub.s32 4, %v1751
        %v1753 = vrot.slane %v411, %v1752
        %v1754 = vlaneseq
        %v1755 = vshrl.u32 %v1754, 7
        %v1756 = vsub.s32 5, %v1755
        %v1757 = vrot.slane %v411, %v1756
        %v1758 = vlaneseq
        %v1759 = vshrl.u32 %v1758, 7
        %v1760 = vsub.s32 6, %v1759
        %v1761 = vrot.slane %v411, %v1760
        %v1762 = vlaneseq
        %v1763 = vshrl.u32 %v1762, 7
        %v1764 = vsub.s32 7, %v1763
        %v1765 = vrot.slane %v411, %v1764
        %v1766 = vlaneseq
        %v1767 = vshrl.u32 %v1766, 7
        %v1768 = vsub.s32 0, %v1767
        %v1769 = vrot.slane %v414, %v1768
        %v1770 = vlaneseq
        %v1771 = vshrl.u32 %v1770, 7
        %v1772 = vsub.s32 1, %v1771
        %v1773 = vrot.slane %v414, %v1772
        %v1774 = vlaneseq
        %v1775 = vshrl.u32 %v1774, 7
        %v1776 = vsub.s32 2, %v1775
        %v1777 = vrot.slane %v414, %v1776
        %v1778 = vlaneseq
        %v1779 = vshrl.u32 %v1778, 7
        %v1780 = vsub.s32 3, %v1779
        %v1781 = vrot.slane %v414, %v1780
        %v1782 = vlaneseq
        %v1783 = vshrl.u32 %v1782, 7
        %v1784 = vsub.s32 4, %v1783
        %v1785 = vrot.slane %v414, %v1784
        %v1786 = vlaneseq
        %v1787 = vshrl.u32 %v1786, 7
        %v1788 = vsub.s32 5, %v1787
        %v1789 = vrot.slane %v414, %v1788
        %v1790 = vlaneseq
        %v1791 = vshrl.u32 %v1790, 7
        %v1792 = vsub.s32 6, %v1791
        %v1793 = vrot.slane %v414, %v1792
        %v1794 = vlaneseq
        %v1795 = vshrl.u32 %v1794, 7
        %v1796 = vsub.s32 7, %v1795
        %v1797 = vrot.slane %v414, %v1796
        %v1798 = vlaneseq
        %v1799 = vshrl.u32 %v1798, 7
        %v1800 = vsub.s32 0, %v1799
        %v1801 = vrot.slane %v417, %v1800
        %v1802 = vlaneseq
        %v1803 = vshrl.u32 %v1802, 7
        %v1804 = vsub.s32 1, %v1803
        %v1805 = vrot.slane %v417, %v1804
        %v1806 = vlaneseq
        %v1807 = vshrl.u32 %v1806, 7
        %v1808 = vsub.s32 2, %v1807
        %v1809 = vrot.slane %v417, %v1808
        %v1810 = vlaneseq
        %v1811 = vshrl.u32 %v1810, 7
        %v1812 = vsub.s32 3, %v1811
        %v1813 = vrot.slane %v417, %v1812
        %v1814 = vlaneseq
        %v1815 = vshrl.u32 %v1814, 7
        %v1816 = vsub.s32 4, %v1815
        %v1817 = vrot.slane %v417, %v1816
        %v1818 = vlaneseq
        %v1819 = vshrl.u32 %v1818, 7
        %v1820 = vsub.s32 5, %v1819
        %v1821 = vrot.slane %v417, %v1820
        %v1822 = vlaneseq
        %v1823 = vshrl.u32 %v1822, 7
        %v1824 = vsub.s32 6, %v1823
        %v1825 = vrot.slane %v417, %v1824
        %v1826 = vlaneseq
        %v1827 = vshrl.u32 %v1826, 7
        %v1828 = vsub.s32 7, %v1827
        %v1829 = vrot.slane %v417, %v1828
        %v1830 = vlaneseq
        %v1831 = vshrl.u32 %v1830, 7
        %v1832 = vsub.s32 0, %v1831
        %v1833 = vrot.slane %v420, %v1832
        %v1834 = vlaneseq
        %v1835 = vshrl.u32 %v1834, 7
        %v1836 = vsub.s32 1, %v1835
        %v1837 = vrot.slane %v420, %v1836
        %v1838 = vlaneseq
        %v1839 = vshrl.u32 %v1838, 7
        %v1840 = vsub.s32 2, %v1839
        %v1841 = vrot.slane %v420, %v1840
        %v1842 = vlaneseq
        %v1843 = vshrl.u32 %v1842, 7
        %v1844 = vsub.s32 3, %v1843
        %v1845 = vrot.slane %v420, %v1844
        %v1846 = vlaneseq
        %v1847 = vshrl.u32 %v1846, 7
        %v1848 = vsub.s32 4, %v1847
        %v1849 = vrot.slane %v420, %v1848
        %v1850 = vlaneseq
        %v1851 = vshrl.u32 %v1850, 7
        %v1852 = vsub.s32 5, %v1851
        %v1853 = vrot.slane %v420, %v1852
        %v1854 = vlaneseq
        %v1855 = vshrl.u32 %v1854, 7
        %v1856 = vsub.s32 6, %v1855
        %v1857 = vrot.slane %v420, %v1856
        %v1858 = vlaneseq
        %v1859 = vshrl.u32 %v1858, 7
        %v1860 = vsub.s32 7, %v1859
        %v1861 = vrot.slane %v420, %v1860
        %v1862 = vlaneseq
        %v1863 = vshrl.u32 %v1862, 7
        %v1864 = vsub.s32 0, %v1863
        %v1865 = vrot.slane %v423, %v1864
        %v1866 = vlaneseq
        %v1867 = vshrl.u32 %v1866, 7
        %v1868 = vsub.s32 1, %v1867
        %v1869 = vrot.slane %v423, %v1868
        %v1870 = vlaneseq
        %v1871 = vshrl.u32 %v1870, 7
        %v1872 = vsub.s32 2, %v1871
        %v1873 = vrot.slane %v423, %v1872
        %v1874 = vlaneseq
        %v1875 = vshrl.u32 %v1874, 7
        %v1876 = vsub.s32 3, %v1875
        %v1877 = vrot.slane %v423, %v1876
        %v1878 = vlaneseq
        %v1879 = vshrl.u32 %v1878, 7
        %v1880 = vsub.s32 4, %v1879
        %v1881 = vrot.slane %v423, %v1880
        %v1882 = vlaneseq
        %v1883 = vshrl.u32 %v1882, 7
        %v1884 = vsub.s32 5, %v1883
        %v1885 = vrot.slane %v423, %v1884
        %v1886 = vlaneseq
        %v1887 = vshrl.u32 %v1886, 7
        %v1888 = vsub.s32 6, %v1887
        %v1889 = vrot.slane %v423, %v1888
        %v1890 = vlaneseq
        %v1891 = vshrl.u32 %v1890, 7
        %v1892 = vsub.s32 7, %v1891
        %v1893 = vrot.slane %v423, %v1892
        %v1894 = vlaneseq
        %v1895 = vshrl.u32 %v1894, 7
        %v1896 = vsub.s32 0, %v1895
        %v1897 = vrot.slane %v426, %v1896
        %v1898 = vlaneseq
        %v1899 = vshrl.u32 %v1898, 7
        %v1900 = vsub.s32 1, %v1899
        %v1901 = vrot.slane %v426, %v1900
        %v1902 = vlaneseq
        %v1903 = vshrl.u32 %v1902, 7
        %v1904 = vsub.s32 2, %v1903
        %v1905 = vrot.slane %v426, %v1904
        %v1906 = vlaneseq
        %v1907 = vshrl.u32 %v1906, 7
        %v1908 = vsub.s32 3, %v1907
        %v1909 = vrot.slane %v426, %v1908
        %v1910 = vlaneseq
        %v1911 = vshrl.u32 %v1910, 7
        %v1912 = vsub.s32 4, %v1911
        %v1913 = vrot.slane %v426, %v1912
        %v1914 = vlaneseq
        %v1915 = vshrl.u32 %v1914, 7
        %v1916 = vsub.s32 5, %v1915
        %v1917 = vrot.slane %v426, %v1916
        %v1918 = vlaneseq
        %v1919 = vshrl.u32 %v1918, 7
        %v1920 = vsub.s32 6, %v1919
        %v1921 = vrot.slane %v426, %v1920
        %v1922 = vlaneseq
        %v1923 = vshrl.u32 %v1922, 7
        %v1924 = vsub.s32 7, %v1923
        %v1925 = vrot.slane %v426, %v1924
        %v1926 = vlaneseq
        %v1927 = vshrl.u32 %v1926, 7
        %v1928 = vsub.s32 0, %v1927
        %v1929 = vrot.slane %v429, %v1928
        %v1930 = vlaneseq
        %v1931 = vshrl.u32 %v1930, 7
        %v1932 = vsub.s32 1, %v1931
        %v1933 = vrot.slane %v429, %v1932
        %v1934 = vlaneseq
        %v1935 = vshrl.u32 %v1934, 7
        %v1936 = vsub.s32 2, %v1935
        %v1937 = vrot.slane %v429, %v1936
        %v1938 = vlaneseq
        %v1939 = vshrl.u32 %v1938, 7
        %v1940 = vsub.s32 3, %v1939
        %v1941 = vrot.slane %v429, %v1940
        %v1942 = vlaneseq
        %v1943 = vshrl.u32 %v1942, 7
        %v1944 = vsub.s32 4, %v1943
        %v1945 = vrot.slane %v429, %v1944
        %v1946 = vlaneseq
        %v1947 = vshrl.u32 %v1946, 7
        %v1948 = vsub.s32 5, %v1947
        %v1949 = vrot.slane %v429, %v1948
        %v1950 = vlaneseq
        %v1951 = vshrl.u32 %v1950, 7
        %v1952 = vsub.s32 6, %v1951
        %v1953 = vrot.slane %v429, %v1952
        %v1954 = vlaneseq
        %v1955 = vshrl.u32 %v1954, 7
        %v1956 = vsub.s32 7, %v1955
        %v1957 = vrot.slane %v429, %v1956
        %v1958 = vlaneseq
        %v1959 = vshrl.u32 %v1958, 7
        %v1960 = vsub.s32 0, %v1959
        %v1961 = vrot.slane %v432, %v1960
        %v1962 = vlaneseq
        %v1963 = vshrl.u32 %v1962, 7
        %v1964 = vsub.s32 1, %v1963
        %v1965 = vrot.slane %v432, %v1964
        %v1966 = vlaneseq
        %v1967 = vshrl.u32 %v1966, 7
        %v1968 = vsub.s32 2, %v1967
        %v1969 = vrot.slane %v432, %v1968
        %v1970 = vlaneseq
        %v1971 = vshrl.u32 %v1970, 7
        %v1972 = vsub.s32 3, %v1971
        %v1973 = vrot.slane %v432, %v1972
        %v1974 = vlaneseq
        %v1975 = vshrl.u32 %v1974, 7
        %v1976 = vsub.s32 4, %v1975
        %v1977 = vrot.slane %v432, %v1976
        %v1978 = vlaneseq
        %v1979 = vshrl.u32 %v1978, 7
        %v1980 = vsub.s32 5, %v1979
        %v1981 = vrot.slane %v432, %v1980
        %v1982 = vlaneseq
        %v1983 = vshrl.u32 %v1982, 7
        %v1984 = vsub.s32 6, %v1983
        %v1985 = vrot.slane %v432, %v1984
        %v1986 = vlaneseq
        %v1987 = vshrl.u32 %v1986, 7
        %v1988 = vsub.s32 7, %v1987
        %v1989 = vrot.slane %v432, %v1988
        %v1990 = vlaneseq
        %v1991 = vshrl.u32 %v1990, 7
        %v1992 = vsub.s32 0, %v1991
        %v1993 = vrot.slane %v435, %v1992
        %v1994 = vlaneseq
        %v1995 = vshrl.u32 %v1994, 7
        %v1996 = vsub.s32 1, %v1995
        %v1997 = vrot.slane %v435, %v1996
        %v1998 = vlaneseq
        %v1999 = vshrl.u32 %v1998, 7
        %v2000 = vsub.s32 2, %v1999
        %v2001 = vrot.slane %v435, %v2000
        %v2002 = vlaneseq
        %v2003 = vshrl.u32 %v2002, 7
        %v2004 = vsub.s32 3, %v2003
        %v2005 = vrot.slane %v435, %v2004
        %v2006 = vlaneseq
        %v2007 = vshrl.u32 %v2006, 7
        %v2008 = vsub.s32 4, %v2007
        %v2009 = vrot.slane %v435, %v2008
        %v2010 = vlaneseq
        %v2011 = vshrl.u32 %v2010, 7
        %v2012 = vsub.s32 5, %v2011
        %v2013 = vrot.slane %v435, %v2012
        %v2014 = vlaneseq
        %v2015 = vshrl.u32 %v2014, 7
        %v2016 = vsub.s32 6, %v2015
        %v2017 = vrot.slane %v435, %v2016
        %v2018 = vlaneseq
        %v2019 = vshrl.u32 %v2018, 7
        %v2020 = vsub.s32 7, %v2019
        %v2021 = vrot.slane %v435, %v2020
        %v2022 = vlaneseq
        %v2023 = vshrl.u32 %v2022, 7
        %v2024 = vsub.s32 0, %v2023
        %v2025 = vrot.slane %v438, %v2024
        %v2026 = vlaneseq
        %v2027 = vshrl.u32 %v2026, 7
        %v2028 = vsub.s32 1, %v2027
        %v2029 = vrot.slane %v438, %v2028
        %v2030 = vlaneseq
        %v2031 = vshrl.u32 %v2030, 7
        %v2032 = vsub.s32 2, %v2031
        %v2033 = vrot.slane %v438, %v2032
        %v2034 = vlaneseq
        %v2035 = vshrl.u32 %v2034, 7
        %v2036 = vsub.s32 3, %v2035
        %v2037 = vrot.slane %v438, %v2036
        %v2038 = vlaneseq
        %v2039 = vshrl.u32 %v2038, 7
        %v2040 = vsub.s32 4, %v2039
        %v2041 = vrot.slane %v438, %v2040
        %v2042 = vlaneseq
        %v2043 = vshrl.u32 %v2042, 7
        %v2044 = vsub.s32 5, %v2043
        %v2045 = vrot.slane %v438, %v2044
        %v2046 = vlaneseq
        %v2047 = vshrl.u32 %v2046, 7
        %v2048 = vsub.s32 6, %v2047
        %v2049 = vrot.slane %v438, %v2048
        %v2050 = vlaneseq
        %v2051 = vshrl.u32 %v2050, 7
        %v2052 = vsub.s32 7, %v2051
        %v2053 = vrot.slane %v438, %v2052
        %v2054 = vlaneseq
        %v2055 = vshrl.u32 %v2054, 7
        %v2056 = vsub.s32 0, %v2055
        %v2057 = vrot.slane %v441, %v2056
        %v2058 = vlaneseq
        %v2059 = vshrl.u32 %v2058, 7
        %v2060 = vsub.s32 1, %v2059
        %v2061 = vrot.slane %v441, %v2060
        %v2062 = vlaneseq
        %v2063 = vshrl.u32 %v2062, 7
        %v2064 = vsub.s32 2, %v2063
        %v2065 = vrot.slane %v441, %v2064
        %v2066 = vlaneseq
        %v2067 = vshrl.u32 %v2066, 7
        %v2068 = vsub.s32 3, %v2067
        %v2069 = vrot.slane %v441, %v2068
        %v2070 = vlaneseq
        %v2071 = vshrl.u32 %v2070, 7
        %v2072 = vsub.s32 4, %v2071
        %v2073 = vrot.slane %v441, %v2072
        %v2074 = vlaneseq
        %v2075 = vshrl.u32 %v2074, 7
        %v2076 = vsub.s32 5, %v2075
        %v2077 = vrot.slane %v441, %v2076
        %v2078 = vlaneseq
        %v2079 = vshrl.u32 %v2078, 7
        %v2080 = vsub.s32 6, %v2079
        %v2081 = vrot.slane %v441, %v2080
        %v2082 = vlaneseq
        %v2083 = vshrl.u32 %v2082, 7
        %v2084 = vsub.s32 7, %v2083
        %v2085 = vrot.slane %v441, %v2084
        %v2086 = vlaneseq
        %v2087 = vshrl.u32 %v2086, 7
        %v2088 = vsub.s32 0, %v2087
        %v2089 = vrot.slane %v444, %v2088
        %v2090 = vlaneseq
        %v2091 = vshrl.u32 %v2090, 7
        %v2092 = vsub.s32 1, %v2091
        %v2093 = vrot.slane %v444, %v2092
        %v2094 = vlaneseq
        %v2095 = vshrl.u32 %v2094, 7
        %v2096 = vsub.s32 2, %v2095
        %v2097 = vrot.slane %v444, %v2096
        %v2098 = vlaneseq
        %v2099 = vshrl.u32 %v2098, 7
        %v2100 = vsub.s32 3, %v2099
        %v2101 = vrot.slane %v444, %v2100
        %v2102 = vlaneseq
        %v2103 = vshrl.u32 %v2102, 7
        %v2104 = vsub.s32 4, %v2103
        %v2105 = vrot.slane %v444, %v2104
        %v2106 = vlaneseq
        %v2107 = vshrl.u32 %v2106, 7
        %v2108 = vsub.s32 5, %v2107
        %v2109 = vrot.slane %v444, %v2108
        %v2110 = vlaneseq
        %v2111 = vshrl.u32 %v2110, 7
        %v2112 = vsub.s32 6, %v2111
        %v2113 = vrot.slane %v444, %v2112
        %v2114 = vlaneseq
        %v2115 = vshrl.u32 %v2114, 7
        %v2116 = vsub.s32 7, %v2115
        %v2117 = vrot.slane %v444, %v2116
        %v2118 = vlaneseq
        %v2119 = vshrl.u32 %v2118, 7
        %v2120 = vsub.s32 0, %v2119
        %v2121 = vrot.slane %v447, %v2120
        %v2122 = vlaneseq
        %v2123 = vshrl.u32 %v2122, 7
        %v2124 = vsub.s32 1, %v2123
        %v2125 = vrot.slane %v447, %v2124
        %v2126 = vlaneseq
        %v2127 = vshrl.u32 %v2126, 7
        %v2128 = vsub.s32 2, %v2127
        %v2129 = vrot.slane %v447, %v2128
        %v2130 = vlaneseq
        %v2131 = vshrl.u32 %v2130, 7
        %v2132 = vsub.s32 3, %v2131
        %v2133 = vrot.slane %v447, %v2132
        %v2134 = vlaneseq
        %v2135 = vshrl.u32 %v2134, 7
        %v2136 = vsub.s32 4, %v2135
        %v2137 = vrot.slane %v447, %v2136
        %v2138 = vlaneseq
        %v2139 = vshrl.u32 %v2138, 7
        %v2140 = vsub.s32 5, %v2139
        %v2141 = vrot.slane %v447, %v2140
        %v2142 = vlaneseq
        %v2143 = vshrl.u32 %v2142, 7
        %v2144 = vsub.s32 6, %v2143
        %v2145 = vrot.slane %v447, %v2144
        %v2146 = vlaneseq
        %v2147 = vshrl.u32 %v2146, 7
        %v2148 = vsub.s32 7, %v2147
        %v2149 = vrot.slane %v447, %v2148
        %v2150 = vlaneseq
        %v2151 = vshrl.u32 %v2150, 7
        %v2152 = vsub.s32 0, %v2151
        %v2153 = vrot.slane %v450, %v2152
        %v2154 = vlaneseq
        %v2155 = vshrl.u32 %v2154, 7
        %v2156 = vsub.s32 1, %v2155
        %v2157 = vrot.slane %v450, %v2156
        %v2158 = vlaneseq
        %v2159 = vshrl.u32 %v2158, 7
        %v2160 = vsub.s32 2, %v2159
        %v2161 = vrot.slane %v450, %v2160
        %v2162 = vlaneseq
        %v2163 = vshrl.u32 %v2162, 7
        %v2164 = vsub.s32 3, %v2163
        %v2165 = vrot.slane %v450, %v2164
        %v2166 = vlaneseq
        %v2167 = vshrl.u32 %v2166, 7
        %v2168 = vsub.s32 4, %v2167
        %v2169 = vrot.slane %v450, %v2168
        %v2170 = vlaneseq
        %v2171 = vshrl.u32 %v2170, 7
        %v2172 = vsub.s32 5, %v2171
        %v2173 = vrot.slane %v450, %v2172
        %v2174 = vlaneseq
        %v2175 = vshrl.u32 %v2174, 7
        %v2176 = vsub.s32 6, %v2175
        %v2177 = vrot.slane %v450, %v2176
        %v2178 = vlaneseq
        %v2179 = vshrl.u32 %v2178, 7
        %v2180 = vsub.s32 7, %v2179
        %v2181 = vrot.slane %v450, %v2180
        %v2182 = vlaneseq
        %v2183 = vshrl.u32 %v2182, 7
        %v2184 = vsub.s32 0, %v2183
        %v2185 = vrot.slane %v453, %v2184
        %v2186 = vlaneseq
        %v2187 = vshrl.u32 %v2186, 7
        %v2188 = vsub.s32 1, %v2187
        %v2189 = vrot.slane %v453, %v2188
        %v2190 = vlaneseq
        %v2191 = vshrl.u32 %v2190, 7
        %v2192 = vsub.s32 2, %v2191
        %v2193 = vrot.slane %v453, %v2192
        %v2194 = vlaneseq
        %v2195 = vshrl.u32 %v2194, 7
        %v2196 = vsub.s32 3, %v2195
        %v2197 = vrot.slane %v453, %v2196
        %v2198 = vlaneseq
        %v2199 = vshrl.u32 %v2198, 7
        %v2200 = vsub.s32 4, %v2199
        %v2201 = vrot.slane %v453, %v2200
        %v2202 = vlaneseq
        %v2203 = vshrl.u32 %v2202, 7
        %v2204 = vsub.s32 5, %v2203
        %v2205 = vrot.slane %v453, %v2204
        %v2206 = vlaneseq
        %v2207 = vshrl.u32 %v2206, 7
        %v2208 = vsub.s32 6, %v2207
        %v2209 = vrot.slane %v453, %v2208
        %v2210 = vlaneseq
        %v2211 = vshrl.u32 %v2210, 7
        %v2212 = vsub.s32 7, %v2211
        %v2213 = vrot.slane %v453, %v2212
        %v2214 = vlaneseq
        %v2215 = vshrl.u32 %v2214, 7
        %v2216 = vsub.s32 0, %v2215
        %v2217 = vrot.slane %v456, %v2216
        %v2218 = vlaneseq
        %v2219 = vshrl.u32 %v2218, 7
        %v2220 = vsub.s32 1, %v2219
        %v2221 = vrot.slane %v456, %v2220
        %v2222 = vlaneseq
        %v2223 = vshrl.u32 %v2222, 7
        %v2224 = vsub.s32 2, %v2223
        %v2225 = vrot.slane %v456, %v2224
        %v2226 = vlaneseq
        %v2227 = vshrl.u32 %v2226, 7
        %v2228 = vsub.s32 3, %v2227
        %v2229 = vrot.slane %v456, %v2228
        %v2230 = vlaneseq
        %v2231 = vshrl.u32 %v2230, 7
        %v2232 = vsub.s32 4, %v2231
        %v2233 = vrot.slane %v456, %v2232
        %v2234 = vlaneseq
        %v2235 = vshrl.u32 %v2234, 7
        %v2236 = vsub.s32 5, %v2235
        %v2237 = vrot.slane %v456, %v2236
        %v2238 = vlaneseq
        %v2239 = vshrl.u32 %v2238, 7
        %v2240 = vsub.s32 6, %v2239
        %v2241 = vrot.slane %v456, %v2240
        %v2242 = vlaneseq
        %v2243 = vshrl.u32 %v2242, 7
        %v2244 = vsub.s32 7, %v2243
        %v2245 = vrot.slane %v456, %v2244
        %v2246 = vlaneseq
        %v2247 = vshrl.u32 %v2246, 7
        %v2248 = vsub.s32 0, %v2247
        %v2249 = vrot.slane %v459, %v2248
        %v2250 = vlaneseq
        %v2251 = vshrl.u32 %v2250, 7
        %v2252 = vsub.s32 1, %v2251
        %v2253 = vrot.slane %v459, %v2252
        %v2254 = vlaneseq
        %v2255 = vshrl.u32 %v2254, 7
        %v2256 = vsub.s32 2, %v2255
        %v2257 = vrot.slane %v459, %v2256
        %v2258 = vlaneseq
        %v2259 = vshrl.u32 %v2258, 7
        %v2260 = vsub.s32 3, %v2259
        %v2261 = vrot.slane %v459, %v2260
        %v2262 = vlaneseq
        %v2263 = vshrl.u32 %v2262, 7
        %v2264 = vsub.s32 4, %v2263
        %v2265 = vrot.slane %v459, %v2264
        %v2266 = vlaneseq
        %v2267 = vshrl.u32 %v2266, 7
        %v2268 = vsub.s32 5, %v2267
        %v2269 = vrot.slane %v459, %v2268
        %v2270 = vlaneseq
        %v2271 = vshrl.u32 %v2270, 7
        %v2272 = vsub.s32 6, %v2271
        %v2273 = vrot.slane %v459, %v2272
        %v2274 = vlaneseq
        %v2275 = vshrl.u32 %v2274, 7
        %v2276 = vsub.s32 7, %v2275
        %v2277 = vrot.slane %v459, %v2276
        %v2278 = vlaneseq
        %v2279 = vshrl.u32 %v2278, 7
        %v2280 = vsub.s32 0, %v2279
        %v2281 = vrot.slane %v462, %v2280
        %v2282 = vlaneseq
        %v2283 = vshrl.u32 %v2282, 7
        %v2284 = vsub.s32 1, %v2283
        %v2285 = vrot.slane %v462, %v2284
        %v2286 = vlaneseq
        %v2287 = vshrl.u32 %v2286, 7
        %v2288 = vsub.s32 2, %v2287
        %v2289 = vrot.slane %v462, %v2288
        %v2290 = vlaneseq
        %v2291 = vshrl.u32 %v2290, 7
        %v2292 = vsub.s32 3, %v2291
        %v2293 = vrot.slane %v462, %v2292
        %v2294 = vlaneseq
        %v2295 = vshrl.u32 %v2294, 7
        %v2296 = vsub.s32 4, %v2295
        %v2297 = vrot.slane %v462, %v2296
        %v2298 = vlaneseq
        %v2299 = vshrl.u32 %v2298, 7
        %v2300 = vsub.s32 5, %v2299
        %v2301 = vrot.slane %v462, %v2300
        %v2302 = vlaneseq
        %v2303 = vshrl.u32 %v2302, 7
        %v2304 = vsub.s32 6, %v2303
        %v2305 = vrot.slane %v462, %v2304
        %v2306 = vlaneseq
        %v2307 = vshrl.u32 %v2306, 7
        %v2308 = vsub.s32 7, %v2307
        %v2309 = vrot.slane %v462, %v2308
        %v2310 = vlaneseq
        %v2311 = vshrl.u32 %v2310, 7
        %v2312 = vsub.s32 0, %v2311
        %v2313 = vrot.slane %v465, %v2312
        %v2314 = vlaneseq
        %v2315 = vshrl.u32 %v2314, 7
        %v2316 = vsub.s32 1, %v2315
        %v2317 = vrot.slane %v465, %v2316
        %v2318 = vlaneseq
        %v2319 = vshrl.u32 %v2318, 7
        %v2320 = vsub.s32 2, %v2319
        %v2321 = vrot.slane %v465, %v2320
        %v2322 = vlaneseq
        %v2323 = vshrl.u32 %v2322, 7
        %v2324 = vsub.s32 3, %v2323
        %v2325 = vrot.slane %v465, %v2324
        %v2326 = vlaneseq
        %v2327 = vshrl.u32 %v2326, 7
        %v2328 = vsub.s32 4, %v2327
        %v2329 = vrot.slane %v465, %v2328
        %v2330 = vlaneseq
        %v2331 = vshrl.u32 %v2330, 7
        %v2332 = vsub.s32 5, %v2331
        %v2333 = vrot.slane %v465, %v2332
        %v2334 = vlaneseq
        %v2335 = vshrl.u32 %v2334, 7
        %v2336 = vsub.s32 6, %v2335
        %v2337 = vrot.slane %v465, %v2336
        %v2338 = vlaneseq
        %v2339 = vshrl.u32 %v2338, 7
        %v2340 = vsub.s32 7, %v2339
        %v2341 = vrot.slane %v465, %v2340
        %v2342 = vlaneseq
        %v2343 = vshrl.u32 %v2342, 7
        %v2344 = vsub.s32 0, %v2343
        %v2345 = vrot.slane %v468, %v2344
        %v2346 = vlaneseq
        %v2347 = vshrl.u32 %v2346, 7
        %v2348 = vsub.s32 1, %v2347
        %v2349 = vrot.slane %v468, %v2348
        %v2350 = vlaneseq
        %v2351 = vshrl.u32 %v2350, 7
        %v2352 = vsub.s32 2, %v2351
        %v2353 = vrot.slane %v468, %v2352
        %v2354 = vlaneseq
        %v2355 = vshrl.u32 %v2354, 7
        %v2356 = vsub.s32 3, %v2355
        %v2357 = vrot.slane %v468, %v2356
        %v2358 = vlaneseq
        %v2359 = vshrl.u32 %v2358, 7
        %v2360 = vsub.s32 4, %v2359
        %v2361 = vrot.slane %v468, %v2360
        %v2362 = vlaneseq
        %v2363 = vshrl.u32 %v2362, 7
        %v2364 = vsub.s32 5, %v2363
        %v2365 = vrot.slane %v468, %v2364
        %v2366 = vlaneseq
        %v2367 = vshrl.u32 %v2366, 7
        %v2368 = vsub.s32 6, %v2367
        %v2369 = vrot.slane %v468, %v2368
        %v2370 = vlaneseq
        %v2371 = vshrl.u32 %v2370, 7
        %v2372 = vsub.s32 7, %v2371
        %v2373 = vrot.slane %v468, %v2372
        %v2374 = vlaneseq
        %v2375 = vshrl.u32 %v2374, 7
        %v2376 = vsub.s32 0, %v2375
        %v2377 = vrot.slane %v471, %v2376
        %v2378 = vlaneseq
        %v2379 = vshrl.u32 %v2378, 7
        %v2380 = vsub.s32 1, %v2379
        %v2381 = vrot.slane %v471, %v2380
        %v2382 = vlaneseq
        %v2383 = vshrl.u32 %v2382, 7
        %v2384 = vsub.s32 2, %v2383
        %v2385 = vrot.slane %v471, %v2384
        %v2386 = vlaneseq
        %v2387 = vshrl.u32 %v2386, 7
        %v2388 = vsub.s32 3, %v2387
        %v2389 = vrot.slane %v471, %v2388
        %v2390 = vlaneseq
        %v2391 = vshrl.u32 %v2390, 7
        %v2392 = vsub.s32 4, %v2391
        %v2393 = vrot.slane %v471, %v2392
        %v2394 = vlaneseq
        %v2395 = vshrl.u32 %v2394, 7
        %v2396 = vsub.s32 5, %v2395
        %v2397 = vrot.slane %v471, %v2396
        %v2398 = vlaneseq
        %v2399 = vshrl.u32 %v2398, 7
        %v2400 = vsub.s32 6, %v2399
        %v2401 = vrot.slane %v471, %v2400
        %v2402 = vlaneseq
        %v2403 = vshrl.u32 %v2402, 7
        %v2404 = vsub.s32 7, %v2403
        %v2405 = vrot.slane %v471, %v2404
        %v2406 = vlaneseq
        %v2407 = vshrl.u32 %v2406, 7
        %v2408 = vsub.s32 0, %v2407
        %v2409 = vrot.slane %v474, %v2408
        %v2410 = vlaneseq
        %v2411 = vshrl.u32 %v2410, 7
        %v2412 = vsub.s32 1, %v2411
        %v2413 = vrot.slane %v474, %v2412
        %v2414 = vlaneseq
        %v2415 = vshrl.u32 %v2414, 7
        %v2416 = vsub.s32 2, %v2415
        %v2417 = vrot.slane %v474, %v2416
        %v2418 = vlaneseq
        %v2419 = vshrl.u32 %v2418, 7
        %v2420 = vsub.s32 3, %v2419
        %v2421 = vrot.slane %v474, %v2420
        %v2422 = vlaneseq
        %v2423 = vshrl.u32 %v2422, 7
        %v2424 = vsub.s32 4, %v2423
        %v2425 = vrot.slane %v474, %v2424
        %v2426 = vlaneseq
        %v2427 = vshrl.u32 %v2426, 7
        %v2428 = vsub.s32 5, %v2427
        %v2429 = vrot.slane %v474, %v2428
        %v2430 = vlaneseq
        %v2431 = vshrl.u32 %v2430, 7
        %v2432 = vsub.s32 6, %v2431
        %v2433 = vrot.slane %v474, %v2432
        %v2434 = vlaneseq
        %v2435 = vshrl.u32 %v2434, 7
        %v2436 = vsub.s32 7, %v2435
        %v2437 = vrot.slane %v474, %v2436
        %v2438 = vlaneseq
        %v2439 = vshrl.u32 %v2438, 7
        %v2440 = vsub.s32 0, %v2439
        %v2441 = vrot.slane %v477, %v2440
        %v2442 = vlaneseq
        %v2443 = vshrl.u32 %v2442, 7
        %v2444 = vsub.s32 1, %v2443
        %v2445 = vrot.slane %v477, %v2444
        %v2446 = vlaneseq
        %v2447 = vshrl.u32 %v2446, 7
        %v2448 = vsub.s32 2, %v2447
        %v2449 = vrot.slane %v477, %v2448
        %v2450 = vlaneseq
        %v2451 = vshrl.u32 %v2450, 7
        %v2452 = vsub.s32 3, %v2451
        %v2453 = vrot.slane %v477, %v2452
        %v2454 = vlaneseq
        %v2455 = vshrl.u32 %v2454, 7
        %v2456 = vsub.s32 4, %v2455
        %v2457 = vrot.slane %v477, %v2456
        %v2458 = vlaneseq
        %v2459 = vshrl.u32 %v2458, 7
        %v2460 = vsub.s32 5, %v2459
        %v2461 = vrot.slane %v477, %v2460
        %v2462 = vlaneseq
        %v2463 = vshrl.u32 %v2462, 7
        %v2464 = vsub.s32 6, %v2463
        %v2465 = vrot.slane %v477, %v2464
        %v2466 = vlaneseq
        %v2467 = vshrl.u32 %v2466, 7
        %v2468 = vsub.s32 7, %v2467
        %v2469 = vrot.slane %v477, %v2468
        %v2470 = vlaneseq
        %v2471 = vshrl.u32 %v2470, 7
        %v2472 = vsub.s32 0, %v2471
        %v2473 = vrot.slane %v480, %v2472
        %v2474 = vlaneseq
        %v2475 = vshrl.u32 %v2474, 7
        %v2476 = vsub.s32 1, %v2475
        %v2477 = vrot.slane %v480, %v2476
        %v2478 = vlaneseq
        %v2479 = vshrl.u32 %v2478, 7
        %v2480 = vsub.s32 2, %v2479
        %v2481 = vrot.slane %v480, %v2480
        %v2482 = vlaneseq
        %v2483 = vshrl.u32 %v2482, 7
        %v2484 = vsub.s32 3, %v2483
        %v2485 = vrot.slane %v480, %v2484
        %v2486 = vlaneseq
        %v2487 = vshrl.u32 %v2486, 7
        %v2488 = vsub.s32 4, %v2487
        %v2489 = vrot.slane %v480, %v2488
        %v2490 = vlaneseq
        %v2491 = vshrl.u32 %v2490, 7
        %v2492 = vsub.s32 5, %v2491
        %v2493 = vrot.slane %v480, %v2492
        %v2494 = vlaneseq
        %v2495 = vshrl.u32 %v2494, 7
        %v2496 = vsub.s32 6, %v2495
        %v2497 = vrot.slane %v480, %v2496
        %v2498 = vlaneseq
        %v2499 = vshrl.u32 %v2498, 7
        %v2500 = vsub.s32 7, %v2499
        %v2501 = vrot.slane %v480, %v2500
        %v2502 = vlaneseq
        %v2503 = vshrl.u32 %v2502, 7
        %v2504 = vsub.s32 0, %v2503
        %v2505 = vrot.slane %v483, %v2504
        %v2506 = vlaneseq
        %v2507 = vshrl.u32 %v2506, 7
        %v2508 = vsub.s32 1, %v2507
        %v2509 = vrot.slane %v483, %v2508
        %v2510 = vlaneseq
        %v2511 = vshrl.u32 %v2510, 7
        %v2512 = vsub.s32 2, %v2511
        %v2513 = vrot.slane %v483, %v2512
        %v2514 = vlaneseq
        %v2515 = vshrl.u32 %v2514, 7
        %v2516 = vsub.s32 3, %v2515
        %v2517 = vrot.slane %v483, %v2516
        %v2518 = vlaneseq
        %v2519 = vshrl.u32 %v2518, 7
        %v2520 = vsub.s32 4, %v2519
        %v2521 = vrot.slane %v483, %v2520
        %v2522 = vlaneseq
        %v2523 = vshrl.u32 %v2522, 7
        %v2524 = vsub.s32 5, %v2523
        %v2525 = vrot.slane %v483, %v2524
        %v2526 = vlaneseq
        %v2527 = vshrl.u32 %v2526, 7
        %v2528 = vsub.s32 6, %v2527
        %v2529 = vrot.slane %v483, %v2528
        %v2530 = vlaneseq
        %v2531 = vshrl.u32 %v2530, 7
        %v2532 = vsub.s32 7, %v2531
        %v2533 = vrot.slane %v483, %v2532
        %v2534 = vlaneseq
        %v2535 = vshrl.u32 %v2534, 7
        %v2536 = vsub.s32 0, %v2535
        %v2537 = vrot.slane %v486, %v2536
        %v2538 = vlaneseq
        %v2539 = vshrl.u32 %v2538, 7
        %v2540 = vsub.s32 1, %v2539
        %v2541 = vrot.slane %v486, %v2540
        %v2542 = vlaneseq
        %v2543 = vshrl.u32 %v2542, 7
        %v2544 = vsub.s32 2, %v2543
        %v2545 = vrot.slane %v486, %v2544
        %v2546 = vlaneseq
        %v2547 = vshrl.u32 %v2546, 7
        %v2548 = vsub.s32 3, %v2547
        %v2549 = vrot.slane %v486, %v2548
        %v2550 = vlaneseq
        %v2551 = vshrl.u32 %v2550, 7
        %v2552 = vsub.s32 4, %v2551
        %v2553 = vrot.slane %v486, %v2552
        %v2554 = vlaneseq
        %v2555 = vshrl.u32 %v2554, 7
        %v2556 = vsub.s32 5, %v2555
        %v2557 = vrot.slane %v486, %v2556
        %v2558 = vlaneseq
        %v2559 = vshrl.u32 %v2558, 7
        %v2560 = vsub.s32 6, %v2559
        %v2561 = vrot.slane %v486, %v2560
        %v2562 = vlaneseq
        %v2563 = vshrl.u32 %v2562, 7
        %v2564 = vsub.s32 7, %v2563
        %v2565 = vrot.slane %v486, %v2564
        %v2566 = vlaneseq
        %v2567 = vshrl.u32 %v2566, 7
        %v2568 = vsub.s32 0, %v2567
        %v2569 = vrot.slane %v489, %v2568
        %v2570 = vlaneseq
        %v2571 = vshrl.u32 %v2570, 7
        %v2572 = vsub.s32 1, %v2571
        %v2573 = vrot.slane %v489, %v2572
        %v2574 = vlaneseq
        %v2575 = vshrl.u32 %v2574, 7
        %v2576 = vsub.s32 2, %v2575
        %v2577 = vrot.slane %v489, %v2576
        %v2578 = vlaneseq
        %v2579 = vshrl.u32 %v2578, 7
        %v2580 = vsub.s32 3, %v2579
        %v2581 = vrot.slane %v489, %v2580
        %v2582 = vlaneseq
        %v2583 = vshrl.u32 %v2582, 7
        %v2584 = vsub.s32 4, %v2583
        %v2585 = vrot.slane %v489, %v2584
        %v2586 = vlaneseq
        %v2587 = vshrl.u32 %v2586, 7
        %v2588 = vsub.s32 5, %v2587
        %v2589 = vrot.slane %v489, %v2588
        %v2590 = vlaneseq
        %v2591 = vshrl.u32 %v2590, 7
        %v2592 = vsub.s32 6, %v2591
        %v2593 = vrot.slane %v489, %v2592
        %v2594 = vlaneseq
        %v2595 = vshrl.u32 %v2594, 7
        %v2596 = vsub.s32 7, %v2595
        %v2597 = vrot.slane %v489, %v2596
        %v2598 = vlaneseq
        %v2599 = vshrl.u32 %v2598, 7
        %v2600 = vsub.s32 0, %v2599
        %v2601 = vrot.slane %v492, %v2600
        %v2602 = vlaneseq
        %v2603 = vshrl.u32 %v2602, 7
        %v2604 = vsub.s32 1, %v2603
        %v2605 = vrot.slane %v492, %v2604
        %v2606 = vlaneseq
        %v2607 = vshrl.u32 %v2606, 7
        %v2608 = vsub.s32 2, %v2607
        %v2609 = vrot.slane %v492, %v2608
        %v2610 = vlaneseq
        %v2611 = vshrl.u32 %v2610, 7
        %v2612 = vsub.s32 3, %v2611
        %v2613 = vrot.slane %v492, %v2612
        %v2614 = vlaneseq
        %v2615 = vshrl.u32 %v2614, 7
        %v2616 = vsub.s32 4, %v2615
        %v2617 = vrot.slane %v492, %v2616
        %v2618 = vlaneseq
        %v2619 = vshrl.u32 %v2618, 7
        %v2620 = vsub.s32 5, %v2619
        %v2621 = vrot.slane %v492, %v2620
        %v2622 = vlaneseq
        %v2623 = vshrl.u32 %v2622, 7
        %v2624 = vsub.s32 6, %v2623
        %v2625 = vrot.slane %v492, %v2624
        %v2626 = vlaneseq
        %v2627 = vshrl.u32 %v2626, 7
        %v2628 = vsub.s32 7, %v2627
        %v2629 = vrot.slane %v492, %v2628
        %v2630 = vlaneseq
        %v2631 = vshrl.u32 %v2630, 7
        %v2632 = vsub.s32 0, %v2631
        %v2633 = vrot.slane %v495, %v2632
        %v2634 = vlaneseq
        %v2635 = vshrl.u32 %v2634, 7
        %v2636 = vsub.s32 1, %v2635
        %v2637 = vrot.slane %v495, %v2636
        %v2638 = vlaneseq
        %v2639 = vshrl.u32 %v2638, 7
        %v2640 = vsub.s32 2, %v2639
        %v2641 = vrot.slane %v495, %v2640
        %v2642 = vlaneseq
        %v2643 = vshrl.u32 %v2642, 7
        %v2644 = vsub.s32 3, %v2643
        %v2645 = vrot.slane %v495, %v2644
        %v2646 = vlaneseq
        %v2647 = vshrl.u32 %v2646, 7
        %v2648 = vsub.s32 4, %v2647
        %v2649 = vrot.slane %v495, %v2648
        %v2650 = vlaneseq
        %v2651 = vshrl.u32 %v2650, 7
        %v2652 = vsub.s32 5, %v2651
        %v2653 = vrot.slane %v495, %v2652
        %v2654 = vlaneseq
        %v2655 = vshrl.u32 %v2654, 7
        %v2656 = vsub.s32 6, %v2655
        %v2657 = vrot.slane %v495, %v2656
        %v2658 = vlaneseq
        %v2659 = vshrl.u32 %v2658, 7
        %v2660 = vsub.s32 7, %v2659
        %v2661 = vrot.slane %v495, %v2660
        %v2662 = vlaneseq
        %v2663 = vshrl.u32 %v2662, 7
        %v2664 = vsub.s32 0, %v2663
        %v2665 = vrot.slane %v498, %v2664
        %v2666 = vlaneseq
        %v2667 = vshrl.u32 %v2666, 7
        %v2668 = vsub.s32 1, %v2667
        %v2669 = vrot.slane %v498, %v2668
        %v2670 = vlaneseq
        %v2671 = vshrl.u32 %v2670, 7
        %v2672 = vsub.s32 2, %v2671
        %v2673 = vrot.slane %v498, %v2672
        %v2674 = vlaneseq
        %v2675 = vshrl.u32 %v2674, 7
        %v2676 = vsub.s32 3, %v2675
        %v2677 = vrot.slane %v498, %v2676
        %v2678 = vlaneseq
        %v2679 = vshrl.u32 %v2678, 7
        %v2680 = vsub.s32 4, %v2679
        %v2681 = vrot.slane %v498, %v2680
        %v2682 = vlaneseq
        %v2683 = vshrl.u32 %v2682, 7
        %v2684 = vsub.s32 5, %v2683
        %v2685 = vrot.slane %v498, %v2684
        %v2686 = vlaneseq
        %v2687 = vshrl.u32 %v2686, 7
        %v2688 = vsub.s32 6, %v2687
        %v2689 = vrot.slane %v498, %v2688
        %v2690 = vlaneseq
        %v2691 = vshrl.u32 %v2690, 7
        %v2692 = vsub.s32 7, %v2691
        %v2693 = vrot.slane %v498, %v2692
        %v2694 = vlaneseq
        %v2695 = vshrl.u32 %v2694, 7
        %v2696 = vsub.s32 0, %v2695
        %v2697 = vrot.slane %v501, %v2696
        %v2698 = vlaneseq
        %v2699 = vshrl.u32 %v2698, 7
        %v2700 = vsub.s32 1, %v2699
        %v2701 = vrot.slane %v501, %v2700
        %v2702 = vlaneseq
        %v2703 = vshrl.u32 %v2702, 7
        %v2704 = vsub.s32 2, %v2703
        %v2705 = vrot.slane %v501, %v2704
        %v2706 = vlaneseq
        %v2707 = vshrl.u32 %v2706, 7
        %v2708 = vsub.s32 3, %v2707
        %v2709 = vrot.slane %v501, %v2708
        %v2710 = vlaneseq
        %v2711 = vshrl.u32 %v2710, 7
        %v2712 = vsub.s32 4, %v2711
        %v2713 = vrot.slane %v501, %v2712
        %v2714 = vlaneseq
        %v2715 = vshrl.u32 %v2714, 7
        %v2716 = vsub.s32 5, %v2715
        %v2717 = vrot.slane %v501, %v2716
        %v2718 = vlaneseq
        %v2719 = vshrl.u32 %v2718, 7
        %v2720 = vsub.s32 6, %v2719
        %v2721 = vrot.slane %v501, %v2720
        %v2722 = vlaneseq
        %v2723 = vshrl.u32 %v2722, 7
        %v2724 = vsub.s32 7, %v2723
        %v2725 = vrot.slane %v501, %v2724
        %v2726 = vlaneseq
        %v2727 = vshrl.u32 %v2726, 7
        %v2728 = vsub.s32 0, %v2727
        %v2729 = vrot.slane %v504, %v2728
        %v2730 = vlaneseq
        %v2731 = vshrl.u32 %v2730, 7
        %v2732 = vsub.s32 1, %v2731
        %v2733 = vrot.slane %v504, %v2732
        %v2734 = vlaneseq
        %v2735 = vshrl.u32 %v2734, 7
        %v2736 = vsub.s32 2, %v2735
        %v2737 = vrot.slane %v504, %v2736
        %v2738 = vlaneseq
        %v2739 = vshrl.u32 %v2738, 7
        %v2740 = vsub.s32 3, %v2739
        %v2741 = vrot.slane %v504, %v2740
        %v2742 = vlaneseq
        %v2743 = vshrl.u32 %v2742, 7
        %v2744 = vsub.s32 4, %v2743
        %v2745 = vrot.slane %v504, %v2744
        %v2746 = vlaneseq
        %v2747 = vshrl.u32 %v2746, 7
        %v2748 = vsub.s32 5, %v2747
        %v2749 = vrot.slane %v504, %v2748
        %v2750 = vlaneseq
        %v2751 = vshrl.u32 %v2750, 7
        %v2752 = vsub.s32 6, %v2751
        %v2753 = vrot.slane %v504, %v2752
        %v2754 = vlaneseq
        %v2755 = vshrl.u32 %v2754, 7
        %v2756 = vsub.s32 7, %v2755
        %v2757 = vrot.slane %v504, %v2756
        %v2758 = vlaneseq
        %v2759 = vshrl.u32 %v2758, 7
        %v2760 = vsub.s32 0, %v2759
        %v2761 = vrot.slane %v507, %v2760
        %v2762 = vlaneseq
        %v2763 = vshrl.u32 %v2762, 7
        %v2764 = vsub.s32 1, %v2763
        %v2765 = vrot.slane %v507, %v2764
        %v2766 = vlaneseq
        %v2767 = vshrl.u32 %v2766, 7
        %v2768 = vsub.s32 2, %v2767
        %v2769 = vrot.slane %v507, %v2768
        %v2770 = vlaneseq
        %v2771 = vshrl.u32 %v2770, 7
        %v2772 = vsub.s32 3, %v2771
        %v2773 = vrot.slane %v507, %v2772
        %v2774 = vlaneseq
        %v2775 = vshrl.u32 %v2774, 7
        %v2776 = vsub.s32 4, %v2775
        %v2777 = vrot.slane %v507, %v2776
        %v2778 = vlaneseq
        %v2779 = vshrl.u32 %v2778, 7
        %v2780 = vsub.s32 5, %v2779
        %v2781 = vrot.slane %v507, %v2780
        %v2782 = vlaneseq
        %v2783 = vshrl.u32 %v2782, 7
        %v2784 = vsub.s32 6, %v2783
        %v2785 = vrot.slane %v507, %v2784
        %v2786 = vlaneseq
        %v2787 = vshrl.u32 %v2786, 7
        %v2788 = vsub.s32 7, %v2787
        %v2789 = vrot.slane %v507, %v2788
        %v2790 = vlaneseq
        %v2791 = vshrl.u32 %v2790, 7
        %v2792 = vsub.s32 0, %v2791
        %v2793 = vrot.slane %v510, %v2792
        %v2794 = vlaneseq
        %v2795 = vshrl.u32 %v2794, 7
        %v2796 = vsub.s32 1, %v2795
        %v2797 = vrot.slane %v510, %v2796
        %v2798 = vlaneseq
        %v2799 = vshrl.u32 %v2798, 7
        %v2800 = vsub.s32 2, %v2799
        %v2801 = vrot.slane %v510, %v2800
        %v2802 = vlaneseq
        %v2803 = vshrl.u32 %v2802, 7
        %v2804 = vsub.s32 3, %v2803
        %v2805 = vrot.slane %v510, %v2804
        %v2806 = vlaneseq
        %v2807 = vshrl.u32 %v2806, 7
        %v2808 = vsub.s32 4, %v2807
        %v2809 = vrot.slane %v510, %v2808
        %v2810 = vlaneseq
        %v2811 = vshrl.u32 %v2810, 7
        %v2812 = vsub.s32 5, %v2811
        %v2813 = vrot.slane %v510, %v2812
        %v2814 = vlaneseq
        %v2815 = vshrl.u32 %v2814, 7
        %v2816 = vsub.s32 6, %v2815
        %v2817 = vrot.slane %v510, %v2816
        %v2818 = vlaneseq
        %v2819 = vshrl.u32 %v2818, 7
        %v2820 = vsub.s32 7, %v2819
        %v2821 = vrot.slane %v510, %v2820
        %v2822 = vlaneseq
        %v2823 = vshrl.u32 %v2822, 7
        %v2824 = vsub.s32 0, %v2823
        %v2825 = vrot.slane %v513, %v2824
        %v2826 = vlaneseq
        %v2827 = vshrl.u32 %v2826, 7
        %v2828 = vsub.s32 1, %v2827
        %v2829 = vrot.slane %v513, %v2828
        %v2830 = vlaneseq
        %v2831 = vshrl.u32 %v2830, 7
        %v2832 = vsub.s32 2, %v2831
        %v2833 = vrot.slane %v513, %v2832
        %v2834 = vlaneseq
        %v2835 = vshrl.u32 %v2834, 7
        %v2836 = vsub.s32 3, %v2835
        %v2837 = vrot.slane %v513, %v2836
        %v2838 = vlaneseq
        %v2839 = vshrl.u32 %v2838, 7
        %v2840 = vsub.s32 4, %v2839
        %v2841 = vrot.slane %v513, %v2840
        %v2842 = vlaneseq
        %v2843 = vshrl.u32 %v2842, 7
        %v2844 = vsub.s32 5, %v2843
        %v2845 = vrot.slane %v513, %v2844
        %v2846 = vlaneseq
        %v2847 = vshrl.u32 %v2846, 7
        %v2848 = vsub.s32 6, %v2847
        %v2849 = vrot.slane %v513, %v2848
        %v2850 = vlaneseq
        %v2851 = vshrl.u32 %v2850, 7
        %v2852 = vsub.s32 7, %v2851
        %v2853 = vrot.slane %v513, %v2852
        %v2854 = vlaneseq
        %v2855 = vshrl.u32 %v2854, 7
        %v2856 = vsub.s32 0, %v2855
        %v2857 = vrot.slane %v516, %v2856
        %v2858 = vlaneseq
        %v2859 = vshrl.u32 %v2858, 7
        %v2860 = vsub.s32 1, %v2859
        %v2861 = vrot.slane %v516, %v2860
        %v2862 = vlaneseq
        %v2863 = vshrl.u32 %v2862, 7
        %v2864 = vsub.s32 2, %v2863
        %v2865 = vrot.slane %v516, %v2864
        %v2866 = vlaneseq
        %v2867 = vshrl.u32 %v2866, 7
        %v2868 = vsub.s32 3, %v2867
        %v2869 = vrot.slane %v516, %v2868
        %v2870 = vlaneseq
        %v2871 = vshrl.u32 %v2870, 7
        %v2872 = vsub.s32 4, %v2871
        %v2873 = vrot.slane %v516, %v2872
        %v2874 = vlaneseq
        %v2875 = vshrl.u32 %v2874, 7
        %v2876 = vsub.s32 5, %v2875
        %v2877 = vrot.slane %v516, %v2876
        %v2878 = vlaneseq
        %v2879 = vshrl.u32 %v2878, 7
        %v2880 = vsub.s32 6, %v2879
        %v2881 = vrot.slane %v516, %v2880
        %v2882 = vlaneseq
        %v2883 = vshrl.u32 %v2882, 7
        %v2884 = vsub.s32 7, %v2883
        %v2885 = vrot.slane %v516, %v2884
        %v2886 = vlaneseq
        %v2887 = vshrl.u32 %v2886, 7
        %v2888 = vsub.s32 0, %v2887
        %v2889 = vrot.slane %v519, %v2888
        %v2890 = vlaneseq
        %v2891 = vshrl.u32 %v2890, 7
        %v2892 = vsub.s32 1, %v2891
        %v2893 = vrot.slane %v519, %v2892
        %v2894 = vlaneseq
        %v2895 = vshrl.u32 %v2894, 7
        %v2896 = vsub.s32 2, %v2895
        %v2897 = vrot.slane %v519, %v2896
        %v2898 = vlaneseq
        %v2899 = vshrl.u32 %v2898, 7
        %v2900 = vsub.s32 3, %v2899
        %v2901 = vrot.slane %v519, %v2900
        %v2902 = vlaneseq
        %v2903 = vshrl.u32 %v2902, 7
        %v2904 = vsub.s32 4, %v2903
        %v2905 = vrot.slane %v519, %v2904
        %v2906 = vlaneseq
        %v2907 = vshrl.u32 %v2906, 7
        %v2908 = vsub.s32 5, %v2907
        %v2909 = vrot.slane %v519, %v2908
        %v2910 = vlaneseq
        %v2911 = vshrl.u32 %v2910, 7
        %v2912 = vsub.s32 6, %v2911
        %v2913 = vrot.slane %v519, %v2912
        %v2914 = vlaneseq
        %v2915 = vshrl.u32 %v2914, 7
        %v2916 = vsub.s32 7, %v2915
        %v2917 = vrot.slane %v519, %v2916
        %v2918 = vlaneseq
        %v2919 = vshrl.u32 %v2918, 7
        %v2920 = vsub.s32 0, %v2919
        %v2921 = vrot.slane %v522, %v2920
        %v2922 = vlaneseq
        %v2923 = vshrl.u32 %v2922, 7
        %v2924 = vsub.s32 1, %v2923
        %v2925 = vrot.slane %v522, %v2924
        %v2926 = vlaneseq
        %v2927 = vshrl.u32 %v2926, 7
        %v2928 = vsub.s32 2, %v2927
        %v2929 = vrot.slane %v522, %v2928
        %v2930 = vlaneseq
        %v2931 = vshrl.u32 %v2930, 7
        %v2932 = vsub.s32 3, %v2931
        %v2933 = vrot.slane %v522, %v2932
        %v2934 = vlaneseq
        %v2935 = vshrl.u32 %v2934, 7
        %v2936 = vsub.s32 4, %v2935
        %v2937 = vrot.slane %v522, %v2936
        %v2938 = vlaneseq
        %v2939 = vshrl.u32 %v2938, 7
        %v2940 = vsub.s32 5, %v2939
        %v2941 = vrot.slane %v522, %v2940
        %v2942 = vlaneseq
        %v2943 = vshrl.u32 %v2942, 7
        %v2944 = vsub.s32 6, %v2943
        %v2945 = vrot.slane %v522, %v2944
        %v2946 = vlaneseq
        %v2947 = vshrl.u32 %v2946, 7
        %v2948 = vsub.s32 7, %v2947
        %v2949 = vrot.slane %v522, %v2948
        %v2950 = vlaneseq
        %v2951 = vshrl.u32 %v2950, 7
        %v2952 = vsub.s32 0, %v2951
        %v2953 = vrot.slane %v525, %v2952
        %v2954 = vlaneseq
        %v2955 = vshrl.u32 %v2954, 7
        %v2956 = vsub.s32 1, %v2955
        %v2957 = vrot.slane %v525, %v2956
        %v2958 = vlaneseq
        %v2959 = vshrl.u32 %v2958, 7
        %v2960 = vsub.s32 2, %v2959
        %v2961 = vrot.slane %v525, %v2960
        %v2962 = vlaneseq
        %v2963 = vshrl.u32 %v2962, 7
        %v2964 = vsub.s32 3, %v2963
        %v2965 = vrot.slane %v525, %v2964
        %v2966 = vlaneseq
        %v2967 = vshrl.u32 %v2966, 7
        %v2968 = vsub.s32 4, %v2967
        %v2969 = vrot.slane %v525, %v2968
        %v2970 = vlaneseq
        %v2971 = vshrl.u32 %v2970, 7
        %v2972 = vsub.s32 5, %v2971
        %v2973 = vrot.slane %v525, %v2972
        %v2974 = vlaneseq
        %v2975 = vshrl.u32 %v2974, 7
        %v2976 = vsub.s32 6, %v2975
        %v2977 = vrot.slane %v525, %v2976
        %v2978 = vlaneseq
        %v2979 = vshrl.u32 %v2978, 7
        %v2980 = vsub.s32 7, %v2979
        %v2981 = vrot.slane %v525, %v2980
        %v2982 = vlaneseq
        %v2983 = vshrl.u32 %v2982, 7
        %v2984 = vsub.s32 0, %v2983
        %v2985 = vrot.slane %v528, %v2984
        %v2986 = vlaneseq
        %v2987 = vshrl.u32 %v2986, 7
        %v2988 = vsub.s32 1, %v2987
        %v2989 = vrot.slane %v528, %v2988
        %v2990 = vlaneseq
        %v2991 = vshrl.u32 %v2990, 7
        %v2992 = vsub.s32 2, %v2991
        %v2993 = vrot.slane %v528, %v2992
        %v2994 = vlaneseq
        %v2995 = vshrl.u32 %v2994, 7
        %v2996 = vsub.s32 3, %v2995
        %v2997 = vrot.slane %v528, %v2996
        %v2998 = vlaneseq
        %v2999 = vshrl.u32 %v2998, 7
        %v3000 = vsub.s32 4, %v2999
        %v3001 = vrot.slane %v528, %v3000
        %v3002 = vlaneseq
        %v3003 = vshrl.u32 %v3002, 7
        %v3004 = vsub.s32 5, %v3003
        %v3005 = vrot.slane %v528, %v3004
        %v3006 = vlaneseq
        %v3007 = vshrl.u32 %v3006, 7
        %v3008 = vsub.s32 6, %v3007
        %v3009 = vrot.slane %v528, %v3008
        %v3010 = vlaneseq
        %v3011 = vshrl.u32 %v3010, 7
        %v3012 = vsub.s32 7, %v3011
        %v3013 = vrot.slane %v528, %v3012
        %v3014 = vlaneseq
        %v3015 = vshrl.u32 %v3014, 7
        %v3016 = vsub.s32 0, %v3015
        %v3017 = vrot.slane %v531, %v3016
        %v3018 = vlaneseq
        %v3019 = vshrl.u32 %v3018, 7
        %v3020 = vsub.s32 1, %v3019
        %v3021 = vrot.slane %v531, %v3020
        %v3022 = vlaneseq
        %v3023 = vshrl.u32 %v3022, 7
        %v3024 = vsub.s32 2, %v3023
        %v3025 = vrot.slane %v531, %v3024
        %v3026 = vlaneseq
        %v3027 = vshrl.u32 %v3026, 7
        %v3028 = vsub.s32 3, %v3027
        %v3029 = vrot.slane %v531, %v3028
        %v3030 = vlaneseq
        %v3031 = vshrl.u32 %v3030, 7
        %v3032 = vsub.s32 4, %v3031
        %v3033 = vrot.slane %v531, %v3032
        %v3034 = vlaneseq
        %v3035 = vshrl.u32 %v3034, 7
        %v3036 = vsub.s32 5, %v3035
        %v3037 = vrot.slane %v531, %v3036
        %v3038 = vlaneseq
        %v3039 = vshrl.u32 %v3038, 7
        %v3040 = vsub.s32 6, %v3039
        %v3041 = vrot.slane %v531, %v3040
        %v3042 = vlaneseq
        %v3043 = vshrl.u32 %v3042, 7
        %v3044 = vsub.s32 7, %v3043
        %v3045 = vrot.slane %v531, %v3044
        %v3046 = vlaneseq
        %v3047 = vshrl.u32 %v3046, 7
        %v3048 = vsub.s32 0, %v3047
        %v3049 = vrot.slane %v534, %v3048
        %v3050 = vlaneseq
        %v3051 = vshrl.u32 %v3050, 7
        %v3052 = vsub.s32 1, %v3051
        %v3053 = vrot.slane %v534, %v3052
        %v3054 = vlaneseq
        %v3055 = vshrl.u32 %v3054, 7
        %v3056 = vsub.s32 2, %v3055
        %v3057 = vrot.slane %v534, %v3056
        %v3058 = vlaneseq
        %v3059 = vshrl.u32 %v3058, 7
        %v3060 = vsub.s32 3, %v3059
        %v3061 = vrot.slane %v534, %v3060
        %v3062 = vlaneseq
        %v3063 = vshrl.u32 %v3062, 7
        %v3064 = vsub.s32 4, %v3063
        %v3065 = vrot.slane %v534, %v3064
        %v3066 = vlaneseq
        %v3067 = vshrl.u32 %v3066, 7
        %v3068 = vsub.s32 5, %v3067
        %v3069 = vrot.slane %v534, %v3068
        %v3070 = vlaneseq
        %v3071 = vshrl.u32 %v3070, 7
        %v3072 = vsub.s32 6, %v3071
        %v3073 = vrot.slane %v534, %v3072
        %v3074 = vlaneseq
        %v3075 = vshrl.u32 %v3074, 7
        %v3076 = vsub.s32 7, %v3075
        %v3077 = vrot.slane %v534, %v3076
        %v3078 = vlaneseq
        %v3079 = vshrl.u32 %v3078, 7
        %v3080 = vsub.s32 0, %v3079
        %v3081 = vrot.slane %v537, %v3080
        %v3082 = vlaneseq
        %v3083 = vshrl.u32 %v3082, 7
        %v3084 = vsub.s32 1, %v3083
        %v3085 = vrot.slane %v537, %v3084
        %v3086 = vlaneseq
        %v3087 = vshrl.u32 %v3086, 7
        %v3088 = vsub.s32 2, %v3087
        %v3089 = vrot.slane %v537, %v3088
        %v3090 = vlaneseq
        %v3091 = vshrl.u32 %v3090, 7
        %v3092 = vsub.s32 3, %v3091
        %v3093 = vrot.slane %v537, %v3092
        %v3094 = vlaneseq
        %v3095 = vshrl.u32 %v3094, 7
        %v3096 = vsub.s32 4, %v3095
        %v3097 = vrot.slane %v537, %v3096
        %v3098 = vlaneseq
        %v3099 = vshrl.u32 %v3098, 7
        %v3100 = vsub.s32 5, %v3099
        %v3101 = vrot.slane %v537, %v3100
        %v3102 = vlaneseq
        %v3103 = vshrl.u32 %v3102, 7
        %v3104 = vsub.s32 6, %v3103
        %v3105 = vrot.slane %v537, %v3104
        %v3106 = vlaneseq
        %v3107 = vshrl.u32 %v3106, 7
        %v3108 = vsub.s32 7, %v3107
        %v3109 = vrot.slane %v537, %v3108
        %v3110 = vlaneseq
        %v3111 = vshrl.u32 %v3110, 7
        %v3112 = vsub.s32 0, %v3111
        %v3113 = vrot.slane %v540, %v3112
        %v3114 = vlaneseq
        %v3115 = vshrl.u32 %v3114, 7
        %v3116 = vsub.s32 1, %v3115
        %v3117 = vrot.slane %v540, %v3116
        %v3118 = vlaneseq
        %v3119 = vshrl.u32 %v3118, 7
        %v3120 = vsub.s32 2, %v3119
        %v3121 = vrot.slane %v540, %v3120
        %v3122 = vlaneseq
        %v3123 = vshrl.u32 %v3122, 7
        %v3124 = vsub.s32 3, %v3123
        %v3125 = vrot.slane %v540, %v3124
        %v3126 = vlaneseq
        %v3127 = vshrl.u32 %v3126, 7
        %v3128 = vsub.s32 4, %v3127
        %v3129 = vrot.slane %v540, %v3128
        %v3130 = vlaneseq
        %v3131 = vshrl.u32 %v3130, 7
        %v3132 = vsub.s32 5, %v3131
        %v3133 = vrot.slane %v540, %v3132
        %v3134 = vlaneseq
        %v3135 = vshrl.u32 %v3134, 7
        %v3136 = vsub.s32 6, %v3135
        %v3137 = vrot.slane %v540, %v3136
        %v3138 = vlaneseq
        %v3139 = vshrl.u32 %v3138, 7
        %v3140 = vsub.s32 7, %v3139
        %v3141 = vrot.slane %v540, %v3140
        %v3142 = vlaneseq
        %v3143 = vshrl.u32 %v3142, 7
        %v3144 = vsub.s32 0, %v3143
        %v3145 = vrot.slane %v543, %v3144
        %v3146 = vlaneseq
        %v3147 = vshrl.u32 %v3146, 7
        %v3148 = vsub.s32 1, %v3147
        %v3149 = vrot.slane %v543, %v3148
        %v3150 = vlaneseq
        %v3151 = vshrl.u32 %v3150, 7
        %v3152 = vsub.s32 2, %v3151
        %v3153 = vrot.slane %v543, %v3152
        %v3154 = vlaneseq
        %v3155 = vshrl.u32 %v3154, 7
        %v3156 = vsub.s32 3, %v3155
        %v3157 = vrot.slane %v543, %v3156
        %v3158 = vlaneseq
        %v3159 = vshrl.u32 %v3158, 7
        %v3160 = vsub.s32 4, %v3159
        %v3161 = vrot.slane %v543, %v3160
        %v3162 = vlaneseq
        %v3163 = vshrl.u32 %v3162, 7
        %v3164 = vsub.s32 5, %v3163
        %v3165 = vrot.slane %v543, %v3164
        %v3166 = vlaneseq
        %v3167 = vshrl.u32 %v3166, 7
        %v3168 = vsub.s32 6, %v3167
        %v3169 = vrot.slane %v543, %v3168
        %v3170 = vlaneseq
        %v3171 = vshrl.u32 %v3170, 7
        %v3172 = vsub.s32 7, %v3171
        %v3173 = vrot.slane %v543, %v3172
        %v3174 = vlaneseq
        %v3175 = vshrl.u32 %v3174, 7
        %v3176 = vsub.s32 0, %v3175
        %v3177 = vrot.slane %v546, %v3176
        %v3178 = vlaneseq
        %v3179 = vshrl.u32 %v3178, 7
        %v3180 = vsub.s32 1, %v3179
        %v3181 = vrot.slane %v546, %v3180
        %v3182 = vlaneseq
        %v3183 = vshrl.u32 %v3182, 7
        %v3184 = vsub.s32 2, %v3183
        %v3185 = vrot.slane %v546, %v3184
        %v3186 = vlaneseq
        %v3187 = vshrl.u32 %v3186, 7
        %v3188 = vsub.s32 3, %v3187
        %v3189 = vrot.slane %v546, %v3188
        %v3190 = vlaneseq
        %v3191 = vshrl.u32 %v3190, 7
        %v3192 = vsub.s32 4, %v3191
        %v3193 = vrot.slane %v546, %v3192
        %v3194 = vlaneseq
        %v3195 = vshrl.u32 %v3194, 7
        %v3196 = vsub.s32 5, %v3195
        %v3197 = vrot.slane %v546, %v3196
        %v3198 = vlaneseq
        %v3199 = vshrl.u32 %v3198, 7
        %v3200 = vsub.s32 6, %v3199
        %v3201 = vrot.slane %v546, %v3200
        %v3202 = vlaneseq
        %v3203 = vshrl.u32 %v3202, 7
        %v3204 = vsub.s32 7, %v3203
        %v3205 = vrot.slane %v546, %v3204
        %v3206 = vlaneseq
        %v3207 = vshrl.u32 %v3206, 7
        %v3208 = vsub.s32 0, %v3207
        %v3209 = vrot.slane %v549, %v3208
        %v3210 = vlaneseq
        %v3211 = vshrl.u32 %v3210, 7
        %v3212 = vsub.s32 1, %v3211
        %v3213 = vrot.slane %v549, %v3212
        %v3214 = vlaneseq
        %v3215 = vshrl.u32 %v3214, 7
        %v3216 = vsub.s32 2, %v3215
        %v3217 = vrot.slane %v549, %v3216
        %v3218 = vlaneseq
        %v3219 = vshrl.u32 %v3218, 7
        %v3220 = vsub.s32 3, %v3219
        %v3221 = vrot.slane %v549, %v3220
        %v3222 = vlaneseq
        %v3223 = vshrl.u32 %v3222, 7
        %v3224 = vsub.s32 4, %v3223
        %v3225 = vrot.slane %v549, %v3224
        %v3226 = vlaneseq
        %v3227 = vshrl.u32 %v3226, 7
        %v3228 = vsub.s32 5, %v3227
        %v3229 = vrot.slane %v549, %v3228
        %v3230 = vlaneseq
        %v3231 = vshrl.u32 %v3230, 7
        %v3232 = vsub.s32 6, %v3231
        %v3233 = vrot.slane %v549, %v3232
        %v3234 = vlaneseq
        %v3235 = vshrl.u32 %v3234, 7
        %v3236 = vsub.s32 7, %v3235
        %v3237 = vrot.slane %v549, %v3236
        %v3238 = vlaneseq
        %v3239 = vshrl.u32 %v3238, 7
        %v3240 = vsub.s32 0, %v3239
        %v3241 = vrot.slane %v552, %v3240
        %v3242 = vlaneseq
        %v3243 = vshrl.u32 %v3242, 7
        %v3244 = vsub.s32 1, %v3243
        %v3245 = vrot.slane %v552, %v3244
        %v3246 = vlaneseq
        %v3247 = vshrl.u32 %v3246, 7
        %v3248 = vsub.s32 2, %v3247
        %v3249 = vrot.slane %v552, %v3248
        %v3250 = vlaneseq
        %v3251 = vshrl.u32 %v3250, 7
        %v3252 = vsub.s32 3, %v3251
        %v3253 = vrot.slane %v552, %v3252
        %v3254 = vlaneseq
        %v3255 = vshrl.u32 %v3254, 7
        %v3256 = vsub.s32 4, %v3255
        %v3257 = vrot.slane %v552, %v3256
        %v3258 = vlaneseq
        %v3259 = vshrl.u32 %v3258, 7
        %v3260 = vsub.s32 5, %v3259
        %v3261 = vrot.slane %v552, %v3260
        %v3262 = vlaneseq
        %v3263 = vshrl.u32 %v3262, 7
        %v3264 = vsub.s32 6, %v3263
        %v3265 = vrot.slane %v552, %v3264
        %v3266 = vlaneseq
        %v3267 = vshrl.u32 %v3266, 7
        %v3268 = vsub.s32 7, %v3267
        %v3269 = vrot.slane %v552, %v3268
        %v3270 = vlaneseq
        %v3271 = vshrl.u32 %v3270, 7
        %v3272 = vsub.s32 0, %v3271
        %v3273 = vrot.slane %v555, %v3272
        %v3274 = vlaneseq
        %v3275 = vshrl.u32 %v3274, 7
        %v3276 = vsub.s32 1, %v3275
        %v3277 = vrot.slane %v555, %v3276
        %v3278 = vlaneseq
        %v3279 = vshrl.u32 %v3278, 7
        %v3280 = vsub.s32 2, %v3279
        %v3281 = vrot.slane %v555, %v3280
        %v3282 = vlaneseq
        %v3283 = vshrl.u32 %v3282, 7
        %v3284 = vsub.s32 3, %v3283
        %v3285 = vrot.slane %v555, %v3284
        %v3286 = vlaneseq
        %v3287 = vshrl.u32 %v3286, 7
        %v3288 = vsub.s32 4, %v3287
        %v3289 = vrot.slane %v555, %v3288
        %v3290 = vlaneseq
        %v3291 = vshrl.u32 %v3290, 7
        %v3292 = vsub.s32 5, %v3291
        %v3293 = vrot.slane %v555, %v3292
        %v3294 = vlaneseq
        %v3295 = vshrl.u32 %v3294, 7
        %v3296 = vsub.s32 6, %v3295
        %v3297 = vrot.slane %v555, %v3296
        %v3298 = vlaneseq
        %v3299 = vshrl.u32 %v3298, 7
        %v3300 = vsub.s32 7, %v3299
        %v3301 = vrot.slane %v555, %v3300
        %v3302 = vlaneseq
        %v3303 = vshrl.u32 %v3302, 7
        %v3304 = vsub.s32 0, %v3303
        %v3305 = vrot.slane %v558, %v3304
        %v3306 = vlaneseq
        %v3307 = vshrl.u32 %v3306, 7
        %v3308 = vsub.s32 1, %v3307
        %v3309 = vrot.slane %v558, %v3308
        %v3310 = vlaneseq
        %v3311 = vshrl.u32 %v3310, 7
        %v3312 = vsub.s32 2, %v3311
        %v3313 = vrot.slane %v558, %v3312
        %v3314 = vlaneseq
        %v3315 = vshrl.u32 %v3314, 7
        %v3316 = vsub.s32 3, %v3315
        %v3317 = vrot.slane %v558, %v3316
        %v3318 = vlaneseq
        %v3319 = vshrl.u32 %v3318, 7
        %v3320 = vsub.s32 4, %v3319
        %v3321 = vrot.slane %v558, %v3320
        %v3322 = vlaneseq
        %v3323 = vshrl.u32 %v3322, 7
        %v3324 = vsub.s32 5, %v3323
        %v3325 = vrot.slane %v558, %v3324
        %v3326 = vlaneseq
        %v3327 = vshrl.u32 %v3326, 7
        %v3328 = vsub.s32 6, %v3327
        %v3329 = vrot.slane %v558, %v3328
        %v3330 = vlaneseq
        %v3331 = vshrl.u32 %v3330, 7
        %v3332 = vsub.s32 7, %v3331
        %v3333 = vrot.slane %v558, %v3332
        %v3334 = vlaneseq
        %v3335 = vshrl.u32 %v3334, 7
        %v3336 = vsub.s32 0, %v3335
        %v3337 = vrot.slane %v561, %v3336
        %v3338 = vlaneseq
        %v3339 = vshrl.u32 %v3338, 7
        %v3340 = vsub.s32 1, %v3339
        %v3341 = vrot.slane %v561, %v3340
        %v3342 = vlaneseq
        %v3343 = vshrl.u32 %v3342, 7
        %v3344 = vsub.s32 2, %v3343
        %v3345 = vrot.slane %v561, %v3344
        %v3346 = vlaneseq
        %v3347 = vshrl.u32 %v3346, 7
        %v3348 = vsub.s32 3, %v3347
        %v3349 = vrot.slane %v561, %v3348
        %v3350 = vlaneseq
        %v3351 = vshrl.u32 %v3350, 7
        %v3352 = vsub.s32 4, %v3351
        %v3353 = vrot.slane %v561, %v3352
        %v3354 = vlaneseq
        %v3355 = vshrl.u32 %v3354, 7
        %v3356 = vsub.s32 5, %v3355
        %v3357 = vrot.slane %v561, %v3356
        %v3358 = vlaneseq
        %v3359 = vshrl.u32 %v3358, 7
        %v3360 = vsub.s32 6, %v3359
        %v3361 = vrot.slane %v561, %v3360
        %v3362 = vlaneseq
        %v3363 = vshrl.u32 %v3362, 7
        %v3364 = vsub.s32 7, %v3363
        %v3365 = vrot.slane %v561, %v3364
        %v3366 = vlaneseq
        %v3367 = vshrl.u32 %v3366, 7
        %v3368 = vsub.s32 0, %v3367
        %v3369 = vrot.slane %v564, %v3368
        %v3370 = vlaneseq
        %v3371 = vshrl.u32 %v3370, 7
        %v3372 = vsub.s32 1, %v3371
        %v3373 = vrot.slane %v564, %v3372
        %v3374 = vlaneseq
        %v3375 = vshrl.u32 %v3374, 7
        %v3376 = vsub.s32 2, %v3375
        %v3377 = vrot.slane %v564, %v3376
        %v3378 = vlaneseq
        %v3379 = vshrl.u32 %v3378, 7
        %v3380 = vsub.s32 3, %v3379
        %v3381 = vrot.slane %v564, %v3380
        %v3382 = vlaneseq
        %v3383 = vshrl.u32 %v3382, 7
        %v3384 = vsub.s32 4, %v3383
        %v3385 = vrot.slane %v564, %v3384
        %v3386 = vlaneseq
        %v3387 = vshrl.u32 %v3386, 7
        %v3388 = vsub.s32 5, %v3387
        %v3389 = vrot.slane %v564, %v3388
        %v3390 = vlaneseq
        %v3391 = vshrl.u32 %v3390, 7
        %v3392 = vsub.s32 6, %v3391
        %v3393 = vrot.slane %v564, %v3392
        %v3394 = vlaneseq
        %v3395 = vshrl.u32 %v3394, 7
        %v3396 = vsub.s32 7, %v3395
        %v3397 = vrot.slane %v564, %v3396
        %v3398 = vlaneseq
        %v3399 = vshrl.u32 %v3398, 7
        %v3400 = vsub.s32 0, %v3399
        %v3401 = vrot.slane %v567, %v3400
        %v3402 = vlaneseq
        %v3403 = vshrl.u32 %v3402, 7
        %v3404 = vsub.s32 1, %v3403
        %v3405 = vrot.slane %v567, %v3404
        %v3406 = vlaneseq
        %v3407 = vshrl.u32 %v3406, 7
        %v3408 = vsub.s32 2, %v3407
        %v3409 = vrot.slane %v567, %v3408
        %v3410 = vlaneseq
        %v3411 = vshrl.u32 %v3410, 7
        %v3412 = vsub.s32 3, %v3411
        %v3413 = vrot.slane %v567, %v3412
        %v3414 = vlaneseq
        %v3415 = vshrl.u32 %v3414, 7
        %v3416 = vsub.s32 4, %v3415
        %v3417 = vrot.slane %v567, %v3416
        %v3418 = vlaneseq
        %v3419 = vshrl.u32 %v3418, 7
        %v3420 = vsub.s32 5, %v3419
        %v3421 = vrot.slane %v567, %v3420
        %v3422 = vlaneseq
        %v3423 = vshrl.u32 %v3422, 7
        %v3424 = vsub.s32 6, %v3423
        %v3425 = vrot.slane %v567, %v3424
        %v3426 = vlaneseq
        %v3427 = vshrl.u32 %v3426, 7
        %v3428 = vsub.s32 7, %v3427
        %v3429 = vrot.slane %v567, %v3428
        %v3430 = vlaneseq
        %v3431 = vshrl.u32 %v3430, 7
        %v3432 = vsub.s32 0, %v3431
        %v3433 = vrot.slane %v570, %v3432
        %v3434 = vlaneseq
        %v3435 = vshrl.u32 %v3434, 7
        %v3436 = vsub.s32 1, %v3435
        %v3437 = vrot.slane %v570, %v3436
        %v3438 = vlaneseq
        %v3439 = vshrl.u32 %v3438, 7
        %v3440 = vsub.s32 2, %v3439
        %v3441 = vrot.slane %v570, %v3440
        %v3442 = vlaneseq
        %v3443 = vshrl.u32 %v3442, 7
        %v3444 = vsub.s32 3, %v3443
        %v3445 = vrot.slane %v570, %v3444
        %v3446 = vlaneseq
        %v3447 = vshrl.u32 %v3446, 7
        %v3448 = vsub.s32 4, %v3447
        %v3449 = vrot.slane %v570, %v3448
        %v3450 = vlaneseq
        %v3451 = vshrl.u32 %v3450, 7
        %v3452 = vsub.s32 5, %v3451
        %v3453 = vrot.slane %v570, %v3452
        %v3454 = vlaneseq
        %v3455 = vshrl.u32 %v3454, 7
        %v3456 = vsub.s32 6, %v3455
        %v3457 = vrot.slane %v570, %v3456
        %v3458 = vlaneseq
        %v3459 = vshrl.u32 %v3458, 7
        %v3460 = vsub.s32 7, %v3459
        %v3461 = vrot.slane %v570, %v3460
        %v3462 = vlaneseq
        %v3463 = vshrl.u32 %v3462, 7
        %v3464 = vsub.s32 0, %v3463
        %v3465 = vrot.slane %v573, %v3464
        %v3466 = vlaneseq
        %v3467 = vshrl.u32 %v3466, 7
        %v3468 = vsub.s32 1, %v3467
        %v3469 = vrot.slane %v573, %v3468
        %v3470 = vlaneseq
        %v3471 = vshrl.u32 %v3470, 7
        %v3472 = vsub.s32 2, %v3471
        %v3473 = vrot.slane %v573, %v3472
        %v3474 = vlaneseq
        %v3475 = vshrl.u32 %v3474, 7
        %v3476 = vsub.s32 3, %v3475
        %v3477 = vrot.slane %v573, %v3476
        %v3478 = vlaneseq
        %v3479 = vshrl.u32 %v3478, 7
        %v3480 = vsub.s32 4, %v3479
        %v3481 = vrot.slane %v573, %v3480
        %v3482 = vlaneseq
        %v3483 = vshrl.u32 %v3482, 7
        %v3484 = vsub.s32 5, %v3483
        %v3485 = vrot.slane %v573, %v3484
        %v3486 = vlaneseq
        %v3487 = vshrl.u32 %v3486, 7
        %v3488 = vsub.s32 6, %v3487
        %v3489 = vrot.slane %v573, %v3488
        %v3490 = vlaneseq
        %v3491 = vshrl.u32 %v3490, 7
        %v3492 = vsub.s32 7, %v3491
        %v3493 = vrot.slane %v573, %v3492
        %v3494 = vlaneseq
        %v3495 = vshrl.u32 %v3494, 7
        %v3496 = vsub.s32 0, %v3495
        %v3497 = vrot.slane %v576, %v3496
        %v3498 = vlaneseq
        %v3499 = vshrl.u32 %v3498, 7
        %v3500 = vsub.s32 1, %v3499
        %v3501 = vrot.slane %v576, %v3500
        %v3502 = vlaneseq
        %v3503 = vshrl.u32 %v3502, 7
        %v3504 = vsub.s32 2, %v3503
        %v3505 = vrot.slane %v576, %v3504
        %v3506 = vlaneseq
        %v3507 = vshrl.u32 %v3506, 7
        %v3508 = vsub.s32 3, %v3507
        %v3509 = vrot.slane %v576, %v3508
        %v3510 = vlaneseq
        %v3511 = vshrl.u32 %v3510, 7
        %v3512 = vsub.s32 4, %v3511
        %v3513 = vrot.slane %v576, %v3512
        %v3514 = vlaneseq
        %v3515 = vshrl.u32 %v3514, 7
        %v3516 = vsub.s32 5, %v3515
        %v3517 = vrot.slane %v576, %v3516
        %v3518 = vlaneseq
        %v3519 = vshrl.u32 %v3518, 7
        %v3520 = vsub.s32 6, %v3519
        %v3521 = vrot.slane %v576, %v3520
        %v3522 = vlaneseq
        %v3523 = vshrl.u32 %v3522, 7
        %v3524 = vsub.s32 7, %v3523
        %v3525 = vrot.slane %v576, %v3524
        %v3526 = vlaneseq
        %v3527 = vshrl.u32 %v3526, 7
        %v3528 = vsub.s32 0, %v3527
        %v3529 = vrot.slane %v579, %v3528
        %v3530 = vlaneseq
        %v3531 = vshrl.u32 %v3530, 7
        %v3532 = vsub.s32 1, %v3531
        %v3533 = vrot.slane %v579, %v3532
        %v3534 = vlaneseq
        %v3535 = vshrl.u32 %v3534, 7
        %v3536 = vsub.s32 2, %v3535
        %v3537 = vrot.slane %v579, %v3536
        %v3538 = vlaneseq
        %v3539 = vshrl.u32 %v3538, 7
        %v3540 = vsub.s32 3, %v3539
        %v3541 = vrot.slane %v579, %v3540
        %v3542 = vlaneseq
        %v3543 = vshrl.u32 %v3542, 7
        %v3544 = vsub.s32 4, %v3543
        %v3545 = vrot.slane %v579, %v3544
        %v3546 = vlaneseq
        %v3547 = vshrl.u32 %v3546, 7
        %v3548 = vsub.s32 5, %v3547
        %v3549 = vrot.slane %v579, %v3548
        %v3550 = vlaneseq
        %v3551 = vshrl.u32 %v3550, 7
        %v3552 = vsub.s32 6, %v3551
        %v3553 = vrot.slane %v579, %v3552
        %v3554 = vlaneseq
        %v3555 = vshrl.u32 %v3554, 7
        %v3556 = vsub.s32 7, %v3555
        %v3557 = vrot.slane %v579, %v3556
        %v3558 = vlaneseq
        %v3559 = vshrl.u32 %v3558, 7
        %v3560 = vsub.s32 0, %v3559
        %v3561 = vrot.slane %v582, %v3560
        %v3562 = vlaneseq
        %v3563 = vshrl.u32 %v3562, 7
        %v3564 = vsub.s32 1, %v3563
        %v3565 = vrot.slane %v582, %v3564
        %v3566 = vlaneseq
        %v3567 = vshrl.u32 %v3566, 7
        %v3568 = vsub.s32 2, %v3567
        %v3569 = vrot.slane %v582, %v3568
        %v3570 = vlaneseq
        %v3571 = vshrl.u32 %v3570, 7
        %v3572 = vsub.s32 3, %v3571
        %v3573 = vrot.slane %v582, %v3572
        %v3574 = vlaneseq
        %v3575 = vshrl.u32 %v3574, 7
        %v3576 = vsub.s32 4, %v3575
        %v3577 = vrot.slane %v582, %v3576
        %v3578 = vlaneseq
        %v3579 = vshrl.u32 %v3578, 7
        %v3580 = vsub.s32 5, %v3579
        %v3581 = vrot.slane %v582, %v3580
        %v3582 = vlaneseq
        %v3583 = vshrl.u32 %v3582, 7
        %v3584 = vsub.s32 6, %v3583
        %v3585 = vrot.slane %v582, %v3584
        %v3586 = vlaneseq
        %v3587 = vshrl.u32 %v3586, 7
        %v3588 = vsub.s32 7, %v3587
        %v3589 = vrot.slane %v582, %v3588
        %v3590 = vlaneseq
        %v3591 = vshrl.u32 %v3590, 7
        %v3592 = vsub.s32 0, %v3591
        %v3593 = vrot.slane %v585, %v3592
        %v3594 = vlaneseq
        %v3595 = vshrl.u32 %v3594, 7
        %v3596 = vsub.s32 1, %v3595
        %v3597 = vrot.slane %v585, %v3596
        %v3598 = vlaneseq
        %v3599 = vshrl.u32 %v3598, 7
        %v3600 = vsub.s32 2, %v3599
        %v3601 = vrot.slane %v585, %v3600
        %v3602 = vlaneseq
        %v3603 = vshrl.u32 %v3602, 7
        %v3604 = vsub.s32 3, %v3603
        %v3605 = vrot.slane %v585, %v3604
        %v3606 = vlaneseq
        %v3607 = vshrl.u32 %v3606, 7
        %v3608 = vsub.s32 4, %v3607
        %v3609 = vrot.slane %v585, %v3608
        %v3610 = vlaneseq
        %v3611 = vshrl.u32 %v3610, 7
        %v3612 = vsub.s32 5, %v3611
        %v3613 = vrot.slane %v585, %v3612
        %v3614 = vlaneseq
        %v3615 = vshrl.u32 %v3614, 7
        %v3616 = vsub.s32 6, %v3615
        %v3617 = vrot.slane %v585, %v3616
        %v3618 = vlaneseq
        %v3619 = vshrl.u32 %v3618, 7
        %v3620 = vsub.s32 7, %v3619
        %v3621 = vrot.slane %v585, %v3620
        %v3622 = vlaneseq
        %v3623 = vshrl.u32 %v3622, 7
        %v3624 = vsub.s32 0, %v3623
        %v3625 = vrot.slane %v588, %v3624
        %v3626 = vlaneseq
        %v3627 = vshrl.u32 %v3626, 7
        %v3628 = vsub.s32 1, %v3627
        %v3629 = vrot.slane %v588, %v3628
        %v3630 = vlaneseq
        %v3631 = vshrl.u32 %v3630, 7
        %v3632 = vsub.s32 2, %v3631
        %v3633 = vrot.slane %v588, %v3632
        %v3634 = vlaneseq
        %v3635 = vshrl.u32 %v3634, 7
        %v3636 = vsub.s32 3, %v3635
        %v3637 = vrot.slane %v588, %v3636
        %v3638 = vlaneseq
        %v3639 = vshrl.u32 %v3638, 7
        %v3640 = vsub.s32 4, %v3639
        %v3641 = vrot.slane %v588, %v3640
        %v3642 = vlaneseq
        %v3643 = vshrl.u32 %v3642, 7
        %v3644 = vsub.s32 5, %v3643
        %v3645 = vrot.slane %v588, %v3644
        %v3646 = vlaneseq
        %v3647 = vshrl.u32 %v3646, 7
        %v3648 = vsub.s32 6, %v3647
        %v3649 = vrot.slane %v588, %v3648
        %v3650 = vlaneseq
        %v3651 = vshrl.u32 %v3650, 7
        %v3652 = vsub.s32 7, %v3651
        %v3653 = vrot.slane %v588, %v3652
        %v3654 = vlaneseq
        %v3655 = vshrl.u32 %v3654, 7
        %v3656 = vsub.s32 0, %v3655
        %v3657 = vrot.slane %v591, %v3656
        %v3658 = vlaneseq
        %v3659 = vshrl.u32 %v3658, 7
        %v3660 = vsub.s32 1, %v3659
        %v3661 = vrot.slane %v591, %v3660
        %v3662 = vlaneseq
        %v3663 = vshrl.u32 %v3662, 7
        %v3664 = vsub.s32 2, %v3663
        %v3665 = vrot.slane %v591, %v3664
        %v3666 = vlaneseq
        %v3667 = vshrl.u32 %v3666, 7
        %v3668 = vsub.s32 3, %v3667
        %v3669 = vrot.slane %v591, %v3668
        %v3670 = vlaneseq
        %v3671 = vshrl.u32 %v3670, 7
        %v3672 = vsub.s32 4, %v3671
        %v3673 = vrot.slane %v591, %v3672
        %v3674 = vlaneseq
        %v3675 = vshrl.u32 %v3674, 7
        %v3676 = vsub.s32 5, %v3675
        %v3677 = vrot.slane %v591, %v3676
        %v3678 = vlaneseq
        %v3679 = vshrl.u32 %v3678, 7
        %v3680 = vsub.s32 6, %v3679
        %v3681 = vrot.slane %v591, %v3680
        %v3682 = vlaneseq
        %v3683 = vshrl.u32 %v3682, 7
        %v3684 = vsub.s32 7, %v3683
        %v3685 = vrot.slane %v591, %v3684
        %v3686 = vlaneseq
        %v3687 = vshrl.u32 %v3686, 7
        %v3688 = vsub.s32 0, %v3687
        %v3689 = vrot.slane %v594, %v3688
        %v3690 = vlaneseq
        %v3691 = vshrl.u32 %v3690, 7
        %v3692 = vsub.s32 1, %v3691
        %v3693 = vrot.slane %v594, %v3692
        %v3694 = vlaneseq
        %v3695 = vshrl.u32 %v3694, 7
        %v3696 = vsub.s32 2, %v3695
        %v3697 = vrot.slane %v594, %v3696
        %v3698 = vlaneseq
        %v3699 = vshrl.u32 %v3698, 7
        %v3700 = vsub.s32 3, %v3699
        %v3701 = vrot.slane %v594, %v3700
        %v3702 = vlaneseq
        %v3703 = vshrl.u32 %v3702, 7
        %v3704 = vsub.s32 4, %v3703
        %v3705 = vrot.slane %v594, %v3704
        %v3706 = vlaneseq
        %v3707 = vshrl.u32 %v3706, 7
        %v3708 = vsub.s32 5, %v3707
        %v3709 = vrot.slane %v594, %v3708
        %v3710 = vlaneseq
        %v3711 = vshrl.u32 %v3710, 7
        %v3712 = vsub.s32 6, %v3711
        %v3713 = vrot.slane %v594, %v3712
        %v3714 = vlaneseq
        %v3715 = vshrl.u32 %v3714, 7
        %v3716 = vsub.s32 7, %v3715
        %v3717 = vrot.slane %v594, %v3716
        %v3718 = vlaneseq
        %v3719 = vshrl.u32 %v3718, 7
        %v3720 = vsub.s32 0, %v3719
        %v3721 = vrot.slane %v597, %v3720
        %v3722 = vlaneseq
        %v3723 = vshrl.u32 %v3722, 7
        %v3724 = vsub.s32 1, %v3723
        %v3725 = vrot.slane %v597, %v3724
        %v3726 = vlaneseq
        %v3727 = vshrl.u32 %v3726, 7
        %v3728 = vsub.s32 2, %v3727
        %v3729 = vrot.slane %v597, %v3728
        %v3730 = vlaneseq
        %v3731 = vshrl.u32 %v3730, 7
        %v3732 = vsub.s32 3, %v3731
        %v3733 = vrot.slane %v597, %v3732
        %v3734 = vlaneseq
        %v3735 = vshrl.u32 %v3734, 7
        %v3736 = vsub.s32 4, %v3735
        %v3737 = vrot.slane %v597, %v3736
        %v3738 = vlaneseq
        %v3739 = vshrl.u32 %v3738, 7
        %v3740 = vsub.s32 5, %v3739
        %v3741 = vrot.slane %v597, %v3740
        %v3742 = vlaneseq
        %v3743 = vshrl.u32 %v3742, 7
        %v3744 = vsub.s32 6, %v3743
        %v3745 = vrot.slane %v597, %v3744
        %v3746 = vlaneseq
        %v3747 = vshrl.u32 %v3746, 7
        %v3748 = vsub.s32 7, %v3747
        %v3749 = vrot.slane %v597, %v3748
        %v3750 = vlaneseq
        %v3751 = vshrl.u32 %v3750, 7
        %v3752 = vsub.s32 0, %v3751
        %v3753 = vrot.slane %v600, %v3752
        %v3754 = vlaneseq
        %v3755 = vshrl.u32 %v3754, 7
        %v3756 = vsub.s32 1, %v3755
        %v3757 = vrot.slane %v600, %v3756
        %v3758 = vlaneseq
        %v3759 = vshrl.u32 %v3758, 7
        %v3760 = vsub.s32 2, %v3759
        %v3761 = vrot.slane %v600, %v3760
        %v3762 = vlaneseq
        %v3763 = vshrl.u32 %v3762, 7
        %v3764 = vsub.s32 3, %v3763
        %v3765 = vrot.slane %v600, %v3764
        %v3766 = vlaneseq
        %v3767 = vshrl.u32 %v3766, 7
        %v3768 = vsub.s32 4, %v3767
        %v3769 = vrot.slane %v600, %v3768
        %v3770 = vlaneseq
        %v3771 = vshrl.u32 %v3770, 7
        %v3772 = vsub.s32 5, %v3771
        %v3773 = vrot.slane %v600, %v3772
        %v3774 = vlaneseq
        %v3775 = vshrl.u32 %v3774, 7
        %v3776 = vsub.s32 6, %v3775
        %v3777 = vrot.slane %v600, %v3776
        %v3778 = vlaneseq
        %v3779 = vshrl.u32 %v3778, 7
        %v3780 = vsub.s32 7, %v3779
        %v3781 = vrot.slane %v600, %v3780
        %v3782 = vlaneseq
        %v3783 = vshrl.u32 %v3782, 7
        %v3784 = vsub.s32 0, %v3783
        %v3785 = vrot.slane %v603, %v3784
        %v3786 = vlaneseq
        %v3787 = vshrl.u32 %v3786, 7
        %v3788 = vsub.s32 1, %v3787
        %v3789 = vrot.slane %v603, %v3788
        %v3790 = vlaneseq
        %v3791 = vshrl.u32 %v3790, 7
        %v3792 = vsub.s32 2, %v3791
        %v3793 = vrot.slane %v603, %v3792
        %v3794 = vlaneseq
        %v3795 = vshrl.u32 %v3794, 7
        %v3796 = vsub.s32 3, %v3795
        %v3797 = vrot.slane %v603, %v3796
        %v3798 = vlaneseq
        %v3799 = vshrl.u32 %v3798, 7
        %v3800 = vsub.s32 4, %v3799
        %v3801 = vrot.slane %v603, %v3800
        %v3802 = vlaneseq
        %v3803 = vshrl.u32 %v3802, 7
        %v3804 = vsub.s32 5, %v3803
        %v3805 = vrot.slane %v603, %v3804
        %v3806 = vlaneseq
        %v3807 = vshrl.u32 %v3806, 7
        %v3808 = vsub.s32 6, %v3807
        %v3809 = vrot.slane %v603, %v3808
        %v3810 = vlaneseq
        %v3811 = vshrl.u32 %v3810, 7
        %v3812 = vsub.s32 7, %v3811
        %v3813 = vrot.slane %v603, %v3812
        %v3814 = vlaneseq
        %v3815 = vshrl.u32 %v3814, 7
        %v3816 = vsub.s32 0, %v3815
        %v3817 = vrot.slane %v606, %v3816
        %v3818 = vlaneseq
        %v3819 = vshrl.u32 %v3818, 7
        %v3820 = vsub.s32 1, %v3819
        %v3821 = vrot.slane %v606, %v3820
        %v3822 = vlaneseq
        %v3823 = vshrl.u32 %v3822, 7
        %v3824 = vsub.s32 2, %v3823
        %v3825 = vrot.slane %v606, %v3824
        %v3826 = vlaneseq
        %v3827 = vshrl.u32 %v3826, 7
        %v3828 = vsub.s32 3, %v3827
        %v3829 = vrot.slane %v606, %v3828
        %v3830 = vlaneseq
        %v3831 = vshrl.u32 %v3830, 7
        %v3832 = vsub.s32 4, %v3831
        %v3833 = vrot.slane %v606, %v3832
        %v3834 = vlaneseq
        %v3835 = vshrl.u32 %v3834, 7
        %v3836 = vsub.s32 5, %v3835
        %v3837 = vrot.slane %v606, %v3836
        %v3838 = vlaneseq
        %v3839 = vshrl.u32 %v3838, 7
        %v3840 = vsub.s32 6, %v3839
        %v3841 = vrot.slane %v606, %v3840
        %v3842 = vlaneseq
        %v3843 = vshrl.u32 %v3842, 7
        %v3844 = vsub.s32 7, %v3843
        %v3845 = vrot.slane %v606, %v3844
        %v3846 = vlaneseq
        %v3847 = vshrl.u32 %v3846, 7
        %v3848 = vsub.s32 0, %v3847
        %v3849 = vrot.slane %v609, %v3848
        %v3850 = vlaneseq
        %v3851 = vshrl.u32 %v3850, 7
        %v3852 = vsub.s32 1, %v3851
        %v3853 = vrot.slane %v609, %v3852
        %v3854 = vlaneseq
        %v3855 = vshrl.u32 %v3854, 7
        %v3856 = vsub.s32 2, %v3855
        %v3857 = vrot.slane %v609, %v3856
        %v3858 = vlaneseq
        %v3859 = vshrl.u32 %v3858, 7
        %v3860 = vsub.s32 3, %v3859
        %v3861 = vrot.slane %v609, %v3860
        %v3862 = vlaneseq
        %v3863 = vshrl.u32 %v3862, 7
        %v3864 = vsub.s32 4, %v3863
        %v3865 = vrot.slane %v609, %v3864
        %v3866 = vlaneseq
        %v3867 = vshrl.u32 %v3866, 7
        %v3868 = vsub.s32 5, %v3867
        %v3869 = vrot.slane %v609, %v3868
        %v3870 = vlaneseq
        %v3871 = vshrl.u32 %v3870, 7
        %v3872 = vsub.s32 6, %v3871
        %v3873 = vrot.slane %v609, %v3872
        %v3874 = vlaneseq
        %v3875 = vshrl.u32 %v3874, 7
        %v3876 = vsub.s32 7, %v3875
        %v3877 = vrot.slane %v609, %v3876
        %v3878 = vlaneseq
        %v3879 = vshrl.u32 %v3878, 7
        %v3880 = vsub.s32 0, %v3879
        %v3881 = vrot.slane %v612, %v3880
        %v3882 = vlaneseq
        %v3883 = vshrl.u32 %v3882, 7
        %v3884 = vsub.s32 1, %v3883
        %v3885 = vrot.slane %v612, %v3884
        %v3886 = vlaneseq
        %v3887 = vshrl.u32 %v3886, 7
        %v3888 = vsub.s32 2, %v3887
        %v3889 = vrot.slane %v612, %v3888
        %v3890 = vlaneseq
        %v3891 = vshrl.u32 %v3890, 7
        %v3892 = vsub.s32 3, %v3891
        %v3893 = vrot.slane %v612, %v3892
        %v3894 = vlaneseq
        %v3895 = vshrl.u32 %v3894, 7
        %v3896 = vsub.s32 4, %v3895
        %v3897 = vrot.slane %v612, %v3896
        %v3898 = vlaneseq
        %v3899 = vshrl.u32 %v3898, 7
        %v3900 = vsub.s32 5, %v3899
        %v3901 = vrot.slane %v612, %v3900
        %v3902 = vlaneseq
        %v3903 = vshrl.u32 %v3902, 7
        %v3904 = vsub.s32 6, %v3903
        %v3905 = vrot.slane %v612, %v3904
        %v3906 = vlaneseq
        %v3907 = vshrl.u32 %v3906, 7
        %v3908 = vsub.s32 7, %v3907
        %v3909 = vrot.slane %v612, %v3908
        %v3910 = vlaneseq
        %v3911 = vshrl.u32 %v3910, 7
        %v3912 = vsub.s32 0, %v3911
        %v3913 = vrot.slane %v615, %v3912
        %v3914 = vlaneseq
        %v3915 = vshrl.u32 %v3914, 7
        %v3916 = vsub.s32 1, %v3915
        %v3917 = vrot.slane %v615, %v3916
        %v3918 = vlaneseq
        %v3919 = vshrl.u32 %v3918, 7
        %v3920 = vsub.s32 2, %v3919
        %v3921 = vrot.slane %v615, %v3920
        %v3922 = vlaneseq
        %v3923 = vshrl.u32 %v3922, 7
        %v3924 = vsub.s32 3, %v3923
        %v3925 = vrot.slane %v615, %v3924
        %v3926 = vlaneseq
        %v3927 = vshrl.u32 %v3926, 7
        %v3928 = vsub.s32 4, %v3927
        %v3929 = vrot.slane %v615, %v3928
        %v3930 = vlaneseq
        %v3931 = vshrl.u32 %v3930, 7
        %v3932 = vsub.s32 5, %v3931
        %v3933 = vrot.slane %v615, %v3932
        %v3934 = vlaneseq
        %v3935 = vshrl.u32 %v3934, 7
        %v3936 = vsub.s32 6, %v3935
        %v3937 = vrot.slane %v615, %v3936
        %v3938 = vlaneseq
        %v3939 = vshrl.u32 %v3938, 7
        %v3940 = vsub.s32 7, %v3939
        %v3941 = vrot.slane %v615, %v3940
        %v3942 = vlaneseq
        %v3943 = vshrl.u32 %v3942, 7
        %v3944 = vsub.s32 0, %v3943
        %v3945 = vrot.slane %v618, %v3944
        %v3946 = vlaneseq
        %v3947 = vshrl.u32 %v3946, 7
        %v3948 = vsub.s32 1, %v3947
        %v3949 = vrot.slane %v618, %v3948
        %v3950 = vlaneseq
        %v3951 = vshrl.u32 %v3950, 7
        %v3952 = vsub.s32 2, %v3951
        %v3953 = vrot.slane %v618, %v3952
        %v3954 = vlaneseq
        %v3955 = vshrl.u32 %v3954, 7
        %v3956 = vsub.s32 3, %v3955
        %v3957 = vrot.slane %v618, %v3956
        %v3958 = vlaneseq
        %v3959 = vshrl.u32 %v3958, 7
        %v3960 = vsub.s32 4, %v3959
        %v3961 = vrot.slane %v618, %v3960
        %v3962 = vlaneseq
        %v3963 = vshrl.u32 %v3962, 7
        %v3964 = vsub.s32 5, %v3963
        %v3965 = vrot.slane %v618, %v3964
        %v3966 = vlaneseq
        %v3967 = vshrl.u32 %v3966, 7
        %v3968 = vsub.s32 6, %v3967
        %v3969 = vrot.slane %v618, %v3968
        %v3970 = vlaneseq
        %v3971 = vshrl.u32 %v3970, 7
        %v3972 = vsub.s32 7, %v3971
        %v3973 = vrot.slane %v618, %v3972
        %v3974 = vlaneseq
        %v3975 = vshrl.u32 %v3974, 7
        %v3976 = vsub.s32 0, %v3975
        %v3977 = vrot.slane %v621, %v3976
        %v3978 = vlaneseq
        %v3979 = vshrl.u32 %v3978, 7
        %v3980 = vsub.s32 1, %v3979
        %v3981 = vrot.slane %v621, %v3980
        %v3982 = vlaneseq
        %v3983 = vshrl.u32 %v3982, 7
        %v3984 = vsub.s32 2, %v3983
        %v3985 = vrot.slane %v621, %v3984
        %v3986 = vlaneseq
        %v3987 = vshrl.u32 %v3986, 7
        %v3988 = vsub.s32 3, %v3987
        %v3989 = vrot.slane %v621, %v3988
        %v3990 = vlaneseq
        %v3991 = vshrl.u32 %v3990, 7
        %v3992 = vsub.s32 4, %v3991
        %v3993 = vrot.slane %v621, %v3992
        %v3994 = vlaneseq
        %v3995 = vshrl.u32 %v3994, 7
        %v3996 = vsub.s32 5, %v3995
        %v3997 = vrot.slane %v621, %v3996
        %v3998 = vlaneseq
        %v3999 = vshrl.u32 %v3998, 7
        %v4000 = vsub.s32 6, %v3999
        %v4001 = vrot.slane %v621, %v4000
        %v4002 = vlaneseq
        %v4003 = vshrl.u32 %v4002, 7
        %v4004 = vsub.s32 7, %v4003
        %v4005 = vrot.slane %v621, %v4004
        %v4006 = vlaneseq
        %v4007 = vshrl.u32 %v4006, 7
        %v4008 = vsub.s32 0, %v4007
        %v4009 = vrot.slane %v624, %v4008
        %v4010 = vlaneseq
        %v4011 = vshrl.u32 %v4010, 7
        %v4012 = vsub.s32 1, %v4011
        %v4013 = vrot.slane %v624, %v4012
        %v4014 = vlaneseq
        %v4015 = vshrl.u32 %v4014, 7
        %v4016 = vsub.s32 2, %v4015
        %v4017 = vrot.slane %v624, %v4016
        %v4018 = vlaneseq
        %v4019 = vshrl.u32 %v4018, 7
        %v4020 = vsub.s32 3, %v4019
        %v4021 = vrot.slane %v624, %v4020
        %v4022 = vlaneseq
        %v4023 = vshrl.u32 %v4022, 7
        %v4024 = vsub.s32 4, %v4023
        %v4025 = vrot.slane %v624, %v4024
        %v4026 = vlaneseq
        %v4027 = vshrl.u32 %v4026, 7
        %v4028 = vsub.s32 5, %v4027
        %v4029 = vrot.slane %v624, %v4028
        %v4030 = vlaneseq
        %v4031 = vshrl.u32 %v4030, 7
        %v4032 = vsub.s32 6, %v4031
        %v4033 = vrot.slane %v624, %v4032
        %v4034 = vlaneseq
        %v4035 = vshrl.u32 %v4034, 7
        %v4036 = vsub.s32 7, %v4035
        %v4037 = vrot.slane %v624, %v4036
        %v4038 = vlaneseq
        %v4039 = vshrl.u32 %v4038, 7
        %v4040 = vsub.s32 0, %v4039
        %v4041 = vrot.slane %v627, %v4040
        %v4042 = vlaneseq
        %v4043 = vshrl.u32 %v4042, 7
        %v4044 = vsub.s32 1, %v4043
        %v4045 = vrot.slane %v627, %v4044
        %v4046 = vlaneseq
        %v4047 = vshrl.u32 %v4046, 7
        %v4048 = vsub.s32 2, %v4047
        %v4049 = vrot.slane %v627, %v4048
        %v4050 = vlaneseq
        %v4051 = vshrl.u32 %v4050, 7
        %v4052 = vsub.s32 3, %v4051
        %v4053 = vrot.slane %v627, %v4052
        %v4054 = vlaneseq
        %v4055 = vshrl.u32 %v4054, 7
        %v4056 = vsub.s32 4, %v4055
        %v4057 = vrot.slane %v627, %v4056
        %v4058 = vlaneseq
        %v4059 = vshrl.u32 %v4058, 7
        %v4060 = vsub.s32 5, %v4059
        %v4061 = vrot.slane %v627, %v4060
        %v4062 = vlaneseq
        %v4063 = vshrl.u32 %v4062, 7
        %v4064 = vsub.s32 6, %v4063
        %v4065 = vrot.slane %v627, %v4064
        %v4066 = vlaneseq
        %v4067 = vshrl.u32 %v4066, 7
        %v4068 = vsub.s32 7, %v4067
        %v4069 = vrot.slane %v627, %v4068
        %v4070 = vlaneseq
        %v4071 = vshrl.u32 %v4070, 7
        %v4072 = vsub.s32 0, %v4071
        %v4073 = vrot.slane %v630, %v4072
        %v4074 = vlaneseq
        %v4075 = vshrl.u32 %v4074, 7
        %v4076 = vsub.s32 1, %v4075
        %v4077 = vrot.slane %v630, %v4076
        %v4078 = vlaneseq
        %v4079 = vshrl.u32 %v4078, 7
        %v4080 = vsub.s32 2, %v4079
        %v4081 = vrot.slane %v630, %v4080
        %v4082 = vlaneseq
        %v4083 = vshrl.u32 %v4082, 7
        %v4084 = vsub.s32 3, %v4083
        %v4085 = vrot.slane %v630, %v4084
        %v4086 = vlaneseq
        %v4087 = vshrl.u32 %v4086, 7
        %v4088 = vsub.s32 4, %v4087
        %v4089 = vrot.slane %v630, %v4088
        %v4090 = vlaneseq
        %v4091 = vshrl.u32 %v4090, 7
        %v4092 = vsub.s32 5, %v4091
        %v4093 = vrot.slane %v630, %v4092
        %v4094 = vlaneseq
        %v4095 = vshrl.u32 %v4094, 7
        %v4096 = vsub.s32 6, %v4095
        %v4097 = vrot.slane %v630, %v4096
        %v4098 = vlaneseq
        %v4099 = vshrl.u32 %v4098, 7
        %v4100 = vsub.s32 7, %v4099
        %v4101 = vrot.slane %v630, %v4100
        %v4102 = vlaneseq
        %v4103 = vshrl.u32 %v4102, 7
        %v4104 = vsub.s32 0, %v4103
        %v4105 = vrot.slane %v633, %v4104
        %v4106 = vlaneseq
        %v4107 = vshrl.u32 %v4106, 7
        %v4108 = vsub.s32 1, %v4107
        %v4109 = vrot.slane %v633, %v4108
        %v4110 = vlaneseq
        %v4111 = vshrl.u32 %v4110, 7
        %v4112 = vsub.s32 2, %v4111
        %v4113 = vrot.slane %v633, %v4112
        %v4114 = vlaneseq
        %v4115 = vshrl.u32 %v4114, 7
        %v4116 = vsub.s32 3, %v4115
        %v4117 = vrot.slane %v633, %v4116
        %v4118 = vlaneseq
        %v4119 = vshrl.u32 %v4118, 7
        %v4120 = vsub.s32 4, %v4119
        %v4121 = vrot.slane %v633, %v4120
        %v4122 = vlaneseq
        %v4123 = vshrl.u32 %v4122, 7
        %v4124 = vsub.s32 5, %v4123
        %v4125 = vrot.slane %v633, %v4124
        %v4126 = vlaneseq
        %v4127 = vshrl.u32 %v4126, 7
        %v4128 = vsub.s32 6, %v4127
        %v4129 = vrot.slane %v633, %v4128
        %v4130 = vlaneseq
        %v4131 = vshrl.u32 %v4130, 7
        %v4132 = vsub.s32 7, %v4131
        %v4133 = vrot.slane %v633, %v4132
        %v4134 = vlaneseq
        %v4135 = vshrl.u32 %v4134, 7
        %v4136 = vsub.s32 0, %v4135
        %v4137 = vrot.slane %v636, %v4136
        %v4138 = vlaneseq
        %v4139 = vshrl.u32 %v4138, 7
        %v4140 = vsub.s32 1, %v4139
        %v4141 = vrot.slane %v636, %v4140
        %v4142 = vlaneseq
        %v4143 = vshrl.u32 %v4142, 7
        %v4144 = vsub.s32 2, %v4143
        %v4145 = vrot.slane %v636, %v4144
        %v4146 = vlaneseq
        %v4147 = vshrl.u32 %v4146, 7
        %v4148 = vsub.s32 3, %v4147
        %v4149 = vrot.slane %v636, %v4148
        %v4150 = vlaneseq
        %v4151 = vshrl.u32 %v4150, 7
        %v4152 = vsub.s32 4, %v4151
        %v4153 = vrot.slane %v636, %v4152
        %v4154 = vlaneseq
        %v4155 = vshrl.u32 %v4154, 7
        %v4156 = vsub.s32 5, %v4155
        %v4157 = vrot.slane %v636, %v4156
        %v4158 = vlaneseq
        %v4159 = vshrl.u32 %v4158, 7
        %v4160 = vsub.s32 6, %v4159
        %v4161 = vrot.slane %v636, %v4160
        %v4162 = vlaneseq
        %v4163 = vshrl.u32 %v4162, 7
        %v4164 = vsub.s32 7, %v4163
        %v4165 = vrot.slane %v636, %v4164
        %v4166 = vlaneseq
        %v4167 = vshrl.u32 %v4166, 7
        %v4168 = vsub.s32 0, %v4167
        %v4169 = vrot.slane %v639, %v4168
        %v4170 = vlaneseq
        %v4171 = vshrl.u32 %v4170, 7
        %v4172 = vsub.s32 1, %v4171
        %v4173 = vrot.slane %v639, %v4172
        %v4174 = vlaneseq
        %v4175 = vshrl.u32 %v4174, 7
        %v4176 = vsub.s32 2, %v4175
        %v4177 = vrot.slane %v639, %v4176
        %v4178 = vlaneseq
        %v4179 = vshrl.u32 %v4178, 7
        %v4180 = vsub.s32 3, %v4179
        %v4181 = vrot.slane %v639, %v4180
        %v4182 = vlaneseq
        %v4183 = vshrl.u32 %v4182, 7
        %v4184 = vsub.s32 4, %v4183
        %v4185 = vrot.slane %v639, %v4184
        %v4186 = vlaneseq
        %v4187 = vshrl.u32 %v4186, 7
        %v4188 = vsub.s32 5, %v4187
        %v4189 = vrot.slane %v639, %v4188
        %v4190 = vlaneseq
        %v4191 = vshrl.u32 %v4190, 7
        %v4192 = vsub.s32 6, %v4191
        %v4193 = vrot.slane %v639, %v4192
        %v4194 = vlaneseq
        %v4195 = vshrl.u32 %v4194, 7
        %v4196 = vsub.s32 7, %v4195
        %v4197 = vrot.slane %v639, %v4196
        %v4198 = vlaneseq
        %v4199 = vshrl.u32 %v4198, 7
        %v4200 = vsub.s32 0, %v4199
        %v4201 = vrot.slane %v642, %v4200
        %v4202 = vlaneseq
        %v4203 = vshrl.u32 %v4202, 7
        %v4204 = vsub.s32 1, %v4203
        %v4205 = vrot.slane %v642, %v4204
        %v4206 = vlaneseq
        %v4207 = vshrl.u32 %v4206, 7
        %v4208 = vsub.s32 2, %v4207
        %v4209 = vrot.slane %v642, %v4208
        %v4210 = vlaneseq
        %v4211 = vshrl.u32 %v4210, 7
        %v4212 = vsub.s32 3, %v4211
        %v4213 = vrot.slane %v642, %v4212
        %v4214 = vlaneseq
        %v4215 = vshrl.u32 %v4214, 7
        %v4216 = vsub.s32 4, %v4215
        %v4217 = vrot.slane %v642, %v4216
        %v4218 = vlaneseq
        %v4219 = vshrl.u32 %v4218, 7
        %v4220 = vsub.s32 5, %v4219
        %v4221 = vrot.slane %v642, %v4220
        %v4222 = vlaneseq
        %v4223 = vshrl.u32 %v4222, 7
        %v4224 = vsub.s32 6, %v4223
        %v4225 = vrot.slane %v642, %v4224
        %v4226 = vlaneseq
        %v4227 = vshrl.u32 %v4226, 7
        %v4228 = vsub.s32 7, %v4227
        %v4229 = vrot.slane %v642, %v4228
        %v4230 = vlaneseq
        %v4231 = vshrl.u32 %v4230, 7
        %v4232 = vsub.s32 0, %v4231
        %v4233 = vrot.slane %v645, %v4232
        %v4234 = vlaneseq
        %v4235 = vshrl.u32 %v4234, 7
        %v4236 = vsub.s32 1, %v4235
        %v4237 = vrot.slane %v645, %v4236
        %v4238 = vlaneseq
        %v4239 = vshrl.u32 %v4238, 7
        %v4240 = vsub.s32 2, %v4239
        %v4241 = vrot.slane %v645, %v4240
        %v4242 = vlaneseq
        %v4243 = vshrl.u32 %v4242, 7
        %v4244 = vsub.s32 3, %v4243
        %v4245 = vrot.slane %v645, %v4244
        %v4246 = vlaneseq
        %v4247 = vshrl.u32 %v4246, 7
        %v4248 = vsub.s32 4, %v4247
        %v4249 = vrot.slane %v645, %v4248
        %v4250 = vlaneseq
        %v4251 = vshrl.u32 %v4250, 7
        %v4252 = vsub.s32 5, %v4251
        %v4253 = vrot.slane %v645, %v4252
        %v4254 = vlaneseq
        %v4255 = vshrl.u32 %v4254, 7
        %v4256 = vsub.s32 6, %v4255
        %v4257 = vrot.slane %v645, %v4256
        %v4258 = vlaneseq
        %v4259 = vshrl.u32 %v4258, 7
        %v4260 = vsub.s32 7, %v4259
        %v4261 = vrot.slane %v645, %v4260
        %v4262 = vlaneseq
        %v4263 = vshrl.u32 %v4262, 7
        %v4264 = vsub.s32 0, %v4263
        %v4265 = vrot.slane %v648, %v4264
        %v4266 = vlaneseq
        %v4267 = vshrl.u32 %v4266, 7
        %v4268 = vsub.s32 1, %v4267
        %v4269 = vrot.slane %v648, %v4268
        %v4270 = vlaneseq
        %v4271 = vshrl.u32 %v4270, 7
        %v4272 = vsub.s32 2, %v4271
        %v4273 = vrot.slane %v648, %v4272
        %v4274 = vlaneseq
        %v4275 = vshrl.u32 %v4274, 7
        %v4276 = vsub.s32 3, %v4275
        %v4277 = vrot.slane %v648, %v4276
        %v4278 = vlaneseq
        %v4279 = vshrl.u32 %v4278, 7
        %v4280 = vsub.s32 4, %v4279
        %v4281 = vrot.slane %v648, %v4280
        %v4282 = vlaneseq
        %v4283 = vshrl.u32 %v4282, 7
        %v4284 = vsub.s32 5, %v4283
        %v4285 = vrot.slane %v648, %v4284
        %v4286 = vlaneseq
        %v4287 = vshrl.u32 %v4286, 7
        %v4288 = vsub.s32 6, %v4287
        %v4289 = vrot.slane %v648, %v4288
        %v4290 = vlaneseq
        %v4291 = vshrl.u32 %v4290, 7
        %v4292 = vsub.s32 7, %v4291
        %v4293 = vrot.slane %v648, %v4292
        %v4294 = vlaneseq
        %v4295 = vshrl.u32 %v4294, 7
        %v4296 = vsub.s32 0, %v4295
        %v4297 = vrot.slane %v651, %v4296
        %v4298 = vlaneseq
        %v4299 = vshrl.u32 %v4298, 7
        %v4300 = vsub.s32 1, %v4299
        %v4301 = vrot.slane %v651, %v4300
        %v4302 = vlaneseq
        %v4303 = vshrl.u32 %v4302, 7
        %v4304 = vsub.s32 2, %v4303
        %v4305 = vrot.slane %v651, %v4304
        %v4306 = vlaneseq
        %v4307 = vshrl.u32 %v4306, 7
        %v4308 = vsub.s32 3, %v4307
        %v4309 = vrot.slane %v651, %v4308
        %v4310 = vlaneseq
        %v4311 = vshrl.u32 %v4310, 7
        %v4312 = vsub.s32 4, %v4311
        %v4313 = vrot.slane %v651, %v4312
        %v4314 = vlaneseq
        %v4315 = vshrl.u32 %v4314, 7
        %v4316 = vsub.s32 5, %v4315
        %v4317 = vrot.slane %v651, %v4316
        %v4318 = vlaneseq
        %v4319 = vshrl.u32 %v4318, 7
        %v4320 = vsub.s32 6, %v4319
        %v4321 = vrot.slane %v651, %v4320
        %v4322 = vlaneseq
        %v4323 = vshrl.u32 %v4322, 7
        %v4324 = vsub.s32 7, %v4323
        %v4325 = vrot.slane %v651, %v4324
        %v4326 = vlaneseq
        %v4327 = vshrl.u32 %v4326, 7
        %v4328 = vsub.s32 0, %v4327
        %v4329 = vrot.slane %v654, %v4328
        %v4330 = vlaneseq
        %v4331 = vshrl.u32 %v4330, 7
        %v4332 = vsub.s32 1, %v4331
        %v4333 = vrot.slane %v654, %v4332
        %v4334 = vlaneseq
        %v4335 = vshrl.u32 %v4334, 7
        %v4336 = vsub.s32 2, %v4335
        %v4337 = vrot.slane %v654, %v4336
        %v4338 = vlaneseq
        %v4339 = vshrl.u32 %v4338, 7
        %v4340 = vsub.s32 3, %v4339
        %v4341 = vrot.slane %v654, %v4340
        %v4342 = vlaneseq
        %v4343 = vshrl.u32 %v4342, 7
        %v4344 = vsub.s32 4, %v4343
        %v4345 = vrot.slane %v654, %v4344
        %v4346 = vlaneseq
        %v4347 = vshrl.u32 %v4346, 7
        %v4348 = vsub.s32 5, %v4347
        %v4349 = vrot.slane %v654, %v4348
        %v4350 = vlaneseq
        %v4351 = vshrl.u32 %v4350, 7
        %v4352 = vsub.s32 6, %v4351
        %v4353 = vrot.slane %v654, %v4352
        %v4354 = vlaneseq
        %v4355 = vshrl.u32 %v4354, 7
        %v4356 = vsub.s32 7, %v4355
        %v4357 = vrot.slane %v654, %v4356
        %v4358 = vlaneseq
        %v4359 = vshrl.u32 %v4358, 7
        %v4360 = vsub.s32 0, %v4359
        %v4361 = vrot.slane %v657, %v4360
        %v4362 = vlaneseq
        %v4363 = vshrl.u32 %v4362, 7
        %v4364 = vsub.s32 1, %v4363
        %v4365 = vrot.slane %v657, %v4364
        %v4366 = vlaneseq
        %v4367 = vshrl.u32 %v4366, 7
        %v4368 = vsub.s32 2, %v4367
        %v4369 = vrot.slane %v657, %v4368
        %v4370 = vlaneseq
        %v4371 = vshrl.u32 %v4370, 7
        %v4372 = vsub.s32 3, %v4371
        %v4373 = vrot.slane %v657, %v4372
        %v4374 = vlaneseq
        %v4375 = vshrl.u32 %v4374, 7
        %v4376 = vsub.s32 4, %v4375
        %v4377 = vrot.slane %v657, %v4376
        %v4378 = vlaneseq
        %v4379 = vshrl.u32 %v4378, 7
        %v4380 = vsub.s32 5, %v4379
        %v4381 = vrot.slane %v657, %v4380
        %v4382 = vlaneseq
        %v4383 = vshrl.u32 %v4382, 7
        %v4384 = vsub.s32 6, %v4383
        %v4385 = vrot.slane %v657, %v4384
        %v4386 = vlaneseq
        %v4387 = vshrl.u32 %v4386, 7
        %v4388 = vsub.s32 7, %v4387
        %v4389 = vrot.slane %v657, %v4388
        %v4390 = vlaneseq
        %v4391 = vshrl.u32 %v4390, 7
        %v4392 = vsub.s32 0, %v4391
        %v4393 = vrot.slane %v660, %v4392
        %v4394 = vlaneseq
        %v4395 = vshrl.u32 %v4394, 7
        %v4396 = vsub.s32 1, %v4395
        %v4397 = vrot.slane %v660, %v4396
        %v4398 = vlaneseq
        %v4399 = vshrl.u32 %v4398, 7
        %v4400 = vsub.s32 2, %v4399
        %v4401 = vrot.slane %v660, %v4400
        %v4402 = vlaneseq
        %v4403 = vshrl.u32 %v4402, 7
        %v4404 = vsub.s32 3, %v4403
        %v4405 = vrot.slane %v660, %v4404
        %v4406 = vlaneseq
        %v4407 = vshrl.u32 %v4406, 7
        %v4408 = vsub.s32 4, %v4407
        %v4409 = vrot.slane %v660, %v4408
        %v4410 = vlaneseq
        %v4411 = vshrl.u32 %v4410, 7
        %v4412 = vsub.s32 5, %v4411
        %v4413 = vrot.slane %v660, %v4412
        %v4414 = vlaneseq
        %v4415 = vshrl.u32 %v4414, 7
        %v4416 = vsub.s32 6, %v4415
        %v4417 = vrot.slane %v660, %v4416
        %v4418 = vlaneseq
        %v4419 = vshrl.u32 %v4418, 7
        %v4420 = vsub.s32 7, %v4419
        %v4421 = vrot.slane %v660, %v4420
        %v4422 = vlaneseq
        %v4423 = vshrl.u32 %v4422, 7
        %v4424 = vsub.s32 0, %v4423
        %v4425 = vrot.slane %v663, %v4424
        %v4426 = vlaneseq
        %v4427 = vshrl.u32 %v4426, 7
        %v4428 = vsub.s32 1, %v4427
        %v4429 = vrot.slane %v663, %v4428
        %v4430 = vlaneseq
        %v4431 = vshrl.u32 %v4430, 7
        %v4432 = vsub.s32 2, %v4431
        %v4433 = vrot.slane %v663, %v4432
        %v4434 = vlaneseq
        %v4435 = vshrl.u32 %v4434, 7
        %v4436 = vsub.s32 3, %v4435
        %v4437 = vrot.slane %v663, %v4436
        %v4438 = vlaneseq
        %v4439 = vshrl.u32 %v4438, 7
        %v4440 = vsub.s32 4, %v4439
        %v4441 = vrot.slane %v663, %v4440
        %v4442 = vlaneseq
        %v4443 = vshrl.u32 %v4442, 7
        %v4444 = vsub.s32 5, %v4443
        %v4445 = vrot.slane %v663, %v4444
        %v4446 = vlaneseq
        %v4447 = vshrl.u32 %v4446, 7
        %v4448 = vsub.s32 6, %v4447
        %v4449 = vrot.slane %v663, %v4448
        %v4450 = vlaneseq
        %v4451 = vshrl.u32 %v4450, 7
        %v4452 = vsub.s32 7, %v4451
        %v4453 = vrot.slane %v663, %v4452
        %v4454 = vlaneseq
        %v4455 = vshrl.u32 %v4454, 7
        %v4456 = vsub.s32 0, %v4455
        %v4457 = vrot.slane %v666, %v4456
        %v4458 = vlaneseq
        %v4459 = vshrl.u32 %v4458, 7
        %v4460 = vsub.s32 1, %v4459
        %v4461 = vrot.slane %v666, %v4460
        %v4462 = vlaneseq
        %v4463 = vshrl.u32 %v4462, 7
        %v4464 = vsub.s32 2, %v4463
        %v4465 = vrot.slane %v666, %v4464
        %v4466 = vlaneseq
        %v4467 = vshrl.u32 %v4466, 7
        %v4468 = vsub.s32 3, %v4467
        %v4469 = vrot.slane %v666, %v4468
        %v4470 = vlaneseq
        %v4471 = vshrl.u32 %v4470, 7
        %v4472 = vsub.s32 4, %v4471
        %v4473 = vrot.slane %v666, %v4472
        %v4474 = vlaneseq
        %v4475 = vshrl.u32 %v4474, 7
        %v4476 = vsub.s32 5, %v4475
        %v4477 = vrot.slane %v666, %v4476
        %v4478 = vlaneseq
        %v4479 = vshrl.u32 %v4478, 7
        %v4480 = vsub.s32 6, %v4479
        %v4481 = vrot.slane %v666, %v4480
        %v4482 = vlaneseq
        %v4483 = vshrl.u32 %v4482, 7
        %v4484 = vsub.s32 7, %v4483
        %v4485 = vrot.slane %v666, %v4484
        %v4486 = vlaneseq
        %v4487 = vshrl.u32 %v4486, 7
        %v4488 = vsub.s32 0, %v4487
        %v4489 = vrot.slane %v669, %v4488
        %v4490 = vlaneseq
        %v4491 = vshrl.u32 %v4490, 7
        %v4492 = vsub.s32 1, %v4491
        %v4493 = vrot.slane %v669, %v4492
        %v4494 = vlaneseq
        %v4495 = vshrl.u32 %v4494, 7
        %v4496 = vsub.s32 2, %v4495
        %v4497 = vrot.slane %v669, %v4496
        %v4498 = vlaneseq
        %v4499 = vshrl.u32 %v4498, 7
        %v4500 = vsub.s32 3, %v4499
        %v4501 = vrot.slane %v669, %v4500
        %v4502 = vlaneseq
        %v4503 = vshrl.u32 %v4502, 7
        %v4504 = vsub.s32 4, %v4503
        %v4505 = vrot.slane %v669, %v4504
        %v4506 = vlaneseq
        %v4507 = vshrl.u32 %v4506, 7
        %v4508 = vsub.s32 5, %v4507
        %v4509 = vrot.slane %v669, %v4508
        %v4510 = vlaneseq
        %v4511 = vshrl.u32 %v4510, 7
        %v4512 = vsub.s32 6, %v4511
        %v4513 = vrot.slane %v669, %v4512
        %v4514 = vlaneseq
        %v4515 = vshrl.u32 %v4514, 7
        %v4516 = vsub.s32 7, %v4515
        %v4517 = vrot.slane %v669, %v4516
        %v4518 = vlaneseq
        %v4519 = vshrl.u32 %v4518, 7
        %v4520 = vsub.s32 0, %v4519
        %v4521 = vrot.slane %v672, %v4520
        %v4522 = vlaneseq
        %v4523 = vshrl.u32 %v4522, 7
        %v4524 = vsub.s32 1, %v4523
        %v4525 = vrot.slane %v672, %v4524
        %v4526 = vlaneseq
        %v4527 = vshrl.u32 %v4526, 7
        %v4528 = vsub.s32 2, %v4527
        %v4529 = vrot.slane %v672, %v4528
        %v4530 = vlaneseq
        %v4531 = vshrl.u32 %v4530, 7
        %v4532 = vsub.s32 3, %v4531
        %v4533 = vrot.slane %v672, %v4532
        %v4534 = vlaneseq
        %v4535 = vshrl.u32 %v4534, 7
        %v4536 = vsub.s32 4, %v4535
        %v4537 = vrot.slane %v672, %v4536
        %v4538 = vlaneseq
        %v4539 = vshrl.u32 %v4538, 7
        %v4540 = vsub.s32 5, %v4539
        %v4541 = vrot.slane %v672, %v4540
        %v4542 = vlaneseq
        %v4543 = vshrl.u32 %v4542, 7
        %v4544 = vsub.s32 6, %v4543
        %v4545 = vrot.slane %v672, %v4544
        %v4546 = vlaneseq
        %v4547 = vshrl.u32 %v4546, 7
        %v4548 = vsub.s32 7, %v4547
        %v4549 = vrot.slane %v672, %v4548
        %v4550 = vlaneseq
        %v4551 = vshrl.u32 %v4550, 7
        %v4552 = vsub.s32 0, %v4551
        %v4553 = vrot.slane %v675, %v4552
        %v4554 = vlaneseq
        %v4555 = vshrl.u32 %v4554, 7
        %v4556 = vsub.s32 1, %v4555
        %v4557 = vrot.slane %v675, %v4556
        %v4558 = vlaneseq
        %v4559 = vshrl.u32 %v4558, 7
        %v4560 = vsub.s32 2, %v4559
        %v4561 = vrot.slane %v675, %v4560
        %v4562 = vlaneseq
        %v4563 = vshrl.u32 %v4562, 7
        %v4564 = vsub.s32 3, %v4563
        %v4565 = vrot.slane %v675, %v4564
        %v4566 = vlaneseq
        %v4567 = vshrl.u32 %v4566, 7
        %v4568 = vsub.s32 4, %v4567
        %v4569 = vrot.slane %v675, %v4568
        %v4570 = vlaneseq
        %v4571 = vshrl.u32 %v4570, 7
        %v4572 = vsub.s32 5, %v4571
        %v4573 = vrot.slane %v675, %v4572
        %v4574 = vlaneseq
        %v4575 = vshrl.u32 %v4574, 7
        %v4576 = vsub.s32 6, %v4575
        %v4577 = vrot.slane %v675, %v4576
        %v4578 = vlaneseq
        %v4579 = vshrl.u32 %v4578, 7
        %v4580 = vsub.s32 7, %v4579
        %v4581 = vrot.slane %v675, %v4580
        %v4582 = vlaneseq
        %v4583 = vshrl.u32 %v4582, 7
        %v4584 = vsub.s32 0, %v4583
        %v4585 = vrot.slane %v678, %v4584
        %v4586 = vlaneseq
        %v4587 = vshrl.u32 %v4586, 7
        %v4588 = vsub.s32 1, %v4587
        %v4589 = vrot.slane %v678, %v4588
        %v4590 = vlaneseq
        %v4591 = vshrl.u32 %v4590, 7
        %v4592 = vsub.s32 2, %v4591
        %v4593 = vrot.slane %v678, %v4592
        %v4594 = vlaneseq
        %v4595 = vshrl.u32 %v4594, 7
        %v4596 = vsub.s32 3, %v4595
        %v4597 = vrot.slane %v678, %v4596
        %v4598 = vlaneseq
        %v4599 = vshrl.u32 %v4598, 7
        %v4600 = vsub.s32 4, %v4599
        %v4601 = vrot.slane %v678, %v4600
        %v4602 = vlaneseq
        %v4603 = vshrl.u32 %v4602, 7
        %v4604 = vsub.s32 5, %v4603
        %v4605 = vrot.slane %v678, %v4604
        %v4606 = vlaneseq
        %v4607 = vshrl.u32 %v4606, 7
        %v4608 = vsub.s32 6, %v4607
        %v4609 = vrot.slane %v678, %v4608
        %v4610 = vlaneseq
        %v4611 = vshrl.u32 %v4610, 7
        %v4612 = vsub.s32 7, %v4611
        %v4613 = vrot.slane %v678, %v4612
        %v4614 = vlaneseq
        %v4615 = vshrl.u32 %v4614, 7
        %v4616 = vsub.s32 0, %v4615
        %v4617 = vrot.slane %v681, %v4616
        %v4618 = vlaneseq
        %v4619 = vshrl.u32 %v4618, 7
        %v4620 = vsub.s32 1, %v4619
        %v4621 = vrot.slane %v681, %v4620
        %v4622 = vlaneseq
        %v4623 = vshrl.u32 %v4622, 7
        %v4624 = vsub.s32 2, %v4623
        %v4625 = vrot.slane %v681, %v4624
        %v4626 = vlaneseq
        %v4627 = vshrl.u32 %v4626, 7
        %v4628 = vsub.s32 3, %v4627
        %v4629 = vrot.slane %v681, %v4628
        %v4630 = vlaneseq
        %v4631 = vshrl.u32 %v4630, 7
        %v4632 = vsub.s32 4, %v4631
        %v4633 = vrot.slane %v681, %v4632
        %v4634 = vlaneseq
        %v4635 = vshrl.u32 %v4634, 7
        %v4636 = vsub.s32 5, %v4635
        %v4637 = vrot.slane %v681, %v4636
        %v4638 = vlaneseq
        %v4639 = vshrl.u32 %v4638, 7
        %v4640 = vsub.s32 6, %v4639
        %v4641 = vrot.slane %v681, %v4640
        %v4642 = vlaneseq
        %v4643 = vshrl.u32 %v4642, 7
        %v4644 = vsub.s32 7, %v4643
        %v4645 = vrot.slane %v681, %v4644
        %v4646 = vlaneseq
        %v4647 = vshrl.u32 %v4646, 7
        %v4648 = vsub.s32 0, %v4647
        %v4649 = vrot.slane %v684, %v4648
        %v4650 = vlaneseq
        %v4651 = vshrl.u32 %v4650, 7
        %v4652 = vsub.s32 1, %v4651
        %v4653 = vrot.slane %v684, %v4652
        %v4654 = vlaneseq
        %v4655 = vshrl.u32 %v4654, 7
        %v4656 = vsub.s32 2, %v4655
        %v4657 = vrot.slane %v684, %v4656
        %v4658 = vlaneseq
        %v4659 = vshrl.u32 %v4658, 7
        %v4660 = vsub.s32 3, %v4659
        %v4661 = vrot.slane %v684, %v4660
        %v4662 = vlaneseq
        %v4663 = vshrl.u32 %v4662, 7
        %v4664 = vsub.s32 4, %v4663
        %v4665 = vrot.slane %v684, %v4664
        %v4666 = vlaneseq
        %v4667 = vshrl.u32 %v4666, 7
        %v4668 = vsub.s32 5, %v4667
        %v4669 = vrot.slane %v684, %v4668
        %v4670 = vlaneseq
        %v4671 = vshrl.u32 %v4670, 7
        %v4672 = vsub.s32 6, %v4671
        %v4673 = vrot.slane %v684, %v4672
        %v4674 = vlaneseq
        %v4675 = vshrl.u32 %v4674, 7
        %v4676 = vsub.s32 7, %v4675
        %v4677 = vrot.slane %v684, %v4676
        %v4678 = vlaneseq
        %v4679 = vshrl.u32 %v4678, 7
        %v4680 = vsub.s32 0, %v4679
        %v4681 = vrot.slane %v687, %v4680
        %v4682 = vlaneseq
        %v4683 = vshrl.u32 %v4682, 7
        %v4684 = vsub.s32 1, %v4683
        %v4685 = vrot.slane %v687, %v4684
        %v4686 = vlaneseq
        %v4687 = vshrl.u32 %v4686, 7
        %v4688 = vsub.s32 2, %v4687
        %v4689 = vrot.slane %v687, %v4688
        %v4690 = vlaneseq
        %v4691 = vshrl.u32 %v4690, 7
        %v4692 = vsub.s32 3, %v4691
        %v4693 = vrot.slane %v687, %v4692
        %v4694 = vlaneseq
        %v4695 = vshrl.u32 %v4694, 7
        %v4696 = vsub.s32 4, %v4695
        %v4697 = vrot.slane %v687, %v4696
        %v4698 = vlaneseq
        %v4699 = vshrl.u32 %v4698, 7
        %v4700 = vsub.s32 5, %v4699
        %v4701 = vrot.slane %v687, %v4700
        %v4702 = vlaneseq
        %v4703 = vshrl.u32 %v4702, 7
        %v4704 = vsub.s32 6, %v4703
        %v4705 = vrot.slane %v687, %v4704
        %v4706 = vlaneseq
        %v4707 = vshrl.u32 %v4706, 7
        %v4708 = vsub.s32 7, %v4707
        %v4709 = vrot.slane %v687, %v4708
        %v4710 = vlaneseq
        %v4711 = vshrl.u32 %v4710, 7
        %v4712 = vsub.s32 0, %v4711
        %v4713 = vrot.slane %v690, %v4712
        %v4714 = vlaneseq
        %v4715 = vshrl.u32 %v4714, 7
        %v4716 = vsub.s32 1, %v4715
        %v4717 = vrot.slane %v690, %v4716
        %v4718 = vlaneseq
        %v4719 = vshrl.u32 %v4718, 7
        %v4720 = vsub.s32 2, %v4719
        %v4721 = vrot.slane %v690, %v4720
        %v4722 = vlaneseq
        %v4723 = vshrl.u32 %v4722, 7
        %v4724 = vsub.s32 3, %v4723
        %v4725 = vrot.slane %v690, %v4724
        %v4726 = vlaneseq
        %v4727 = vshrl.u32 %v4726, 7
        %v4728 = vsub.s32 4, %v4727
        %v4729 = vrot.slane %v690, %v4728
        %v4730 = vlaneseq
        %v4731 = vshrl.u32 %v4730, 7
        %v4732 = vsub.s32 5, %v4731
        %v4733 = vrot.slane %v690, %v4732
        %v4734 = vlaneseq
        %v4735 = vshrl.u32 %v4734, 7
        %v4736 = vsub.s32 6, %v4735
        %v4737 = vrot.slane %v690, %v4736
        %v4738 = vlaneseq
        %v4739 = vshrl.u32 %v4738, 7
        %v4740 = vsub.s32 7, %v4739
        %v4741 = vrot.slane %v690, %v4740
        %v4742 = vlaneseq
        %v4743 = vshrl.u32 %v4742, 7
        %v4744 = vsub.s32 0, %v4743
        %v4745 = vrot.slane %v693, %v4744
        %v4746 = vlaneseq
        %v4747 = vshrl.u32 %v4746, 7
        %v4748 = vsub.s32 1, %v4747
        %v4749 = vrot.slane %v693, %v4748
        %v4750 = vlaneseq
        %v4751 = vshrl.u32 %v4750, 7
        %v4752 = vsub.s32 2, %v4751
        %v4753 = vrot.slane %v693, %v4752
        %v4754 = vlaneseq
        %v4755 = vshrl.u32 %v4754, 7
        %v4756 = vsub.s32 3, %v4755
        %v4757 = vrot.slane %v693, %v4756
        %v4758 = vlaneseq
        %v4759 = vshrl.u32 %v4758, 7
        %v4760 = vsub.s32 4, %v4759
        %v4761 = vrot.slane %v693, %v4760
        %v4762 = vlaneseq
        %v4763 = vshrl.u32 %v4762, 7
        %v4764 = vsub.s32 5, %v4763
        %v4765 = vrot.slane %v693, %v4764
        %v4766 = vlaneseq
        %v4767 = vshrl.u32 %v4766, 7
        %v4768 = vsub.s32 6, %v4767
        %v4769 = vrot.slane %v693, %v4768
        %v4770 = vlaneseq
        %v4771 = vshrl.u32 %v4770, 7
        %v4772 = vsub.s32 7, %v4771
        %v4773 = vrot.slane %v693, %v4772
        %v4774 = vlaneseq
        %v4775 = vshrl.u32 %v4774, 7
        %v4776 = vsub.s32 0, %v4775
        %v4777 = vrot.slane %v696, %v4776
        %v4778 = vlaneseq
        %v4779 = vshrl.u32 %v4778, 7
        %v4780 = vsub.s32 1, %v4779
        %v4781 = vrot.slane %v696, %v4780
        %v4782 = vlaneseq
        %v4783 = vshrl.u32 %v4782, 7
        %v4784 = vsub.s32 2, %v4783
        %v4785 = vrot.slane %v696, %v4784
        %v4786 = vlaneseq
        %v4787 = vshrl.u32 %v4786, 7
        %v4788 = vsub.s32 3, %v4787
        %v4789 = vrot.slane %v696, %v4788
        %v4790 = vlaneseq
        %v4791 = vshrl.u32 %v4790, 7
        %v4792 = vsub.s32 4, %v4791
        %v4793 = vrot.slane %v696, %v4792
        %v4794 = vlaneseq
        %v4795 = vshrl.u32 %v4794, 7
        %v4796 = vsub.s32 5, %v4795
        %v4797 = vrot.slane %v696, %v4796
        %v4798 = vlaneseq
        %v4799 = vshrl.u32 %v4798, 7
        %v4800 = vsub.s32 6, %v4799
        %v4801 = vrot.slane %v696, %v4800
        %v4802 = vlaneseq
        %v4803 = vshrl.u32 %v4802, 7
        %v4804 = vsub.s32 7, %v4803
        %v4805 = vrot.slane %v696, %v4804
        %v4806 = vlaneseq
        %v4807 = vshrl.u32 %v4806, 7
        %v4808 = vsub.s32 0, %v4807
        %v4809 = vrot.slane %v699, %v4808
        %v4810 = vlaneseq
        %v4811 = vshrl.u32 %v4810, 7
        %v4812 = vsub.s32 1, %v4811
        %v4813 = vrot.slane %v699, %v4812
        %v4814 = vlaneseq
        %v4815 = vshrl.u32 %v4814, 7
        %v4816 = vsub.s32 2, %v4815
        %v4817 = vrot.slane %v699, %v4816
        %v4818 = vlaneseq
        %v4819 = vshrl.u32 %v4818, 7
        %v4820 = vsub.s32 3, %v4819
        %v4821 = vrot.slane %v699, %v4820
        %v4822 = vlaneseq
        %v4823 = vshrl.u32 %v4822, 7
        %v4824 = vsub.s32 4, %v4823
        %v4825 = vrot.slane %v699, %v4824
        %v4826 = vlaneseq
        %v4827 = vshrl.u32 %v4826, 7
        %v4828 = vsub.s32 5, %v4827
        %v4829 = vrot.slane %v699, %v4828
        %v4830 = vlaneseq
        %v4831 = vshrl.u32 %v4830, 7
        %v4832 = vsub.s32 6, %v4831
        %v4833 = vrot.slane %v699, %v4832
        %v4834 = vlaneseq
        %v4835 = vshrl.u32 %v4834, 7
        %v4836 = vsub.s32 7, %v4835
        %v4837 = vrot.slane %v699, %v4836
        %v4838 = vlaneseq
        %v4839 = vshrl.u32 %v4838, 7
        %v4840 = vsub.s32 0, %v4839
        %v4841 = vrot.slane %v702, %v4840
        %v4842 = vlaneseq
        %v4843 = vshrl.u32 %v4842, 7
        %v4844 = vsub.s32 1, %v4843
        %v4845 = vrot.slane %v702, %v4844
        %v4846 = vlaneseq
        %v4847 = vshrl.u32 %v4846, 7
        %v4848 = vsub.s32 2, %v4847
        %v4849 = vrot.slane %v702, %v4848
        %v4850 = vlaneseq
        %v4851 = vshrl.u32 %v4850, 7
        %v4852 = vsub.s32 3, %v4851
        %v4853 = vrot.slane %v702, %v4852
        %v4854 = vlaneseq
        %v4855 = vshrl.u32 %v4854, 7
        %v4856 = vsub.s32 4, %v4855
        %v4857 = vrot.slane %v702, %v4856
        %v4858 = vlaneseq
        %v4859 = vshrl.u32 %v4858, 7
        %v4860 = vsub.s32 5, %v4859
        %v4861 = vrot.slane %v702, %v4860
        %v4862 = vlaneseq
        %v4863 = vshrl.u32 %v4862, 7
        %v4864 = vsub.s32 6, %v4863
        %v4865 = vrot.slane %v702, %v4864
        %v4866 = vlaneseq
        %v4867 = vshrl.u32 %v4866, 7
        %v4868 = vsub.s32 7, %v4867
        %v4869 = vrot.slane %v702, %v4868
        %v4870 = vlaneseq
        %v4871 = vshrl.u32 %v4870, 7
        %v4872 = vsub.s32 0, %v4871
        %v4873 = vrot.slane %v705, %v4872
        %v4874 = vlaneseq
        %v4875 = vshrl.u32 %v4874, 7
        %v4876 = vsub.s32 1, %v4875
        %v4877 = vrot.slane %v705, %v4876
        %v4878 = vlaneseq
        %v4879 = vshrl.u32 %v4878, 7
        %v4880 = vsub.s32 2, %v4879
        %v4881 = vrot.slane %v705, %v4880
        %v4882 = vlaneseq
        %v4883 = vshrl.u32 %v4882, 7
        %v4884 = vsub.s32 3, %v4883
        %v4885 = vrot.slane %v705, %v4884
        %v4886 = vlaneseq
        %v4887 = vshrl.u32 %v4886, 7
        %v4888 = vsub.s32 4, %v4887
        %v4889 = vrot.slane %v705, %v4888
        %v4890 = vlaneseq
        %v4891 = vshrl.u32 %v4890, 7
        %v4892 = vsub.s32 5, %v4891
        %v4893 = vrot.slane %v705, %v4892
        %v4894 = vlaneseq
        %v4895 = vshrl.u32 %v4894, 7
        %v4896 = vsub.s32 6, %v4895
        %v4897 = vrot.slane %v705, %v4896
        %v4898 = vlaneseq
        %v4899 = vshrl.u32 %v4898, 7
        %v4900 = vsub.s32 7, %v4899
        %v4901 = vrot.slane %v705, %v4900
        %v4902 = vlaneseq
        %v4903 = vshrl.u32 %v4902, 7
        %v4904 = vsub.s32 0, %v4903
        %v4905 = vrot.slane %v708, %v4904
        %v4906 = vlaneseq
        %v4907 = vshrl.u32 %v4906, 7
        %v4908 = vsub.s32 1, %v4907
        %v4909 = vrot.slane %v708, %v4908
        %v4910 = vlaneseq
        %v4911 = vshrl.u32 %v4910, 7
        %v4912 = vsub.s32 2, %v4911
        %v4913 = vrot.slane %v708, %v4912
        %v4914 = vlaneseq
        %v4915 = vshrl.u32 %v4914, 7
        %v4916 = vsub.s32 3, %v4915
        %v4917 = vrot.slane %v708, %v4916
        %v4918 = vlaneseq
        %v4919 = vshrl.u32 %v4918, 7
        %v4920 = vsub.s32 4, %v4919
        %v4921 = vrot.slane %v708, %v4920
        %v4922 = vlaneseq
        %v4923 = vshrl.u32 %v4922, 7
        %v4924 = vsub.s32 5, %v4923
        %v4925 = vrot.slane %v708, %v4924
        %v4926 = vlaneseq
        %v4927 = vshrl.u32 %v4926, 7
        %v4928 = vsub.s32 6, %v4927
        %v4929 = vrot.slane %v708, %v4928
        %v4930 = vlaneseq
        %v4931 = vshrl.u32 %v4930, 7
        %v4932 = vsub.s32 7, %v4931
        %v4933 = vrot.slane %v708, %v4932
        %v4934 = vcombine.low %v841, %v845
        %v4935 = vcombine.low %v849, %v853
        %v4936 = vcombine.low %v857, %v861
        %v4937 = vcombine.low %v865, %v869
        %v4939 = vunpack.c.l.s4 1966171168
        %v4940 = vunpack.c.0.s8 %v4939
        %v4941 = vlaneseq
        %v4942 = vshrl.u32 %v4941, 7
        %v4943 = vsub.s32 %v4940, %v4942
        %v4944 = vrot.slane %v4934, %v4943
        %v4946 = vunpack.c.l.s4 1966171168
        %v4947 = vunpack.c.0.s8 %v4946
        %v4948 = vlaneseq
        %v4949 = vshrl.u32 %v4948, 7
        %v4950 = vsub.s32 %v4947, %v4949
        %v4951 = vrot.slane %v4935, %v4950
        %v4953 = vunpack.c.l.s4 1966171168
        %v4954 = vunpack.c.0.s8 %v4953
        %v4955 = vlaneseq
        %v4956 = vshrl.u32 %v4955, 7
        %v4957 = vsub.s32 %v4954, %v4956
        %v4958 = vrot.slane %v4936, %v4957
        %v4960 = vunpack.c.l.s4 1966171168
        %v4961 = vunpack.c.0.s8 %v4960
        %v4962 = vlaneseq
        %v4963 = vshrl.u32 %v4962, 7
        %v4964 = vsub.s32 %v4961, %v4963
        %v4965 = vrot.slane %v4937, %v4964
        %v4966 = vcombine.low %v4944, %v4951
        %v4967 = vcombine.low %v4958, %v4965
        %v4969 = vunpack.c.l.s4 1966171168
        %v4970 = vunpack.c.0.s8 %v4969
        %v4971 = vlaneseq
        %v4972 = vshrl.u32 %v4971, 7
        %v4973 = vsub.s32 %v4970, %v4972
        %v4974 = vrot.slane %v4966, %v4973
        %v4976 = vunpack.c.l.s4 1966171168
        %v4977 = vunpack.c.0.s8 %v4976
        %v4978 = vlaneseq
        %v4979 = vshrl.u32 %v4978, 7
        %v4980 = vsub.s32 %v4977, %v4979
        %v4981 = vrot.slane %v4967, %v4980
        %v4982 = vcombine.low %v4974, %v4981
        %v4983 = vcombine.low %v873, %v877
        %v4984 = vcombine.low %v881, %v885
        %v4985 = vcombine.low %v889, %v893
        %v4986 = vcombine.low %v897, %v901
        %v4988 = vunpack.c.l.s4 1966171168
        %v4989 = vunpack.c.0.s8 %v4988
        %v4990 = vlaneseq
        %v4991 = vshrl.u32 %v4990, 7
        %v4992 = vsub.s32 %v4989, %v4991
        %v4993 = vrot.slane %v4983, %v4992
        %v4995 = vunpack.c.l.s4 1966171168
        %v4996 = vunpack.c.0.s8 %v4995
        %v4997 = vlaneseq
        %v4998 = vshrl.u32 %v4997, 7
        %v4999 = vsub.s32 %v4996, %v4998
        %v5000 = vrot.slane %v4984, %v4999
        %v5002 = vunpack.c.l.s4 1966171168
        %v5003 = vunpack.c.0.s8 %v5002
        %v5004 = vlaneseq
        %v5005 = vshrl.u32 %v5004, 7
        %v5006 = vsub.s32 %v5003, %v5005
        %v5007 = vrot.slane %v4985, %v5006
        %v5009 = vunpack.c.l.s4 1966171168
        %v5010 = vunpack.c.0.s8 %v5009
        %v5011 = vlaneseq
        %v5012 = vshrl.u32 %v5011, 7
        %v5013 = vsub.s32 %v5010, %v5012
        %v5014 = vrot.slane %v4986, %v5013
        %v5015 = vcombine.low %v4993, %v5000
        %v5016 = vcombine.low %v5007, %v5014
        %v5018 = vunpack.c.l.s4 1966171168
        %v5019 = vunpack.c.0.s8 %v5018
        %v5020 = vlaneseq
        %v5021 = vshrl.u32 %v5020, 7
        %v5022 = vsub.s32 %v5019, %v5021
        %v5023 = vrot.slane %v5015, %v5022
        %v5025 = vunpack.c.l.s4 1966171168
        %v5026 = vunpack.c.0.s8 %v5025
        %v5027 = vlaneseq
        %v5028 = vshrl.u32 %v5027, 7
        %v5029 = vsub.s32 %v5026, %v5028
        %v5030 = vrot.slane %v5016, %v5029
        %v5031 = vcombine.low %v5023, %v5030
        %v5032 = vcombine.low %v905, %v909
        %v5033 = vcombine.low %v913, %v917
        %v5034 = vcombine.low %v921, %v925
        %v5035 = vcombine.low %v929, %v933
        %v5037 = vunpack.c.l.s4 1966171168
        %v5038 = vunpack.c.0.s8 %v5037
        %v5039 = vlaneseq
        %v5040 = vshrl.u32 %v5039, 7
        %v5041 = vsub.s32 %v5038, %v5040
        %v5042 = vrot.slane %v5032, %v5041
        %v5044 = vunpack.c.l.s4 1966171168
        %v5045 = vunpack.c.0.s8 %v5044
        %v5046 = vlaneseq
        %v5047 = vshrl.u32 %v5046, 7
        %v5048 = vsub.s32 %v5045, %v5047
        %v5049 = vrot.slane %v5033, %v5048
        %v5051 = vunpack.c.l.s4 1966171168
        %v5052 = vunpack.c.0.s8 %v5051
        %v5053 = vlaneseq
        %v5054 = vshrl.u32 %v5053, 7
        %v5055 = vsub.s32 %v5052, %v5054
        %v5056 = vrot.slane %v5034, %v5055
        %v5058 = vunpack.c.l.s4 1966171168
        %v5059 = vunpack.c.0.s8 %v5058
        %v5060 = vlaneseq
        %v5061 = vshrl.u32 %v5060, 7
        %v5062 = vsub.s32 %v5059, %v5061
        %v5063 = vrot.slane %v5035, %v5062
        %v5064 = vcombine.low %v5042, %v5049
        %v5065 = vcombine.low %v5056, %v5063
        %v5067 = vunpack.c.l.s4 1966171168
        %v5068 = vunpack.c.0.s8 %v5067
        %v5069 = vlaneseq
        %v5070 = vshrl.u32 %v5069, 7
        %v5071 = vsub.s32 %v5068, %v5070
        %v5072 = vrot.slane %v5064, %v5071
        %v5074 = vunpack.c.l.s4 1966171168
        %v5075 = vunpack.c.0.s8 %v5074
        %v5076 = vlaneseq
        %v5077 = vshrl.u32 %v5076, 7
        %v5078 = vsub.s32 %v5075, %v5077
        %v5079 = vrot.slane %v5065, %v5078
        %v5080 = vcombine.low %v5072, %v5079
        %v5081 = vcombine.low %v937, %v941
        %v5082 = vcombine.low %v945, %v949
        %v5083 = vcombine.low %v953, %v957
        %v5084 = vcombine.low %v961, %v965
        %v5086 = vunpack.c.l.s4 1966171168
        %v5087 = vunpack.c.0.s8 %v5086
        %v5088 = vlaneseq
        %v5089 = vshrl.u32 %v5088, 7
        %v5090 = vsub.s32 %v5087, %v5089
        %v5091 = vrot.slane %v5081, %v5090
        %v5093 = vunpack.c.l.s4 1966171168
        %v5094 = vunpack.c.0.s8 %v5093
        %v5095 = vlaneseq
        %v5096 = vshrl.u32 %v5095, 7
        %v5097 = vsub.s32 %v5094, %v5096
        %v5098 = vrot.slane %v5082, %v5097
        %v5100 = vunpack.c.l.s4 1966171168
        %v5101 = vunpack.c.0.s8 %v5100
        %v5102 = vlaneseq
        %v5103 = vshrl.u32 %v5102, 7
        %v5104 = vsub.s32 %v5101, %v5103
        %v5105 = vrot.slane %v5083, %v5104
        %v5107 = vunpack.c.l.s4 1966171168
        %v5108 = vunpack.c.0.s8 %v5107
        %v5109 = vlaneseq
        %v5110 = vshrl.u32 %v5109, 7
        %v5111 = vsub.s32 %v5108, %v5110
        %v5112 = vrot.slane %v5084, %v5111
        %v5113 = vcombine.low %v5091, %v5098
        %v5114 = vcombine.low %v5105, %v5112
        %v5116 = vunpack.c.l.s4 1966171168
        %v5117 = vunpack.c.0.s8 %v5116
        %v5118 = vlaneseq
        %v5119 = vshrl.u32 %v5118, 7
        %v5120 = vsub.s32 %v5117, %v5119
        %v5121 = vrot.slane %v5113, %v5120
        %v5123 = vunpack.c.l.s4 1966171168
        %v5124 = vunpack.c.0.s8 %v5123
        %v5125 = vlaneseq
        %v5126 = vshrl.u32 %v5125, 7
        %v5127 = vsub.s32 %v5124, %v5126
        %v5128 = vrot.slane %v5114, %v5127
        %v5129 = vcombine.low %v5121, %v5128
        %v5130 = vcombine.low %v969, %v973
        %v5131 = vcombine.low %v977, %v981
        %v5132 = vcombine.low %v985, %v989
        %v5133 = vcombine.low %v993, %v997
        %v5135 = vunpack.c.l.s4 1966171168
        %v5136 = vunpack.c.0.s8 %v5135
        %v5137 = vlaneseq
        %v5138 = vshrl.u32 %v5137, 7
        %v5139 = vsub.s32 %v5136, %v5138
        %v5140 = vrot.slane %v5130, %v5139
        %v5142 = vunpack.c.l.s4 1966171168
        %v5143 = vunpack.c.0.s8 %v5142
        %v5144 = vlaneseq
        %v5145 = vshrl.u32 %v5144, 7
        %v5146 = vsub.s32 %v5143, %v5145
        %v5147 = vrot.slane %v5131, %v5146
        %v5149 = vunpack.c.l.s4 1966171168
        %v5150 = vunpack.c.0.s8 %v5149
        %v5151 = vlaneseq
        %v5152 = vshrl.u32 %v5151, 7
        %v5153 = vsub.s32 %v5150, %v5152
        %v5154 = vrot.slane %v5132, %v5153
        %v5156 = vunpack.c.l.s4 1966171168
        %v5157 = vunpack.c.0.s8 %v5156
        %v5158 = vlaneseq
        %v5159 = vshrl.u32 %v5158, 7
        %v5160 = vsub.s32 %v5157, %v5159
        %v5161 = vrot.slane %v5133, %v5160
        %v5162 = vcombine.low %v5140, %v5147
        %v5163 = vcombine.low %v5154, %v5161
        %v5165 = vunpack.c.l.s4 1966171168
        %v5166 = vunpack.c.0.s8 %v5165
        %v5167 = vlaneseq
        %v5168 = vshrl.u32 %v5167, 7
        %v5169 = vsub.s32 %v5166, %v5168
        %v5170 = vrot.slane %v5162, %v5169
        %v5172 = vunpack.c.l.s4 1966171168
        %v5173 = vunpack.c.0.s8 %v5172
        %v5174 = vlaneseq
        %v5175 = vshrl.u32 %v5174, 7
        %v5176 = vsub.s32 %v5173, %v5175
        %v5177 = vrot.slane %v5163, %v5176
        %v5178 = vcombine.low %v5170, %v5177
        %v5179 = vcombine.low %v1001, %v1005
        %v5180 = vcombine.low %v1009, %v1013
        %v5181 = vcombine.low %v1017, %v1021
        %v5182 = vcombine.low %v1025, %v1029
        %v5184 = vunpack.c.l.s4 1966171168
        %v5185 = vunpack.c.0.s8 %v5184
        %v5186 = vlaneseq
        %v5187 = vshrl.u32 %v5186, 7
        %v5188 = vsub.s32 %v5185, %v5187
        %v5189 = vrot.slane %v5179, %v5188
        %v5191 = vunpack.c.l.s4 1966171168
        %v5192 = vunpack.c.0.s8 %v5191
        %v5193 = vlaneseq
        %v5194 = vshrl.u32 %v5193, 7
        %v5195 = vsub.s32 %v5192, %v5194
        %v5196 = vrot.slane %v5180, %v5195
        %v5198 = vunpack.c.l.s4 1966171168
        %v5199 = vunpack.c.0.s8 %v5198
        %v5200 = vlaneseq
        %v5201 = vshrl.u32 %v5200, 7
        %v5202 = vsub.s32 %v5199, %v5201
        %v5203 = vrot.slane %v5181, %v5202
        %v5205 = vunpack.c.l.s4 1966171168
        %v5206 = vunpack.c.0.s8 %v5205
        %v5207 = vlaneseq
        %v5208 = vshrl.u32 %v5207, 7
        %v5209 = vsub.s32 %v5206, %v5208
        %v5210 = vrot.slane %v5182, %v5209
        %v5211 = vcombine.low %v5189, %v5196
        %v5212 = vcombine.low %v5203, %v5210
        %v5214 = vunpack.c.l.s4 1966171168
        %v5215 = vunpack.c.0.s8 %v5214
        %v5216 = vlaneseq
        %v5217 = vshrl.u32 %v5216, 7
        %v5218 = vsub.s32 %v5215, %v5217
        %v5219 = vrot.slane %v5211, %v5218
        %v5221 = vunpack.c.l.s4 1966171168
        %v5222 = vunpack.c.0.s8 %v5221
        %v5223 = vlaneseq
        %v5224 = vshrl.u32 %v5223, 7
        %v5225 = vsub.s32 %v5222, %v5224
        %v5226 = vrot.slane %v5212, %v5225
        %v5227 = vcombine.low %v5219, %v5226
        %v5228 = vcombine.low %v1033, %v1037
        %v5229 = vcombine.low %v1041, %v1045
        %v5230 = vcombine.low %v1049, %v1053
        %v5231 = vcombine.low %v1057, %v1061
        %v5233 = vunpack.c.l.s4 1966171168
        %v5234 = vunpack.c.0.s8 %v5233
        %v5235 = vlaneseq
        %v5236 = vshrl.u32 %v5235, 7
        %v5237 = vsub.s32 %v5234, %v5236
        %v5238 = vrot.slane %v5228, %v5237
        %v5240 = vunpack.c.l.s4 1966171168
        %v5241 = vunpack.c.0.s8 %v5240
        %v5242 = vlaneseq
        %v5243 = vshrl.u32 %v5242, 7
        %v5244 = vsub.s32 %v5241, %v5243
        %v5245 = vrot.slane %v5229, %v5244
        %v5247 = vunpack.c.l.s4 1966171168
        %v5248 = vunpack.c.0.s8 %v5247
        %v5249 = vlaneseq
        %v5250 = vshrl.u32 %v5249, 7
        %v5251 = vsub.s32 %v5248, %v5250
        %v5252 = vrot.slane %v5230, %v5251
        %v5254 = vunpack.c.l.s4 1966171168
        %v5255 = vunpack.c.0.s8 %v5254
        %v5256 = vlaneseq
        %v5257 = vshrl.u32 %v5256, 7
        %v5258 = vsub.s32 %v5255, %v5257
        %v5259 = vrot.slane %v5231, %v5258
        %v5260 = vcombine.low %v5238, %v5245
        %v5261 = vcombine.low %v5252, %v5259
        %v5263 = vunpack.c.l.s4 1966171168
        %v5264 = vunpack.c.0.s8 %v5263
        %v5265 = vlaneseq
        %v5266 = vshrl.u32 %v5265, 7
        %v5267 = vsub.s32 %v5264, %v5266
        %v5268 = vrot.slane %v5260, %v5267
        %v5270 = vunpack.c.l.s4 1966171168
        %v5271 = vunpack.c.0.s8 %v5270
        %v5272 = vlaneseq
        %v5273 = vshrl.u32 %v5272, 7
        %v5274 = vsub.s32 %v5271, %v5273
        %v5275 = vrot.slane %v5261, %v5274
        %v5276 = vcombine.low %v5268, %v5275
        %v5277 = vcombine.low %v1065, %v1069
        %v5278 = vcombine.low %v1073, %v1077
        %v5279 = vcombine.low %v1081, %v1085
        %v5280 = vcombine.low %v1089, %v1093
        %v5282 = vunpack.c.l.s4 1966171168
        %v5283 = vunpack.c.0.s8 %v5282
        %v5284 = vlaneseq
        %v5285 = vshrl.u32 %v5284, 7
        %v5286 = vsub.s32 %v5283, %v5285
        %v5287 = vrot.slane %v5277, %v5286
        %v5289 = vunpack.c.l.s4 1966171168
        %v5290 = vunpack.c.0.s8 %v5289
        %v5291 = vlaneseq
        %v5292 = vshrl.u32 %v5291, 7
        %v5293 = vsub.s32 %v5290, %v5292
        %v5294 = vrot.slane %v5278, %v5293
        %v5296 = vunpack.c.l.s4 1966171168
        %v5297 = vunpack.c.0.s8 %v5296
        %v5298 = vlaneseq
        %v5299 = vshrl.u32 %v5298, 7
        %v5300 = vsub.s32 %v5297, %v5299
        %v5301 = vrot.slane %v5279, %v5300
        %v5303 = vunpack.c.l.s4 1966171168
        %v5304 = vunpack.c.0.s8 %v5303
        %v5305 = vlaneseq
        %v5306 = vshrl.u32 %v5305, 7
        %v5307 = vsub.s32 %v5304, %v5306
        %v5308 = vrot.slane %v5280, %v5307
        %v5309 = vcombine.low %v5287, %v5294
        %v5310 = vcombine.low %v5301, %v5308
        %v5312 = vunpack.c.l.s4 1966171168
        %v5313 = vunpack.c.0.s8 %v5312
        %v5314 = vlaneseq
        %v5315 = vshrl.u32 %v5314, 7
        %v5316 = vsub.s32 %v5313, %v5315
        %v5317 = vrot.slane %v5309, %v5316
        %v5319 = vunpack.c.l.s4 1966171168
        %v5320 = vunpack.c.0.s8 %v5319
        %v5321 = vlaneseq
        %v5322 = vshrl.u32 %v5321, 7
        %v5323 = vsub.s32 %v5320, %v5322
        %v5324 = vrot.slane %v5310, %v5323
        %v5325 = vcombine.low %v5317, %v5324
        %v5326 = vcombine.low %v1097, %v1101
        %v5327 = vcombine.low %v1105, %v1109
        %v5328 = vcombine.low %v1113, %v1117
        %v5329 = vcombine.low %v1121, %v1125
        %v5331 = vunpack.c.l.s4 1966171168
        %v5332 = vunpack.c.0.s8 %v5331
        %v5333 = vlaneseq
        %v5334 = vshrl.u32 %v5333, 7
        %v5335 = vsub.s32 %v5332, %v5334
        %v5336 = vrot.slane %v5326, %v5335
        %v5338 = vunpack.c.l.s4 1966171168
        %v5339 = vunpack.c.0.s8 %v5338
        %v5340 = vlaneseq
        %v5341 = vshrl.u32 %v5340, 7
        %v5342 = vsub.s32 %v5339, %v5341
        %v5343 = vrot.slane %v5327, %v5342
        %v5345 = vunpack.c.l.s4 1966171168
        %v5346 = vunpack.c.0.s8 %v5345
        %v5347 = vlaneseq
        %v5348 = vshrl.u32 %v5347, 7
        %v5349 = vsub.s32 %v5346, %v5348
        %v5350 = vrot.slane %v5328, %v5349
        %v5352 = vunpack.c.l.s4 1966171168
        %v5353 = vunpack.c.0.s8 %v5352
        %v5354 = vlaneseq
        %v5355 = vshrl.u32 %v5354, 7
        %v5356 = vsub.s32 %v5353, %v5355
        %v5357 = vrot.slane %v5329, %v5356
        %v5358 = vcombine.low %v5336, %v5343
        %v5359 = vcombine.low %v5350, %v5357
        %v5361 = vunpack.c.l.s4 1966171168
        %v5362 = vunpack.c.0.s8 %v5361
        %v5363 = vlaneseq
        %v5364 = vshrl.u32 %v5363, 7
        %v5365 = vsub.s32 %v5362, %v5364
        %v5366 = vrot.slane %v5358, %v5365
        %v5368 = vunpack.c.l.s4 1966171168
        %v5369 = vunpack.c.0.s8 %v5368
        %v5370 = vlaneseq
        %v5371 = vshrl.u32 %v5370, 7
        %v5372 = vsub.s32 %v5369, %v5371
        %v5373 = vrot.slane %v5359, %v5372
        %v5374 = vcombine.low %v5366, %v5373
        %v5375 = vcombine.low %v1129, %v1133
        %v5376 = vcombine.low %v1137, %v1141
        %v5377 = vcombine.low %v1145, %v1149
        %v5378 = vcombine.low %v1153, %v1157
        %v5380 = vunpack.c.l.s4 1966171168
        %v5381 = vunpack.c.0.s8 %v5380
        %v5382 = vlaneseq
        %v5383 = vshrl.u32 %v5382, 7
        %v5384 = vsub.s32 %v5381, %v5383
        %v5385 = vrot.slane %v5375, %v5384
        %v5387 = vunpack.c.l.s4 1966171168
        %v5388 = vunpack.c.0.s8 %v5387
        %v5389 = vlaneseq
        %v5390 = vshrl.u32 %v5389, 7
        %v5391 = vsub.s32 %v5388, %v5390
        %v5392 = vrot.slane %v5376, %v5391
        %v5394 = vunpack.c.l.s4 1966171168
        %v5395 = vunpack.c.0.s8 %v5394
        %v5396 = vlaneseq
        %v5397 = vshrl.u32 %v5396, 7
        %v5398 = vsub.s32 %v5395, %v5397
        %v5399 = vrot.slane %v5377, %v5398
        %v5401 = vunpack.c.l.s4 1966171168
        %v5402 = vunpack.c.0.s8 %v5401
        %v5403 = vlaneseq
        %v5404 = vshrl.u32 %v5403, 7
        %v5405 = vsub.s32 %v5402, %v5404
        %v5406 = vrot.slane %v5378, %v5405
        %v5407 = vcombine.low %v5385, %v5392
        %v5408 = vcombine.low %v5399, %v5406
        %v5410 = vunpack.c.l.s4 1966171168
        %v5411 = vunpack.c.0.s8 %v5410
        %v5412 = vlaneseq
        %v5413 = vshrl.u32 %v5412, 7
        %v5414 = vsub.s32 %v5411, %v5413
        %v5415 = vrot.slane %v5407, %v5414
        %v5417 = vunpack.c.l.s4 1966171168
        %v5418 = vunpack.c.0.s8 %v5417
        %v5419 = vlaneseq
        %v5420 = vshrl.u32 %v5419, 7
        %v5421 = vsub.s32 %v5418, %v5420
        %v5422 = vrot.slane %v5408, %v5421
        %v5423 = vcombine.low %v5415, %v5422
        %v5424 = vcombine.low %v1161, %v1165
        %v5425 = vcombine.low %v1169, %v1173
        %v5426 = vcombine.low %v1177, %v1181
        %v5427 = vcombine.low %v1185, %v1189
        %v5429 = vunpack.c.l.s4 1966171168
        %v5430 = vunpack.c.0.s8 %v5429
        %v5431 = vlaneseq
        %v5432 = vshrl.u32 %v5431, 7
        %v5433 = vsub.s32 %v5430, %v5432
        %v5434 = vrot.slane %v5424, %v5433
        %v5436 = vunpack.c.l.s4 1966171168
        %v5437 = vunpack.c.0.s8 %v5436
        %v5438 = vlaneseq
        %v5439 = vshrl.u32 %v5438, 7
        %v5440 = vsub.s32 %v5437, %v5439
        %v5441 = vrot.slane %v5425, %v5440
        %v5443 = vunpack.c.l.s4 1966171168
        %v5444 = vunpack.c.0.s8 %v5443
        %v5445 = vlaneseq
        %v5446 = vshrl.u32 %v5445, 7
        %v5447 = vsub.s32 %v5444, %v5446
        %v5448 = vrot.slane %v5426, %v5447
        %v5450 = vunpack.c.l.s4 1966171168
        %v5451 = vunpack.c.0.s8 %v5450
        %v5452 = vlaneseq
        %v5453 = vshrl.u32 %v5452, 7
        %v5454 = vsub.s32 %v5451, %v5453
        %v5455 = vrot.slane %v5427, %v5454
        %v5456 = vcombine.low %v5434, %v5441
        %v5457 = vcombine.low %v5448, %v5455
        %v5459 = vunpack.c.l.s4 1966171168
        %v5460 = vunpack.c.0.s8 %v5459
        %v5461 = vlaneseq
        %v5462 = vshrl.u32 %v5461, 7
        %v5463 = vsub.s32 %v5460, %v5462
        %v5464 = vrot.slane %v5456, %v5463
        %v5466 = vunpack.c.l.s4 1966171168
        %v5467 = vunpack.c.0.s8 %v5466
        %v5468 = vlaneseq
        %v5469 = vshrl.u32 %v5468, 7
        %v5470 = vsub.s32 %v5467, %v5469
        %v5471 = vrot.slane %v5457, %v5470
        %v5472 = vcombine.low %v5464, %v5471
        %v5473 = vcombine.low %v1193, %v1197
        %v5474 = vcombine.low %v1201, %v1205
        %v5475 = vcombine.low %v1209, %v1213
        %v5476 = vcombine.low %v1217, %v1221
        %v5478 = vunpack.c.l.s4 1966171168
        %v5479 = vunpack.c.0.s8 %v5478
        %v5480 = vlaneseq
        %v5481 = vshrl.u32 %v5480, 7
        %v5482 = vsub.s32 %v5479, %v5481
        %v5483 = vrot.slane %v5473, %v5482
        %v5485 = vunpack.c.l.s4 1966171168
        %v5486 = vunpack.c.0.s8 %v5485
        %v5487 = vlaneseq
        %v5488 = vshrl.u32 %v5487, 7
        %v5489 = vsub.s32 %v5486, %v5488
        %v5490 = vrot.slane %v5474, %v5489
        %v5492 = vunpack.c.l.s4 1966171168
        %v5493 = vunpack.c.0.s8 %v5492
        %v5494 = vlaneseq
        %v5495 = vshrl.u32 %v5494, 7
        %v5496 = vsub.s32 %v5493, %v5495
        %v5497 = vrot.slane %v5475, %v5496
        %v5499 = vunpack.c.l.s4 1966171168
        %v5500 = vunpack.c.0.s8 %v5499
        %v5501 = vlaneseq
        %v5502 = vshrl.u32 %v5501, 7
        %v5503 = vsub.s32 %v5500, %v5502
        %v5504 = vrot.slane %v5476, %v5503
        %v5505 = vcombine.low %v5483, %v5490
        %v5506 = vcombine.low %v5497, %v5504
        %v5508 = vunpack.c.l.s4 1966171168
        %v5509 = vunpack.c.0.s8 %v5508
        %v5510 = vlaneseq
        %v5511 = vshrl.u32 %v5510, 7
        %v5512 = vsub.s32 %v5509, %v5511
        %v5513 = vrot.slane %v5505, %v5512
        %v5515 = vunpack.c.l.s4 1966171168
        %v5516 = vunpack.c.0.s8 %v5515
        %v5517 = vlaneseq
        %v5518 = vshrl.u32 %v5517, 7
        %v5519 = vsub.s32 %v5516, %v5518
        %v5520 = vrot.slane %v5506, %v5519
        %v5521 = vcombine.low %v5513, %v5520
        %v5522 = vcombine.low %v1225, %v1229
        %v5523 = vcombine.low %v1233, %v1237
        %v5524 = vcombine.low %v1241, %v1245
        %v5525 = vcombine.low %v1249, %v1253
        %v5527 = vunpack.c.l.s4 1966171168
        %v5528 = vunpack.c.0.s8 %v5527
        %v5529 = vlaneseq
        %v5530 = vshrl.u32 %v5529, 7
        %v5531 = vsub.s32 %v5528, %v5530
        %v5532 = vrot.slane %v5522, %v5531
        %v5534 = vunpack.c.l.s4 1966171168
        %v5535 = vunpack.c.0.s8 %v5534
        %v5536 = vlaneseq
        %v5537 = vshrl.u32 %v5536, 7
        %v5538 = vsub.s32 %v5535, %v5537
        %v5539 = vrot.slane %v5523, %v5538
        %v5541 = vunpack.c.l.s4 1966171168
        %v5542 = vunpack.c.0.s8 %v5541
        %v5543 = vlaneseq
        %v5544 = vshrl.u32 %v5543, 7
        %v5545 = vsub.s32 %v5542, %v5544
        %v5546 = vrot.slane %v5524, %v5545
        %v5548 = vunpack.c.l.s4 1966171168
        %v5549 = vunpack.c.0.s8 %v5548
        %v5550 = vlaneseq
        %v5551 = vshrl.u32 %v5550, 7
        %v5552 = vsub.s32 %v5549, %v5551
        %v5553 = vrot.slane %v5525, %v5552
        %v5554 = vcombine.low %v5532, %v5539
        %v5555 = vcombine.low %v5546, %v5553
        %v5557 = vunpack.c.l.s4 1966171168
        %v5558 = vunpack.c.0.s8 %v5557
        %v5559 = vlaneseq
        %v5560 = vshrl.u32 %v5559, 7
        %v5561 = vsub.s32 %v5558, %v5560
        %v5562 = vrot.slane %v5554, %v5561
        %v5564 = vunpack.c.l.s4 1966171168
        %v5565 = vunpack.c.0.s8 %v5564
        %v5566 = vlaneseq
        %v5567 = vshrl.u32 %v5566, 7
        %v5568 = vsub.s32 %v5565, %v5567
        %v5569 = vrot.slane %v5555, %v5568
        %v5570 = vcombine.low %v5562, %v5569
        %v5571 = vcombine.low %v1257, %v1261
        %v5572 = vcombine.low %v1265, %v1269
        %v5573 = vcombine.low %v1273, %v1277
        %v5574 = vcombine.low %v1281, %v1285
        %v5576 = vunpack.c.l.s4 1966171168
        %v5577 = vunpack.c.0.s8 %v5576
        %v5578 = vlaneseq
        %v5579 = vshrl.u32 %v5578, 7
        %v5580 = vsub.s32 %v5577, %v5579
        %v5581 = vrot.slane %v5571, %v5580
        %v5583 = vunpack.c.l.s4 1966171168
        %v5584 = vunpack.c.0.s8 %v5583
        %v5585 = vlaneseq
        %v5586 = vshrl.u32 %v5585, 7
        %v5587 = vsub.s32 %v5584, %v5586
        %v5588 = vrot.slane %v5572, %v5587
        %v5590 = vunpack.c.l.s4 1966171168
        %v5591 = vunpack.c.0.s8 %v5590
        %v5592 = vlaneseq
        %v5593 = vshrl.u32 %v5592, 7
        %v5594 = vsub.s32 %v5591, %v5593
        %v5595 = vrot.slane %v5573, %v5594
        %v5597 = vunpack.c.l.s4 1966171168
        %v5598 = vunpack.c.0.s8 %v5597
        %v5599 = vlaneseq
        %v5600 = vshrl.u32 %v5599, 7
        %v5601 = vsub.s32 %v5598, %v5600
        %v5602 = vrot.slane %v5574, %v5601
        %v5603 = vcombine.low %v5581, %v5588
        %v5604 = vcombine.low %v5595, %v5602
        %v5606 = vunpack.c.l.s4 1966171168
        %v5607 = vunpack.c.0.s8 %v5606
        %v5608 = vlaneseq
        %v5609 = vshrl.u32 %v5608, 7
        %v5610 = vsub.s32 %v5607, %v5609
        %v5611 = vrot.slane %v5603, %v5610
        %v5613 = vunpack.c.l.s4 1966171168
        %v5614 = vunpack.c.0.s8 %v5613
        %v5615 = vlaneseq
        %v5616 = vshrl.u32 %v5615, 7
        %v5617 = vsub.s32 %v5614, %v5616
        %v5618 = vrot.slane %v5604, %v5617
        %v5619 = vcombine.low %v5611, %v5618
        %v5620 = vcombine.low %v1289, %v1293
        %v5621 = vcombine.low %v1297, %v1301
        %v5622 = vcombine.low %v1305, %v1309
        %v5623 = vcombine.low %v1313, %v1317
        %v5625 = vunpack.c.l.s4 1966171168
        %v5626 = vunpack.c.0.s8 %v5625
        %v5627 = vlaneseq
        %v5628 = vshrl.u32 %v5627, 7
        %v5629 = vsub.s32 %v5626, %v5628
        %v5630 = vrot.slane %v5620, %v5629
        %v5632 = vunpack.c.l.s4 1966171168
        %v5633 = vunpack.c.0.s8 %v5632
        %v5634 = vlaneseq
        %v5635 = vshrl.u32 %v5634, 7
        %v5636 = vsub.s32 %v5633, %v5635
        %v5637 = vrot.slane %v5621, %v5636
        %v5639 = vunpack.c.l.s4 1966171168
        %v5640 = vunpack.c.0.s8 %v5639
        %v5641 = vlaneseq
        %v5642 = vshrl.u32 %v5641, 7
        %v5643 = vsub.s32 %v5640, %v5642
        %v5644 = vrot.slane %v5622, %v5643
        %v5646 = vunpack.c.l.s4 1966171168
        %v5647 = vunpack.c.0.s8 %v5646
        %v5648 = vlaneseq
        %v5649 = vshrl.u32 %v5648, 7
        %v5650 = vsub.s32 %v5647, %v5649
        %v5651 = vrot.slane %v5623, %v5650
        %v5652 = vcombine.low %v5630, %v5637
        %v5653 = vcombine.low %v5644, %v5651
        %v5655 = vunpack.c.l.s4 1966171168
        %v5656 = vunpack.c.0.s8 %v5655
        %v5657 = vlaneseq
        %v5658 = vshrl.u32 %v5657, 7
        %v5659 = vsub.s32 %v5656, %v5658
        %v5660 = vrot.slane %v5652, %v5659
        %v5662 = vunpack.c.l.s4 1966171168
        %v5663 = vunpack.c.0.s8 %v5662
        %v5664 = vlaneseq
        %v5665 = vshrl.u32 %v5664, 7
        %v5666 = vsub.s32 %v5663, %v5665
        %v5667 = vrot.slane %v5653, %v5666
        %v5668 = vcombine.low %v5660, %v5667
        %v5669 = vcombine.low %v1321, %v1325
        %v5670 = vcombine.low %v1329, %v1333
        %v5671 = vcombine.low %v1337, %v1341
        %v5672 = vcombine.low %v1345, %v1349
        %v5674 = vunpack.c.l.s4 1966171168
        %v5675 = vunpack.c.0.s8 %v5674
        %v5676 = vlaneseq
        %v5677 = vshrl.u32 %v5676, 7
        %v5678 = vsub.s32 %v5675, %v5677
        %v5679 = vrot.slane %v5669, %v5678
        %v5681 = vunpack.c.l.s4 1966171168
        %v5682 = vunpack.c.0.s8 %v5681
        %v5683 = vlaneseq
        %v5684 = vshrl.u32 %v5683, 7
        %v5685 = vsub.s32 %v5682, %v5684
        %v5686 = vrot.slane %v5670, %v5685
        %v5688 = vunpack.c.l.s4 1966171168
        %v5689 = vunpack.c.0.s8 %v5688
        %v5690 = vlaneseq
        %v5691 = vshrl.u32 %v5690, 7
        %v5692 = vsub.s32 %v5689, %v5691
        %v5693 = vrot.slane %v5671, %v5692
        %v5695 = vunpack.c.l.s4 1966171168
        %v5696 = vunpack.c.0.s8 %v5695
        %v5697 = vlaneseq
        %v5698 = vshrl.u32 %v5697, 7
        %v5699 = vsub.s32 %v5696, %v5698
        %v5700 = vrot.slane %v5672, %v5699
        %v5701 = vcombine.low %v5679, %v5686
        %v5702 = vcombine.low %v5693, %v5700
        %v5704 = vunpack.c.l.s4 1966171168
        %v5705 = vunpack.c.0.s8 %v5704
        %v5706 = vlaneseq
        %v5707 = vshrl.u32 %v5706, 7
        %v5708 = vsub.s32 %v5705, %v5707
        %v5709 = vrot.slane %v5701, %v5708
        %v5711 = vunpack.c.l.s4 1966171168
        %v5712 = vunpack.c.0.s8 %v5711
        %v5713 = vlaneseq
        %v5714 = vshrl.u32 %v5713, 7
        %v5715 = vsub.s32 %v5712, %v5714
        %v5716 = vrot.slane %v5702, %v5715
        %v5717 = vcombine.low %v5709, %v5716
        %v5718 = vcombine.low %v1353, %v1357
        %v5719 = vcombine.low %v1361, %v1365
        %v5720 = vcombine.low %v1369, %v1373
        %v5721 = vcombine.low %v1377, %v1381
        %v5723 = vunpack.c.l.s4 1966171168
        %v5724 = vunpack.c.0.s8 %v5723
        %v5725 = vlaneseq
        %v5726 = vshrl.u32 %v5725, 7
        %v5727 = vsub.s32 %v5724, %v5726
        %v5728 = vrot.slane %v5718, %v5727
        %v5730 = vunpack.c.l.s4 1966171168
        %v5731 = vunpack.c.0.s8 %v5730
        %v5732 = vlaneseq
        %v5733 = vshrl.u32 %v5732, 7
        %v5734 = vsub.s32 %v5731, %v5733
        %v5735 = vrot.slane %v5719, %v5734
        %v5737 = vunpack.c.l.s4 1966171168
        %v5738 = vunpack.c.0.s8 %v5737
        %v5739 = vlaneseq
        %v5740 = vshrl.u32 %v5739, 7
        %v5741 = vsub.s32 %v5738, %v5740
        %v5742 = vrot.slane %v5720, %v5741
        %v5744 = vunpack.c.l.s4 1966171168
        %v5745 = vunpack.c.0.s8 %v5744
        %v5746 = vlaneseq
        %v5747 = vshrl.u32 %v5746, 7
        %v5748 = vsub.s32 %v5745, %v5747
        %v5749 = vrot.slane %v5721, %v5748
        %v5750 = vcombine.low %v5728, %v5735
        %v5751 = vcombine.low %v5742, %v5749
        %v5753 = vunpack.c.l.s4 1966171168
        %v5754 = vunpack.c.0.s8 %v5753
        %v5755 = vlaneseq
        %v5756 = vshrl.u32 %v5755, 7
        %v5757 = vsub.s32 %v5754, %v5756
        %v5758 = vrot.slane %v5750, %v5757
        %v5760 = vunpack.c.l.s4 1966171168
        %v5761 = vunpack.c.0.s8 %v5760
        %v5762 = vlaneseq
        %v5763 = vshrl.u32 %v5762, 7
        %v5764 = vsub.s32 %v5761, %v5763
        %v5765 = vrot.slane %v5751, %v5764
        %v5766 = vcombine.low %v5758, %v5765
        %v5767 = vcombine.low %v1385, %v1389
        %v5768 = vcombine.low %v1393, %v1397
        %v5769 = vcombine.low %v1401, %v1405
        %v5770 = vcombine.low %v1409, %v1413
        %v5772 = vunpack.c.l.s4 1966171168
        %v5773 = vunpack.c.0.s8 %v5772
        %v5774 = vlaneseq
        %v5775 = vshrl.u32 %v5774, 7
        %v5776 = vsub.s32 %v5773, %v5775
        %v5777 = vrot.slane %v5767, %v5776
        %v5779 = vunpack.c.l.s4 1966171168
        %v5780 = vunpack.c.0.s8 %v5779
        %v5781 = vlaneseq
        %v5782 = vshrl.u32 %v5781, 7
        %v5783 = vsub.s32 %v5780, %v5782
        %v5784 = vrot.slane %v5768, %v5783
        %v5786 = vunpack.c.l.s4 1966171168
        %v5787 = vunpack.c.0.s8 %v5786
        %v5788 = vlaneseq
        %v5789 = vshrl.u32 %v5788, 7
        %v5790 = vsub.s32 %v5787, %v5789
        %v5791 = vrot.slane %v5769, %v5790
        %v5793 = vunpack.c.l.s4 1966171168
        %v5794 = vunpack.c.0.s8 %v5793
        %v5795 = vlaneseq
        %v5796 = vshrl.u32 %v5795, 7
        %v5797 = vsub.s32 %v5794, %v5796
        %v5798 = vrot.slane %v5770, %v5797
        %v5799 = vcombine.low %v5777, %v5784
        %v5800 = vcombine.low %v5791, %v5798
        %v5802 = vunpack.c.l.s4 1966171168
        %v5803 = vunpack.c.0.s8 %v5802
        %v5804 = vlaneseq
        %v5805 = vshrl.u32 %v5804, 7
        %v5806 = vsub.s32 %v5803, %v5805
        %v5807 = vrot.slane %v5799, %v5806
        %v5809 = vunpack.c.l.s4 1966171168
        %v5810 = vunpack.c.0.s8 %v5809
        %v5811 = vlaneseq
        %v5812 = vshrl.u32 %v5811, 7
        %v5813 = vsub.s32 %v5810, %v5812
        %v5814 = vrot.slane %v5800, %v5813
        %v5815 = vcombine.low %v5807, %v5814
        %v5816 = vcombine.low %v1417, %v1421
        %v5817 = vcombine.low %v1425, %v1429
        %v5818 = vcombine.low %v1433, %v1437
        %v5819 = vcombine.low %v1441, %v1445
        %v5821 = vunpack.c.l.s4 1966171168
        %v5822 = vunpack.c.0.s8 %v5821
        %v5823 = vlaneseq
        %v5824 = vshrl.u32 %v5823, 7
        %v5825 = vsub.s32 %v5822, %v5824
        %v5826 = vrot.slane %v5816, %v5825
        %v5828 = vunpack.c.l.s4 1966171168
        %v5829 = vunpack.c.0.s8 %v5828
        %v5830 = vlaneseq
        %v5831 = vshrl.u32 %v5830, 7
        %v5832 = vsub.s32 %v5829, %v5831
        %v5833 = vrot.slane %v5817, %v5832
        %v5835 = vunpack.c.l.s4 1966171168
        %v5836 = vunpack.c.0.s8 %v5835
        %v5837 = vlaneseq
        %v5838 = vshrl.u32 %v5837, 7
        %v5839 = vsub.s32 %v5836, %v5838
        %v5840 = vrot.slane %v5818, %v5839
        %v5842 = vunpack.c.l.s4 1966171168
        %v5843 = vunpack.c.0.s8 %v5842
        %v5844 = vlaneseq
        %v5845 = vshrl.u32 %v5844, 7
        %v5846 = vsub.s32 %v5843, %v5845
        %v5847 = vrot.slane %v5819, %v5846
        %v5848 = vcombine.low %v5826, %v5833
        %v5849 = vcombine.low %v5840, %v5847
        %v5851 = vunpack.c.l.s4 1966171168
        %v5852 = vunpack.c.0.s8 %v5851
        %v5853 = vlaneseq
        %v5854 = vshrl.u32 %v5853, 7
        %v5855 = vsub.s32 %v5852, %v5854
        %v5856 = vrot.slane %v5848, %v5855
        %v5858 = vunpack.c.l.s4 1966171168
        %v5859 = vunpack.c.0.s8 %v5858
        %v5860 = vlaneseq
        %v5861 = vshrl.u32 %v5860, 7
        %v5862 = vsub.s32 %v5859, %v5861
        %v5863 = vrot.slane %v5849, %v5862
        %v5864 = vcombine.low %v5856, %v5863
        %v5865 = vcombine.low %v1449, %v1453
        %v5866 = vcombine.low %v1457, %v1461
        %v5867 = vcombine.low %v1465, %v1469
        %v5868 = vcombine.low %v1473, %v1477
        %v5870 = vunpack.c.l.s4 1966171168
        %v5871 = vunpack.c.0.s8 %v5870
        %v5872 = vlaneseq
        %v5873 = vshrl.u32 %v5872, 7
        %v5874 = vsub.s32 %v5871, %v5873
        %v5875 = vrot.slane %v5865, %v5874
        %v5877 = vunpack.c.l.s4 1966171168
        %v5878 = vunpack.c.0.s8 %v5877
        %v5879 = vlaneseq
        %v5880 = vshrl.u32 %v5879, 7
        %v5881 = vsub.s32 %v5878, %v5880
        %v5882 = vrot.slane %v5866, %v5881
        %v5884 = vunpack.c.l.s4 1966171168
        %v5885 = vunpack.c.0.s8 %v5884
        %v5886 = vlaneseq
        %v5887 = vshrl.u32 %v5886, 7
        %v5888 = vsub.s32 %v5885, %v5887
        %v5889 = vrot.slane %v5867, %v5888
        %v5891 = vunpack.c.l.s4 1966171168
        %v5892 = vunpack.c.0.s8 %v5891
        %v5893 = vlaneseq
        %v5894 = vshrl.u32 %v5893, 7
        %v5895 = vsub.s32 %v5892, %v5894
        %v5896 = vrot.slane %v5868, %v5895
        %v5897 = vcombine.low %v5875, %v5882
        %v5898 = vcombine.low %v5889, %v5896
        %v5900 = vunpack.c.l.s4 1966171168
        %v5901 = vunpack.c.0.s8 %v5900
        %v5902 = vlaneseq
        %v5903 = vshrl.u32 %v5902, 7
        %v5904 = vsub.s32 %v5901, %v5903
        %v5905 = vrot.slane %v5897, %v5904
        %v5907 = vunpack.c.l.s4 1966171168
        %v5908 = vunpack.c.0.s8 %v5907
        %v5909 = vlaneseq
        %v5910 = vshrl.u32 %v5909, 7
        %v5911 = vsub.s32 %v5908, %v5910
        %v5912 = vrot.slane %v5898, %v5911
        %v5913 = vcombine.low %v5905, %v5912
        %v5914 = vcombine.low %v1481, %v1485
        %v5915 = vcombine.low %v1489, %v1493
        %v5916 = vcombine.low %v1497, %v1501
        %v5917 = vcombine.low %v1505, %v1509
        %v5919 = vunpack.c.l.s4 1966171168
        %v5920 = vunpack.c.0.s8 %v5919
        %v5921 = vlaneseq
        %v5922 = vshrl.u32 %v5921, 7
        %v5923 = vsub.s32 %v5920, %v5922
        %v5924 = vrot.slane %v5914, %v5923
        %v5926 = vunpack.c.l.s4 1966171168
        %v5927 = vunpack.c.0.s8 %v5926
        %v5928 = vlaneseq
        %v5929 = vshrl.u32 %v5928, 7
        %v5930 = vsub.s32 %v5927, %v5929
        %v5931 = vrot.slane %v5915, %v5930
        %v5933 = vunpack.c.l.s4 1966171168
        %v5934 = vunpack.c.0.s8 %v5933
        %v5935 = vlaneseq
        %v5936 = vshrl.u32 %v5935, 7
        %v5937 = vsub.s32 %v5934, %v5936
        %v5938 = vrot.slane %v5916, %v5937
        %v5940 = vunpack.c.l.s4 1966171168
        %v5941 = vunpack.c.0.s8 %v5940
        %v5942 = vlaneseq
        %v5943 = vshrl.u32 %v5942, 7
        %v5944 = vsub.s32 %v5941, %v5943
        %v5945 = vrot.slane %v5917, %v5944
        %v5946 = vcombine.low %v5924, %v5931
        %v5947 = vcombine.low %v5938, %v5945
        %v5949 = vunpack.c.l.s4 1966171168
        %v5950 = vunpack.c.0.s8 %v5949
        %v5951 = vlaneseq
        %v5952 = vshrl.u32 %v5951, 7
        %v5953 = vsub.s32 %v5950, %v5952
        %v5954 = vrot.slane %v5946, %v5953
        %v5956 = vunpack.c.l.s4 1966171168
        %v5957 = vunpack.c.0.s8 %v5956
        %v5958 = vlaneseq
        %v5959 = vshrl.u32 %v5958, 7
        %v5960 = vsub.s32 %v5957, %v5959
        %v5961 = vrot.slane %v5947, %v5960
        %v5962 = vcombine.low %v5954, %v5961
        %v5963 = vcombine.low %v1513, %v1517
        %v5964 = vcombine.low %v1521, %v1525
        %v5965 = vcombine.low %v1529, %v1533
        %v5966 = vcombine.low %v1537, %v1541
        %v5968 = vunpack.c.l.s4 1966171168
        %v5969 = vunpack.c.0.s8 %v5968
        %v5970 = vlaneseq
        %v5971 = vshrl.u32 %v5970, 7
        %v5972 = vsub.s32 %v5969, %v5971
        %v5973 = vrot.slane %v5963, %v5972
        %v5975 = vunpack.c.l.s4 1966171168
        %v5976 = vunpack.c.0.s8 %v5975
        %v5977 = vlaneseq
        %v5978 = vshrl.u32 %v5977, 7
        %v5979 = vsub.s32 %v5976, %v5978
        %v5980 = vrot.slane %v5964, %v5979
        %v5982 = vunpack.c.l.s4 1966171168
        %v5983 = vunpack.c.0.s8 %v5982
        %v5984 = vlaneseq
        %v5985 = vshrl.u32 %v5984, 7
        %v5986 = vsub.s32 %v5983, %v5985
        %v5987 = vrot.slane %v5965, %v5986
        %v5989 = vunpack.c.l.s4 1966171168
        %v5990 = vunpack.c.0.s8 %v5989
        %v5991 = vlaneseq
        %v5992 = vshrl.u32 %v5991, 7
        %v5993 = vsub.s32 %v5990, %v5992
        %v5994 = vrot.slane %v5966, %v5993
        %v5995 = vcombine.low %v5973, %v5980
        %v5996 = vcombine.low %v5987, %v5994
        %v5998 = vunpack.c.l.s4 1966171168
        %v5999 = vunpack.c.0.s8 %v5998
        %v6000 = vlaneseq
        %v6001 = vshrl.u32 %v6000, 7
        %v6002 = vsub.s32 %v5999, %v6001
        %v6003 = vrot.slane %v5995, %v6002
        %v6005 = vunpack.c.l.s4 1966171168
        %v6006 = vunpack.c.0.s8 %v6005
        %v6007 = vlaneseq
        %v6008 = vshrl.u32 %v6007, 7
        %v6009 = vsub.s32 %v6006, %v6008
        %v6010 = vrot.slane %v5996, %v6009
        %v6011 = vcombine.low %v6003, %v6010
        %v6012 = vcombine.low %v1545, %v1549
        %v6013 = vcombine.low %v1553, %v1557
        %v6014 = vcombine.low %v1561, %v1565
        %v6015 = vcombine.low %v1569, %v1573
        %v6017 = vunpack.c.l.s4 1966171168
        %v6018 = vunpack.c.0.s8 %v6017
        %v6019 = vlaneseq
        %v6020 = vshrl.u32 %v6019, 7
        %v6021 = vsub.s32 %v6018, %v6020
        %v6022 = vrot.slane %v6012, %v6021
        %v6024 = vunpack.c.l.s4 1966171168
        %v6025 = vunpack.c.0.s8 %v6024
        %v6026 = vlaneseq
        %v6027 = vshrl.u32 %v6026, 7
        %v6028 = vsub.s32 %v6025, %v6027
        %v6029 = vrot.slane %v6013, %v6028
        %v6031 = vunpack.c.l.s4 1966171168
        %v6032 = vunpack.c.0.s8 %v6031
        %v6033 = vlaneseq
        %v6034 = vshrl.u32 %v6033, 7
        %v6035 = vsub.s32 %v6032, %v6034
        %v6036 = vrot.slane %v6014, %v6035
        %v6038 = vunpack.c.l.s4 1966171168
        %v6039 = vunpack.c.0.s8 %v6038
        %v6040 = vlaneseq
        %v6041 = vshrl.u32 %v6040, 7
        %v6042 = vsub.s32 %v6039, %v6041
        %v6043 = vrot.slane %v6015, %v6042
        %v6044 = vcombine.low %v6022, %v6029
        %v6045 = vcombine.low %v6036, %v6043
        %v6047 = vunpack.c.l.s4 1966171168
        %v6048 = vunpack.c.0.s8 %v6047
        %v6049 = vlaneseq
        %v6050 = vshrl.u32 %v6049, 7
        %v6051 = vsub.s32 %v6048, %v6050
        %v6052 = vrot.slane %v6044, %v6051
        %v6054 = vunpack.c.l.s4 1966171168
        %v6055 = vunpack.c.0.s8 %v6054
        %v6056 = vlaneseq
        %v6057 = vshrl.u32 %v6056, 7
        %v6058 = vsub.s32 %v6055, %v6057
        %v6059 = vrot.slane %v6045, %v6058
        %v6060 = vcombine.low %v6052, %v6059
        %v6061 = vcombine.low %v1577, %v1581
        %v6062 = vcombine.low %v1585, %v1589
        %v6063 = vcombine.low %v1593, %v1597
        %v6064 = vcombine.low %v1601, %v1605
        %v6066 = vunpack.c.l.s4 1966171168
        %v6067 = vunpack.c.0.s8 %v6066
        %v6068 = vlaneseq
        %v6069 = vshrl.u32 %v6068, 7
        %v6070 = vsub.s32 %v6067, %v6069
        %v6071 = vrot.slane %v6061, %v6070
        %v6073 = vunpack.c.l.s4 1966171168
        %v6074 = vunpack.c.0.s8 %v6073
        %v6075 = vlaneseq
        %v6076 = vshrl.u32 %v6075, 7
        %v6077 = vsub.s32 %v6074, %v6076
        %v6078 = vrot.slane %v6062, %v6077
        %v6080 = vunpack.c.l.s4 1966171168
        %v6081 = vunpack.c.0.s8 %v6080
        %v6082 = vlaneseq
        %v6083 = vshrl.u32 %v6082, 7
        %v6084 = vsub.s32 %v6081, %v6083
        %v6085 = vrot.slane %v6063, %v6084
        %v6087 = vunpack.c.l.s4 1966171168
        %v6088 = vunpack.c.0.s8 %v6087
        %v6089 = vlaneseq
        %v6090 = vshrl.u32 %v6089, 7
        %v6091 = vsub.s32 %v6088, %v6090
        %v6092 = vrot.slane %v6064, %v6091
        %v6093 = vcombine.low %v6071, %v6078
        %v6094 = vcombine.low %v6085, %v6092
        %v6096 = vunpack.c.l.s4 1966171168
        %v6097 = vunpack.c.0.s8 %v6096
        %v6098 = vlaneseq
        %v6099 = vshrl.u32 %v6098, 7
        %v6100 = vsub.s32 %v6097, %v6099
        %v6101 = vrot.slane %v6093, %v6100
        %v6103 = vunpack.c.l.s4 1966171168
        %v6104 = vunpack.c.0.s8 %v6103
        %v6105 = vlaneseq
        %v6106 = vshrl.u32 %v6105, 7
        %v6107 = vsub.s32 %v6104, %v6106
        %v6108 = vrot.slane %v6094, %v6107
        %v6109 = vcombine.low %v6101, %v6108
        %v6110 = vcombine.low %v1609, %v1613
        %v6111 = vcombine.low %v1617, %v1621
        %v6112 = vcombine.low %v1625, %v1629
        %v6113 = vcombine.low %v1633, %v1637
        %v6115 = vunpack.c.l.s4 1966171168
        %v6116 = vunpack.c.0.s8 %v6115
        %v6117 = vlaneseq
        %v6118 = vshrl.u32 %v6117, 7
        %v6119 = vsub.s32 %v6116, %v6118
        %v6120 = vrot.slane %v6110, %v6119
        %v6122 = vunpack.c.l.s4 1966171168
        %v6123 = vunpack.c.0.s8 %v6122
        %v6124 = vlaneseq
        %v6125 = vshrl.u32 %v6124, 7
        %v6126 = vsub.s32 %v6123, %v6125
        %v6127 = vrot.slane %v6111, %v6126
        %v6129 = vunpack.c.l.s4 1966171168
        %v6130 = vunpack.c.0.s8 %v6129
        %v6131 = vlaneseq
        %v6132 = vshrl.u32 %v6131, 7
        %v6133 = vsub.s32 %v6130, %v6132
        %v6134 = vrot.slane %v6112, %v6133
        %v6136 = vunpack.c.l.s4 1966171168
        %v6137 = vunpack.c.0.s8 %v6136
        %v6138 = vlaneseq
        %v6139 = vshrl.u32 %v6138, 7
        %v6140 = vsub.s32 %v6137, %v6139
        %v6141 = vrot.slane %v6113, %v6140
        %v6142 = vcombine.low %v6120, %v6127
        %v6143 = vcombine.low %v6134, %v6141
        %v6145 = vunpack.c.l.s4 1966171168
        %v6146 = vunpack.c.0.s8 %v6145
        %v6147 = vlaneseq
        %v6148 = vshrl.u32 %v6147, 7
        %v6149 = vsub.s32 %v6146, %v6148
        %v6150 = vrot.slane %v6142, %v6149
        %v6152 = vunpack.c.l.s4 1966171168
        %v6153 = vunpack.c.0.s8 %v6152
        %v6154 = vlaneseq
        %v6155 = vshrl.u32 %v6154, 7
        %v6156 = vsub.s32 %v6153, %v6155
        %v6157 = vrot.slane %v6143, %v6156
        %v6158 = vcombine.low %v6150, %v6157
        %v6159 = vcombine.low %v1641, %v1645
        %v6160 = vcombine.low %v1649, %v1653
        %v6161 = vcombine.low %v1657, %v1661
        %v6162 = vcombine.low %v1665, %v1669
        %v6164 = vunpack.c.l.s4 1966171168
        %v6165 = vunpack.c.0.s8 %v6164
        %v6166 = vlaneseq
        %v6167 = vshrl.u32 %v6166, 7
        %v6168 = vsub.s32 %v6165, %v6167
        %v6169 = vrot.slane %v6159, %v6168
        %v6171 = vunpack.c.l.s4 1966171168
        %v6172 = vunpack.c.0.s8 %v6171
        %v6173 = vlaneseq
        %v6174 = vshrl.u32 %v6173, 7
        %v6175 = vsub.s32 %v6172, %v6174
        %v6176 = vrot.slane %v6160, %v6175
        %v6178 = vunpack.c.l.s4 1966171168
        %v6179 = vunpack.c.0.s8 %v6178
        %v6180 = vlaneseq
        %v6181 = vshrl.u32 %v6180, 7
        %v6182 = vsub.s32 %v6179, %v6181
        %v6183 = vrot.slane %v6161, %v6182
        %v6185 = vunpack.c.l.s4 1966171168
        %v6186 = vunpack.c.0.s8 %v6185
        %v6187 = vlaneseq
        %v6188 = vshrl.u32 %v6187, 7
        %v6189 = vsub.s32 %v6186, %v6188
        %v6190 = vrot.slane %v6162, %v6189
        %v6191 = vcombine.low %v6169, %v6176
        %v6192 = vcombine.low %v6183, %v6190
        %v6194 = vunpack.c.l.s4 1966171168
        %v6195 = vunpack.c.0.s8 %v6194
        %v6196 = vlaneseq
        %v6197 = vshrl.u32 %v6196, 7
        %v6198 = vsub.s32 %v6195, %v6197
        %v6199 = vrot.slane %v6191, %v6198
        %v6201 = vunpack.c.l.s4 1966171168
        %v6202 = vunpack.c.0.s8 %v6201
        %v6203 = vlaneseq
        %v6204 = vshrl.u32 %v6203, 7
        %v6205 = vsub.s32 %v6202, %v6204
        %v6206 = vrot.slane %v6192, %v6205
        %v6207 = vcombine.low %v6199, %v6206
        %v6208 = vcombine.low %v1673, %v1677
        %v6209 = vcombine.low %v1681, %v1685
        %v6210 = vcombine.low %v1689, %v1693
        %v6211 = vcombine.low %v1697, %v1701
        %v6213 = vunpack.c.l.s4 1966171168
        %v6214 = vunpack.c.0.s8 %v6213
        %v6215 = vlaneseq
        %v6216 = vshrl.u32 %v6215, 7
        %v6217 = vsub.s32 %v6214, %v6216
        %v6218 = vrot.slane %v6208, %v6217
        %v6220 = vunpack.c.l.s4 1966171168
        %v6221 = vunpack.c.0.s8 %v6220
        %v6222 = vlaneseq
        %v6223 = vshrl.u32 %v6222, 7
        %v6224 = vsub.s32 %v6221, %v6223
        %v6225 = vrot.slane %v6209, %v6224
        %v6227 = vunpack.c.l.s4 1966171168
        %v6228 = vunpack.c.0.s8 %v6227
        %v6229 = vlaneseq
        %v6230 = vshrl.u32 %v6229, 7
        %v6231 = vsub.s32 %v6228, %v6230
        %v6232 = vrot.slane %v6210, %v6231
        %v6234 = vunpack.c.l.s4 1966171168
        %v6235 = vunpack.c.0.s8 %v6234
        %v6236 = vlaneseq
        %v6237 = vshrl.u32 %v6236, 7
        %v6238 = vsub.s32 %v6235, %v6237
        %v6239 = vrot.slane %v6211, %v6238
        %v6240 = vcombine.low %v6218, %v6225
        %v6241 = vcombine.low %v6232, %v6239
        %v6243 = vunpack.c.l.s4 1966171168
        %v6244 = vunpack.c.0.s8 %v6243
        %v6245 = vlaneseq
        %v6246 = vshrl.u32 %v6245, 7
        %v6247 = vsub.s32 %v6244, %v6246
        %v6248 = vrot.slane %v6240, %v6247
        %v6250 = vunpack.c.l.s4 1966171168
        %v6251 = vunpack.c.0.s8 %v6250
        %v6252 = vlaneseq
        %v6253 = vshrl.u32 %v6252, 7
        %v6254 = vsub.s32 %v6251, %v6253
        %v6255 = vrot.slane %v6241, %v6254
        %v6256 = vcombine.low %v6248, %v6255
        %v6257 = vcombine.low %v1705, %v1709
        %v6258 = vcombine.low %v1713, %v1717
        %v6259 = vcombine.low %v1721, %v1725
        %v6260 = vcombine.low %v1729, %v1733
        %v6262 = vunpack.c.l.s4 1966171168
        %v6263 = vunpack.c.0.s8 %v6262
        %v6264 = vlaneseq
        %v6265 = vshrl.u32 %v6264, 7
        %v6266 = vsub.s32 %v6263, %v6265
        %v6267 = vrot.slane %v6257, %v6266
        %v6269 = vunpack.c.l.s4 1966171168
        %v6270 = vunpack.c.0.s8 %v6269
        %v6271 = vlaneseq
        %v6272 = vshrl.u32 %v6271, 7
        %v6273 = vsub.s32 %v6270, %v6272
        %v6274 = vrot.slane %v6258, %v6273
        %v6276 = vunpack.c.l.s4 1966171168
        %v6277 = vunpack.c.0.s8 %v6276
        %v6278 = vlaneseq
        %v6279 = vshrl.u32 %v6278, 7
        %v6280 = vsub.s32 %v6277, %v6279
        %v6281 = vrot.slane %v6259, %v6280
        %v6283 = vunpack.c.l.s4 1966171168
        %v6284 = vunpack.c.0.s8 %v6283
        %v6285 = vlaneseq
        %v6286 = vshrl.u32 %v6285, 7
        %v6287 = vsub.s32 %v6284, %v6286
        %v6288 = vrot.slane %v6260, %v6287
        %v6289 = vcombine.low %v6267, %v6274
        %v6290 = vcombine.low %v6281, %v6288
        %v6292 = vunpack.c.l.s4 1966171168
        %v6293 = vunpack.c.0.s8 %v6292
        %v6294 = vlaneseq
        %v6295 = vshrl.u32 %v6294, 7
        %v6296 = vsub.s32 %v6293, %v6295
        %v6297 = vrot.slane %v6289, %v6296
        %v6299 = vunpack.c.l.s4 1966171168
        %v6300 = vunpack.c.0.s8 %v6299
        %v6301 = vlaneseq
        %v6302 = vshrl.u32 %v6301, 7
        %v6303 = vsub.s32 %v6300, %v6302
        %v6304 = vrot.slane %v6290, %v6303
        %v6305 = vcombine.low %v6297, %v6304
        %v6306 = vcombine.low %v1737, %v1741
        %v6307 = vcombine.low %v1745, %v1749
        %v6308 = vcombine.low %v1753, %v1757
        %v6309 = vcombine.low %v1761, %v1765
        %v6311 = vunpack.c.l.s4 1966171168
        %v6312 = vunpack.c.0.s8 %v6311
        %v6313 = vlaneseq
        %v6314 = vshrl.u32 %v6313, 7
        %v6315 = vsub.s32 %v6312, %v6314
        %v6316 = vrot.slane %v6306, %v6315
        %v6318 = vunpack.c.l.s4 1966171168
        %v6319 = vunpack.c.0.s8 %v6318
        %v6320 = vlaneseq
        %v6321 = vshrl.u32 %v6320, 7
        %v6322 = vsub.s32 %v6319, %v6321
        %v6323 = vrot.slane %v6307, %v6322
        %v6325 = vunpack.c.l.s4 1966171168
        %v6326 = vunpack.c.0.s8 %v6325
        %v6327 = vlaneseq
        %v6328 = vshrl.u32 %v6327, 7
        %v6329 = vsub.s32 %v6326, %v6328
        %v6330 = vrot.slane %v6308, %v6329
        %v6332 = vunpack.c.l.s4 1966171168
        %v6333 = vunpack.c.0.s8 %v6332
        %v6334 = vlaneseq
        %v6335 = vshrl.u32 %v6334, 7
        %v6336 = vsub.s32 %v6333, %v6335
        %v6337 = vrot.slane %v6309, %v6336
        %v6338 = vcombine.low %v6316, %v6323
        %v6339 = vcombine.low %v6330, %v6337
        %v6341 = vunpack.c.l.s4 1966171168
        %v6342 = vunpack.c.0.s8 %v6341
        %v6343 = vlaneseq
        %v6344 = vshrl.u32 %v6343, 7
        %v6345 = vsub.s32 %v6342, %v6344
        %v6346 = vrot.slane %v6338, %v6345
        %v6348 = vunpack.c.l.s4 1966171168
        %v6349 = vunpack.c.0.s8 %v6348
        %v6350 = vlaneseq
        %v6351 = vshrl.u32 %v6350, 7
        %v6352 = vsub.s32 %v6349, %v6351
        %v6353 = vrot.slane %v6339, %v6352
        %v6354 = vcombine.low %v6346, %v6353
        %v6355 = vcombine.low %v1769, %v1773
        %v6356 = vcombine.low %v1777, %v1781
        %v6357 = vcombine.low %v1785, %v1789
        %v6358 = vcombine.low %v1793, %v1797
        %v6360 = vunpack.c.l.s4 1966171168
        %v6361 = vunpack.c.0.s8 %v6360
        %v6362 = vlaneseq
        %v6363 = vshrl.u32 %v6362, 7
        %v6364 = vsub.s32 %v6361, %v6363
        %v6365 = vrot.slane %v6355, %v6364
        %v6367 = vunpack.c.l.s4 1966171168
        %v6368 = vunpack.c.0.s8 %v6367
        %v6369 = vlaneseq
        %v6370 = vshrl.u32 %v6369, 7
        %v6371 = vsub.s32 %v6368, %v6370
        %v6372 = vrot.slane %v6356, %v6371
        %v6374 = vunpack.c.l.s4 1966171168
        %v6375 = vunpack.c.0.s8 %v6374
        %v6376 = vlaneseq
        %v6377 = vshrl.u32 %v6376, 7
        %v6378 = vsub.s32 %v6375, %v6377
        %v6379 = vrot.slane %v6357, %v6378
        %v6381 = vunpack.c.l.s4 1966171168
        %v6382 = vunpack.c.0.s8 %v6381
        %v6383 = vlaneseq
        %v6384 = vshrl.u32 %v6383, 7
        %v6385 = vsub.s32 %v6382, %v6384
        %v6386 = vrot.slane %v6358, %v6385
        %v6387 = vcombine.low %v6365, %v6372
        %v6388 = vcombine.low %v6379, %v6386
        %v6390 = vunpack.c.l.s4 1966171168
        %v6391 = vunpack.c.0.s8 %v6390
        %v6392 = vlaneseq
        %v6393 = vshrl.u32 %v6392, 7
        %v6394 = vsub.s32 %v6391, %v6393
        %v6395 = vrot.slane %v6387, %v6394
        %v6397 = vunpack.c.l.s4 1966171168
        %v6398 = vunpack.c.0.s8 %v6397
        %v6399 = vlaneseq
        %v6400 = vshrl.u32 %v6399, 7
        %v6401 = vsub.s32 %v6398, %v6400
        %v6402 = vrot.slane %v6388, %v6401
        %v6403 = vcombine.low %v6395, %v6402
        %v6404 = vcombine.low %v1801, %v1805
        %v6405 = vcombine.low %v1809, %v1813
        %v6406 = vcombine.low %v1817, %v1821
        %v6407 = vcombine.low %v1825, %v1829
        %v6409 = vunpack.c.l.s4 1966171168
        %v6410 = vunpack.c.0.s8 %v6409
        %v6411 = vlaneseq
        %v6412 = vshrl.u32 %v6411, 7
        %v6413 = vsub.s32 %v6410, %v6412
        %v6414 = vrot.slane %v6404, %v6413
        %v6416 = vunpack.c.l.s4 1966171168
        %v6417 = vunpack.c.0.s8 %v6416
        %v6418 = vlaneseq
        %v6419 = vshrl.u32 %v6418, 7
        %v6420 = vsub.s32 %v6417, %v6419
        %v6421 = vrot.slane %v6405, %v6420
        %v6423 = vunpack.c.l.s4 1966171168
        %v6424 = vunpack.c.0.s8 %v6423
        %v6425 = vlaneseq
        %v6426 = vshrl.u32 %v6425, 7
        %v6427 = vsub.s32 %v6424, %v6426
        %v6428 = vrot.slane %v6406, %v6427
        %v6430 = vunpack.c.l.s4 1966171168
        %v6431 = vunpack.c.0.s8 %v6430
        %v6432 = vlaneseq
        %v6433 = vshrl.u32 %v6432, 7
        %v6434 = vsub.s32 %v6431, %v6433
        %v6435 = vrot.slane %v6407, %v6434
        %v6436 = vcombine.low %v6414, %v6421
        %v6437 = vcombine.low %v6428, %v6435
        %v6439 = vunpack.c.l.s4 1966171168
        %v6440 = vunpack.c.0.s8 %v6439
        %v6441 = vlaneseq
        %v6442 = vshrl.u32 %v6441, 7
        %v6443 = vsub.s32 %v6440, %v6442
        %v6444 = vrot.slane %v6436, %v6443
        %v6446 = vunpack.c.l.s4 1966171168
        %v6447 = vunpack.c.0.s8 %v6446
        %v6448 = vlaneseq
        %v6449 = vshrl.u32 %v6448, 7
        %v6450 = vsub.s32 %v6447, %v6449
        %v6451 = vrot.slane %v6437, %v6450
        %v6452 = vcombine.low %v6444, %v6451
        %v6453 = vcombine.low %v1833, %v1837
        %v6454 = vcombine.low %v1841, %v1845
        %v6455 = vcombine.low %v1849, %v1853
        %v6456 = vcombine.low %v1857, %v1861
        %v6458 = vunpack.c.l.s4 1966171168
        %v6459 = vunpack.c.0.s8 %v6458
        %v6460 = vlaneseq
        %v6461 = vshrl.u32 %v6460, 7
        %v6462 = vsub.s32 %v6459, %v6461
        %v6463 = vrot.slane %v6453, %v6462
        %v6465 = vunpack.c.l.s4 1966171168
        %v6466 = vunpack.c.0.s8 %v6465
        %v6467 = vlaneseq
        %v6468 = vshrl.u32 %v6467, 7
        %v6469 = vsub.s32 %v6466, %v6468
        %v6470 = vrot.slane %v6454, %v6469
        %v6472 = vunpack.c.l.s4 1966171168
        %v6473 = vunpack.c.0.s8 %v6472
        %v6474 = vlaneseq
        %v6475 = vshrl.u32 %v6474, 7
        %v6476 = vsub.s32 %v6473, %v6475
        %v6477 = vrot.slane %v6455, %v6476
        %v6479 = vunpack.c.l.s4 1966171168
        %v6480 = vunpack.c.0.s8 %v6479
        %v6481 = vlaneseq
        %v6482 = vshrl.u32 %v6481, 7
        %v6483 = vsub.s32 %v6480, %v6482
        %v6484 = vrot.slane %v6456, %v6483
        %v6485 = vcombine.low %v6463, %v6470
        %v6486 = vcombine.low %v6477, %v6484
        %v6488 = vunpack.c.l.s4 1966171168
        %v6489 = vunpack.c.0.s8 %v6488
        %v6490 = vlaneseq
        %v6491 = vshrl.u32 %v6490, 7
        %v6492 = vsub.s32 %v6489, %v6491
        %v6493 = vrot.slane %v6485, %v6492
        %v6495 = vunpack.c.l.s4 1966171168
        %v6496 = vunpack.c.0.s8 %v6495
        %v6497 = vlaneseq
        %v6498 = vshrl.u32 %v6497, 7
        %v6499 = vsub.s32 %v6496, %v6498
        %v6500 = vrot.slane %v6486, %v6499
        %v6501 = vcombine.low %v6493, %v6500
        %v6502 = vcombine.low %v1865, %v1869
        %v6503 = vcombine.low %v1873, %v1877
        %v6504 = vcombine.low %v1881, %v1885
        %v6505 = vcombine.low %v1889, %v1893
        %v6507 = vunpack.c.l.s4 1966171168
        %v6508 = vunpack.c.0.s8 %v6507
        %v6509 = vlaneseq
        %v6510 = vshrl.u32 %v6509, 7
        %v6511 = vsub.s32 %v6508, %v6510
        %v6512 = vrot.slane %v6502, %v6511
        %v6514 = vunpack.c.l.s4 1966171168
        %v6515 = vunpack.c.0.s8 %v6514
        %v6516 = vlaneseq
        %v6517 = vshrl.u32 %v6516, 7
        %v6518 = vsub.s32 %v6515, %v6517
        %v6519 = vrot.slane %v6503, %v6518
        %v6521 = vunpack.c.l.s4 1966171168
        %v6522 = vunpack.c.0.s8 %v6521
        %v6523 = vlaneseq
        %v6524 = vshrl.u32 %v6523, 7
        %v6525 = vsub.s32 %v6522, %v6524
        %v6526 = vrot.slane %v6504, %v6525
        %v6528 = vunpack.c.l.s4 1966171168
        %v6529 = vunpack.c.0.s8 %v6528
        %v6530 = vlaneseq
        %v6531 = vshrl.u32 %v6530, 7
        %v6532 = vsub.s32 %v6529, %v6531
        %v6533 = vrot.slane %v6505, %v6532
        %v6534 = vcombine.low %v6512, %v6519
        %v6535 = vcombine.low %v6526, %v6533
        %v6537 = vunpack.c.l.s4 1966171168
        %v6538 = vunpack.c.0.s8 %v6537
        %v6539 = vlaneseq
        %v6540 = vshrl.u32 %v6539, 7
        %v6541 = vsub.s32 %v6538, %v6540
        %v6542 = vrot.slane %v6534, %v6541
        %v6544 = vunpack.c.l.s4 1966171168
        %v6545 = vunpack.c.0.s8 %v6544
        %v6546 = vlaneseq
        %v6547 = vshrl.u32 %v6546, 7
        %v6548 = vsub.s32 %v6545, %v6547
        %v6549 = vrot.slane %v6535, %v6548
        %v6550 = vcombine.low %v6542, %v6549
        %v6551 = vcombine.low %v1897, %v1901
        %v6552 = vcombine.low %v1905, %v1909
        %v6553 = vcombine.low %v1913, %v1917
        %v6554 = vcombine.low %v1921, %v1925
        %v6556 = vunpack.c.l.s4 1966171168
        %v6557 = vunpack.c.0.s8 %v6556
        %v6558 = vlaneseq
        %v6559 = vshrl.u32 %v6558, 7
        %v6560 = vsub.s32 %v6557, %v6559
        %v6561 = vrot.slane %v6551, %v6560
        %v6563 = vunpack.c.l.s4 1966171168
        %v6564 = vunpack.c.0.s8 %v6563
        %v6565 = vlaneseq
        %v6566 = vshrl.u32 %v6565, 7
        %v6567 = vsub.s32 %v6564, %v6566
        %v6568 = vrot.slane %v6552, %v6567
        %v6570 = vunpack.c.l.s4 1966171168
        %v6571 = vunpack.c.0.s8 %v6570
        %v6572 = vlaneseq
        %v6573 = vshrl.u32 %v6572, 7
        %v6574 = vsub.s32 %v6571, %v6573
        %v6575 = vrot.slane %v6553, %v6574
        %v6577 = vunpack.c.l.s4 1966171168
        %v6578 = vunpack.c.0.s8 %v6577
        %v6579 = vlaneseq
        %v6580 = vshrl.u32 %v6579, 7
        %v6581 = vsub.s32 %v6578, %v6580
        %v6582 = vrot.slane %v6554, %v6581
        %v6583 = vcombine.low %v6561, %v6568
        %v6584 = vcombine.low %v6575, %v6582
        %v6586 = vunpack.c.l.s4 1966171168
        %v6587 = vunpack.c.0.s8 %v6586
        %v6588 = vlaneseq
        %v6589 = vshrl.u32 %v6588, 7
        %v6590 = vsub.s32 %v6587, %v6589
        %v6591 = vrot.slane %v6583, %v6590
        %v6593 = vunpack.c.l.s4 1966171168
        %v6594 = vunpack.c.0.s8 %v6593
        %v6595 = vlaneseq
        %v6596 = vshrl.u32 %v6595, 7
        %v6597 = vsub.s32 %v6594, %v6596
        %v6598 = vrot.slane %v6584, %v6597
        %v6599 = vcombine.low %v6591, %v6598
        %v6600 = vcombine.low %v1929, %v1933
        %v6601 = vcombine.low %v1937, %v1941
        %v6602 = vcombine.low %v1945, %v1949
        %v6603 = vcombine.low %v1953, %v1957
        %v6605 = vunpack.c.l.s4 1966171168
        %v6606 = vunpack.c.0.s8 %v6605
        %v6607 = vlaneseq
        %v6608 = vshrl.u32 %v6607, 7
        %v6609 = vsub.s32 %v6606, %v6608
        %v6610 = vrot.slane %v6600, %v6609
        %v6612 = vunpack.c.l.s4 1966171168
        %v6613 = vunpack.c.0.s8 %v6612
        %v6614 = vlaneseq
        %v6615 = vshrl.u32 %v6614, 7
        %v6616 = vsub.s32 %v6613, %v6615
        %v6617 = vrot.slane %v6601, %v6616
        %v6619 = vunpack.c.l.s4 1966171168
        %v6620 = vunpack.c.0.s8 %v6619
        %v6621 = vlaneseq
        %v6622 = vshrl.u32 %v6621, 7
        %v6623 = vsub.s32 %v6620, %v6622
        %v6624 = vrot.slane %v6602, %v6623
        %v6626 = vunpack.c.l.s4 1966171168
        %v6627 = vunpack.c.0.s8 %v6626
        %v6628 = vlaneseq
        %v6629 = vshrl.u32 %v6628, 7
        %v6630 = vsub.s32 %v6627, %v6629
        %v6631 = vrot.slane %v6603, %v6630
        %v6632 = vcombine.low %v6610, %v6617
        %v6633 = vcombine.low %v6624, %v6631
        %v6635 = vunpack.c.l.s4 1966171168
        %v6636 = vunpack.c.0.s8 %v6635
        %v6637 = vlaneseq
        %v6638 = vshrl.u32 %v6637, 7
        %v6639 = vsub.s32 %v6636, %v6638
        %v6640 = vrot.slane %v6632, %v6639
        %v6642 = vunpack.c.l.s4 1966171168
        %v6643 = vunpack.c.0.s8 %v6642
        %v6644 = vlaneseq
        %v6645 = vshrl.u32 %v6644, 7
        %v6646 = vsub.s32 %v6643, %v6645
        %v6647 = vrot.slane %v6633, %v6646
        %v6648 = vcombine.low %v6640, %v6647
        %v6649 = vcombine.low %v1961, %v1965
        %v6650 = vcombine.low %v1969, %v1973
        %v6651 = vcombine.low %v1977, %v1981
        %v6652 = vcombine.low %v1985, %v1989
        %v6654 = vunpack.c.l.s4 1966171168
        %v6655 = vunpack.c.0.s8 %v6654
        %v6656 = vlaneseq
        %v6657 = vshrl.u32 %v6656, 7
        %v6658 = vsub.s32 %v6655, %v6657
        %v6659 = vrot.slane %v6649, %v6658
        %v6661 = vunpack.c.l.s4 1966171168
        %v6662 = vunpack.c.0.s8 %v6661
        %v6663 = vlaneseq
        %v6664 = vshrl.u32 %v6663, 7
        %v6665 = vsub.s32 %v6662, %v6664
        %v6666 = vrot.slane %v6650, %v6665
        %v6668 = vunpack.c.l.s4 1966171168
        %v6669 = vunpack.c.0.s8 %v6668
        %v6670 = vlaneseq
        %v6671 = vshrl.u32 %v6670, 7
        %v6672 = vsub.s32 %v6669, %v6671
        %v6673 = vrot.slane %v6651, %v6672
        %v6675 = vunpack.c.l.s4 1966171168
        %v6676 = vunpack.c.0.s8 %v6675
        %v6677 = vlaneseq
        %v6678 = vshrl.u32 %v6677, 7
        %v6679 = vsub.s32 %v6676, %v6678
        %v6680 = vrot.slane %v6652, %v6679
        %v6681 = vcombine.low %v6659, %v6666
        %v6682 = vcombine.low %v6673, %v6680
        %v6684 = vunpack.c.l.s4 1966171168
        %v6685 = vunpack.c.0.s8 %v6684
        %v6686 = vlaneseq
        %v6687 = vshrl.u32 %v6686, 7
        %v6688 = vsub.s32 %v6685, %v6687
        %v6689 = vrot.slane %v6681, %v6688
        %v6691 = vunpack.c.l.s4 1966171168
        %v6692 = vunpack.c.0.s8 %v6691
        %v6693 = vlaneseq
        %v6694 = vshrl.u32 %v6693, 7
        %v6695 = vsub.s32 %v6692, %v6694
        %v6696 = vrot.slane %v6682, %v6695
        %v6697 = vcombine.low %v6689, %v6696
        %v6698 = vcombine.low %v1993, %v1997
        %v6699 = vcombine.low %v2001, %v2005
        %v6700 = vcombine.low %v2009, %v2013
        %v6701 = vcombine.low %v2017, %v2021
        %v6703 = vunpack.c.l.s4 1966171168
        %v6704 = vunpack.c.0.s8 %v6703
        %v6705 = vlaneseq
        %v6706 = vshrl.u32 %v6705, 7
        %v6707 = vsub.s32 %v6704, %v6706
        %v6708 = vrot.slane %v6698, %v6707
        %v6710 = vunpack.c.l.s4 1966171168
        %v6711 = vunpack.c.0.s8 %v6710
        %v6712 = vlaneseq
        %v6713 = vshrl.u32 %v6712, 7
        %v6714 = vsub.s32 %v6711, %v6713
        %v6715 = vrot.slane %v6699, %v6714
        %v6717 = vunpack.c.l.s4 1966171168
        %v6718 = vunpack.c.0.s8 %v6717
        %v6719 = vlaneseq
        %v6720 = vshrl.u32 %v6719, 7
        %v6721 = vsub.s32 %v6718, %v6720
        %v6722 = vrot.slane %v6700, %v6721
        %v6724 = vunpack.c.l.s4 1966171168
        %v6725 = vunpack.c.0.s8 %v6724
        %v6726 = vlaneseq
        %v6727 = vshrl.u32 %v6726, 7
        %v6728 = vsub.s32 %v6725, %v6727
        %v6729 = vrot.slane %v6701, %v6728
        %v6730 = vcombine.low %v6708, %v6715
        %v6731 = vcombine.low %v6722, %v6729
        %v6733 = vunpack.c.l.s4 1966171168
        %v6734 = vunpack.c.0.s8 %v6733
        %v6735 = vlaneseq
        %v6736 = vshrl.u32 %v6735, 7
        %v6737 = vsub.s32 %v6734, %v6736
        %v6738 = vrot.slane %v6730, %v6737
        %v6740 = vunpack.c.l.s4 1966171168
        %v6741 = vunpack.c.0.s8 %v6740
        %v6742 = vlaneseq
        %v6743 = vshrl.u32 %v6742, 7
        %v6744 = vsub.s32 %v6741, %v6743
        %v6745 = vrot.slane %v6731, %v6744
        %v6746 = vcombine.low %v6738, %v6745
        %v6747 = vcombine.low %v2025, %v2029
        %v6748 = vcombine.low %v2033, %v2037
        %v6749 = vcombine.low %v2041, %v2045
        %v6750 = vcombine.low %v2049, %v2053
        %v6752 = vunpack.c.l.s4 1966171168
        %v6753 = vunpack.c.0.s8 %v6752
        %v6754 = vlaneseq
        %v6755 = vshrl.u32 %v6754, 7
        %v6756 = vsub.s32 %v6753, %v6755
        %v6757 = vrot.slane %v6747, %v6756
        %v6759 = vunpack.c.l.s4 1966171168
        %v6760 = vunpack.c.0.s8 %v6759
        %v6761 = vlaneseq
        %v6762 = vshrl.u32 %v6761, 7
        %v6763 = vsub.s32 %v6760, %v6762
        %v6764 = vrot.slane %v6748, %v6763
        %v6766 = vunpack.c.l.s4 1966171168
        %v6767 = vunpack.c.0.s8 %v6766
        %v6768 = vlaneseq
        %v6769 = vshrl.u32 %v6768, 7
        %v6770 = vsub.s32 %v6767, %v6769
        %v6771 = vrot.slane %v6749, %v6770
        %v6773 = vunpack.c.l.s4 1966171168
        %v6774 = vunpack.c.0.s8 %v6773
        %v6775 = vlaneseq
        %v6776 = vshrl.u32 %v6775, 7
        %v6777 = vsub.s32 %v6774, %v6776
        %v6778 = vrot.slane %v6750, %v6777
        %v6779 = vcombine.low %v6757, %v6764
        %v6780 = vcombine.low %v6771, %v6778
        %v6782 = vunpack.c.l.s4 1966171168
        %v6783 = vunpack.c.0.s8 %v6782
        %v6784 = vlaneseq
        %v6785 = vshrl.u32 %v6784, 7
        %v6786 = vsub.s32 %v6783, %v6785
        %v6787 = vrot.slane %v6779, %v6786
        %v6789 = vunpack.c.l.s4 1966171168
        %v6790 = vunpack.c.0.s8 %v6789
        %v6791 = vlaneseq
        %v6792 = vshrl.u32 %v6791, 7
        %v6793 = vsub.s32 %v6790, %v6792
        %v6794 = vrot.slane %v6780, %v6793
        %v6795 = vcombine.low %v6787, %v6794
        %v6796 = vcombine.low %v2057, %v2061
        %v6797 = vcombine.low %v2065, %v2069
        %v6798 = vcombine.low %v2073, %v2077
        %v6799 = vcombine.low %v2081, %v2085
        %v6801 = vunpack.c.l.s4 1966171168
        %v6802 = vunpack.c.0.s8 %v6801
        %v6803 = vlaneseq
        %v6804 = vshrl.u32 %v6803, 7
        %v6805 = vsub.s32 %v6802, %v6804
        %v6806 = vrot.slane %v6796, %v6805
        %v6808 = vunpack.c.l.s4 1966171168
        %v6809 = vunpack.c.0.s8 %v6808
        %v6810 = vlaneseq
        %v6811 = vshrl.u32 %v6810, 7
        %v6812 = vsub.s32 %v6809, %v6811
        %v6813 = vrot.slane %v6797, %v6812
        %v6815 = vunpack.c.l.s4 1966171168
        %v6816 = vunpack.c.0.s8 %v6815
        %v6817 = vlaneseq
        %v6818 = vshrl.u32 %v6817, 7
        %v6819 = vsub.s32 %v6816, %v6818
        %v6820 = vrot.slane %v6798, %v6819
        %v6822 = vunpack.c.l.s4 1966171168
        %v6823 = vunpack.c.0.s8 %v6822
        %v6824 = vlaneseq
        %v6825 = vshrl.u32 %v6824, 7
        %v6826 = vsub.s32 %v6823, %v6825
        %v6827 = vrot.slane %v6799, %v6826
        %v6828 = vcombine.low %v6806, %v6813
        %v6829 = vcombine.low %v6820, %v6827
        %v6831 = vunpack.c.l.s4 1966171168
        %v6832 = vunpack.c.0.s8 %v6831
        %v6833 = vlaneseq
        %v6834 = vshrl.u32 %v6833, 7
        %v6835 = vsub.s32 %v6832, %v6834
        %v6836 = vrot.slane %v6828, %v6835
        %v6838 = vunpack.c.l.s4 1966171168
        %v6839 = vunpack.c.0.s8 %v6838
        %v6840 = vlaneseq
        %v6841 = vshrl.u32 %v6840, 7
        %v6842 = vsub.s32 %v6839, %v6841
        %v6843 = vrot.slane %v6829, %v6842
        %v6844 = vcombine.low %v6836, %v6843
        %v6845 = vcombine.low %v2089, %v2093
        %v6846 = vcombine.low %v2097, %v2101
        %v6847 = vcombine.low %v2105, %v2109
        %v6848 = vcombine.low %v2113, %v2117
        %v6850 = vunpack.c.l.s4 1966171168
        %v6851 = vunpack.c.0.s8 %v6850
        %v6852 = vlaneseq
        %v6853 = vshrl.u32 %v6852, 7
        %v6854 = vsub.s32 %v6851, %v6853
        %v6855 = vrot.slane %v6845, %v6854
        %v6857 = vunpack.c.l.s4 1966171168
        %v6858 = vunpack.c.0.s8 %v6857
        %v6859 = vlaneseq
        %v6860 = vshrl.u32 %v6859, 7
        %v6861 = vsub.s32 %v6858, %v6860
        %v6862 = vrot.slane %v6846, %v6861
        %v6864 = vunpack.c.l.s4 1966171168
        %v6865 = vunpack.c.0.s8 %v6864
        %v6866 = vlaneseq
        %v6867 = vshrl.u32 %v6866, 7
        %v6868 = vsub.s32 %v6865, %v6867
        %v6869 = vrot.slane %v6847, %v6868
        %v6871 = vunpack.c.l.s4 1966171168
        %v6872 = vunpack.c.0.s8 %v6871
        %v6873 = vlaneseq
        %v6874 = vshrl.u32 %v6873, 7
        %v6875 = vsub.s32 %v6872, %v6874
        %v6876 = vrot.slane %v6848, %v6875
        %v6877 = vcombine.low %v6855, %v6862
        %v6878 = vcombine.low %v6869, %v6876
        %v6880 = vunpack.c.l.s4 1966171168
        %v6881 = vunpack.c.0.s8 %v6880
        %v6882 = vlaneseq
        %v6883 = vshrl.u32 %v6882, 7
        %v6884 = vsub.s32 %v6881, %v6883
        %v6885 = vrot.slane %v6877, %v6884
        %v6887 = vunpack.c.l.s4 1966171168
        %v6888 = vunpack.c.0.s8 %v6887
        %v6889 = vlaneseq
        %v6890 = vshrl.u32 %v6889, 7
        %v6891 = vsub.s32 %v6888, %v6890
        %v6892 = vrot.slane %v6878, %v6891
        %v6893 = vcombine.low %v6885, %v6892
        %v6894 = vcombine.low %v2121, %v2125
        %v6895 = vcombine.low %v2129, %v2133
        %v6896 = vcombine.low %v2137, %v2141
        %v6897 = vcombine.low %v2145, %v2149
        %v6899 = vunpack.c.l.s4 1966171168
        %v6900 = vunpack.c.0.s8 %v6899
        %v6901 = vlaneseq
        %v6902 = vshrl.u32 %v6901, 7
        %v6903 = vsub.s32 %v6900, %v6902
        %v6904 = vrot.slane %v6894, %v6903
        %v6906 = vunpack.c.l.s4 1966171168
        %v6907 = vunpack.c.0.s8 %v6906
        %v6908 = vlaneseq
        %v6909 = vshrl.u32 %v6908, 7
        %v6910 = vsub.s32 %v6907, %v6909
        %v6911 = vrot.slane %v6895, %v6910
        %v6913 = vunpack.c.l.s4 1966171168
        %v6914 = vunpack.c.0.s8 %v6913
        %v6915 = vlaneseq
        %v6916 = vshrl.u32 %v6915, 7
        %v6917 = vsub.s32 %v6914, %v6916
        %v6918 = vrot.slane %v6896, %v6917
        %v6920 = vunpack.c.l.s4 1966171168
        %v6921 = vunpack.c.0.s8 %v6920
        %v6922 = vlaneseq
        %v6923 = vshrl.u32 %v6922, 7
        %v6924 = vsub.s32 %v6921, %v6923
        %v6925 = vrot.slane %v6897, %v6924
        %v6926 = vcombine.low %v6904, %v6911
        %v6927 = vcombine.low %v6918, %v6925
        %v6929 = vunpack.c.l.s4 1966171168
        %v6930 = vunpack.c.0.s8 %v6929
        %v6931 = vlaneseq
        %v6932 = vshrl.u32 %v6931, 7
        %v6933 = vsub.s32 %v6930, %v6932
        %v6934 = vrot.slane %v6926, %v6933
        %v6936 = vunpack.c.l.s4 1966171168
        %v6937 = vunpack.c.0.s8 %v6936
        %v6938 = vlaneseq
        %v6939 = vshrl.u32 %v6938, 7
        %v6940 = vsub.s32 %v6937, %v6939
        %v6941 = vrot.slane %v6927, %v6940
        %v6942 = vcombine.low %v6934, %v6941
        %v6943 = vcombine.low %v2153, %v2157
        %v6944 = vcombine.low %v2161, %v2165
        %v6945 = vcombine.low %v2169, %v2173
        %v6946 = vcombine.low %v2177, %v2181
        %v6948 = vunpack.c.l.s4 1966171168
        %v6949 = vunpack.c.0.s8 %v6948
        %v6950 = vlaneseq
        %v6951 = vshrl.u32 %v6950, 7
        %v6952 = vsub.s32 %v6949, %v6951
        %v6953 = vrot.slane %v6943, %v6952
        %v6955 = vunpack.c.l.s4 1966171168
        %v6956 = vunpack.c.0.s8 %v6955
        %v6957 = vlaneseq
        %v6958 = vshrl.u32 %v6957, 7
        %v6959 = vsub.s32 %v6956, %v6958
        %v6960 = vrot.slane %v6944, %v6959
        %v6962 = vunpack.c.l.s4 1966171168
        %v6963 = vunpack.c.0.s8 %v6962
        %v6964 = vlaneseq
        %v6965 = vshrl.u32 %v6964, 7
        %v6966 = vsub.s32 %v6963, %v6965
        %v6967 = vrot.slane %v6945, %v6966
        %v6969 = vunpack.c.l.s4 1966171168
        %v6970 = vunpack.c.0.s8 %v6969
        %v6971 = vlaneseq
        %v6972 = vshrl.u32 %v6971, 7
        %v6973 = vsub.s32 %v6970, %v6972
        %v6974 = vrot.slane %v6946, %v6973
        %v6975 = vcombine.low %v6953, %v6960
        %v6976 = vcombine.low %v6967, %v6974
        %v6978 = vunpack.c.l.s4 1966171168
        %v6979 = vunpack.c.0.s8 %v6978
        %v6980 = vlaneseq
        %v6981 = vshrl.u32 %v6980, 7
        %v6982 = vsub.s32 %v6979, %v6981
        %v6983 = vrot.slane %v6975, %v6982
        %v6985 = vunpack.c.l.s4 1966171168
        %v6986 = vunpack.c.0.s8 %v6985
        %v6987 = vlaneseq
        %v6988 = vshrl.u32 %v6987, 7
        %v6989 = vsub.s32 %v6986, %v6988
        %v6990 = vrot.slane %v6976, %v6989
        %v6991 = vcombine.low %v6983, %v6990
        %v6992 = vcombine.low %v2185, %v2189
        %v6993 = vcombine.low %v2193, %v2197
        %v6994 = vcombine.low %v2201, %v2205
        %v6995 = vcombine.low %v2209, %v2213
        %v6997 = vunpack.c.l.s4 1966171168
        %v6998 = vunpack.c.0.s8 %v6997
        %v6999 = vlaneseq
        %v7000 = vshrl.u32 %v6999, 7
        %v7001 = vsub.s32 %v6998, %v7000
        %v7002 = vrot.slane %v6992, %v7001
        %v7004 = vunpack.c.l.s4 1966171168
        %v7005 = vunpack.c.0.s8 %v7004
        %v7006 = vlaneseq
        %v7007 = vshrl.u32 %v7006, 7
        %v7008 = vsub.s32 %v7005, %v7007
        %v7009 = vrot.slane %v6993, %v7008
        %v7011 = vunpack.c.l.s4 1966171168
        %v7012 = vunpack.c.0.s8 %v7011
        %v7013 = vlaneseq
        %v7014 = vshrl.u32 %v7013, 7
        %v7015 = vsub.s32 %v7012, %v7014
        %v7016 = vrot.slane %v6994, %v7015
        %v7018 = vunpack.c.l.s4 1966171168
        %v7019 = vunpack.c.0.s8 %v7018
        %v7020 = vlaneseq
        %v7021 = vshrl.u32 %v7020, 7
        %v7022 = vsub.s32 %v7019, %v7021
        %v7023 = vrot.slane %v6995, %v7022
        %v7024 = vcombine.low %v7002, %v7009
        %v7025 = vcombine.low %v7016, %v7023
        %v7027 = vunpack.c.l.s4 1966171168
        %v7028 = vunpack.c.0.s8 %v7027
        %v7029 = vlaneseq
        %v7030 = vshrl.u32 %v7029, 7
        %v7031 = vsub.s32 %v7028, %v7030
        %v7032 = vrot.slane %v7024, %v7031
        %v7034 = vunpack.c.l.s4 1966171168
        %v7035 = vunpack.c.0.s8 %v7034
        %v7036 = vlaneseq
        %v7037 = vshrl.u32 %v7036, 7
        %v7038 = vsub.s32 %v7035, %v7037
        %v7039 = vrot.slane %v7025, %v7038
        %v7040 = vcombine.low %v7032, %v7039
        %v7041 = vcombine.low %v2217, %v2221
        %v7042 = vcombine.low %v2225, %v2229
        %v7043 = vcombine.low %v2233, %v2237
        %v7044 = vcombine.low %v2241, %v2245
        %v7046 = vunpack.c.l.s4 1966171168
        %v7047 = vunpack.c.0.s8 %v7046
        %v7048 = vlaneseq
        %v7049 = vshrl.u32 %v7048, 7
        %v7050 = vsub.s32 %v7047, %v7049
        %v7051 = vrot.slane %v7041, %v7050
        %v7053 = vunpack.c.l.s4 1966171168
        %v7054 = vunpack.c.0.s8 %v7053
        %v7055 = vlaneseq
        %v7056 = vshrl.u32 %v7055, 7
        %v7057 = vsub.s32 %v7054, %v7056
        %v7058 = vrot.slane %v7042, %v7057
        %v7060 = vunpack.c.l.s4 1966171168
        %v7061 = vunpack.c.0.s8 %v7060
        %v7062 = vlaneseq
        %v7063 = vshrl.u32 %v7062, 7
        %v7064 = vsub.s32 %v7061, %v7063
        %v7065 = vrot.slane %v7043, %v7064
        %v7067 = vunpack.c.l.s4 1966171168
        %v7068 = vunpack.c.0.s8 %v7067
        %v7069 = vlaneseq
        %v7070 = vshrl.u32 %v7069, 7
        %v7071 = vsub.s32 %v7068, %v7070
        %v7072 = vrot.slane %v7044, %v7071
        %v7073 = vcombine.low %v7051, %v7058
        %v7074 = vcombine.low %v7065, %v7072
        %v7076 = vunpack.c.l.s4 1966171168
        %v7077 = vunpack.c.0.s8 %v7076
        %v7078 = vlaneseq
        %v7079 = vshrl.u32 %v7078, 7
        %v7080 = vsub.s32 %v7077, %v7079
        %v7081 = vrot.slane %v7073, %v7080
        %v7083 = vunpack.c.l.s4 1966171168
        %v7084 = vunpack.c.0.s8 %v7083
        %v7085 = vlaneseq
        %v7086 = vshrl.u32 %v7085, 7
        %v7087 = vsub.s32 %v7084, %v7086
        %v7088 = vrot.slane %v7074, %v7087
        %v7089 = vcombine.low %v7081, %v7088
        %v7090 = vcombine.low %v2249, %v2253
        %v7091 = vcombine.low %v2257, %v2261
        %v7092 = vcombine.low %v2265, %v2269
        %v7093 = vcombine.low %v2273, %v2277
        %v7095 = vunpack.c.l.s4 1966171168
        %v7096 = vunpack.c.0.s8 %v7095
        %v7097 = vlaneseq
        %v7098 = vshrl.u32 %v7097, 7
        %v7099 = vsub.s32 %v7096, %v7098
        %v7100 = vrot.slane %v7090, %v7099
        %v7102 = vunpack.c.l.s4 1966171168
        %v7103 = vunpack.c.0.s8 %v7102
        %v7104 = vlaneseq
        %v7105 = vshrl.u32 %v7104, 7
        %v7106 = vsub.s32 %v7103, %v7105
        %v7107 = vrot.slane %v7091, %v7106
        %v7109 = vunpack.c.l.s4 1966171168
        %v7110 = vunpack.c.0.s8 %v7109
        %v7111 = vlaneseq
        %v7112 = vshrl.u32 %v7111, 7
        %v7113 = vsub.s32 %v7110, %v7112
        %v7114 = vrot.slane %v7092, %v7113
        %v7116 = vunpack.c.l.s4 1966171168
        %v7117 = vunpack.c.0.s8 %v7116
        %v7118 = vlaneseq
        %v7119 = vshrl.u32 %v7118, 7
        %v7120 = vsub.s32 %v7117, %v7119
        %v7121 = vrot.slane %v7093, %v7120
        %v7122 = vcombine.low %v7100, %v7107
        %v7123 = vcombine.low %v7114, %v7121
        %v7125 = vunpack.c.l.s4 1966171168
        %v7126 = vunpack.c.0.s8 %v7125
        %v7127 = vlaneseq
        %v7128 = vshrl.u32 %v7127, 7
        %v7129 = vsub.s32 %v7126, %v7128
        %v7130 = vrot.slane %v7122, %v7129
        %v7132 = vunpack.c.l.s4 1966171168
        %v7133 = vunpack.c.0.s8 %v7132
        %v7134 = vlaneseq
        %v7135 = vshrl.u32 %v7134, 7
        %v7136 = vsub.s32 %v7133, %v7135
        %v7137 = vrot.slane %v7123, %v7136
        %v7138 = vcombine.low %v7130, %v7137
        %v7139 = vcombine.low %v2281, %v2285
        %v7140 = vcombine.low %v2289, %v2293
        %v7141 = vcombine.low %v2297, %v2301
        %v7142 = vcombine.low %v2305, %v2309
        %v7144 = vunpack.c.l.s4 1966171168
        %v7145 = vunpack.c.0.s8 %v7144
        %v7146 = vlaneseq
        %v7147 = vshrl.u32 %v7146, 7
        %v7148 = vsub.s32 %v7145, %v7147
        %v7149 = vrot.slane %v7139, %v7148
        %v7151 = vunpack.c.l.s4 1966171168
        %v7152 = vunpack.c.0.s8 %v7151
        %v7153 = vlaneseq
        %v7154 = vshrl.u32 %v7153, 7
        %v7155 = vsub.s32 %v7152, %v7154
        %v7156 = vrot.slane %v7140, %v7155
        %v7158 = vunpack.c.l.s4 1966171168
        %v7159 = vunpack.c.0.s8 %v7158
        %v7160 = vlaneseq
        %v7161 = vshrl.u32 %v7160, 7
        %v7162 = vsub.s32 %v7159, %v7161
        %v7163 = vrot.slane %v7141, %v7162
        %v7165 = vunpack.c.l.s4 1966171168
        %v7166 = vunpack.c.0.s8 %v7165
        %v7167 = vlaneseq
        %v7168 = vshrl.u32 %v7167, 7
        %v7169 = vsub.s32 %v7166, %v7168
        %v7170 = vrot.slane %v7142, %v7169
        %v7171 = vcombine.low %v7149, %v7156
        %v7172 = vcombine.low %v7163, %v7170
        %v7174 = vunpack.c.l.s4 1966171168
        %v7175 = vunpack.c.0.s8 %v7174
        %v7176 = vlaneseq
        %v7177 = vshrl.u32 %v7176, 7
        %v7178 = vsub.s32 %v7175, %v7177
        %v7179 = vrot.slane %v7171, %v7178
        %v7181 = vunpack.c.l.s4 1966171168
        %v7182 = vunpack.c.0.s8 %v7181
        %v7183 = vlaneseq
        %v7184 = vshrl.u32 %v7183, 7
        %v7185 = vsub.s32 %v7182, %v7184
        %v7186 = vrot.slane %v7172, %v7185
        %v7187 = vcombine.low %v7179, %v7186
        %v7188 = vcombine.low %v2313, %v2317
        %v7189 = vcombine.low %v2321, %v2325
        %v7190 = vcombine.low %v2329, %v2333
        %v7191 = vcombine.low %v2337, %v2341
        %v7193 = vunpack.c.l.s4 1966171168
        %v7194 = vunpack.c.0.s8 %v7193
        %v7195 = vlaneseq
        %v7196 = vshrl.u32 %v7195, 7
        %v7197 = vsub.s32 %v7194, %v7196
        %v7198 = vrot.slane %v7188, %v7197
        %v7200 = vunpack.c.l.s4 1966171168
        %v7201 = vunpack.c.0.s8 %v7200
        %v7202 = vlaneseq
        %v7203 = vshrl.u32 %v7202, 7
        %v7204 = vsub.s32 %v7201, %v7203
        %v7205 = vrot.slane %v7189, %v7204
        %v7207 = vunpack.c.l.s4 1966171168
        %v7208 = vunpack.c.0.s8 %v7207
        %v7209 = vlaneseq
        %v7210 = vshrl.u32 %v7209, 7
        %v7211 = vsub.s32 %v7208, %v7210
        %v7212 = vrot.slane %v7190, %v7211
        %v7214 = vunpack.c.l.s4 1966171168
        %v7215 = vunpack.c.0.s8 %v7214
        %v7216 = vlaneseq
        %v7217 = vshrl.u32 %v7216, 7
        %v7218 = vsub.s32 %v7215, %v7217
        %v7219 = vrot.slane %v7191, %v7218
        %v7220 = vcombine.low %v7198, %v7205
        %v7221 = vcombine.low %v7212, %v7219
        %v7223 = vunpack.c.l.s4 1966171168
        %v7224 = vunpack.c.0.s8 %v7223
        %v7225 = vlaneseq
        %v7226 = vshrl.u32 %v7225, 7
        %v7227 = vsub.s32 %v7224, %v7226
        %v7228 = vrot.slane %v7220, %v7227
        %v7230 = vunpack.c.l.s4 1966171168
        %v7231 = vunpack.c.0.s8 %v7230
        %v7232 = vlaneseq
        %v7233 = vshrl.u32 %v7232, 7
        %v7234 = vsub.s32 %v7231, %v7233
        %v7235 = vrot.slane %v7221, %v7234
        %v7236 = vcombine.low %v7228, %v7235
        %v7237 = vcombine.low %v2345, %v2349
        %v7238 = vcombine.low %v2353, %v2357
        %v7239 = vcombine.low %v2361, %v2365
        %v7240 = vcombine.low %v2369, %v2373
        %v7242 = vunpack.c.l.s4 1966171168
        %v7243 = vunpack.c.0.s8 %v7242
        %v7244 = vlaneseq
        %v7245 = vshrl.u32 %v7244, 7
        %v7246 = vsub.s32 %v7243, %v7245
        %v7247 = vrot.slane %v7237, %v7246
        %v7249 = vunpack.c.l.s4 1966171168
        %v7250 = vunpack.c.0.s8 %v7249
        %v7251 = vlaneseq
        %v7252 = vshrl.u32 %v7251, 7
        %v7253 = vsub.s32 %v7250, %v7252
        %v7254 = vrot.slane %v7238, %v7253
        %v7256 = vunpack.c.l.s4 1966171168
        %v7257 = vunpack.c.0.s8 %v7256
        %v7258 = vlaneseq
        %v7259 = vshrl.u32 %v7258, 7
        %v7260 = vsub.s32 %v7257, %v7259
        %v7261 = vrot.slane %v7239, %v7260
        %v7263 = vunpack.c.l.s4 1966171168
        %v7264 = vunpack.c.0.s8 %v7263
        %v7265 = vlaneseq
        %v7266 = vshrl.u32 %v7265, 7
        %v7267 = vsub.s32 %v7264, %v7266
        %v7268 = vrot.slane %v7240, %v7267
        %v7269 = vcombine.low %v7247, %v7254
        %v7270 = vcombine.low %v7261, %v7268
        %v7272 = vunpack.c.l.s4 1966171168
        %v7273 = vunpack.c.0.s8 %v7272
        %v7274 = vlaneseq
        %v7275 = vshrl.u32 %v7274, 7
        %v7276 = vsub.s32 %v7273, %v7275
        %v7277 = vrot.slane %v7269, %v7276
        %v7279 = vunpack.c.l.s4 1966171168
        %v7280 = vunpack.c.0.s8 %v7279
        %v7281 = vlaneseq
        %v7282 = vshrl.u32 %v7281, 7
        %v7283 = vsub.s32 %v7280, %v7282
        %v7284 = vrot.slane %v7270, %v7283
        %v7285 = vcombine.low %v7277, %v7284
        %v7286 = vcombine.low %v2377, %v2381
        %v7287 = vcombine.low %v2385, %v2389
        %v7288 = vcombine.low %v2393, %v2397
        %v7289 = vcombine.low %v2401, %v2405
        %v7291 = vunpack.c.l.s4 1966171168
        %v7292 = vunpack.c.0.s8 %v7291
        %v7293 = vlaneseq
        %v7294 = vshrl.u32 %v7293, 7
        %v7295 = vsub.s32 %v7292, %v7294
        %v7296 = vrot.slane %v7286, %v7295
        %v7298 = vunpack.c.l.s4 1966171168
        %v7299 = vunpack.c.0.s8 %v7298
        %v7300 = vlaneseq
        %v7301 = vshrl.u32 %v7300, 7
        %v7302 = vsub.s32 %v7299, %v7301
        %v7303 = vrot.slane %v7287, %v7302
        %v7305 = vunpack.c.l.s4 1966171168
        %v7306 = vunpack.c.0.s8 %v7305
        %v7307 = vlaneseq
        %v7308 = vshrl.u32 %v7307, 7
        %v7309 = vsub.s32 %v7306, %v7308
        %v7310 = vrot.slane %v7288, %v7309
        %v7312 = vunpack.c.l.s4 1966171168
        %v7313 = vunpack.c.0.s8 %v7312
        %v7314 = vlaneseq
        %v7315 = vshrl.u32 %v7314, 7
        %v7316 = vsub.s32 %v7313, %v7315
        %v7317 = vrot.slane %v7289, %v7316
        %v7318 = vcombine.low %v7296, %v7303
        %v7319 = vcombine.low %v7310, %v7317
        %v7321 = vunpack.c.l.s4 1966171168
        %v7322 = vunpack.c.0.s8 %v7321
        %v7323 = vlaneseq
        %v7324 = vshrl.u32 %v7323, 7
        %v7325 = vsub.s32 %v7322, %v7324
        %v7326 = vrot.slane %v7318, %v7325
        %v7328 = vunpack.c.l.s4 1966171168
        %v7329 = vunpack.c.0.s8 %v7328
        %v7330 = vlaneseq
        %v7331 = vshrl.u32 %v7330, 7
        %v7332 = vsub.s32 %v7329, %v7331
        %v7333 = vrot.slane %v7319, %v7332
        %v7334 = vcombine.low %v7326, %v7333
        %v7335 = vcombine.low %v2409, %v2413
        %v7336 = vcombine.low %v2417, %v2421
        %v7337 = vcombine.low %v2425, %v2429
        %v7338 = vcombine.low %v2433, %v2437
        %v7340 = vunpack.c.l.s4 1966171168
        %v7341 = vunpack.c.0.s8 %v7340
        %v7342 = vlaneseq
        %v7343 = vshrl.u32 %v7342, 7
        %v7344 = vsub.s32 %v7341, %v7343
        %v7345 = vrot.slane %v7335, %v7344
        %v7347 = vunpack.c.l.s4 1966171168
        %v7348 = vunpack.c.0.s8 %v7347
        %v7349 = vlaneseq
        %v7350 = vshrl.u32 %v7349, 7
        %v7351 = vsub.s32 %v7348, %v7350
        %v7352 = vrot.slane %v7336, %v7351
        %v7354 = vunpack.c.l.s4 1966171168
        %v7355 = vunpack.c.0.s8 %v7354
        %v7356 = vlaneseq
        %v7357 = vshrl.u32 %v7356, 7
        %v7358 = vsub.s32 %v7355, %v7357
        %v7359 = vrot.slane %v7337, %v7358
        %v7361 = vunpack.c.l.s4 1966171168
        %v7362 = vunpack.c.0.s8 %v7361
        %v7363 = vlaneseq
        %v7364 = vshrl.u32 %v7363, 7
        %v7365 = vsub.s32 %v7362, %v7364
        %v7366 = vrot.slane %v7338, %v7365
        %v7367 = vcombine.low %v7345, %v7352
        %v7368 = vcombine.low %v7359, %v7366
        %v7370 = vunpack.c.l.s4 1966171168
        %v7371 = vunpack.c.0.s8 %v7370
        %v7372 = vlaneseq
        %v7373 = vshrl.u32 %v7372, 7
        %v7374 = vsub.s32 %v7371, %v7373
        %v7375 = vrot.slane %v7367, %v7374
        %v7377 = vunpack.c.l.s4 1966171168
        %v7378 = vunpack.c.0.s8 %v7377
        %v7379 = vlaneseq
        %v7380 = vshrl.u32 %v7379, 7
        %v7381 = vsub.s32 %v7378, %v7380
        %v7382 = vrot.slane %v7368, %v7381
        %v7383 = vcombine.low %v7375, %v7382
        %v7384 = vcombine.low %v2441, %v2445
        %v7385 = vcombine.low %v2449, %v2453
        %v7386 = vcombine.low %v2457, %v2461
        %v7387 = vcombine.low %v2465, %v2469
        %v7389 = vunpack.c.l.s4 1966171168
        %v7390 = vunpack.c.0.s8 %v7389
        %v7391 = vlaneseq
        %v7392 = vshrl.u32 %v7391, 7
        %v7393 = vsub.s32 %v7390, %v7392
        %v7394 = vrot.slane %v7384, %v7393
        %v7396 = vunpack.c.l.s4 1966171168
        %v7397 = vunpack.c.0.s8 %v7396
        %v7398 = vlaneseq
        %v7399 = vshrl.u32 %v7398, 7
        %v7400 = vsub.s32 %v7397, %v7399
        %v7401 = vrot.slane %v7385, %v7400
        %v7403 = vunpack.c.l.s4 1966171168
        %v7404 = vunpack.c.0.s8 %v7403
        %v7405 = vlaneseq
        %v7406 = vshrl.u32 %v7405, 7
        %v7407 = vsub.s32 %v7404, %v7406
        %v7408 = vrot.slane %v7386, %v7407
        %v7410 = vunpack.c.l.s4 1966171168
        %v7411 = vunpack.c.0.s8 %v7410
        %v7412 = vlaneseq
        %v7413 = vshrl.u32 %v7412, 7
        %v7414 = vsub.s32 %v7411, %v7413
        %v7415 = vrot.slane %v7387, %v7414
        %v7416 = vcombine.low %v7394, %v7401
        %v7417 = vcombine.low %v7408, %v7415
        %v7419 = vunpack.c.l.s4 1966171168
        %v7420 = vunpack.c.0.s8 %v7419
        %v7421 = vlaneseq
        %v7422 = vshrl.u32 %v7421, 7
        %v7423 = vsub.s32 %v7420, %v7422
        %v7424 = vrot.slane %v7416, %v7423
        %v7426 = vunpack.c.l.s4 1966171168
        %v7427 = vunpack.c.0.s8 %v7426
        %v7428 = vlaneseq
        %v7429 = vshrl.u32 %v7428, 7
        %v7430 = vsub.s32 %v7427, %v7429
        %v7431 = vrot.slane %v7417, %v7430
        %v7432 = vcombine.low %v7424, %v7431
        %v7433 = vcombine.low %v2473, %v2477
        %v7434 = vcombine.low %v2481, %v2485
        %v7435 = vcombine.low %v2489, %v2493
        %v7436 = vcombine.low %v2497, %v2501
        %v7438 = vunpack.c.l.s4 1966171168
        %v7439 = vunpack.c.0.s8 %v7438
        %v7440 = vlaneseq
        %v7441 = vshrl.u32 %v7440, 7
        %v7442 = vsub.s32 %v7439, %v7441
        %v7443 = vrot.slane %v7433, %v7442
        %v7445 = vunpack.c.l.s4 1966171168
        %v7446 = vunpack.c.0.s8 %v7445
        %v7447 = vlaneseq
        %v7448 = vshrl.u32 %v7447, 7
        %v7449 = vsub.s32 %v7446, %v7448
        %v7450 = vrot.slane %v7434, %v7449
        %v7452 = vunpack.c.l.s4 1966171168
        %v7453 = vunpack.c.0.s8 %v7452
        %v7454 = vlaneseq
        %v7455 = vshrl.u32 %v7454, 7
        %v7456 = vsub.s32 %v7453, %v7455
        %v7457 = vrot.slane %v7435, %v7456
        %v7459 = vunpack.c.l.s4 1966171168
        %v7460 = vunpack.c.0.s8 %v7459
        %v7461 = vlaneseq
        %v7462 = vshrl.u32 %v7461, 7
        %v7463 = vsub.s32 %v7460, %v7462
        %v7464 = vrot.slane %v7436, %v7463
        %v7465 = vcombine.low %v7443, %v7450
        %v7466 = vcombine.low %v7457, %v7464
        %v7468 = vunpack.c.l.s4 1966171168
        %v7469 = vunpack.c.0.s8 %v7468
        %v7470 = vlaneseq
        %v7471 = vshrl.u32 %v7470, 7
        %v7472 = vsub.s32 %v7469, %v7471
        %v7473 = vrot.slane %v7465, %v7472
        %v7475 = vunpack.c.l.s4 1966171168
        %v7476 = vunpack.c.0.s8 %v7475
        %v7477 = vlaneseq
        %v7478 = vshrl.u32 %v7477, 7
        %v7479 = vsub.s32 %v7476, %v7478
        %v7480 = vrot.slane %v7466, %v7479
        %v7481 = vcombine.low %v7473, %v7480
        %v7482 = vcombine.low %v2505, %v2509
        %v7483 = vcombine.low %v2513, %v2517
        %v7484 = vcombine.low %v2521, %v2525
        %v7485 = vcombine.low %v2529, %v2533
        %v7487 = vunpack.c.l.s4 1966171168
        %v7488 = vunpack.c.0.s8 %v7487
        %v7489 = vlaneseq
        %v7490 = vshrl.u32 %v7489, 7
        %v7491 = vsub.s32 %v7488, %v7490
        %v7492 = vrot.slane %v7482, %v7491
        %v7494 = vunpack.c.l.s4 1966171168
        %v7495 = vunpack.c.0.s8 %v7494
        %v7496 = vlaneseq
        %v7497 = vshrl.u32 %v7496, 7
        %v7498 = vsub.s32 %v7495, %v7497
        %v7499 = vrot.slane %v7483, %v7498
        %v7501 = vunpack.c.l.s4 1966171168
        %v7502 = vunpack.c.0.s8 %v7501
        %v7503 = vlaneseq
        %v7504 = vshrl.u32 %v7503, 7
        %v7505 = vsub.s32 %v7502, %v7504
        %v7506 = vrot.slane %v7484, %v7505
        %v7508 = vunpack.c.l.s4 1966171168
        %v7509 = vunpack.c.0.s8 %v7508
        %v7510 = vlaneseq
        %v7511 = vshrl.u32 %v7510, 7
        %v7512 = vsub.s32 %v7509, %v7511
        %v7513 = vrot.slane %v7485, %v7512
        %v7514 = vcombine.low %v7492, %v7499
        %v7515 = vcombine.low %v7506, %v7513
        %v7517 = vunpack.c.l.s4 1966171168
        %v7518 = vunpack.c.0.s8 %v7517
        %v7519 = vlaneseq
        %v7520 = vshrl.u32 %v7519, 7
        %v7521 = vsub.s32 %v7518, %v7520
        %v7522 = vrot.slane %v7514, %v7521
        %v7524 = vunpack.c.l.s4 1966171168
        %v7525 = vunpack.c.0.s8 %v7524
        %v7526 = vlaneseq
        %v7527 = vshrl.u32 %v7526, 7
        %v7528 = vsub.s32 %v7525, %v7527
        %v7529 = vrot.slane %v7515, %v7528
        %v7530 = vcombine.low %v7522, %v7529
        %v7531 = vcombine.low %v2537, %v2541
        %v7532 = vcombine.low %v2545, %v2549
        %v7533 = vcombine.low %v2553, %v2557
        %v7534 = vcombine.low %v2561, %v2565
        %v7536 = vunpack.c.l.s4 1966171168
        %v7537 = vunpack.c.0.s8 %v7536
        %v7538 = vlaneseq
        %v7539 = vshrl.u32 %v7538, 7
        %v7540 = vsub.s32 %v7537, %v7539
        %v7541 = vrot.slane %v7531, %v7540
        %v7543 = vunpack.c.l.s4 1966171168
        %v7544 = vunpack.c.0.s8 %v7543
        %v7545 = vlaneseq
        %v7546 = vshrl.u32 %v7545, 7
        %v7547 = vsub.s32 %v7544, %v7546
        %v7548 = vrot.slane %v7532, %v7547
        %v7550 = vunpack.c.l.s4 1966171168
        %v7551 = vunpack.c.0.s8 %v7550
        %v7552 = vlaneseq
        %v7553 = vshrl.u32 %v7552, 7
        %v7554 = vsub.s32 %v7551, %v7553
        %v7555 = vrot.slane %v7533, %v7554
        %v7557 = vunpack.c.l.s4 1966171168
        %v7558 = vunpack.c.0.s8 %v7557
        %v7559 = vlaneseq
        %v7560 = vshrl.u32 %v7559, 7
        %v7561 = vsub.s32 %v7558, %v7560
        %v7562 = vrot.slane %v7534, %v7561
        %v7563 = vcombine.low %v7541, %v7548
        %v7564 = vcombine.low %v7555, %v7562
        %v7566 = vunpack.c.l.s4 1966171168
        %v7567 = vunpack.c.0.s8 %v7566
        %v7568 = vlaneseq
        %v7569 = vshrl.u32 %v7568, 7
        %v7570 = vsub.s32 %v7567, %v7569
        %v7571 = vrot.slane %v7563, %v7570
        %v7573 = vunpack.c.l.s4 1966171168
        %v7574 = vunpack.c.0.s8 %v7573
        %v7575 = vlaneseq
        %v7576 = vshrl.u32 %v7575, 7
        %v7577 = vsub.s32 %v7574, %v7576
        %v7578 = vrot.slane %v7564, %v7577
        %v7579 = vcombine.low %v7571, %v7578
        %v7580 = vcombine.low %v2569, %v2573
        %v7581 = vcombine.low %v2577, %v2581
        %v7582 = vcombine.low %v2585, %v2589
        %v7583 = vcombine.low %v2593, %v2597
        %v7585 = vunpack.c.l.s4 1966171168
        %v7586 = vunpack.c.0.s8 %v7585
        %v7587 = vlaneseq
        %v7588 = vshrl.u32 %v7587, 7
        %v7589 = vsub.s32 %v7586, %v7588
        %v7590 = vrot.slane %v7580, %v7589
        %v7592 = vunpack.c.l.s4 1966171168
        %v7593 = vunpack.c.0.s8 %v7592
        %v7594 = vlaneseq
        %v7595 = vshrl.u32 %v7594, 7
        %v7596 = vsub.s32 %v7593, %v7595
        %v7597 = vrot.slane %v7581, %v7596
        %v7599 = vunpack.c.l.s4 1966171168
        %v7600 = vunpack.c.0.s8 %v7599
        %v7601 = vlaneseq
        %v7602 = vshrl.u32 %v7601, 7
        %v7603 = vsub.s32 %v7600, %v7602
        %v7604 = vrot.slane %v7582, %v7603
        %v7606 = vunpack.c.l.s4 1966171168
        %v7607 = vunpack.c.0.s8 %v7606
        %v7608 = vlaneseq
        %v7609 = vshrl.u32 %v7608, 7
        %v7610 = vsub.s32 %v7607, %v7609
        %v7611 = vrot.slane %v7583, %v7610
        %v7612 = vcombine.low %v7590, %v7597
        %v7613 = vcombine.low %v7604, %v7611
        %v7615 = vunpack.c.l.s4 1966171168
        %v7616 = vunpack.c.0.s8 %v7615
        %v7617 = vlaneseq
        %v7618 = vshrl.u32 %v7617, 7
        %v7619 = vsub.s32 %v7616, %v7618
        %v7620 = vrot.slane %v7612, %v7619
        %v7622 = vunpack.c.l.s4 1966171168
        %v7623 = vunpack.c.0.s8 %v7622
        %v7624 = vlaneseq
        %v7625 = vshrl.u32 %v7624, 7
        %v7626 = vsub.s32 %v7623, %v7625
        %v7627 = vrot.slane %v7613, %v7626
        %v7628 = vcombine.low %v7620, %v7627
        %v7629 = vcombine.low %v2601, %v2605
        %v7630 = vcombine.low %v2609, %v2613
        %v7631 = vcombine.low %v2617, %v2621
        %v7632 = vcombine.low %v2625, %v2629
        %v7634 = vunpack.c.l.s4 1966171168
        %v7635 = vunpack.c.0.s8 %v7634
        %v7636 = vlaneseq
        %v7637 = vshrl.u32 %v7636, 7
        %v7638 = vsub.s32 %v7635, %v7637
        %v7639 = vrot.slane %v7629, %v7638
        %v7641 = vunpack.c.l.s4 1966171168
        %v7642 = vunpack.c.0.s8 %v7641
        %v7643 = vlaneseq
        %v7644 = vshrl.u32 %v7643, 7
        %v7645 = vsub.s32 %v7642, %v7644
        %v7646 = vrot.slane %v7630, %v7645
        %v7648 = vunpack.c.l.s4 1966171168
        %v7649 = vunpack.c.0.s8 %v7648
        %v7650 = vlaneseq
        %v7651 = vshrl.u32 %v7650, 7
        %v7652 = vsub.s32 %v7649, %v7651
        %v7653 = vrot.slane %v7631, %v7652
        %v7655 = vunpack.c.l.s4 1966171168
        %v7656 = vunpack.c.0.s8 %v7655
        %v7657 = vlaneseq
        %v7658 = vshrl.u32 %v7657, 7
        %v7659 = vsub.s32 %v7656, %v7658
        %v7660 = vrot.slane %v7632, %v7659
        %v7661 = vcombine.low %v7639, %v7646
        %v7662 = vcombine.low %v7653, %v7660
        %v7664 = vunpack.c.l.s4 1966171168
        %v7665 = vunpack.c.0.s8 %v7664
        %v7666 = vlaneseq
        %v7667 = vshrl.u32 %v7666, 7
        %v7668 = vsub.s32 %v7665, %v7667
        %v7669 = vrot.slane %v7661, %v7668
        %v7671 = vunpack.c.l.s4 1966171168
        %v7672 = vunpack.c.0.s8 %v7671
        %v7673 = vlaneseq
        %v7674 = vshrl.u32 %v7673, 7
        %v7675 = vsub.s32 %v7672, %v7674
        %v7676 = vrot.slane %v7662, %v7675
        %v7677 = vcombine.low %v7669, %v7676
        %v7678 = vcombine.low %v2633, %v2637
        %v7679 = vcombine.low %v2641, %v2645
        %v7680 = vcombine.low %v2649, %v2653
        %v7681 = vcombine.low %v2657, %v2661
        %v7683 = vunpack.c.l.s4 1966171168
        %v7684 = vunpack.c.0.s8 %v7683
        %v7685 = vlaneseq
        %v7686 = vshrl.u32 %v7685, 7
        %v7687 = vsub.s32 %v7684, %v7686
        %v7688 = vrot.slane %v7678, %v7687
        %v7690 = vunpack.c.l.s4 1966171168
        %v7691 = vunpack.c.0.s8 %v7690
        %v7692 = vlaneseq
        %v7693 = vshrl.u32 %v7692, 7
        %v7694 = vsub.s32 %v7691, %v7693
        %v7695 = vrot.slane %v7679, %v7694
        %v7697 = vunpack.c.l.s4 1966171168
        %v7698 = vunpack.c.0.s8 %v7697
        %v7699 = vlaneseq
        %v7700 = vshrl.u32 %v7699, 7
        %v7701 = vsub.s32 %v7698, %v7700
        %v7702 = vrot.slane %v7680, %v7701
        %v7704 = vunpack.c.l.s4 1966171168
        %v7705 = vunpack.c.0.s8 %v7704
        %v7706 = vlaneseq
        %v7707 = vshrl.u32 %v7706, 7
        %v7708 = vsub.s32 %v7705, %v7707
        %v7709 = vrot.slane %v7681, %v7708
        %v7710 = vcombine.low %v7688, %v7695
        %v7711 = vcombine.low %v7702, %v7709
        %v7713 = vunpack.c.l.s4 1966171168
        %v7714 = vunpack.c.0.s8 %v7713
        %v7715 = vlaneseq
        %v7716 = vshrl.u32 %v7715, 7
        %v7717 = vsub.s32 %v7714, %v7716
        %v7718 = vrot.slane %v7710, %v7717
        %v7720 = vunpack.c.l.s4 1966171168
        %v7721 = vunpack.c.0.s8 %v7720
        %v7722 = vlaneseq
        %v7723 = vshrl.u32 %v7722, 7
        %v7724 = vsub.s32 %v7721, %v7723
        %v7725 = vrot.slane %v7711, %v7724
        %v7726 = vcombine.low %v7718, %v7725
        %v7727 = vcombine.low %v2665, %v2669
        %v7728 = vcombine.low %v2673, %v2677
        %v7729 = vcombine.low %v2681, %v2685
        %v7730 = vcombine.low %v2689, %v2693
        %v7732 = vunpack.c.l.s4 1966171168
        %v7733 = vunpack.c.0.s8 %v7732
        %v7734 = vlaneseq
        %v7735 = vshrl.u32 %v7734, 7
        %v7736 = vsub.s32 %v7733, %v7735
        %v7737 = vrot.slane %v7727, %v7736
        %v7739 = vunpack.c.l.s4 1966171168
        %v7740 = vunpack.c.0.s8 %v7739
        %v7741 = vlaneseq
        %v7742 = vshrl.u32 %v7741, 7
        %v7743 = vsub.s32 %v7740, %v7742
        %v7744 = vrot.slane %v7728, %v7743
        %v7746 = vunpack.c.l.s4 1966171168
        %v7747 = vunpack.c.0.s8 %v7746
        %v7748 = vlaneseq
        %v7749 = vshrl.u32 %v7748, 7
        %v7750 = vsub.s32 %v7747, %v7749
        %v7751 = vrot.slane %v7729, %v7750
        %v7753 = vunpack.c.l.s4 1966171168
        %v7754 = vunpack.c.0.s8 %v7753
        %v7755 = vlaneseq
        %v7756 = vshrl.u32 %v7755, 7
        %v7757 = vsub.s32 %v7754, %v7756
        %v7758 = vrot.slane %v7730, %v7757
        %v7759 = vcombine.low %v7737, %v7744
        %v7760 = vcombine.low %v7751, %v7758
        %v7762 = vunpack.c.l.s4 1966171168
        %v7763 = vunpack.c.0.s8 %v7762
        %v7764 = vlaneseq
        %v7765 = vshrl.u32 %v7764, 7
        %v7766 = vsub.s32 %v7763, %v7765
        %v7767 = vrot.slane %v7759, %v7766
        %v7769 = vunpack.c.l.s4 1966171168
        %v7770 = vunpack.c.0.s8 %v7769
        %v7771 = vlaneseq
        %v7772 = vshrl.u32 %v7771, 7
        %v7773 = vsub.s32 %v7770, %v7772
        %v7774 = vrot.slane %v7760, %v7773
        %v7775 = vcombine.low %v7767, %v7774
        %v7776 = vcombine.low %v2697, %v2701
        %v7777 = vcombine.low %v2705, %v2709
        %v7778 = vcombine.low %v2713, %v2717
        %v7779 = vcombine.low %v2721, %v2725
        %v7781 = vunpack.c.l.s4 1966171168
        %v7782 = vunpack.c.0.s8 %v7781
        %v7783 = vlaneseq
        %v7784 = vshrl.u32 %v7783, 7
        %v7785 = vsub.s32 %v7782, %v7784
        %v7786 = vrot.slane %v7776, %v7785
        %v7788 = vunpack.c.l.s4 1966171168
        %v7789 = vunpack.c.0.s8 %v7788
        %v7790 = vlaneseq
        %v7791 = vshrl.u32 %v7790, 7
        %v7792 = vsub.s32 %v7789, %v7791
        %v7793 = vrot.slane %v7777, %v7792
        %v7795 = vunpack.c.l.s4 1966171168
        %v7796 = vunpack.c.0.s8 %v7795
        %v7797 = vlaneseq
        %v7798 = vshrl.u32 %v7797, 7
        %v7799 = vsub.s32 %v7796, %v7798
        %v7800 = vrot.slane %v7778, %v7799
        %v7802 = vunpack.c.l.s4 1966171168
        %v7803 = vunpack.c.0.s8 %v7802
        %v7804 = vlaneseq
        %v7805 = vshrl.u32 %v7804, 7
        %v7806 = vsub.s32 %v7803, %v7805
        %v7807 = vrot.slane %v7779, %v7806
        %v7808 = vcombine.low %v7786, %v7793
        %v7809 = vcombine.low %v7800, %v7807
        %v7811 = vunpack.c.l.s4 1966171168
        %v7812 = vunpack.c.0.s8 %v7811
        %v7813 = vlaneseq
        %v7814 = vshrl.u32 %v7813, 7
        %v7815 = vsub.s32 %v7812, %v7814
        %v7816 = vrot.slane %v7808, %v7815
        %v7818 = vunpack.c.l.s4 1966171168
        %v7819 = vunpack.c.0.s8 %v7818
        %v7820 = vlaneseq
        %v7821 = vshrl.u32 %v7820, 7
        %v7822 = vsub.s32 %v7819, %v7821
        %v7823 = vrot.slane %v7809, %v7822
        %v7824 = vcombine.low %v7816, %v7823
        %v7825 = vcombine.low %v2729, %v2733
        %v7826 = vcombine.low %v2737, %v2741
        %v7827 = vcombine.low %v2745, %v2749
        %v7828 = vcombine.low %v2753, %v2757
        %v7830 = vunpack.c.l.s4 1966171168
        %v7831 = vunpack.c.0.s8 %v7830
        %v7832 = vlaneseq
        %v7833 = vshrl.u32 %v7832, 7
        %v7834 = vsub.s32 %v7831, %v7833
        %v7835 = vrot.slane %v7825, %v7834
        %v7837 = vunpack.c.l.s4 1966171168
        %v7838 = vunpack.c.0.s8 %v7837
        %v7839 = vlaneseq
        %v7840 = vshrl.u32 %v7839, 7
        %v7841 = vsub.s32 %v7838, %v7840
        %v7842 = vrot.slane %v7826, %v7841
        %v7844 = vunpack.c.l.s4 1966171168
        %v7845 = vunpack.c.0.s8 %v7844
        %v7846 = vlaneseq
        %v7847 = vshrl.u32 %v7846, 7
        %v7848 = vsub.s32 %v7845, %v7847
        %v7849 = vrot.slane %v7827, %v7848
        %v7851 = vunpack.c.l.s4 1966171168
        %v7852 = vunpack.c.0.s8 %v7851
        %v7853 = vlaneseq
        %v7854 = vshrl.u32 %v7853, 7
        %v7855 = vsub.s32 %v7852, %v7854
        %v7856 = vrot.slane %v7828, %v7855
        %v7857 = vcombine.low %v7835, %v7842
        %v7858 = vcombine.low %v7849, %v7856
        %v7860 = vunpack.c.l.s4 1966171168
        %v7861 = vunpack.c.0.s8 %v7860
        %v7862 = vlaneseq
        %v7863 = vshrl.u32 %v7862, 7
        %v7864 = vsub.s32 %v7861, %v7863
        %v7865 = vrot.slane %v7857, %v7864
        %v7867 = vunpack.c.l.s4 1966171168
        %v7868 = vunpack.c.0.s8 %v7867
        %v7869 = vlaneseq
        %v7870 = vshrl.u32 %v7869, 7
        %v7871 = vsub.s32 %v7868, %v7870
        %v7872 = vrot.slane %v7858, %v7871
        %v7873 = vcombine.low %v7865, %v7872
        %v7874 = vcombine.low %v2761, %v2765
        %v7875 = vcombine.low %v2769, %v2773
        %v7876 = vcombine.low %v2777, %v2781
        %v7877 = vcombine.low %v2785, %v2789
        %v7879 = vunpack.c.l.s4 1966171168
        %v7880 = vunpack.c.0.s8 %v7879
        %v7881 = vlaneseq
        %v7882 = vshrl.u32 %v7881, 7
        %v7883 = vsub.s32 %v7880, %v7882
        %v7884 = vrot.slane %v7874, %v7883
        %v7886 = vunpack.c.l.s4 1966171168
        %v7887 = vunpack.c.0.s8 %v7886
        %v7888 = vlaneseq
        %v7889 = vshrl.u32 %v7888, 7
        %v7890 = vsub.s32 %v7887, %v7889
        %v7891 = vrot.slane %v7875, %v7890
        %v7893 = vunpack.c.l.s4 1966171168
        %v7894 = vunpack.c.0.s8 %v7893
        %v7895 = vlaneseq
        %v7896 = vshrl.u32 %v7895, 7
        %v7897 = vsub.s32 %v7894, %v7896
        %v7898 = vrot.slane %v7876, %v7897
        %v7900 = vunpack.c.l.s4 1966171168
        %v7901 = vunpack.c.0.s8 %v7900
        %v7902 = vlaneseq
        %v7903 = vshrl.u32 %v7902, 7
        %v7904 = vsub.s32 %v7901, %v7903
        %v7905 = vrot.slane %v7877, %v7904
        %v7906 = vcombine.low %v7884, %v7891
        %v7907 = vcombine.low %v7898, %v7905
        %v7909 = vunpack.c.l.s4 1966171168
        %v7910 = vunpack.c.0.s8 %v7909
        %v7911 = vlaneseq
        %v7912 = vshrl.u32 %v7911, 7
        %v7913 = vsub.s32 %v7910, %v7912
        %v7914 = vrot.slane %v7906, %v7913
        %v7916 = vunpack.c.l.s4 1966171168
        %v7917 = vunpack.c.0.s8 %v7916
        %v7918 = vlaneseq
        %v7919 = vshrl.u32 %v7918, 7
        %v7920 = vsub.s32 %v7917, %v7919
        %v7921 = vrot.slane %v7907, %v7920
        %v7922 = vcombine.low %v7914, %v7921
        %v7923 = vcombine.low %v2793, %v2797
        %v7924 = vcombine.low %v2801, %v2805
        %v7925 = vcombine.low %v2809, %v2813
        %v7926 = vcombine.low %v2817, %v2821
        %v7928 = vunpack.c.l.s4 1966171168
        %v7929 = vunpack.c.0.s8 %v7928
        %v7930 = vlaneseq
        %v7931 = vshrl.u32 %v7930, 7
        %v7932 = vsub.s32 %v7929, %v7931
        %v7933 = vrot.slane %v7923, %v7932
        %v7935 = vunpack.c.l.s4 1966171168
        %v7936 = vunpack.c.0.s8 %v7935
        %v7937 = vlaneseq
        %v7938 = vshrl.u32 %v7937, 7
        %v7939 = vsub.s32 %v7936, %v7938
        %v7940 = vrot.slane %v7924, %v7939
        %v7942 = vunpack.c.l.s4 1966171168
        %v7943 = vunpack.c.0.s8 %v7942
        %v7944 = vlaneseq
        %v7945 = vshrl.u32 %v7944, 7
        %v7946 = vsub.s32 %v7943, %v7945
        %v7947 = vrot.slane %v7925, %v7946
        %v7949 = vunpack.c.l.s4 1966171168
        %v7950 = vunpack.c.0.s8 %v7949
        %v7951 = vlaneseq
        %v7952 = vshrl.u32 %v7951, 7
        %v7953 = vsub.s32 %v7950, %v7952
        %v7954 = vrot.slane %v7926, %v7953
        %v7955 = vcombine.low %v7933, %v7940
        %v7956 = vcombine.low %v7947, %v7954
        %v7958 = vunpack.c.l.s4 1966171168
        %v7959 = vunpack.c.0.s8 %v7958
        %v7960 = vlaneseq
        %v7961 = vshrl.u32 %v7960, 7
        %v7962 = vsub.s32 %v7959, %v7961
        %v7963 = vrot.slane %v7955, %v7962
        %v7965 = vunpack.c.l.s4 1966171168
        %v7966 = vunpack.c.0.s8 %v7965
        %v7967 = vlaneseq
        %v7968 = vshrl.u32 %v7967, 7
        %v7969 = vsub.s32 %v7966, %v7968
        %v7970 = vrot.slane %v7956, %v7969
        %v7971 = vcombine.low %v7963, %v7970
        %v7972 = vcombine.low %v2825, %v2829
        %v7973 = vcombine.low %v2833, %v2837
        %v7974 = vcombine.low %v2841, %v2845
        %v7975 = vcombine.low %v2849, %v2853
        %v7977 = vunpack.c.l.s4 1966171168
        %v7978 = vunpack.c.0.s8 %v7977
        %v7979 = vlaneseq
        %v7980 = vshrl.u32 %v7979, 7
        %v7981 = vsub.s32 %v7978, %v7980
        %v7982 = vrot.slane %v7972, %v7981
        %v7984 = vunpack.c.l.s4 1966171168
        %v7985 = vunpack.c.0.s8 %v7984
        %v7986 = vlaneseq
        %v7987 = vshrl.u32 %v7986, 7
        %v7988 = vsub.s32 %v7985, %v7987
        %v7989 = vrot.slane %v7973, %v7988
        %v7991 = vunpack.c.l.s4 1966171168
        %v7992 = vunpack.c.0.s8 %v7991
        %v7993 = vlaneseq
        %v7994 = vshrl.u32 %v7993, 7
        %v7995 = vsub.s32 %v7992, %v7994
        %v7996 = vrot.slane %v7974, %v7995
        %v7998 = vunpack.c.l.s4 1966171168
        %v7999 = vunpack.c.0.s8 %v7998
        %v8000 = vlaneseq
        %v8001 = vshrl.u32 %v8000, 7
        %v8002 = vsub.s32 %v7999, %v8001
        %v8003 = vrot.slane %v7975, %v8002
        %v8004 = vcombine.low %v7982, %v7989
        %v8005 = vcombine.low %v7996, %v8003
        %v8007 = vunpack.c.l.s4 1966171168
        %v8008 = vunpack.c.0.s8 %v8007
        %v8009 = vlaneseq
        %v8010 = vshrl.u32 %v8009, 7
        %v8011 = vsub.s32 %v8008, %v8010
        %v8012 = vrot.slane %v8004, %v8011
        %v8014 = vunpack.c.l.s4 1966171168
        %v8015 = vunpack.c.0.s8 %v8014
        %v8016 = vlaneseq
        %v8017 = vshrl.u32 %v8016, 7
        %v8018 = vsub.s32 %v8015, %v8017
        %v8019 = vrot.slane %v8005, %v8018
        %v8020 = vcombine.low %v8012, %v8019
        %v8021 = vcombine.low %v2857, %v2861
        %v8022 = vcombine.low %v2865, %v2869
        %v8023 = vcombine.low %v2873, %v2877
        %v8024 = vcombine.low %v2881, %v2885
        %v8026 = vunpack.c.l.s4 1966171168
        %v8027 = vunpack.c.0.s8 %v8026
        %v8028 = vlaneseq
        %v8029 = vshrl.u32 %v8028, 7
        %v8030 = vsub.s32 %v8027, %v8029
        %v8031 = vrot.slane %v8021, %v8030
        %v8033 = vunpack.c.l.s4 1966171168
        %v8034 = vunpack.c.0.s8 %v8033
        %v8035 = vlaneseq
        %v8036 = vshrl.u32 %v8035, 7
        %v8037 = vsub.s32 %v8034, %v8036
        %v8038 = vrot.slane %v8022, %v8037
        %v8040 = vunpack.c.l.s4 1966171168
        %v8041 = vunpack.c.0.s8 %v8040
        %v8042 = vlaneseq
        %v8043 = vshrl.u32 %v8042, 7
        %v8044 = vsub.s32 %v8041, %v8043
        %v8045 = vrot.slane %v8023, %v8044
        %v8047 = vunpack.c.l.s4 1966171168
        %v8048 = vunpack.c.0.s8 %v8047
        %v8049 = vlaneseq
        %v8050 = vshrl.u32 %v8049, 7
        %v8051 = vsub.s32 %v8048, %v8050
        %v8052 = vrot.slane %v8024, %v8051
        %v8053 = vcombine.low %v8031, %v8038
        %v8054 = vcombine.low %v8045, %v8052
        %v8056 = vunpack.c.l.s4 1966171168
        %v8057 = vunpack.c.0.s8 %v8056
        %v8058 = vlaneseq
        %v8059 = vshrl.u32 %v8058, 7
        %v8060 = vsub.s32 %v8057, %v8059
        %v8061 = vrot.slane %v8053, %v8060
        %v8063 = vunpack.c.l.s4 1966171168
        %v8064 = vunpack.c.0.s8 %v8063
        %v8065 = vlaneseq
        %v8066 = vshrl.u32 %v8065, 7
        %v8067 = vsub.s32 %v8064, %v8066
        %v8068 = vrot.slane %v8054, %v8067
        %v8069 = vcombine.low %v8061, %v8068
        %v8070 = vcombine.low %v2889, %v2893
        %v8071 = vcombine.low %v2897, %v2901
        %v8072 = vcombine.low %v2905, %v2909
        %v8073 = vcombine.low %v2913, %v2917
        %v8075 = vunpack.c.l.s4 1966171168
        %v8076 = vunpack.c.0.s8 %v8075
        %v8077 = vlaneseq
        %v8078 = vshrl.u32 %v8077, 7
        %v8079 = vsub.s32 %v8076, %v8078
        %v8080 = vrot.slane %v8070, %v8079
        %v8082 = vunpack.c.l.s4 1966171168
        %v8083 = vunpack.c.0.s8 %v8082
        %v8084 = vlaneseq
        %v8085 = vshrl.u32 %v8084, 7
        %v8086 = vsub.s32 %v8083, %v8085
        %v8087 = vrot.slane %v8071, %v8086
        %v8089 = vunpack.c.l.s4 1966171168
        %v8090 = vunpack.c.0.s8 %v8089
        %v8091 = vlaneseq
        %v8092 = vshrl.u32 %v8091, 7
        %v8093 = vsub.s32 %v8090, %v8092
        %v8094 = vrot.slane %v8072, %v8093
        %v8096 = vunpack.c.l.s4 1966171168
        %v8097 = vunpack.c.0.s8 %v8096
        %v8098 = vlaneseq
        %v8099 = vshrl.u32 %v8098, 7
        %v8100 = vsub.s32 %v8097, %v8099
        %v8101 = vrot.slane %v8073, %v8100
        %v8102 = vcombine.low %v8080, %v8087
        %v8103 = vcombine.low %v8094, %v8101
        %v8105 = vunpack.c.l.s4 1966171168
        %v8106 = vunpack.c.0.s8 %v8105
        %v8107 = vlaneseq
        %v8108 = vshrl.u32 %v8107, 7
        %v8109 = vsub.s32 %v8106, %v8108
        %v8110 = vrot.slane %v8102, %v8109
        %v8112 = vunpack.c.l.s4 1966171168
        %v8113 = vunpack.c.0.s8 %v8112
        %v8114 = vlaneseq
        %v8115 = vshrl.u32 %v8114, 7
        %v8116 = vsub.s32 %v8113, %v8115
        %v8117 = vrot.slane %v8103, %v8116
        %v8118 = vcombine.low %v8110, %v8117
        %v8119 = vcombine.low %v2921, %v2925
        %v8120 = vcombine.low %v2929, %v2933
        %v8121 = vcombine.low %v2937, %v2941
        %v8122 = vcombine.low %v2945, %v2949
        %v8124 = vunpack.c.l.s4 1966171168
        %v8125 = vunpack.c.0.s8 %v8124
        %v8126 = vlaneseq
        %v8127 = vshrl.u32 %v8126, 7
        %v8128 = vsub.s32 %v8125, %v8127
        %v8129 = vrot.slane %v8119, %v8128
        %v8131 = vunpack.c.l.s4 1966171168
        %v8132 = vunpack.c.0.s8 %v8131
        %v8133 = vlaneseq
        %v8134 = vshrl.u32 %v8133, 7
        %v8135 = vsub.s32 %v8132, %v8134
        %v8136 = vrot.slane %v8120, %v8135
        %v8138 = vunpack.c.l.s4 1966171168
        %v8139 = vunpack.c.0.s8 %v8138
        %v8140 = vlaneseq
        %v8141 = vshrl.u32 %v8140, 7
        %v8142 = vsub.s32 %v8139, %v8141
        %v8143 = vrot.slane %v8121, %v8142
        %v8145 = vunpack.c.l.s4 1966171168
        %v8146 = vunpack.c.0.s8 %v8145
        %v8147 = vlaneseq
        %v8148 = vshrl.u32 %v8147, 7
        %v8149 = vsub.s32 %v8146, %v8148
        %v8150 = vrot.slane %v8122, %v8149
        %v8151 = vcombine.low %v8129, %v8136
        %v8152 = vcombine.low %v8143, %v8150
        %v8154 = vunpack.c.l.s4 1966171168
        %v8155 = vunpack.c.0.s8 %v8154
        %v8156 = vlaneseq
        %v8157 = vshrl.u32 %v8156, 7
        %v8158 = vsub.s32 %v8155, %v8157
        %v8159 = vrot.slane %v8151, %v8158
        %v8161 = vunpack.c.l.s4 1966171168
        %v8162 = vunpack.c.0.s8 %v8161
        %v8163 = vlaneseq
        %v8164 = vshrl.u32 %v8163, 7
        %v8165 = vsub.s32 %v8162, %v8164
        %v8166 = vrot.slane %v8152, %v8165
        %v8167 = vcombine.low %v8159, %v8166
        %v8168 = vcombine.low %v2953, %v2957
        %v8169 = vcombine.low %v2961, %v2965
        %v8170 = vcombine.low %v2969, %v2973
        %v8171 = vcombine.low %v2977, %v2981
        %v8173 = vunpack.c.l.s4 1966171168
        %v8174 = vunpack.c.0.s8 %v8173
        %v8175 = vlaneseq
        %v8176 = vshrl.u32 %v8175, 7
        %v8177 = vsub.s32 %v8174, %v8176
        %v8178 = vrot.slane %v8168, %v8177
        %v8180 = vunpack.c.l.s4 1966171168
        %v8181 = vunpack.c.0.s8 %v8180
        %v8182 = vlaneseq
        %v8183 = vshrl.u32 %v8182, 7
        %v8184 = vsub.s32 %v8181, %v8183
        %v8185 = vrot.slane %v8169, %v8184
        %v8187 = vunpack.c.l.s4 1966171168
        %v8188 = vunpack.c.0.s8 %v8187
        %v8189 = vlaneseq
        %v8190 = vshrl.u32 %v8189, 7
        %v8191 = vsub.s32 %v8188, %v8190
        %v8192 = vrot.slane %v8170, %v8191
        %v8194 = vunpack.c.l.s4 1966171168
        %v8195 = vunpack.c.0.s8 %v8194
        %v8196 = vlaneseq
        %v8197 = vshrl.u32 %v8196, 7
        %v8198 = vsub.s32 %v8195, %v8197
        %v8199 = vrot.slane %v8171, %v8198
        %v8200 = vcombine.low %v8178, %v8185
        %v8201 = vcombine.low %v8192, %v8199
        %v8203 = vunpack.c.l.s4 1966171168
        %v8204 = vunpack.c.0.s8 %v8203
        %v8205 = vlaneseq
        %v8206 = vshrl.u32 %v8205, 7
        %v8207 = vsub.s32 %v8204, %v8206
        %v8208 = vrot.slane %v8200, %v8207
        %v8210 = vunpack.c.l.s4 1966171168
        %v8211 = vunpack.c.0.s8 %v8210
        %v8212 = vlaneseq
        %v8213 = vshrl.u32 %v8212, 7
        %v8214 = vsub.s32 %v8211, %v8213
        %v8215 = vrot.slane %v8201, %v8214
        %v8216 = vcombine.low %v8208, %v8215
        %v8217 = vcombine.low %v2985, %v2989
        %v8218 = vcombine.low %v2993, %v2997
        %v8219 = vcombine.low %v3001, %v3005
        %v8220 = vcombine.low %v3009, %v3013
        %v8222 = vunpack.c.l.s4 1966171168
        %v8223 = vunpack.c.0.s8 %v8222
        %v8224 = vlaneseq
        %v8225 = vshrl.u32 %v8224, 7
        %v8226 = vsub.s32 %v8223, %v8225
        %v8227 = vrot.slane %v8217, %v8226
        %v8229 = vunpack.c.l.s4 1966171168
        %v8230 = vunpack.c.0.s8 %v8229
        %v8231 = vlaneseq
        %v8232 = vshrl.u32 %v8231, 7
        %v8233 = vsub.s32 %v8230, %v8232
        %v8234 = vrot.slane %v8218, %v8233
        %v8236 = vunpack.c.l.s4 1966171168
        %v8237 = vunpack.c.0.s8 %v8236
        %v8238 = vlaneseq
        %v8239 = vshrl.u32 %v8238, 7
        %v8240 = vsub.s32 %v8237, %v8239
        %v8241 = vrot.slane %v8219, %v8240
        %v8243 = vunpack.c.l.s4 1966171168
        %v8244 = vunpack.c.0.s8 %v8243
        %v8245 = vlaneseq
        %v8246 = vshrl.u32 %v8245, 7
        %v8247 = vsub.s32 %v8244, %v8246
        %v8248 = vrot.slane %v8220, %v8247
        %v8249 = vcombine.low %v8227, %v8234
        %v8250 = vcombine.low %v8241, %v8248
        %v8252 = vunpack.c.l.s4 1966171168
        %v8253 = vunpack.c.0.s8 %v8252
        %v8254 = vlaneseq
        %v8255 = vshrl.u32 %v8254, 7
        %v8256 = vsub.s32 %v8253, %v8255
        %v8257 = vrot.slane %v8249, %v8256
        %v8259 = vunpack.c.l.s4 1966171168
        %v8260 = vunpack.c.0.s8 %v8259
        %v8261 = vlaneseq
        %v8262 = vshrl.u32 %v8261, 7
        %v8263 = vsub.s32 %v8260, %v8262
        %v8264 = vrot.slane %v8250, %v8263
        %v8265 = vcombine.low %v8257, %v8264
        %v8266 = vcombine.low %v3017, %v3021
        %v8267 = vcombine.low %v3025, %v3029
        %v8268 = vcombine.low %v3033, %v3037
        %v8269 = vcombine.low %v3041, %v3045
        %v8271 = vunpack.c.l.s4 1966171168
        %v8272 = vunpack.c.0.s8 %v8271
        %v8273 = vlaneseq
        %v8274 = vshrl.u32 %v8273, 7
        %v8275 = vsub.s32 %v8272, %v8274
        %v8276 = vrot.slane %v8266, %v8275
        %v8278 = vunpack.c.l.s4 1966171168
        %v8279 = vunpack.c.0.s8 %v8278
        %v8280 = vlaneseq
        %v8281 = vshrl.u32 %v8280, 7
        %v8282 = vsub.s32 %v8279, %v8281
        %v8283 = vrot.slane %v8267, %v8282
        %v8285 = vunpack.c.l.s4 1966171168
        %v8286 = vunpack.c.0.s8 %v8285
        %v8287 = vlaneseq
        %v8288 = vshrl.u32 %v8287, 7
        %v8289 = vsub.s32 %v8286, %v8288
        %v8290 = vrot.slane %v8268, %v8289
        %v8292 = vunpack.c.l.s4 1966171168
        %v8293 = vunpack.c.0.s8 %v8292
        %v8294 = vlaneseq
        %v8295 = vshrl.u32 %v8294, 7
        %v8296 = vsub.s32 %v8293, %v8295
        %v8297 = vrot.slane %v8269, %v8296
        %v8298 = vcombine.low %v8276, %v8283
        %v8299 = vcombine.low %v8290, %v8297
        %v8301 = vunpack.c.l.s4 1966171168
        %v8302 = vunpack.c.0.s8 %v8301
        %v8303 = vlaneseq
        %v8304 = vshrl.u32 %v8303, 7
        %v8305 = vsub.s32 %v8302, %v8304
        %v8306 = vrot.slane %v8298, %v8305
        %v8308 = vunpack.c.l.s4 1966171168
        %v8309 = vunpack.c.0.s8 %v8308
        %v8310 = vlaneseq
        %v8311 = vshrl.u32 %v8310, 7
        %v8312 = vsub.s32 %v8309, %v8311
        %v8313 = vrot.slane %v8299, %v8312
        %v8314 = vcombine.low %v8306, %v8313
        %v8315 = vcombine.low %v3049, %v3053
        %v8316 = vcombine.low %v3057, %v3061
        %v8317 = vcombine.low %v3065, %v3069
        %v8318 = vcombine.low %v3073, %v3077
        %v8320 = vunpack.c.l.s4 1966171168
        %v8321 = vunpack.c.0.s8 %v8320
        %v8322 = vlaneseq
        %v8323 = vshrl.u32 %v8322, 7
        %v8324 = vsub.s32 %v8321, %v8323
        %v8325 = vrot.slane %v8315, %v8324
        %v8327 = vunpack.c.l.s4 1966171168
        %v8328 = vunpack.c.0.s8 %v8327
        %v8329 = vlaneseq
        %v8330 = vshrl.u32 %v8329, 7
        %v8331 = vsub.s32 %v8328, %v8330
        %v8332 = vrot.slane %v8316, %v8331
        %v8334 = vunpack.c.l.s4 1966171168
        %v8335 = vunpack.c.0.s8 %v8334
        %v8336 = vlaneseq
        %v8337 = vshrl.u32 %v8336, 7
        %v8338 = vsub.s32 %v8335, %v8337
        %v8339 = vrot.slane %v8317, %v8338
        %v8341 = vunpack.c.l.s4 1966171168
        %v8342 = vunpack.c.0.s8 %v8341
        %v8343 = vlaneseq
        %v8344 = vshrl.u32 %v8343, 7
        %v8345 = vsub.s32 %v8342, %v8344
        %v8346 = vrot.slane %v8318, %v8345
        %v8347 = vcombine.low %v8325, %v8332
        %v8348 = vcombine.low %v8339, %v8346
        %v8350 = vunpack.c.l.s4 1966171168
        %v8351 = vunpack.c.0.s8 %v8350
        %v8352 = vlaneseq
        %v8353 = vshrl.u32 %v8352, 7
        %v8354 = vsub.s32 %v8351, %v8353
        %v8355 = vrot.slane %v8347, %v8354
        %v8357 = vunpack.c.l.s4 1966171168
        %v8358 = vunpack.c.0.s8 %v8357
        %v8359 = vlaneseq
        %v8360 = vshrl.u32 %v8359, 7
        %v8361 = vsub.s32 %v8358, %v8360
        %v8362 = vrot.slane %v8348, %v8361
        %v8363 = vcombine.low %v8355, %v8362
        %v8364 = vcombine.low %v3081, %v3085
        %v8365 = vcombine.low %v3089, %v3093
        %v8366 = vcombine.low %v3097, %v3101
        %v8367 = vcombine.low %v3105, %v3109
        %v8369 = vunpack.c.l.s4 1966171168
        %v8370 = vunpack.c.0.s8 %v8369
        %v8371 = vlaneseq
        %v8372 = vshrl.u32 %v8371, 7
        %v8373 = vsub.s32 %v8370, %v8372
        %v8374 = vrot.slane %v8364, %v8373
        %v8376 = vunpack.c.l.s4 1966171168
        %v8377 = vunpack.c.0.s8 %v8376
        %v8378 = vlaneseq
        %v8379 = vshrl.u32 %v8378, 7
        %v8380 = vsub.s32 %v8377, %v8379
        %v8381 = vrot.slane %v8365, %v8380
        %v8383 = vunpack.c.l.s4 1966171168
        %v8384 = vunpack.c.0.s8 %v8383
        %v8385 = vlaneseq
        %v8386 = vshrl.u32 %v8385, 7
        %v8387 = vsub.s32 %v8384, %v8386
        %v8388 = vrot.slane %v8366, %v8387
        %v8390 = vunpack.c.l.s4 1966171168
        %v8391 = vunpack.c.0.s8 %v8390
        %v8392 = vlaneseq
        %v8393 = vshrl.u32 %v8392, 7
        %v8394 = vsub.s32 %v8391, %v8393
        %v8395 = vrot.slane %v8367, %v8394
        %v8396 = vcombine.low %v8374, %v8381
        %v8397 = vcombine.low %v8388, %v8395
        %v8399 = vunpack.c.l.s4 1966171168
        %v8400 = vunpack.c.0.s8 %v8399
        %v8401 = vlaneseq
        %v8402 = vshrl.u32 %v8401, 7
        %v8403 = vsub.s32 %v8400, %v8402
        %v8404 = vrot.slane %v8396, %v8403
        %v8406 = vunpack.c.l.s4 1966171168
        %v8407 = vunpack.c.0.s8 %v8406
        %v8408 = vlaneseq
        %v8409 = vshrl.u32 %v8408, 7
        %v8410 = vsub.s32 %v8407, %v8409
        %v8411 = vrot.slane %v8397, %v8410
        %v8412 = vcombine.low %v8404, %v8411
        %v8413 = vcombine.low %v3113, %v3117
        %v8414 = vcombine.low %v3121, %v3125
        %v8415 = vcombine.low %v3129, %v3133
        %v8416 = vcombine.low %v3137, %v3141
        %v8418 = vunpack.c.l.s4 1966171168
        %v8419 = vunpack.c.0.s8 %v8418
        %v8420 = vlaneseq
        %v8421 = vshrl.u32 %v8420, 7
        %v8422 = vsub.s32 %v8419, %v8421
        %v8423 = vrot.slane %v8413, %v8422
        %v8425 = vunpack.c.l.s4 1966171168
        %v8426 = vunpack.c.0.s8 %v8425
        %v8427 = vlaneseq
        %v8428 = vshrl.u32 %v8427, 7
        %v8429 = vsub.s32 %v8426, %v8428
        %v8430 = vrot.slane %v8414, %v8429
        %v8432 = vunpack.c.l.s4 1966171168
        %v8433 = vunpack.c.0.s8 %v8432
        %v8434 = vlaneseq
        %v8435 = vshrl.u32 %v8434, 7
        %v8436 = vsub.s32 %v8433, %v8435
        %v8437 = vrot.slane %v8415, %v8436
        %v8439 = vunpack.c.l.s4 1966171168
        %v8440 = vunpack.c.0.s8 %v8439
        %v8441 = vlaneseq
        %v8442 = vshrl.u32 %v8441, 7
        %v8443 = vsub.s32 %v8440, %v8442
        %v8444 = vrot.slane %v8416, %v8443
        %v8445 = vcombine.low %v8423, %v8430
        %v8446 = vcombine.low %v8437, %v8444
        %v8448 = vunpack.c.l.s4 1966171168
        %v8449 = vunpack.c.0.s8 %v8448
        %v8450 = vlaneseq
        %v8451 = vshrl.u32 %v8450, 7
        %v8452 = vsub.s32 %v8449, %v8451
        %v8453 = vrot.slane %v8445, %v8452
        %v8455 = vunpack.c.l.s4 1966171168
        %v8456 = vunpack.c.0.s8 %v8455
        %v8457 = vlaneseq
        %v8458 = vshrl.u32 %v8457, 7
        %v8459 = vsub.s32 %v8456, %v8458
        %v8460 = vrot.slane %v8446, %v8459
        %v8461 = vcombine.low %v8453, %v8460
        %v8462 = vcombine.low %v3145, %v3149
        %v8463 = vcombine.low %v3153, %v3157
        %v8464 = vcombine.low %v3161, %v3165
        %v8465 = vcombine.low %v3169, %v3173
        %v8467 = vunpack.c.l.s4 1966171168
        %v8468 = vunpack.c.0.s8 %v8467
        %v8469 = vlaneseq
        %v8470 = vshrl.u32 %v8469, 7
        %v8471 = vsub.s32 %v8468, %v8470
        %v8472 = vrot.slane %v8462, %v8471
        %v8474 = vunpack.c.l.s4 1966171168
        %v8475 = vunpack.c.0.s8 %v8474
        %v8476 = vlaneseq
        %v8477 = vshrl.u32 %v8476, 7
        %v8478 = vsub.s32 %v8475, %v8477
        %v8479 = vrot.slane %v8463, %v8478
        %v8481 = vunpack.c.l.s4 1966171168
        %v8482 = vunpack.c.0.s8 %v8481
        %v8483 = vlaneseq
        %v8484 = vshrl.u32 %v8483, 7
        %v8485 = vsub.s32 %v8482, %v8484
        %v8486 = vrot.slane %v8464, %v8485
        %v8488 = vunpack.c.l.s4 1966171168
        %v8489 = vunpack.c.0.s8 %v8488
        %v8490 = vlaneseq
        %v8491 = vshrl.u32 %v8490, 7
        %v8492 = vsub.s32 %v8489, %v8491
        %v8493 = vrot.slane %v8465, %v8492
        %v8494 = vcombine.low %v8472, %v8479
        %v8495 = vcombine.low %v8486, %v8493
        %v8497 = vunpack.c.l.s4 1966171168
        %v8498 = vunpack.c.0.s8 %v8497
        %v8499 = vlaneseq
        %v8500 = vshrl.u32 %v8499, 7
        %v8501 = vsub.s32 %v8498, %v8500
        %v8502 = vrot.slane %v8494, %v8501
        %v8504 = vunpack.c.l.s4 1966171168
        %v8505 = vunpack.c.0.s8 %v8504
        %v8506 = vlaneseq
        %v8507 = vshrl.u32 %v8506, 7
        %v8508 = vsub.s32 %v8505, %v8507
        %v8509 = vrot.slane %v8495, %v8508
        %v8510 = vcombine.low %v8502, %v8509
        %v8511 = vcombine.low %v3177, %v3181
        %v8512 = vcombine.low %v3185, %v3189
        %v8513 = vcombine.low %v3193, %v3197
        %v8514 = vcombine.low %v3201, %v3205
        %v8516 = vunpack.c.l.s4 1966171168
        %v8517 = vunpack.c.0.s8 %v8516
        %v8518 = vlaneseq
        %v8519 = vshrl.u32 %v8518, 7
        %v8520 = vsub.s32 %v8517, %v8519
        %v8521 = vrot.slane %v8511, %v8520
        %v8523 = vunpack.c.l.s4 1966171168
        %v8524 = vunpack.c.0.s8 %v8523
        %v8525 = vlaneseq
        %v8526 = vshrl.u32 %v8525, 7
        %v8527 = vsub.s32 %v8524, %v8526
        %v8528 = vrot.slane %v8512, %v8527
        %v8530 = vunpack.c.l.s4 1966171168
        %v8531 = vunpack.c.0.s8 %v8530
        %v8532 = vlaneseq
        %v8533 = vshrl.u32 %v8532, 7
        %v8534 = vsub.s32 %v8531, %v8533
        %v8535 = vrot.slane %v8513, %v8534
        %v8537 = vunpack.c.l.s4 1966171168
        %v8538 = vunpack.c.0.s8 %v8537
        %v8539 = vlaneseq
        %v8540 = vshrl.u32 %v8539, 7
        %v8541 = vsub.s32 %v8538, %v8540
        %v8542 = vrot.slane %v8514, %v8541
        %v8543 = vcombine.low %v8521, %v8528
        %v8544 = vcombine.low %v8535, %v8542
        %v8546 = vunpack.c.l.s4 1966171168
        %v8547 = vunpack.c.0.s8 %v8546
        %v8548 = vlaneseq
        %v8549 = vshrl.u32 %v8548, 7
        %v8550 = vsub.s32 %v8547, %v8549
        %v8551 = vrot.slane %v8543, %v8550
        %v8553 = vunpack.c.l.s4 1966171168
        %v8554 = vunpack.c.0.s8 %v8553
        %v8555 = vlaneseq
        %v8556 = vshrl.u32 %v8555, 7
        %v8557 = vsub.s32 %v8554, %v8556
        %v8558 = vrot.slane %v8544, %v8557
        %v8559 = vcombine.low %v8551, %v8558
        %v8560 = vcombine.low %v3209, %v3213
        %v8561 = vcombine.low %v3217, %v3221
        %v8562 = vcombine.low %v3225, %v3229
        %v8563 = vcombine.low %v3233, %v3237
        %v8565 = vunpack.c.l.s4 1966171168
        %v8566 = vunpack.c.0.s8 %v8565
        %v8567 = vlaneseq
        %v8568 = vshrl.u32 %v8567, 7
        %v8569 = vsub.s32 %v8566, %v8568
        %v8570 = vrot.slane %v8560, %v8569
        %v8572 = vunpack.c.l.s4 1966171168
        %v8573 = vunpack.c.0.s8 %v8572
        %v8574 = vlaneseq
        %v8575 = vshrl.u32 %v8574, 7
        %v8576 = vsub.s32 %v8573, %v8575
        %v8577 = vrot.slane %v8561, %v8576
        %v8579 = vunpack.c.l.s4 1966171168
        %v8580 = vunpack.c.0.s8 %v8579
        %v8581 = vlaneseq
        %v8582 = vshrl.u32 %v8581, 7
        %v8583 = vsub.s32 %v8580, %v8582
        %v8584 = vrot.slane %v8562, %v8583
        %v8586 = vunpack.c.l.s4 1966171168
        %v8587 = vunpack.c.0.s8 %v8586
        %v8588 = vlaneseq
        %v8589 = vshrl.u32 %v8588, 7
        %v8590 = vsub.s32 %v8587, %v8589
        %v8591 = vrot.slane %v8563, %v8590
        %v8592 = vcombine.low %v8570, %v8577
        %v8593 = vcombine.low %v8584, %v8591
        %v8595 = vunpack.c.l.s4 1966171168
        %v8596 = vunpack.c.0.s8 %v8595
        %v8597 = vlaneseq
        %v8598 = vshrl.u32 %v8597, 7
        %v8599 = vsub.s32 %v8596, %v8598
        %v8600 = vrot.slane %v8592, %v8599
        %v8602 = vunpack.c.l.s4 1966171168
        %v8603 = vunpack.c.0.s8 %v8602
        %v8604 = vlaneseq
        %v8605 = vshrl.u32 %v8604, 7
        %v8606 = vsub.s32 %v8603, %v8605
        %v8607 = vrot.slane %v8593, %v8606
        %v8608 = vcombine.low %v8600, %v8607
        %v8609 = vcombine.low %v3241, %v3245
        %v8610 = vcombine.low %v3249, %v3253
        %v8611 = vcombine.low %v3257, %v3261
        %v8612 = vcombine.low %v3265, %v3269
        %v8614 = vunpack.c.l.s4 1966171168
        %v8615 = vunpack.c.0.s8 %v8614
        %v8616 = vlaneseq
        %v8617 = vshrl.u32 %v8616, 7
        %v8618 = vsub.s32 %v8615, %v8617
        %v8619 = vrot.slane %v8609, %v8618
        %v8621 = vunpack.c.l.s4 1966171168
        %v8622 = vunpack.c.0.s8 %v8621
        %v8623 = vlaneseq
        %v8624 = vshrl.u32 %v8623, 7
        %v8625 = vsub.s32 %v8622, %v8624
        %v8626 = vrot.slane %v8610, %v8625
        %v8628 = vunpack.c.l.s4 1966171168
        %v8629 = vunpack.c.0.s8 %v8628
        %v8630 = vlaneseq
        %v8631 = vshrl.u32 %v8630, 7
        %v8632 = vsub.s32 %v8629, %v8631
        %v8633 = vrot.slane %v8611, %v8632
        %v8635 = vunpack.c.l.s4 1966171168
        %v8636 = vunpack.c.0.s8 %v8635
        %v8637 = vlaneseq
        %v8638 = vshrl.u32 %v8637, 7
        %v8639 = vsub.s32 %v8636, %v8638
        %v8640 = vrot.slane %v8612, %v8639
        %v8641 = vcombine.low %v8619, %v8626
        %v8642 = vcombine.low %v8633, %v8640
        %v8644 = vunpack.c.l.s4 1966171168
        %v8645 = vunpack.c.0.s8 %v8644
        %v8646 = vlaneseq
        %v8647 = vshrl.u32 %v8646, 7
        %v8648 = vsub.s32 %v8645, %v8647
        %v8649 = vrot.slane %v8641, %v8648
        %v8651 = vunpack.c.l.s4 1966171168
        %v8652 = vunpack.c.0.s8 %v8651
        %v8653 = vlaneseq
        %v8654 = vshrl.u32 %v8653, 7
        %v8655 = vsub.s32 %v8652, %v8654
        %v8656 = vrot.slane %v8642, %v8655
        %v8657 = vcombine.low %v8649, %v8656
        %v8658 = vcombine.low %v3273, %v3277
        %v8659 = vcombine.low %v3281, %v3285
        %v8660 = vcombine.low %v3289, %v3293
        %v8661 = vcombine.low %v3297, %v3301
        %v8663 = vunpack.c.l.s4 1966171168
        %v8664 = vunpack.c.0.s8 %v8663
        %v8665 = vlaneseq
        %v8666 = vshrl.u32 %v8665, 7
        %v8667 = vsub.s32 %v8664, %v8666
        %v8668 = vrot.slane %v8658, %v8667
        %v8670 = vunpack.c.l.s4 1966171168
        %v8671 = vunpack.c.0.s8 %v8670
        %v8672 = vlaneseq
        %v8673 = vshrl.u32 %v8672, 7
        %v8674 = vsub.s32 %v8671, %v8673
        %v8675 = vrot.slane %v8659, %v8674
        %v8677 = vunpack.c.l.s4 1966171168
        %v8678 = vunpack.c.0.s8 %v8677
        %v8679 = vlaneseq
        %v8680 = vshrl.u32 %v8679, 7
        %v8681 = vsub.s32 %v8678, %v8680
        %v8682 = vrot.slane %v8660, %v8681
        %v8684 = vunpack.c.l.s4 1966171168
        %v8685 = vunpack.c.0.s8 %v8684
        %v8686 = vlaneseq
        %v8687 = vshrl.u32 %v8686, 7
        %v8688 = vsub.s32 %v8685, %v8687
        %v8689 = vrot.slane %v8661, %v8688
        %v8690 = vcombine.low %v8668, %v8675
        %v8691 = vcombine.low %v8682, %v8689
        %v8693 = vunpack.c.l.s4 1966171168
        %v8694 = vunpack.c.0.s8 %v8693
        %v8695 = vlaneseq
        %v8696 = vshrl.u32 %v8695, 7
        %v8697 = vsub.s32 %v8694, %v8696
        %v8698 = vrot.slane %v8690, %v8697
        %v8700 = vunpack.c.l.s4 1966171168
        %v8701 = vunpack.c.0.s8 %v8700
        %v8702 = vlaneseq
        %v8703 = vshrl.u32 %v8702, 7
        %v8704 = vsub.s32 %v8701, %v8703
        %v8705 = vrot.slane %v8691, %v8704
        %v8706 = vcombine.low %v8698, %v8705
        %v8707 = vcombine.low %v3305, %v3309
        %v8708 = vcombine.low %v3313, %v3317
        %v8709 = vcombine.low %v3321, %v3325
        %v8710 = vcombine.low %v3329, %v3333
        %v8712 = vunpack.c.l.s4 1966171168
        %v8713 = vunpack.c.0.s8 %v8712
        %v8714 = vlaneseq
        %v8715 = vshrl.u32 %v8714, 7
        %v8716 = vsub.s32 %v8713, %v8715
        %v8717 = vrot.slane %v8707, %v8716
        %v8719 = vunpack.c.l.s4 1966171168
        %v8720 = vunpack.c.0.s8 %v8719
        %v8721 = vlaneseq
        %v8722 = vshrl.u32 %v8721, 7
        %v8723 = vsub.s32 %v8720, %v8722
        %v8724 = vrot.slane %v8708, %v8723
        %v8726 = vunpack.c.l.s4 1966171168
        %v8727 = vunpack.c.0.s8 %v8726
        %v8728 = vlaneseq
        %v8729 = vshrl.u32 %v8728, 7
        %v8730 = vsub.s32 %v8727, %v8729
        %v8731 = vrot.slane %v8709, %v8730
        %v8733 = vunpack.c.l.s4 1966171168
        %v8734 = vunpack.c.0.s8 %v8733
        %v8735 = vlaneseq
        %v8736 = vshrl.u32 %v8735, 7
        %v8737 = vsub.s32 %v8734, %v8736
        %v8738 = vrot.slane %v8710, %v8737
        %v8739 = vcombine.low %v8717, %v8724
        %v8740 = vcombine.low %v8731, %v8738
        %v8742 = vunpack.c.l.s4 1966171168
        %v8743 = vunpack.c.0.s8 %v8742
        %v8744 = vlaneseq
        %v8745 = vshrl.u32 %v8744, 7
        %v8746 = vsub.s32 %v8743, %v8745
        %v8747 = vrot.slane %v8739, %v8746
        %v8749 = vunpack.c.l.s4 1966171168
        %v8750 = vunpack.c.0.s8 %v8749
        %v8751 = vlaneseq
        %v8752 = vshrl.u32 %v8751, 7
        %v8753 = vsub.s32 %v8750, %v8752
        %v8754 = vrot.slane %v8740, %v8753
        %v8755 = vcombine.low %v8747, %v8754
        %v8756 = vcombine.low %v3337, %v3341
        %v8757 = vcombine.low %v3345, %v3349
        %v8758 = vcombine.low %v3353, %v3357
        %v8759 = vcombine.low %v3361, %v3365
        %v8761 = vunpack.c.l.s4 1966171168
        %v8762 = vunpack.c.0.s8 %v8761
        %v8763 = vlaneseq
        %v8764 = vshrl.u32 %v8763, 7
        %v8765 = vsub.s32 %v8762, %v8764
        %v8766 = vrot.slane %v8756, %v8765
        %v8768 = vunpack.c.l.s4 1966171168
        %v8769 = vunpack.c.0.s8 %v8768
        %v8770 = vlaneseq
        %v8771 = vshrl.u32 %v8770, 7
        %v8772 = vsub.s32 %v8769, %v8771
        %v8773 = vrot.slane %v8757, %v8772
        %v8775 = vunpack.c.l.s4 1966171168
        %v8776 = vunpack.c.0.s8 %v8775
        %v8777 = vlaneseq
        %v8778 = vshrl.u32 %v8777, 7
        %v8779 = vsub.s32 %v8776, %v8778
        %v8780 = vrot.slane %v8758, %v8779
        %v8782 = vunpack.c.l.s4 1966171168
        %v8783 = vunpack.c.0.s8 %v8782
        %v8784 = vlaneseq
        %v8785 = vshrl.u32 %v8784, 7
        %v8786 = vsub.s32 %v8783, %v8785
        %v8787 = vrot.slane %v8759, %v8786
        %v8788 = vcombine.low %v8766, %v8773
        %v8789 = vcombine.low %v8780, %v8787
        %v8791 = vunpack.c.l.s4 1966171168
        %v8792 = vunpack.c.0.s8 %v8791
        %v8793 = vlaneseq
        %v8794 = vshrl.u32 %v8793, 7
        %v8795 = vsub.s32 %v8792, %v8794
        %v8796 = vrot.slane %v8788, %v8795
        %v8798 = vunpack.c.l.s4 1966171168
        %v8799 = vunpack.c.0.s8 %v8798
        %v8800 = vlaneseq
        %v8801 = vshrl.u32 %v8800, 7
        %v8802 = vsub.s32 %v8799, %v8801
        %v8803 = vrot.slane %v8789, %v8802
        %v8804 = vcombine.low %v8796, %v8803
        %v8805 = vcombine.low %v3369, %v3373
        %v8806 = vcombine.low %v3377, %v3381
        %v8807 = vcombine.low %v3385, %v3389
        %v8808 = vcombine.low %v3393, %v3397
        %v8810 = vunpack.c.l.s4 1966171168
        %v8811 = vunpack.c.0.s8 %v8810
        %v8812 = vlaneseq
        %v8813 = vshrl.u32 %v8812, 7
        %v8814 = vsub.s32 %v8811, %v8813
        %v8815 = vrot.slane %v8805, %v8814
        %v8817 = vunpack.c.l.s4 1966171168
        %v8818 = vunpack.c.0.s8 %v8817
        %v8819 = vlaneseq
        %v8820 = vshrl.u32 %v8819, 7
        %v8821 = vsub.s32 %v8818, %v8820
        %v8822 = vrot.slane %v8806, %v8821
        %v8824 = vunpack.c.l.s4 1966171168
        %v8825 = vunpack.c.0.s8 %v8824
        %v8826 = vlaneseq
        %v8827 = vshrl.u32 %v8826, 7
        %v8828 = vsub.s32 %v8825, %v8827
        %v8829 = vrot.slane %v8807, %v8828
        %v8831 = vunpack.c.l.s4 1966171168
        %v8832 = vunpack.c.0.s8 %v8831
        %v8833 = vlaneseq
        %v8834 = vshrl.u32 %v8833, 7
        %v8835 = vsub.s32 %v8832, %v8834
        %v8836 = vrot.slane %v8808, %v8835
        %v8837 = vcombine.low %v8815, %v8822
        %v8838 = vcombine.low %v8829, %v8836
        %v8840 = vunpack.c.l.s4 1966171168
        %v8841 = vunpack.c.0.s8 %v8840
        %v8842 = vlaneseq
        %v8843 = vshrl.u32 %v8842, 7
        %v8844 = vsub.s32 %v8841, %v8843
        %v8845 = vrot.slane %v8837, %v8844
        %v8847 = vunpack.c.l.s4 1966171168
        %v8848 = vunpack.c.0.s8 %v8847
        %v8849 = vlaneseq
        %v8850 = vshrl.u32 %v8849, 7
        %v8851 = vsub.s32 %v8848, %v8850
        %v8852 = vrot.slane %v8838, %v8851
        %v8853 = vcombine.low %v8845, %v8852
        %v8854 = vcombine.low %v3401, %v3405
        %v8855 = vcombine.low %v3409, %v3413
        %v8856 = vcombine.low %v3417, %v3421
        %v8857 = vcombine.low %v3425, %v3429
        %v8859 = vunpack.c.l.s4 1966171168
        %v8860 = vunpack.c.0.s8 %v8859
        %v8861 = vlaneseq
        %v8862 = vshrl.u32 %v8861, 7
        %v8863 = vsub.s32 %v8860, %v8862
        %v8864 = vrot.slane %v8854, %v8863
        %v8866 = vunpack.c.l.s4 1966171168
        %v8867 = vunpack.c.0.s8 %v8866
        %v8868 = vlaneseq
        %v8869 = vshrl.u32 %v8868, 7
        %v8870 = vsub.s32 %v8867, %v8869
        %v8871 = vrot.slane %v8855, %v8870
        %v8873 = vunpack.c.l.s4 1966171168
        %v8874 = vunpack.c.0.s8 %v8873
        %v8875 = vlaneseq
        %v8876 = vshrl.u32 %v8875, 7
        %v8877 = vsub.s32 %v8874, %v8876
        %v8878 = vrot.slane %v8856, %v8877
        %v8880 = vunpack.c.l.s4 1966171168
        %v8881 = vunpack.c.0.s8 %v8880
        %v8882 = vlaneseq
        %v8883 = vshrl.u32 %v8882, 7
        %v8884 = vsub.s32 %v8881, %v8883
        %v8885 = vrot.slane %v8857, %v8884
        %v8886 = vcombine.low %v8864, %v8871
        %v8887 = vcombine.low %v8878, %v8885
        %v8889 = vunpack.c.l.s4 1966171168
        %v8890 = vunpack.c.0.s8 %v8889
        %v8891 = vlaneseq
        %v8892 = vshrl.u32 %v8891, 7
        %v8893 = vsub.s32 %v8890, %v8892
        %v8894 = vrot.slane %v8886, %v8893
        %v8896 = vunpack.c.l.s4 1966171168
        %v8897 = vunpack.c.0.s8 %v8896
        %v8898 = vlaneseq
        %v8899 = vshrl.u32 %v8898, 7
        %v8900 = vsub.s32 %v8897, %v8899
        %v8901 = vrot.slane %v8887, %v8900
        %v8902 = vcombine.low %v8894, %v8901
        %v8903 = vcombine.low %v3433, %v3437
        %v8904 = vcombine.low %v3441, %v3445
        %v8905 = vcombine.low %v3449, %v3453
        %v8906 = vcombine.low %v3457, %v3461
        %v8908 = vunpack.c.l.s4 1966171168
        %v8909 = vunpack.c.0.s8 %v8908
        %v8910 = vlaneseq
        %v8911 = vshrl.u32 %v8910, 7
        %v8912 = vsub.s32 %v8909, %v8911
        %v8913 = vrot.slane %v8903, %v8912
        %v8915 = vunpack.c.l.s4 1966171168
        %v8916 = vunpack.c.0.s8 %v8915
        %v8917 = vlaneseq
        %v8918 = vshrl.u32 %v8917, 7
        %v8919 = vsub.s32 %v8916, %v8918
        %v8920 = vrot.slane %v8904, %v8919
        %v8922 = vunpack.c.l.s4 1966171168
        %v8923 = vunpack.c.0.s8 %v8922
        %v8924 = vlaneseq
        %v8925 = vshrl.u32 %v8924, 7
        %v8926 = vsub.s32 %v8923, %v8925
        %v8927 = vrot.slane %v8905, %v8926
        %v8929 = vunpack.c.l.s4 1966171168
        %v8930 = vunpack.c.0.s8 %v8929
        %v8931 = vlaneseq
        %v8932 = vshrl.u32 %v8931, 7
        %v8933 = vsub.s32 %v8930, %v8932
        %v8934 = vrot.slane %v8906, %v8933
        %v8935 = vcombine.low %v8913, %v8920
        %v8936 = vcombine.low %v8927, %v8934
        %v8938 = vunpack.c.l.s4 1966171168
        %v8939 = vunpack.c.0.s8 %v8938
        %v8940 = vlaneseq
        %v8941 = vshrl.u32 %v8940, 7
        %v8942 = vsub.s32 %v8939, %v8941
        %v8943 = vrot.slane %v8935, %v8942
        %v8945 = vunpack.c.l.s4 1966171168
        %v8946 = vunpack.c.0.s8 %v8945
        %v8947 = vlaneseq
        %v8948 = vshrl.u32 %v8947, 7
        %v8949 = vsub.s32 %v8946, %v8948
        %v8950 = vrot.slane %v8936, %v8949
        %v8951 = vcombine.low %v8943, %v8950
        %v8952 = vcombine.low %v3465, %v3469
        %v8953 = vcombine.low %v3473, %v3477
        %v8954 = vcombine.low %v3481, %v3485
        %v8955 = vcombine.low %v3489, %v3493
        %v8957 = vunpack.c.l.s4 1966171168
        %v8958 = vunpack.c.0.s8 %v8957
        %v8959 = vlaneseq
        %v8960 = vshrl.u32 %v8959, 7
        %v8961 = vsub.s32 %v8958, %v8960
        %v8962 = vrot.slane %v8952, %v8961
        %v8964 = vunpack.c.l.s4 1966171168
        %v8965 = vunpack.c.0.s8 %v8964
        %v8966 = vlaneseq
        %v8967 = vshrl.u32 %v8966, 7
        %v8968 = vsub.s32 %v8965, %v8967
        %v8969 = vrot.slane %v8953, %v8968
        %v8971 = vunpack.c.l.s4 1966171168
        %v8972 = vunpack.c.0.s8 %v8971
        %v8973 = vlaneseq
        %v8974 = vshrl.u32 %v8973, 7
        %v8975 = vsub.s32 %v8972, %v8974
        %v8976 = vrot.slane %v8954, %v8975
        %v8978 = vunpack.c.l.s4 1966171168
        %v8979 = vunpack.c.0.s8 %v8978
        %v8980 = vlaneseq
        %v8981 = vshrl.u32 %v8980, 7
        %v8982 = vsub.s32 %v8979, %v8981
        %v8983 = vrot.slane %v8955, %v8982
        %v8984 = vcombine.low %v8962, %v8969
        %v8985 = vcombine.low %v8976, %v8983
        %v8987 = vunpack.c.l.s4 1966171168
        %v8988 = vunpack.c.0.s8 %v8987
        %v8989 = vlaneseq
        %v8990 = vshrl.u32 %v8989, 7
        %v8991 = vsub.s32 %v8988, %v8990
        %v8992 = vrot.slane %v8984, %v8991
        %v8994 = vunpack.c.l.s4 1966171168
        %v8995 = vunpack.c.0.s8 %v8994
        %v8996 = vlaneseq
        %v8997 = vshrl.u32 %v8996, 7
        %v8998 = vsub.s32 %v8995, %v8997
        %v8999 = vrot.slane %v8985, %v8998
        %v9000 = vcombine.low %v8992, %v8999
        %v9001 = vcombine.low %v3497, %v3501
        %v9002 = vcombine.low %v3505, %v3509
        %v9003 = vcombine.low %v3513, %v3517
        %v9004 = vcombine.low %v3521, %v3525
        %v9006 = vunpack.c.l.s4 1966171168
        %v9007 = vunpack.c.0.s8 %v9006
        %v9008 = vlaneseq
        %v9009 = vshrl.u32 %v9008, 7
        %v9010 = vsub.s32 %v9007, %v9009
        %v9011 = vrot.slane %v9001, %v9010
        %v9013 = vunpack.c.l.s4 1966171168
        %v9014 = vunpack.c.0.s8 %v9013
        %v9015 = vlaneseq
        %v9016 = vshrl.u32 %v9015, 7
        %v9017 = vsub.s32 %v9014, %v9016
        %v9018 = vrot.slane %v9002, %v9017
        %v9020 = vunpack.c.l.s4 1966171168
        %v9021 = vunpack.c.0.s8 %v9020
        %v9022 = vlaneseq
        %v9023 = vshrl.u32 %v9022, 7
        %v9024 = vsub.s32 %v9021, %v9023
        %v9025 = vrot.slane %v9003, %v9024
        %v9027 = vunpack.c.l.s4 1966171168
        %v9028 = vunpack.c.0.s8 %v9027
        %v9029 = vlaneseq
        %v9030 = vshrl.u32 %v9029, 7
        %v9031 = vsub.s32 %v9028, %v9030
        %v9032 = vrot.slane %v9004, %v9031
        %v9033 = vcombine.low %v9011, %v9018
        %v9034 = vcombine.low %v9025, %v9032
        %v9036 = vunpack.c.l.s4 1966171168
        %v9037 = vunpack.c.0.s8 %v9036
        %v9038 = vlaneseq
        %v9039 = vshrl.u32 %v9038, 7
        %v9040 = vsub.s32 %v9037, %v9039
        %v9041 = vrot.slane %v9033, %v9040
        %v9043 = vunpack.c.l.s4 1966171168
        %v9044 = vunpack.c.0.s8 %v9043
        %v9045 = vlaneseq
        %v9046 = vshrl.u32 %v9045, 7
        %v9047 = vsub.s32 %v9044, %v9046
        %v9048 = vrot.slane %v9034, %v9047
        %v9049 = vcombine.low %v9041, %v9048
        %v9050 = vcombine.low %v3529, %v3533
        %v9051 = vcombine.low %v3537, %v3541
        %v9052 = vcombine.low %v3545, %v3549
        %v9053 = vcombine.low %v3553, %v3557
        %v9055 = vunpack.c.l.s4 1966171168
        %v9056 = vunpack.c.0.s8 %v9055
        %v9057 = vlaneseq
        %v9058 = vshrl.u32 %v9057, 7
        %v9059 = vsub.s32 %v9056, %v9058
        %v9060 = vrot.slane %v9050, %v9059
        %v9062 = vunpack.c.l.s4 1966171168
        %v9063 = vunpack.c.0.s8 %v9062
        %v9064 = vlaneseq
        %v9065 = vshrl.u32 %v9064, 7
        %v9066 = vsub.s32 %v9063, %v9065
        %v9067 = vrot.slane %v9051, %v9066
        %v9069 = vunpack.c.l.s4 1966171168
        %v9070 = vunpack.c.0.s8 %v9069
        %v9071 = vlaneseq
        %v9072 = vshrl.u32 %v9071, 7
        %v9073 = vsub.s32 %v9070, %v9072
        %v9074 = vrot.slane %v9052, %v9073
        %v9076 = vunpack.c.l.s4 1966171168
        %v9077 = vunpack.c.0.s8 %v9076
        %v9078 = vlaneseq
        %v9079 = vshrl.u32 %v9078, 7
        %v9080 = vsub.s32 %v9077, %v9079
        %v9081 = vrot.slane %v9053, %v9080
        %v9082 = vcombine.low %v9060, %v9067
        %v9083 = vcombine.low %v9074, %v9081
        %v9085 = vunpack.c.l.s4 1966171168
        %v9086 = vunpack.c.0.s8 %v9085
        %v9087 = vlaneseq
        %v9088 = vshrl.u32 %v9087, 7
        %v9089 = vsub.s32 %v9086, %v9088
        %v9090 = vrot.slane %v9082, %v9089
        %v9092 = vunpack.c.l.s4 1966171168
        %v9093 = vunpack.c.0.s8 %v9092
        %v9094 = vlaneseq
        %v9095 = vshrl.u32 %v9094, 7
        %v9096 = vsub.s32 %v9093, %v9095
        %v9097 = vrot.slane %v9083, %v9096
        %v9098 = vcombine.low %v9090, %v9097
        %v9099 = vcombine.low %v3561, %v3565
        %v9100 = vcombine.low %v3569, %v3573
        %v9101 = vcombine.low %v3577, %v3581
        %v9102 = vcombine.low %v3585, %v3589
        %v9104 = vunpack.c.l.s4 1966171168
        %v9105 = vunpack.c.0.s8 %v9104
        %v9106 = vlaneseq
        %v9107 = vshrl.u32 %v9106, 7
        %v9108 = vsub.s32 %v9105, %v9107
        %v9109 = vrot.slane %v9099, %v9108
        %v9111 = vunpack.c.l.s4 1966171168
        %v9112 = vunpack.c.0.s8 %v9111
        %v9113 = vlaneseq
        %v9114 = vshrl.u32 %v9113, 7
        %v9115 = vsub.s32 %v9112, %v9114
        %v9116 = vrot.slane %v9100, %v9115
        %v9118 = vunpack.c.l.s4 1966171168
        %v9119 = vunpack.c.0.s8 %v9118
        %v9120 = vlaneseq
        %v9121 = vshrl.u32 %v9120, 7
        %v9122 = vsub.s32 %v9119, %v9121
        %v9123 = vrot.slane %v9101, %v9122
        %v9125 = vunpack.c.l.s4 1966171168
        %v9126 = vunpack.c.0.s8 %v9125
        %v9127 = vlaneseq
        %v9128 = vshrl.u32 %v9127, 7
        %v9129 = vsub.s32 %v9126, %v9128
        %v9130 = vrot.slane %v9102, %v9129
        %v9131 = vcombine.low %v9109, %v9116
        %v9132 = vcombine.low %v9123, %v9130
        %v9134 = vunpack.c.l.s4 1966171168
        %v9135 = vunpack.c.0.s8 %v9134
        %v9136 = vlaneseq
        %v9137 = vshrl.u32 %v9136, 7
        %v9138 = vsub.s32 %v9135, %v9137
        %v9139 = vrot.slane %v9131, %v9138
        %v9141 = vunpack.c.l.s4 1966171168
        %v9142 = vunpack.c.0.s8 %v9141
        %v9143 = vlaneseq
        %v9144 = vshrl.u32 %v9143, 7
        %v9145 = vsub.s32 %v9142, %v9144
        %v9146 = vrot.slane %v9132, %v9145
        %v9147 = vcombine.low %v9139, %v9146
        %v9148 = vcombine.low %v3593, %v3597
        %v9149 = vcombine.low %v3601, %v3605
        %v9150 = vcombine.low %v3609, %v3613
        %v9151 = vcombine.low %v3617, %v3621
        %v9153 = vunpack.c.l.s4 1966171168
        %v9154 = vunpack.c.0.s8 %v9153
        %v9155 = vlaneseq
        %v9156 = vshrl.u32 %v9155, 7
        %v9157 = vsub.s32 %v9154, %v9156
        %v9158 = vrot.slane %v9148, %v9157
        %v9160 = vunpack.c.l.s4 1966171168
        %v9161 = vunpack.c.0.s8 %v9160
        %v9162 = vlaneseq
        %v9163 = vshrl.u32 %v9162, 7
        %v9164 = vsub.s32 %v9161, %v9163
        %v9165 = vrot.slane %v9149, %v9164
        %v9167 = vunpack.c.l.s4 1966171168
        %v9168 = vunpack.c.0.s8 %v9167
        %v9169 = vlaneseq
        %v9170 = vshrl.u32 %v9169, 7
        %v9171 = vsub.s32 %v9168, %v9170
        %v9172 = vrot.slane %v9150, %v9171
        %v9174 = vunpack.c.l.s4 1966171168
        %v9175 = vunpack.c.0.s8 %v9174
        %v9176 = vlaneseq
        %v9177 = vshrl.u32 %v9176, 7
        %v9178 = vsub.s32 %v9175, %v9177
        %v9179 = vrot.slane %v9151, %v9178
        %v9180 = vcombine.low %v9158, %v9165
        %v9181 = vcombine.low %v9172, %v9179
        %v9183 = vunpack.c.l.s4 1966171168
        %v9184 = vunpack.c.0.s8 %v9183
        %v9185 = vlaneseq
        %v9186 = vshrl.u32 %v9185, 7
        %v9187 = vsub.s32 %v9184, %v9186
        %v9188 = vrot.slane %v9180, %v9187
        %v9190 = vunpack.c.l.s4 1966171168
        %v9191 = vunpack.c.0.s8 %v9190
        %v9192 = vlaneseq
        %v9193 = vshrl.u32 %v9192, 7
        %v9194 = vsub.s32 %v9191, %v9193
        %v9195 = vrot.slane %v9181, %v9194
        %v9196 = vcombine.low %v9188, %v9195
        %v9197 = vcombine.low %v3625, %v3629
        %v9198 = vcombine.low %v3633, %v3637
        %v9199 = vcombine.low %v3641, %v3645
        %v9200 = vcombine.low %v3649, %v3653
        %v9202 = vunpack.c.l.s4 1966171168
        %v9203 = vunpack.c.0.s8 %v9202
        %v9204 = vlaneseq
        %v9205 = vshrl.u32 %v9204, 7
        %v9206 = vsub.s32 %v9203, %v9205
        %v9207 = vrot.slane %v9197, %v9206
        %v9209 = vunpack.c.l.s4 1966171168
        %v9210 = vunpack.c.0.s8 %v9209
        %v9211 = vlaneseq
        %v9212 = vshrl.u32 %v9211, 7
        %v9213 = vsub.s32 %v9210, %v9212
        %v9214 = vrot.slane %v9198, %v9213
        %v9216 = vunpack.c.l.s4 1966171168
        %v9217 = vunpack.c.0.s8 %v9216
        %v9218 = vlaneseq
        %v9219 = vshrl.u32 %v9218, 7
        %v9220 = vsub.s32 %v9217, %v9219
        %v9221 = vrot.slane %v9199, %v9220
        %v9223 = vunpack.c.l.s4 1966171168
        %v9224 = vunpack.c.0.s8 %v9223
        %v9225 = vlaneseq
        %v9226 = vshrl.u32 %v9225, 7
        %v9227 = vsub.s32 %v9224, %v9226
        %v9228 = vrot.slane %v9200, %v9227
        %v9229 = vcombine.low %v9207, %v9214
        %v9230 = vcombine.low %v9221, %v9228
        %v9232 = vunpack.c.l.s4 1966171168
        %v9233 = vunpack.c.0.s8 %v9232
        %v9234 = vlaneseq
        %v9235 = vshrl.u32 %v9234, 7
        %v9236 = vsub.s32 %v9233, %v9235
        %v9237 = vrot.slane %v9229, %v9236
        %v9239 = vunpack.c.l.s4 1966171168
        %v9240 = vunpack.c.0.s8 %v9239
        %v9241 = vlaneseq
        %v9242 = vshrl.u32 %v9241, 7
        %v9243 = vsub.s32 %v9240, %v9242
        %v9244 = vrot.slane %v9230, %v9243
        %v9245 = vcombine.low %v9237, %v9244
        %v9246 = vcombine.low %v3657, %v3661
        %v9247 = vcombine.low %v3665, %v3669
        %v9248 = vcombine.low %v3673, %v3677
        %v9249 = vcombine.low %v3681, %v3685
        %v9251 = vunpack.c.l.s4 1966171168
        %v9252 = vunpack.c.0.s8 %v9251
        %v9253 = vlaneseq
        %v9254 = vshrl.u32 %v9253, 7
        %v9255 = vsub.s32 %v9252, %v9254
        %v9256 = vrot.slane %v9246, %v9255
        %v9258 = vunpack.c.l.s4 1966171168
        %v9259 = vunpack.c.0.s8 %v9258
        %v9260 = vlaneseq
        %v9261 = vshrl.u32 %v9260, 7
        %v9262 = vsub.s32 %v9259, %v9261
        %v9263 = vrot.slane %v9247, %v9262
        %v9265 = vunpack.c.l.s4 1966171168
        %v9266 = vunpack.c.0.s8 %v9265
        %v9267 = vlaneseq
        %v9268 = vshrl.u32 %v9267, 7
        %v9269 = vsub.s32 %v9266, %v9268
        %v9270 = vrot.slane %v9248, %v9269
        %v9272 = vunpack.c.l.s4 1966171168
        %v9273 = vunpack.c.0.s8 %v9272
        %v9274 = vlaneseq
        %v9275 = vshrl.u32 %v9274, 7
        %v9276 = vsub.s32 %v9273, %v9275
        %v9277 = vrot.slane %v9249, %v9276
        %v9278 = vcombine.low %v9256, %v9263
        %v9279 = vcombine.low %v9270, %v9277
        %v9281 = vunpack.c.l.s4 1966171168
        %v9282 = vunpack.c.0.s8 %v9281
        %v9283 = vlaneseq
        %v9284 = vshrl.u32 %v9283, 7
        %v9285 = vsub.s32 %v9282, %v9284
        %v9286 = vrot.slane %v9278, %v9285
        %v9288 = vunpack.c.l.s4 1966171168
        %v9289 = vunpack.c.0.s8 %v9288
        %v9290 = vlaneseq
        %v9291 = vshrl.u32 %v9290, 7
        %v9292 = vsub.s32 %v9289, %v9291
        %v9293 = vrot.slane %v9279, %v9292
        %v9294 = vcombine.low %v9286, %v9293
        %v9295 = vcombine.low %v3689, %v3693
        %v9296 = vcombine.low %v3697, %v3701
        %v9297 = vcombine.low %v3705, %v3709
        %v9298 = vcombine.low %v3713, %v3717
        %v9300 = vunpack.c.l.s4 1966171168
        %v9301 = vunpack.c.0.s8 %v9300
        %v9302 = vlaneseq
        %v9303 = vshrl.u32 %v9302, 7
        %v9304 = vsub.s32 %v9301, %v9303
        %v9305 = vrot.slane %v9295, %v9304
        %v9307 = vunpack.c.l.s4 1966171168
        %v9308 = vunpack.c.0.s8 %v9307
        %v9309 = vlaneseq
        %v9310 = vshrl.u32 %v9309, 7
        %v9311 = vsub.s32 %v9308, %v9310
        %v9312 = vrot.slane %v9296, %v9311
        %v9314 = vunpack.c.l.s4 1966171168
        %v9315 = vunpack.c.0.s8 %v9314
        %v9316 = vlaneseq
        %v9317 = vshrl.u32 %v9316, 7
        %v9318 = vsub.s32 %v9315, %v9317
        %v9319 = vrot.slane %v9297, %v9318
        %v9321 = vunpack.c.l.s4 1966171168
        %v9322 = vunpack.c.0.s8 %v9321
        %v9323 = vlaneseq
        %v9324 = vshrl.u32 %v9323, 7
        %v9325 = vsub.s32 %v9322, %v9324
        %v9326 = vrot.slane %v9298, %v9325
        %v9327 = vcombine.low %v9305, %v9312
        %v9328 = vcombine.low %v9319, %v9326
        %v9330 = vunpack.c.l.s4 1966171168
        %v9331 = vunpack.c.0.s8 %v9330
        %v9332 = vlaneseq
        %v9333 = vshrl.u32 %v9332, 7
        %v9334 = vsub.s32 %v9331, %v9333
        %v9335 = vrot.slane %v9327, %v9334
        %v9337 = vunpack.c.l.s4 1966171168
        %v9338 = vunpack.c.0.s8 %v9337
        %v9339 = vlaneseq
        %v9340 = vshrl.u32 %v9339, 7
        %v9341 = vsub.s32 %v9338, %v9340
        %v9342 = vrot.slane %v9328, %v9341
        %v9343 = vcombine.low %v9335, %v9342
        %v9344 = vcombine.low %v3721, %v3725
        %v9345 = vcombine.low %v3729, %v3733
        %v9346 = vcombine.low %v3737, %v3741
        %v9347 = vcombine.low %v3745, %v3749
        %v9349 = vunpack.c.l.s4 1966171168
        %v9350 = vunpack.c.0.s8 %v9349
        %v9351 = vlaneseq
        %v9352 = vshrl.u32 %v9351, 7
        %v9353 = vsub.s32 %v9350, %v9352
        %v9354 = vrot.slane %v9344, %v9353
        %v9356 = vunpack.c.l.s4 1966171168
        %v9357 = vunpack.c.0.s8 %v9356
        %v9358 = vlaneseq
        %v9359 = vshrl.u32 %v9358, 7
        %v9360 = vsub.s32 %v9357, %v9359
        %v9361 = vrot.slane %v9345, %v9360
        %v9363 = vunpack.c.l.s4 1966171168
        %v9364 = vunpack.c.0.s8 %v9363
        %v9365 = vlaneseq
        %v9366 = vshrl.u32 %v9365, 7
        %v9367 = vsub.s32 %v9364, %v9366
        %v9368 = vrot.slane %v9346, %v9367
        %v9370 = vunpack.c.l.s4 1966171168
        %v9371 = vunpack.c.0.s8 %v9370
        %v9372 = vlaneseq
        %v9373 = vshrl.u32 %v9372, 7
        %v9374 = vsub.s32 %v9371, %v9373
        %v9375 = vrot.slane %v9347, %v9374
        %v9376 = vcombine.low %v9354, %v9361
        %v9377 = vcombine.low %v9368, %v9375
        %v9379 = vunpack.c.l.s4 1966171168
        %v9380 = vunpack.c.0.s8 %v9379
        %v9381 = vlaneseq
        %v9382 = vshrl.u32 %v9381, 7
        %v9383 = vsub.s32 %v9380, %v9382
        %v9384 = vrot.slane %v9376, %v9383
        %v9386 = vunpack.c.l.s4 1966171168
        %v9387 = vunpack.c.0.s8 %v9386
        %v9388 = vlaneseq
        %v9389 = vshrl.u32 %v9388, 7
        %v9390 = vsub.s32 %v9387, %v9389
        %v9391 = vrot.slane %v9377, %v9390
        %v9392 = vcombine.low %v9384, %v9391
        %v9393 = vcombine.low %v3753, %v3757
        %v9394 = vcombine.low %v3761, %v3765
        %v9395 = vcombine.low %v3769, %v3773
        %v9396 = vcombine.low %v3777, %v3781
        %v9398 = vunpack.c.l.s4 1966171168
        %v9399 = vunpack.c.0.s8 %v9398
        %v9400 = vlaneseq
        %v9401 = vshrl.u32 %v9400, 7
        %v9402 = vsub.s32 %v9399, %v9401
        %v9403 = vrot.slane %v9393, %v9402
        %v9405 = vunpack.c.l.s4 1966171168
        %v9406 = vunpack.c.0.s8 %v9405
        %v9407 = vlaneseq
        %v9408 = vshrl.u32 %v9407, 7
        %v9409 = vsub.s32 %v9406, %v9408
        %v9410 = vrot.slane %v9394, %v9409
        %v9412 = vunpack.c.l.s4 1966171168
        %v9413 = vunpack.c.0.s8 %v9412
        %v9414 = vlaneseq
        %v9415 = vshrl.u32 %v9414, 7
        %v9416 = vsub.s32 %v9413, %v9415
        %v9417 = vrot.slane %v9395, %v9416
        %v9419 = vunpack.c.l.s4 1966171168
        %v9420 = vunpack.c.0.s8 %v9419
        %v9421 = vlaneseq
        %v9422 = vshrl.u32 %v9421, 7
        %v9423 = vsub.s32 %v9420, %v9422
        %v9424 = vrot.slane %v9396, %v9423
        %v9425 = vcombine.low %v9403, %v9410
        %v9426 = vcombine.low %v9417, %v9424
        %v9428 = vunpack.c.l.s4 1966171168
        %v9429 = vunpack.c.0.s8 %v9428
        %v9430 = vlaneseq
        %v9431 = vshrl.u32 %v9430, 7
        %v9432 = vsub.s32 %v9429, %v9431
        %v9433 = vrot.slane %v9425, %v9432
        %v9435 = vunpack.c.l.s4 1966171168
        %v9436 = vunpack.c.0.s8 %v9435
        %v9437 = vlaneseq
        %v9438 = vshrl.u32 %v9437, 7
        %v9439 = vsub.s32 %v9436, %v9438
        %v9440 = vrot.slane %v9426, %v9439
        %v9441 = vcombine.low %v9433, %v9440
        %v9442 = vcombine.low %v3785, %v3789
        %v9443 = vcombine.low %v3793, %v3797
        %v9444 = vcombine.low %v3801, %v3805
        %v9445 = vcombine.low %v3809, %v3813
        %v9447 = vunpack.c.l.s4 1966171168
        %v9448 = vunpack.c.0.s8 %v9447
        %v9449 = vlaneseq
        %v9450 = vshrl.u32 %v9449, 7
        %v9451 = vsub.s32 %v9448, %v9450
        %v9452 = vrot.slane %v9442, %v9451
        %v9454 = vunpack.c.l.s4 1966171168
        %v9455 = vunpack.c.0.s8 %v9454
        %v9456 = vlaneseq
        %v9457 = vshrl.u32 %v9456, 7
        %v9458 = vsub.s32 %v9455, %v9457
        %v9459 = vrot.slane %v9443, %v9458
        %v9461 = vunpack.c.l.s4 1966171168
        %v9462 = vunpack.c.0.s8 %v9461
        %v9463 = vlaneseq
        %v9464 = vshrl.u32 %v9463, 7
        %v9465 = vsub.s32 %v9462, %v9464
        %v9466 = vrot.slane %v9444, %v9465
        %v9468 = vunpack.c.l.s4 1966171168
        %v9469 = vunpack.c.0.s8 %v9468
        %v9470 = vlaneseq
        %v9471 = vshrl.u32 %v9470, 7
        %v9472 = vsub.s32 %v9469, %v9471
        %v9473 = vrot.slane %v9445, %v9472
        %v9474 = vcombine.low %v9452, %v9459
        %v9475 = vcombine.low %v9466, %v9473
        %v9477 = vunpack.c.l.s4 1966171168
        %v9478 = vunpack.c.0.s8 %v9477
        %v9479 = vlaneseq
        %v9480 = vshrl.u32 %v9479, 7
        %v9481 = vsub.s32 %v9478, %v9480
        %v9482 = vrot.slane %v9474, %v9481
        %v9484 = vunpack.c.l.s4 1966171168
        %v9485 = vunpack.c.0.s8 %v9484
        %v9486 = vlaneseq
        %v9487 = vshrl.u32 %v9486, 7
        %v9488 = vsub.s32 %v9485, %v9487
        %v9489 = vrot.slane %v9475, %v9488
        %v9490 = vcombine.low %v9482, %v9489
        %v9491 = vcombine.low %v3817, %v3821
        %v9492 = vcombine.low %v3825, %v3829
        %v9493 = vcombine.low %v3833, %v3837
        %v9494 = vcombine.low %v3841, %v3845
        %v9496 = vunpack.c.l.s4 1966171168
        %v9497 = vunpack.c.0.s8 %v9496
        %v9498 = vlaneseq
        %v9499 = vshrl.u32 %v9498, 7
        %v9500 = vsub.s32 %v9497, %v9499
        %v9501 = vrot.slane %v9491, %v9500
        %v9503 = vunpack.c.l.s4 1966171168
        %v9504 = vunpack.c.0.s8 %v9503
        %v9505 = vlaneseq
        %v9506 = vshrl.u32 %v9505, 7
        %v9507 = vsub.s32 %v9504, %v9506
        %v9508 = vrot.slane %v9492, %v9507
        %v9510 = vunpack.c.l.s4 1966171168
        %v9511 = vunpack.c.0.s8 %v9510
        %v9512 = vlaneseq
        %v9513 = vshrl.u32 %v9512, 7
        %v9514 = vsub.s32 %v9511, %v9513
        %v9515 = vrot.slane %v9493, %v9514
        %v9517 = vunpack.c.l.s4 1966171168
        %v9518 = vunpack.c.0.s8 %v9517
        %v9519 = vlaneseq
        %v9520 = vshrl.u32 %v9519, 7
        %v9521 = vsub.s32 %v9518, %v9520
        %v9522 = vrot.slane %v9494, %v9521
        %v9523 = vcombine.low %v9501, %v9508
        %v9524 = vcombine.low %v9515, %v9522
        %v9526 = vunpack.c.l.s4 1966171168
        %v9527 = vunpack.c.0.s8 %v9526
        %v9528 = vlaneseq
        %v9529 = vshrl.u32 %v9528, 7
        %v9530 = vsub.s32 %v9527, %v9529
        %v9531 = vrot.slane %v9523, %v9530
        %v9533 = vunpack.c.l.s4 1966171168
        %v9534 = vunpack.c.0.s8 %v9533
        %v9535 = vlaneseq
        %v9536 = vshrl.u32 %v9535, 7
        %v9537 = vsub.s32 %v9534, %v9536
        %v9538 = vrot.slane %v9524, %v9537
        %v9539 = vcombine.low %v9531, %v9538
        %v9540 = vcombine.low %v3849, %v3853
        %v9541 = vcombine.low %v3857, %v3861
        %v9542 = vcombine.low %v3865, %v3869
        %v9543 = vcombine.low %v3873, %v3877
        %v9545 = vunpack.c.l.s4 1966171168
        %v9546 = vunpack.c.0.s8 %v9545
        %v9547 = vlaneseq
        %v9548 = vshrl.u32 %v9547, 7
        %v9549 = vsub.s32 %v9546, %v9548
        %v9550 = vrot.slane %v9540, %v9549
        %v9552 = vunpack.c.l.s4 1966171168
        %v9553 = vunpack.c.0.s8 %v9552
        %v9554 = vlaneseq
        %v9555 = vshrl.u32 %v9554, 7
        %v9556 = vsub.s32 %v9553, %v9555
        %v9557 = vrot.slane %v9541, %v9556
        %v9559 = vunpack.c.l.s4 1966171168
        %v9560 = vunpack.c.0.s8 %v9559
        %v9561 = vlaneseq
        %v9562 = vshrl.u32 %v9561, 7
        %v9563 = vsub.s32 %v9560, %v9562
        %v9564 = vrot.slane %v9542, %v9563
        %v9566 = vunpack.c.l.s4 1966171168
        %v9567 = vunpack.c.0.s8 %v9566
        %v9568 = vlaneseq
        %v9569 = vshrl.u32 %v9568, 7
        %v9570 = vsub.s32 %v9567, %v9569
        %v9571 = vrot.slane %v9543, %v9570
        %v9572 = vcombine.low %v9550, %v9557
        %v9573 = vcombine.low %v9564, %v9571
        %v9575 = vunpack.c.l.s4 1966171168
        %v9576 = vunpack.c.0.s8 %v9575
        %v9577 = vlaneseq
        %v9578 = vshrl.u32 %v9577, 7
        %v9579 = vsub.s32 %v9576, %v9578
        %v9580 = vrot.slane %v9572, %v9579
        %v9582 = vunpack.c.l.s4 1966171168
        %v9583 = vunpack.c.0.s8 %v9582
        %v9584 = vlaneseq
        %v9585 = vshrl.u32 %v9584, 7
        %v9586 = vsub.s32 %v9583, %v9585
        %v9587 = vrot.slane %v9573, %v9586
        %v9588 = vcombine.low %v9580, %v9587
        %v9589 = vcombine.low %v3881, %v3885
        %v9590 = vcombine.low %v3889, %v3893
        %v9591 = vcombine.low %v3897, %v3901
        %v9592 = vcombine.low %v3905, %v3909
        %v9594 = vunpack.c.l.s4 1966171168
        %v9595 = vunpack.c.0.s8 %v9594
        %v9596 = vlaneseq
        %v9597 = vshrl.u32 %v9596, 7
        %v9598 = vsub.s32 %v9595, %v9597
        %v9599 = vrot.slane %v9589, %v9598
        %v9601 = vunpack.c.l.s4 1966171168
        %v9602 = vunpack.c.0.s8 %v9601
        %v9603 = vlaneseq
        %v9604 = vshrl.u32 %v9603, 7
        %v9605 = vsub.s32 %v9602, %v9604
        %v9606 = vrot.slane %v9590, %v9605
        %v9608 = vunpack.c.l.s4 1966171168
        %v9609 = vunpack.c.0.s8 %v9608
        %v9610 = vlaneseq
        %v9611 = vshrl.u32 %v9610, 7
        %v9612 = vsub.s32 %v9609, %v9611
        %v9613 = vrot.slane %v9591, %v9612
        %v9615 = vunpack.c.l.s4 1966171168
        %v9616 = vunpack.c.0.s8 %v9615
        %v9617 = vlaneseq
        %v9618 = vshrl.u32 %v9617, 7
        %v9619 = vsub.s32 %v9616, %v9618
        %v9620 = vrot.slane %v9592, %v9619
        %v9621 = vcombine.low %v9599, %v9606
        %v9622 = vcombine.low %v9613, %v9620
        %v9624 = vunpack.c.l.s4 1966171168
        %v9625 = vunpack.c.0.s8 %v9624
        %v9626 = vlaneseq
        %v9627 = vshrl.u32 %v9626, 7
        %v9628 = vsub.s32 %v9625, %v9627
        %v9629 = vrot.slane %v9621, %v9628
        %v9631 = vunpack.c.l.s4 1966171168
        %v9632 = vunpack.c.0.s8 %v9631
        %v9633 = vlaneseq
        %v9634 = vshrl.u32 %v9633, 7
        %v9635 = vsub.s32 %v9632, %v9634
        %v9636 = vrot.slane %v9622, %v9635
        %v9637 = vcombine.low %v9629, %v9636
        %v9638 = vcombine.low %v3913, %v3917
        %v9639 = vcombine.low %v3921, %v3925
        %v9640 = vcombine.low %v3929, %v3933
        %v9641 = vcombine.low %v3937, %v3941
        %v9643 = vunpack.c.l.s4 1966171168
        %v9644 = vunpack.c.0.s8 %v9643
        %v9645 = vlaneseq
        %v9646 = vshrl.u32 %v9645, 7
        %v9647 = vsub.s32 %v9644, %v9646
        %v9648 = vrot.slane %v9638, %v9647
        %v9650 = vunpack.c.l.s4 1966171168
        %v9651 = vunpack.c.0.s8 %v9650
        %v9652 = vlaneseq
        %v9653 = vshrl.u32 %v9652, 7
        %v9654 = vsub.s32 %v9651, %v9653
        %v9655 = vrot.slane %v9639, %v9654
        %v9657 = vunpack.c.l.s4 1966171168
        %v9658 = vunpack.c.0.s8 %v9657
        %v9659 = vlaneseq
        %v9660 = vshrl.u32 %v9659, 7
        %v9661 = vsub.s32 %v9658, %v9660
        %v9662 = vrot.slane %v9640, %v9661
        %v9664 = vunpack.c.l.s4 1966171168
        %v9665 = vunpack.c.0.s8 %v9664
        %v9666 = vlaneseq
        %v9667 = vshrl.u32 %v9666, 7
        %v9668 = vsub.s32 %v9665, %v9667
        %v9669 = vrot.slane %v9641, %v9668
        %v9670 = vcombine.low %v9648, %v9655
        %v9671 = vcombine.low %v9662, %v9669
        %v9673 = vunpack.c.l.s4 1966171168
        %v9674 = vunpack.c.0.s8 %v9673
        %v9675 = vlaneseq
        %v9676 = vshrl.u32 %v9675, 7
        %v9677 = vsub.s32 %v9674, %v9676
        %v9678 = vrot.slane %v9670, %v9677
        %v9680 = vunpack.c.l.s4 1966171168
        %v9681 = vunpack.c.0.s8 %v9680
        %v9682 = vlaneseq
        %v9683 = vshrl.u32 %v9682, 7
        %v9684 = vsub.s32 %v9681, %v9683
        %v9685 = vrot.slane %v9671, %v9684
        %v9686 = vcombine.low %v9678, %v9685
        %v9687 = vcombine.low %v3945, %v3949
        %v9688 = vcombine.low %v3953, %v3957
        %v9689 = vcombine.low %v3961, %v3965
        %v9690 = vcombine.low %v3969, %v3973
        %v9692 = vunpack.c.l.s4 1966171168
        %v9693 = vunpack.c.0.s8 %v9692
        %v9694 = vlaneseq
        %v9695 = vshrl.u32 %v9694, 7
        %v9696 = vsub.s32 %v9693, %v9695
        %v9697 = vrot.slane %v9687, %v9696
        %v9699 = vunpack.c.l.s4 1966171168
        %v9700 = vunpack.c.0.s8 %v9699
        %v9701 = vlaneseq
        %v9702 = vshrl.u32 %v9701, 7
        %v9703 = vsub.s32 %v9700, %v9702
        %v9704 = vrot.slane %v9688, %v9703
        %v9706 = vunpack.c.l.s4 1966171168
        %v9707 = vunpack.c.0.s8 %v9706
        %v9708 = vlaneseq
        %v9709 = vshrl.u32 %v9708, 7
        %v9710 = vsub.s32 %v9707, %v9709
        %v9711 = vrot.slane %v9689, %v9710
        %v9713 = vunpack.c.l.s4 1966171168
        %v9714 = vunpack.c.0.s8 %v9713
        %v9715 = vlaneseq
        %v9716 = vshrl.u32 %v9715, 7
        %v9717 = vsub.s32 %v9714, %v9716
        %v9718 = vrot.slane %v9690, %v9717
        %v9719 = vcombine.low %v9697, %v9704
        %v9720 = vcombine.low %v9711, %v9718
        %v9722 = vunpack.c.l.s4 1966171168
        %v9723 = vunpack.c.0.s8 %v9722
        %v9724 = vlaneseq
        %v9725 = vshrl.u32 %v9724, 7
        %v9726 = vsub.s32 %v9723, %v9725
        %v9727 = vrot.slane %v9719, %v9726
        %v9729 = vunpack.c.l.s4 1966171168
        %v9730 = vunpack.c.0.s8 %v9729
        %v9731 = vlaneseq
        %v9732 = vshrl.u32 %v9731, 7
        %v9733 = vsub.s32 %v9730, %v9732
        %v9734 = vrot.slane %v9720, %v9733
        %v9735 = vcombine.low %v9727, %v9734
        %v9736 = vcombine.low %v3977, %v3981
        %v9737 = vcombine.low %v3985, %v3989
        %v9738 = vcombine.low %v3993, %v3997
        %v9739 = vcombine.low %v4001, %v4005
        %v9741 = vunpack.c.l.s4 1966171168
        %v9742 = vunpack.c.0.s8 %v9741
        %v9743 = vlaneseq
        %v9744 = vshrl.u32 %v9743, 7
        %v9745 = vsub.s32 %v9742, %v9744
        %v9746 = vrot.slane %v9736, %v9745
        %v9748 = vunpack.c.l.s4 1966171168
        %v9749 = vunpack.c.0.s8 %v9748
        %v9750 = vlaneseq
        %v9751 = vshrl.u32 %v9750, 7
        %v9752 = vsub.s32 %v9749, %v9751
        %v9753 = vrot.slane %v9737, %v9752
        %v9755 = vunpack.c.l.s4 1966171168
        %v9756 = vunpack.c.0.s8 %v9755
        %v9757 = vlaneseq
        %v9758 = vshrl.u32 %v9757, 7
        %v9759 = vsub.s32 %v9756, %v9758
        %v9760 = vrot.slane %v9738, %v9759
        %v9762 = vunpack.c.l.s4 1966171168
        %v9763 = vunpack.c.0.s8 %v9762
        %v9764 = vlaneseq
        %v9765 = vshrl.u32 %v9764, 7
        %v9766 = vsub.s32 %v9763, %v9765
        %v9767 = vrot.slane %v9739, %v9766
        %v9768 = vcombine.low %v9746, %v9753
        %v9769 = vcombine.low %v9760, %v9767
        %v9771 = vunpack.c.l.s4 1966171168
        %v9772 = vunpack.c.0.s8 %v9771
        %v9773 = vlaneseq
        %v9774 = vshrl.u32 %v9773, 7
        %v9775 = vsub.s32 %v9772, %v9774
        %v9776 = vrot.slane %v9768, %v9775
        %v9778 = vunpack.c.l.s4 1966171168
        %v9779 = vunpack.c.0.s8 %v9778
        %v9780 = vlaneseq
        %v9781 = vshrl.u32 %v9780, 7
        %v9782 = vsub.s32 %v9779, %v9781
        %v9783 = vrot.slane %v9769, %v9782
        %v9784 = vcombine.low %v9776, %v9783
        %v9785 = vcombine.low %v4009, %v4013
        %v9786 = vcombine.low %v4017, %v4021
        %v9787 = vcombine.low %v4025, %v4029
        %v9788 = vcombine.low %v4033, %v4037
        %v9790 = vunpack.c.l.s4 1966171168
        %v9791 = vunpack.c.0.s8 %v9790
        %v9792 = vlaneseq
        %v9793 = vshrl.u32 %v9792, 7
        %v9794 = vsub.s32 %v9791, %v9793
        %v9795 = vrot.slane %v9785, %v9794
        %v9797 = vunpack.c.l.s4 1966171168
        %v9798 = vunpack.c.0.s8 %v9797
        %v9799 = vlaneseq
        %v9800 = vshrl.u32 %v9799, 7
        %v9801 = vsub.s32 %v9798, %v9800
        %v9802 = vrot.slane %v9786, %v9801
        %v9804 = vunpack.c.l.s4 1966171168
        %v9805 = vunpack.c.0.s8 %v9804
        %v9806 = vlaneseq
        %v9807 = vshrl.u32 %v9806, 7
        %v9808 = vsub.s32 %v9805, %v9807
        %v9809 = vrot.slane %v9787, %v9808
        %v9811 = vunpack.c.l.s4 1966171168
        %v9812 = vunpack.c.0.s8 %v9811
        %v9813 = vlaneseq
        %v9814 = vshrl.u32 %v9813, 7
        %v9815 = vsub.s32 %v9812, %v9814
        %v9816 = vrot.slane %v9788, %v9815
        %v9817 = vcombine.low %v9795, %v9802
        %v9818 = vcombine.low %v9809, %v9816
        %v9820 = vunpack.c.l.s4 1966171168
        %v9821 = vunpack.c.0.s8 %v9820
        %v9822 = vlaneseq
        %v9823 = vshrl.u32 %v9822, 7
        %v9824 = vsub.s32 %v9821, %v9823
        %v9825 = vrot.slane %v9817, %v9824
        %v9827 = vunpack.c.l.s4 1966171168
        %v9828 = vunpack.c.0.s8 %v9827
        %v9829 = vlaneseq
        %v9830 = vshrl.u32 %v9829, 7
        %v9831 = vsub.s32 %v9828, %v9830
        %v9832 = vrot.slane %v9818, %v9831
        %v9833 = vcombine.low %v9825, %v9832
        %v9834 = vcombine.low %v4041, %v4045
        %v9835 = vcombine.low %v4049, %v4053
        %v9836 = vcombine.low %v4057, %v4061
        %v9837 = vcombine.low %v4065, %v4069
        %v9839 = vunpack.c.l.s4 1966171168
        %v9840 = vunpack.c.0.s8 %v9839
        %v9841 = vlaneseq
        %v9842 = vshrl.u32 %v9841, 7
        %v9843 = vsub.s32 %v9840, %v9842
        %v9844 = vrot.slane %v9834, %v9843
        %v9846 = vunpack.c.l.s4 1966171168
        %v9847 = vunpack.c.0.s8 %v9846
        %v9848 = vlaneseq
        %v9849 = vshrl.u32 %v9848, 7
        %v9850 = vsub.s32 %v9847, %v9849
        %v9851 = vrot.slane %v9835, %v9850
        %v9853 = vunpack.c.l.s4 1966171168
        %v9854 = vunpack.c.0.s8 %v9853
        %v9855 = vlaneseq
        %v9856 = vshrl.u32 %v9855, 7
        %v9857 = vsub.s32 %v9854, %v9856
        %v9858 = vrot.slane %v9836, %v9857
        %v9860 = vunpack.c.l.s4 1966171168
        %v9861 = vunpack.c.0.s8 %v9860
        %v9862 = vlaneseq
        %v9863 = vshrl.u32 %v9862, 7
        %v9864 = vsub.s32 %v9861, %v9863
        %v9865 = vrot.slane %v9837, %v9864
        %v9866 = vcombine.low %v9844, %v9851
        %v9867 = vcombine.low %v9858, %v9865
        %v9869 = vunpack.c.l.s4 1966171168
        %v9870 = vunpack.c.0.s8 %v9869
        %v9871 = vlaneseq
        %v9872 = vshrl.u32 %v9871, 7
        %v9873 = vsub.s32 %v9870, %v9872
        %v9874 = vrot.slane %v9866, %v9873
        %v9876 = vunpack.c.l.s4 1966171168
        %v9877 = vunpack.c.0.s8 %v9876
        %v9878 = vlaneseq
        %v9879 = vshrl.u32 %v9878, 7
        %v9880 = vsub.s32 %v9877, %v9879
        %v9881 = vrot.slane %v9867, %v9880
        %v9882 = vcombine.low %v9874, %v9881
        %v9883 = vcombine.low %v4073, %v4077
        %v9884 = vcombine.low %v4081, %v4085
        %v9885 = vcombine.low %v4089, %v4093
        %v9886 = vcombine.low %v4097, %v4101
        %v9888 = vunpack.c.l.s4 1966171168
        %v9889 = vunpack.c.0.s8 %v9888
        %v9890 = vlaneseq
        %v9891 = vshrl.u32 %v9890, 7
        %v9892 = vsub.s32 %v9889, %v9891
        %v9893 = vrot.slane %v9883, %v9892
        %v9895 = vunpack.c.l.s4 1966171168
        %v9896 = vunpack.c.0.s8 %v9895
        %v9897 = vlaneseq
        %v9898 = vshrl.u32 %v9897, 7
        %v9899 = vsub.s32 %v9896, %v9898
        %v9900 = vrot.slane %v9884, %v9899
        %v9902 = vunpack.c.l.s4 1966171168
        %v9903 = vunpack.c.0.s8 %v9902
        %v9904 = vlaneseq
        %v9905 = vshrl.u32 %v9904, 7
        %v9906 = vsub.s32 %v9903, %v9905
        %v9907 = vrot.slane %v9885, %v9906
        %v9909 = vunpack.c.l.s4 1966171168
        %v9910 = vunpack.c.0.s8 %v9909
        %v9911 = vlaneseq
        %v9912 = vshrl.u32 %v9911, 7
        %v9913 = vsub.s32 %v9910, %v9912
        %v9914 = vrot.slane %v9886, %v9913
        %v9915 = vcombine.low %v9893, %v9900
        %v9916 = vcombine.low %v9907, %v9914
        %v9918 = vunpack.c.l.s4 1966171168
        %v9919 = vunpack.c.0.s8 %v9918
        %v9920 = vlaneseq
        %v9921 = vshrl.u32 %v9920, 7
        %v9922 = vsub.s32 %v9919, %v9921
        %v9923 = vrot.slane %v9915, %v9922
        %v9925 = vunpack.c.l.s4 1966171168
        %v9926 = vunpack.c.0.s8 %v9925
        %v9927 = vlaneseq
        %v9928 = vshrl.u32 %v9927, 7
        %v9929 = vsub.s32 %v9926, %v9928
        %v9930 = vrot.slane %v9916, %v9929
        %v9931 = vcombine.low %v9923, %v9930
        %v9932 = vcombine.low %v4105, %v4109
        %v9933 = vcombine.low %v4113, %v4117
        %v9934 = vcombine.low %v4121, %v4125
        %v9935 = vcombine.low %v4129, %v4133
        %v9937 = vunpack.c.l.s4 1966171168
        %v9938 = vunpack.c.0.s8 %v9937
        %v9939 = vlaneseq
        %v9940 = vshrl.u32 %v9939, 7
        %v9941 = vsub.s32 %v9938, %v9940
        %v9942 = vrot.slane %v9932, %v9941
        %v9944 = vunpack.c.l.s4 1966171168
        %v9945 = vunpack.c.0.s8 %v9944
        %v9946 = vlaneseq
        %v9947 = vshrl.u32 %v9946, 7
        %v9948 = vsub.s32 %v9945, %v9947
        %v9949 = vrot.slane %v9933, %v9948
        %v9951 = vunpack.c.l.s4 1966171168
        %v9952 = vunpack.c.0.s8 %v9951
        %v9953 = vlaneseq
        %v9954 = vshrl.u32 %v9953, 7
        %v9955 = vsub.s32 %v9952, %v9954
        %v9956 = vrot.slane %v9934, %v9955
        %v9958 = vunpack.c.l.s4 1966171168
        %v9959 = vunpack.c.0.s8 %v9958
        %v9960 = vlaneseq
        %v9961 = vshrl.u32 %v9960, 7
        %v9962 = vsub.s32 %v9959, %v9961
        %v9963 = vrot.slane %v9935, %v9962
        %v9964 = vcombine.low %v9942, %v9949
        %v9965 = vcombine.low %v9956, %v9963
        %v9967 = vunpack.c.l.s4 1966171168
        %v9968 = vunpack.c.0.s8 %v9967
        %v9969 = vlaneseq
        %v9970 = vshrl.u32 %v9969, 7
        %v9971 = vsub.s32 %v9968, %v9970
        %v9972 = vrot.slane %v9964, %v9971
        %v9974 = vunpack.c.l.s4 1966171168
        %v9975 = vunpack.c.0.s8 %v9974
        %v9976 = vlaneseq
        %v9977 = vshrl.u32 %v9976, 7
        %v9978 = vsub.s32 %v9975, %v9977
        %v9979 = vrot.slane %v9965, %v9978
        %v9980 = vcombine.low %v9972, %v9979
        %v9981 = vcombine.low %v4137, %v4141
        %v9982 = vcombine.low %v4145, %v4149
        %v9983 = vcombine.low %v4153, %v4157
        %v9984 = vcombine.low %v4161, %v4165
        %v9986 = vunpack.c.l.s4 1966171168
        %v9987 = vunpack.c.0.s8 %v9986
        %v9988 = vlaneseq
        %v9989 = vshrl.u32 %v9988, 7
        %v9990 = vsub.s32 %v9987, %v9989
        %v9991 = vrot.slane %v9981, %v9990
        %v9993 = vunpack.c.l.s4 1966171168
        %v9994 = vunpack.c.0.s8 %v9993
        %v9995 = vlaneseq
        %v9996 = vshrl.u32 %v9995, 7
        %v9997 = vsub.s32 %v9994, %v9996
        %v9998 = vrot.slane %v9982, %v9997
        %v10000 = vunpack.c.l.s4 1966171168
        %v10001 = vunpack.c.0.s8 %v10000
        %v10002 = vlaneseq
        %v10003 = vshrl.u32 %v10002, 7
        %v10004 = vsub.s32 %v10001, %v10003
        %v10005 = vrot.slane %v9983, %v10004
        %v10007 = vunpack.c.l.s4 1966171168
        %v10008 = vunpack.c.0.s8 %v10007
        %v10009 = vlaneseq
        %v10010 = vshrl.u32 %v10009, 7
        %v10011 = vsub.s32 %v10008, %v10010
        %v10012 = vrot.slane %v9984, %v10011
        %v10013 = vcombine.low %v9991, %v9998
        %v10014 = vcombine.low %v10005, %v10012
        %v10016 = vunpack.c.l.s4 1966171168
        %v10017 = vunpack.c.0.s8 %v10016
        %v10018 = vlaneseq
        %v10019 = vshrl.u32 %v10018, 7
        %v10020 = vsub.s32 %v10017, %v10019
        %v10021 = vrot.slane %v10013, %v10020
        %v10023 = vunpack.c.l.s4 1966171168
        %v10024 = vunpack.c.0.s8 %v10023
        %v10025 = vlaneseq
        %v10026 = vshrl.u32 %v10025, 7
        %v10027 = vsub.s32 %v10024, %v10026
        %v10028 = vrot.slane %v10014, %v10027
        %v10029 = vcombine.low %v10021, %v10028
        %v10030 = vcombine.low %v4169, %v4173
        %v10031 = vcombine.low %v4177, %v4181
        %v10032 = vcombine.low %v4185, %v4189
        %v10033 = vcombine.low %v4193, %v4197
        %v10035 = vunpack.c.l.s4 1966171168
        %v10036 = vunpack.c.0.s8 %v10035
        %v10037 = vlaneseq
        %v10038 = vshrl.u32 %v10037, 7
        %v10039 = vsub.s32 %v10036, %v10038
        %v10040 = vrot.slane %v10030, %v10039
        %v10042 = vunpack.c.l.s4 1966171168
        %v10043 = vunpack.c.0.s8 %v10042
        %v10044 = vlaneseq
        %v10045 = vshrl.u32 %v10044, 7
        %v10046 = vsub.s32 %v10043, %v10045
        %v10047 = vrot.slane %v10031, %v10046
        %v10049 = vunpack.c.l.s4 1966171168
        %v10050 = vunpack.c.0.s8 %v10049
        %v10051 = vlaneseq
        %v10052 = vshrl.u32 %v10051, 7
        %v10053 = vsub.s32 %v10050, %v10052
        %v10054 = vrot.slane %v10032, %v10053
        %v10056 = vunpack.c.l.s4 1966171168
        %v10057 = vunpack.c.0.s8 %v10056
        %v10058 = vlaneseq
        %v10059 = vshrl.u32 %v10058, 7
        %v10060 = vsub.s32 %v10057, %v10059
        %v10061 = vrot.slane %v10033, %v10060
        %v10062 = vcombine.low %v10040, %v10047
        %v10063 = vcombine.low %v10054, %v10061
        %v10065 = vunpack.c.l.s4 1966171168
        %v10066 = vunpack.c.0.s8 %v10065
        %v10067 = vlaneseq
        %v10068 = vshrl.u32 %v10067, 7
        %v10069 = vsub.s32 %v10066, %v10068
        %v10070 = vrot.slane %v10062, %v10069
        %v10072 = vunpack.c.l.s4 1966171168
        %v10073 = vunpack.c.0.s8 %v10072
        %v10074 = vlaneseq
        %v10075 = vshrl.u32 %v10074, 7
        %v10076 = vsub.s32 %v10073, %v10075
        %v10077 = vrot.slane %v10063, %v10076
        %v10078 = vcombine.low %v10070, %v10077
        %v10079 = vcombine.low %v4201, %v4205
        %v10080 = vcombine.low %v4209, %v4213
        %v10081 = vcombine.low %v4217, %v4221
        %v10082 = vcombine.low %v4225, %v4229
        %v10084 = vunpack.c.l.s4 1966171168
        %v10085 = vunpack.c.0.s8 %v10084
        %v10086 = vlaneseq
        %v10087 = vshrl.u32 %v10086, 7
        %v10088 = vsub.s32 %v10085, %v10087
        %v10089 = vrot.slane %v10079, %v10088
        %v10091 = vunpack.c.l.s4 1966171168
        %v10092 = vunpack.c.0.s8 %v10091
        %v10093 = vlaneseq
        %v10094 = vshrl.u32 %v10093, 7
        %v10095 = vsub.s32 %v10092, %v10094
        %v10096 = vrot.slane %v10080, %v10095
        %v10098 = vunpack.c.l.s4 1966171168
        %v10099 = vunpack.c.0.s8 %v10098
        %v10100 = vlaneseq
        %v10101 = vshrl.u32 %v10100, 7
        %v10102 = vsub.s32 %v10099, %v10101
        %v10103 = vrot.slane %v10081, %v10102
        %v10105 = vunpack.c.l.s4 1966171168
        %v10106 = vunpack.c.0.s8 %v10105
        %v10107 = vlaneseq
        %v10108 = vshrl.u32 %v10107, 7
        %v10109 = vsub.s32 %v10106, %v10108
        %v10110 = vrot.slane %v10082, %v10109
        %v10111 = vcombine.low %v10089, %v10096
        %v10112 = vcombine.low %v10103, %v10110
        %v10114 = vunpack.c.l.s4 1966171168
        %v10115 = vunpack.c.0.s8 %v10114
        %v10116 = vlaneseq
        %v10117 = vshrl.u32 %v10116, 7
        %v10118 = vsub.s32 %v10115, %v10117
        %v10119 = vrot.slane %v10111, %v10118
        %v10121 = vunpack.c.l.s4 1966171168
        %v10122 = vunpack.c.0.s8 %v10121
        %v10123 = vlaneseq
        %v10124 = vshrl.u32 %v10123, 7
        %v10125 = vsub.s32 %v10122, %v10124
        %v10126 = vrot.slane %v10112, %v10125
        %v10127 = vcombine.low %v10119, %v10126
        %v10128 = vcombine.low %v4233, %v4237
        %v10129 = vcombine.low %v4241, %v4245
        %v10130 = vcombine.low %v4249, %v4253
        %v10131 = vcombine.low %v4257, %v4261
        %v10133 = vunpack.c.l.s4 1966171168
        %v10134 = vunpack.c.0.s8 %v10133
        %v10135 = vlaneseq
        %v10136 = vshrl.u32 %v10135, 7
        %v10137 = vsub.s32 %v10134, %v10136
        %v10138 = vrot.slane %v10128, %v10137
        %v10140 = vunpack.c.l.s4 1966171168
        %v10141 = vunpack.c.0.s8 %v10140
        %v10142 = vlaneseq
        %v10143 = vshrl.u32 %v10142, 7
        %v10144 = vsub.s32 %v10141, %v10143
        %v10145 = vrot.slane %v10129, %v10144
        %v10147 = vunpack.c.l.s4 1966171168
        %v10148 = vunpack.c.0.s8 %v10147
        %v10149 = vlaneseq
        %v10150 = vshrl.u32 %v10149, 7
        %v10151 = vsub.s32 %v10148, %v10150
        %v10152 = vrot.slane %v10130, %v10151
        %v10154 = vunpack.c.l.s4 1966171168
        %v10155 = vunpack.c.0.s8 %v10154
        %v10156 = vlaneseq
        %v10157 = vshrl.u32 %v10156, 7
        %v10158 = vsub.s32 %v10155, %v10157
        %v10159 = vrot.slane %v10131, %v10158
        %v10160 = vcombine.low %v10138, %v10145
        %v10161 = vcombine.low %v10152, %v10159
        %v10163 = vunpack.c.l.s4 1966171168
        %v10164 = vunpack.c.0.s8 %v10163
        %v10165 = vlaneseq
        %v10166 = vshrl.u32 %v10165, 7
        %v10167 = vsub.s32 %v10164, %v10166
        %v10168 = vrot.slane %v10160, %v10167
        %v10170 = vunpack.c.l.s4 1966171168
        %v10171 = vunpack.c.0.s8 %v10170
        %v10172 = vlaneseq
        %v10173 = vshrl.u32 %v10172, 7
        %v10174 = vsub.s32 %v10171, %v10173
        %v10175 = vrot.slane %v10161, %v10174
        %v10176 = vcombine.low %v10168, %v10175
        %v10177 = vcombine.low %v4265, %v4269
        %v10178 = vcombine.low %v4273, %v4277
        %v10179 = vcombine.low %v4281, %v4285
        %v10180 = vcombine.low %v4289, %v4293
        %v10182 = vunpack.c.l.s4 1966171168
        %v10183 = vunpack.c.0.s8 %v10182
        %v10184 = vlaneseq
        %v10185 = vshrl.u32 %v10184, 7
        %v10186 = vsub.s32 %v10183, %v10185
        %v10187 = vrot.slane %v10177, %v10186
        %v10189 = vunpack.c.l.s4 1966171168
        %v10190 = vunpack.c.0.s8 %v10189
        %v10191 = vlaneseq
        %v10192 = vshrl.u32 %v10191, 7
        %v10193 = vsub.s32 %v10190, %v10192
        %v10194 = vrot.slane %v10178, %v10193
        %v10196 = vunpack.c.l.s4 1966171168
        %v10197 = vunpack.c.0.s8 %v10196
        %v10198 = vlaneseq
        %v10199 = vshrl.u32 %v10198, 7
        %v10200 = vsub.s32 %v10197, %v10199
        %v10201 = vrot.slane %v10179, %v10200
        %v10203 = vunpack.c.l.s4 1966171168
        %v10204 = vunpack.c.0.s8 %v10203
        %v10205 = vlaneseq
        %v10206 = vshrl.u32 %v10205, 7
        %v10207 = vsub.s32 %v10204, %v10206
        %v10208 = vrot.slane %v10180, %v10207
        %v10209 = vcombine.low %v10187, %v10194
        %v10210 = vcombine.low %v10201, %v10208
        %v10212 = vunpack.c.l.s4 1966171168
        %v10213 = vunpack.c.0.s8 %v10212
        %v10214 = vlaneseq
        %v10215 = vshrl.u32 %v10214, 7
        %v10216 = vsub.s32 %v10213, %v10215
        %v10217 = vrot.slane %v10209, %v10216
        %v10219 = vunpack.c.l.s4 1966171168
        %v10220 = vunpack.c.0.s8 %v10219
        %v10221 = vlaneseq
        %v10222 = vshrl.u32 %v10221, 7
        %v10223 = vsub.s32 %v10220, %v10222
        %v10224 = vrot.slane %v10210, %v10223
        %v10225 = vcombine.low %v10217, %v10224
        %v10226 = vcombine.low %v4297, %v4301
        %v10227 = vcombine.low %v4305, %v4309
        %v10228 = vcombine.low %v4313, %v4317
        %v10229 = vcombine.low %v4321, %v4325
        %v10231 = vunpack.c.l.s4 1966171168
        %v10232 = vunpack.c.0.s8 %v10231
        %v10233 = vlaneseq
        %v10234 = vshrl.u32 %v10233, 7
        %v10235 = vsub.s32 %v10232, %v10234
        %v10236 = vrot.slane %v10226, %v10235
        %v10238 = vunpack.c.l.s4 1966171168
        %v10239 = vunpack.c.0.s8 %v10238
        %v10240 = vlaneseq
        %v10241 = vshrl.u32 %v10240, 7
        %v10242 = vsub.s32 %v10239, %v10241
        %v10243 = vrot.slane %v10227, %v10242
        %v10245 = vunpack.c.l.s4 1966171168
        %v10246 = vunpack.c.0.s8 %v10245
        %v10247 = vlaneseq
        %v10248 = vshrl.u32 %v10247, 7
        %v10249 = vsub.s32 %v10246, %v10248
        %v10250 = vrot.slane %v10228, %v10249
        %v10252 = vunpack.c.l.s4 1966171168
        %v10253 = vunpack.c.0.s8 %v10252
        %v10254 = vlaneseq
        %v10255 = vshrl.u32 %v10254, 7
        %v10256 = vsub.s32 %v10253, %v10255
        %v10257 = vrot.slane %v10229, %v10256
        %v10258 = vcombine.low %v10236, %v10243
        %v10259 = vcombine.low %v10250, %v10257
        %v10261 = vunpack.c.l.s4 1966171168
        %v10262 = vunpack.c.0.s8 %v10261
        %v10263 = vlaneseq
        %v10264 = vshrl.u32 %v10263, 7
        %v10265 = vsub.s32 %v10262, %v10264
        %v10266 = vrot.slane %v10258, %v10265
        %v10268 = vunpack.c.l.s4 1966171168
        %v10269 = vunpack.c.0.s8 %v10268
        %v10270 = vlaneseq
        %v10271 = vshrl.u32 %v10270, 7
        %v10272 = vsub.s32 %v10269, %v10271
        %v10273 = vrot.slane %v10259, %v10272
        %v10274 = vcombine.low %v10266, %v10273
        %v10275 = vcombine.low %v4329, %v4333
        %v10276 = vcombine.low %v4337, %v4341
        %v10277 = vcombine.low %v4345, %v4349
        %v10278 = vcombine.low %v4353, %v4357
        %v10280 = vunpack.c.l.s4 1966171168
        %v10281 = vunpack.c.0.s8 %v10280
        %v10282 = vlaneseq
        %v10283 = vshrl.u32 %v10282, 7
        %v10284 = vsub.s32 %v10281, %v10283
        %v10285 = vrot.slane %v10275, %v10284
        %v10287 = vunpack.c.l.s4 1966171168
        %v10288 = vunpack.c.0.s8 %v10287
        %v10289 = vlaneseq
        %v10290 = vshrl.u32 %v10289, 7
        %v10291 = vsub.s32 %v10288, %v10290
        %v10292 = vrot.slane %v10276, %v10291
        %v10294 = vunpack.c.l.s4 1966171168
        %v10295 = vunpack.c.0.s8 %v10294
        %v10296 = vlaneseq
        %v10297 = vshrl.u32 %v10296, 7
        %v10298 = vsub.s32 %v10295, %v10297
        %v10299 = vrot.slane %v10277, %v10298
        %v10301 = vunpack.c.l.s4 1966171168
        %v10302 = vunpack.c.0.s8 %v10301
        %v10303 = vlaneseq
        %v10304 = vshrl.u32 %v10303, 7
        %v10305 = vsub.s32 %v10302, %v10304
        %v10306 = vrot.slane %v10278, %v10305
        %v10307 = vcombine.low %v10285, %v10292
        %v10308 = vcombine.low %v10299, %v10306
        %v10310 = vunpack.c.l.s4 1966171168
        %v10311 = vunpack.c.0.s8 %v10310
        %v10312 = vlaneseq
        %v10313 = vshrl.u32 %v10312, 7
        %v10314 = vsub.s32 %v10311, %v10313
        %v10315 = vrot.slane %v10307, %v10314
        %v10317 = vunpack.c.l.s4 1966171168
        %v10318 = vunpack.c.0.s8 %v10317
        %v10319 = vlaneseq
        %v10320 = vshrl.u32 %v10319, 7
        %v10321 = vsub.s32 %v10318, %v10320
        %v10322 = vrot.slane %v10308, %v10321
        %v10323 = vcombine.low %v10315, %v10322
        %v10324 = vcombine.low %v4361, %v4365
        %v10325 = vcombine.low %v4369, %v4373
        %v10326 = vcombine.low %v4377, %v4381
        %v10327 = vcombine.low %v4385, %v4389
        %v10329 = vunpack.c.l.s4 1966171168
        %v10330 = vunpack.c.0.s8 %v10329
        %v10331 = vlaneseq
        %v10332 = vshrl.u32 %v10331, 7
        %v10333 = vsub.s32 %v10330, %v10332
        %v10334 = vrot.slane %v10324, %v10333
        %v10336 = vunpack.c.l.s4 1966171168
        %v10337 = vunpack.c.0.s8 %v10336
        %v10338 = vlaneseq
        %v10339 = vshrl.u32 %v10338, 7
        %v10340 = vsub.s32 %v10337, %v10339
        %v10341 = vrot.slane %v10325, %v10340
        %v10343 = vunpack.c.l.s4 1966171168
        %v10344 = vunpack.c.0.s8 %v10343
        %v10345 = vlaneseq
        %v10346 = vshrl.u32 %v10345, 7
        %v10347 = vsub.s32 %v10344, %v10346
        %v10348 = vrot.slane %v10326, %v10347
        %v10350 = vunpack.c.l.s4 1966171168
        %v10351 = vunpack.c.0.s8 %v10350
        %v10352 = vlaneseq
        %v10353 = vshrl.u32 %v10352, 7
        %v10354 = vsub.s32 %v10351, %v10353
        %v10355 = vrot.slane %v10327, %v10354
        %v10356 = vcombine.low %v10334, %v10341
        %v10357 = vcombine.low %v10348, %v10355
        %v10359 = vunpack.c.l.s4 1966171168
        %v10360 = vunpack.c.0.s8 %v10359
        %v10361 = vlaneseq
        %v10362 = vshrl.u32 %v10361, 7
        %v10363 = vsub.s32 %v10360, %v10362
        %v10364 = vrot.slane %v10356, %v10363
        %v10366 = vunpack.c.l.s4 1966171168
        %v10367 = vunpack.c.0.s8 %v10366
        %v10368 = vlaneseq
        %v10369 = vshrl.u32 %v10368, 7
        %v10370 = vsub.s32 %v10367, %v10369
        %v10371 = vrot.slane %v10357, %v10370
        %v10372 = vcombine.low %v10364, %v10371
        %v10373 = vcombine.low %v4393, %v4397
        %v10374 = vcombine.low %v4401, %v4405
        %v10375 = vcombine.low %v4409, %v4413
        %v10376 = vcombine.low %v4417, %v4421
        %v10378 = vunpack.c.l.s4 1966171168
        %v10379 = vunpack.c.0.s8 %v10378
        %v10380 = vlaneseq
        %v10381 = vshrl.u32 %v10380, 7
        %v10382 = vsub.s32 %v10379, %v10381
        %v10383 = vrot.slane %v10373, %v10382
        %v10385 = vunpack.c.l.s4 1966171168
        %v10386 = vunpack.c.0.s8 %v10385
        %v10387 = vlaneseq
        %v10388 = vshrl.u32 %v10387, 7
        %v10389 = vsub.s32 %v10386, %v10388
        %v10390 = vrot.slane %v10374, %v10389
        %v10392 = vunpack.c.l.s4 1966171168
        %v10393 = vunpack.c.0.s8 %v10392
        %v10394 = vlaneseq
        %v10395 = vshrl.u32 %v10394, 7
        %v10396 = vsub.s32 %v10393, %v10395
        %v10397 = vrot.slane %v10375, %v10396
        %v10399 = vunpack.c.l.s4 1966171168
        %v10400 = vunpack.c.0.s8 %v10399
        %v10401 = vlaneseq
        %v10402 = vshrl.u32 %v10401, 7
        %v10403 = vsub.s32 %v10400, %v10402
        %v10404 = vrot.slane %v10376, %v10403
        %v10405 = vcombine.low %v10383, %v10390
        %v10406 = vcombine.low %v10397, %v10404
        %v10408 = vunpack.c.l.s4 1966171168
        %v10409 = vunpack.c.0.s8 %v10408
        %v10410 = vlaneseq
        %v10411 = vshrl.u32 %v10410, 7
        %v10412 = vsub.s32 %v10409, %v10411
        %v10413 = vrot.slane %v10405, %v10412
        %v10415 = vunpack.c.l.s4 1966171168
        %v10416 = vunpack.c.0.s8 %v10415
        %v10417 = vlaneseq
        %v10418 = vshrl.u32 %v10417, 7
        %v10419 = vsub.s32 %v10416, %v10418
        %v10420 = vrot.slane %v10406, %v10419
        %v10421 = vcombine.low %v10413, %v10420
        %v10422 = vcombine.low %v4425, %v4429
        %v10423 = vcombine.low %v4433, %v4437
        %v10424 = vcombine.low %v4441, %v4445
        %v10425 = vcombine.low %v4449, %v4453
        %v10427 = vunpack.c.l.s4 1966171168
        %v10428 = vunpack.c.0.s8 %v10427
        %v10429 = vlaneseq
        %v10430 = vshrl.u32 %v10429, 7
        %v10431 = vsub.s32 %v10428, %v10430
        %v10432 = vrot.slane %v10422, %v10431
        %v10434 = vunpack.c.l.s4 1966171168
        %v10435 = vunpack.c.0.s8 %v10434
        %v10436 = vlaneseq
        %v10437 = vshrl.u32 %v10436, 7
        %v10438 = vsub.s32 %v10435, %v10437
        %v10439 = vrot.slane %v10423, %v10438
        %v10441 = vunpack.c.l.s4 1966171168
        %v10442 = vunpack.c.0.s8 %v10441
        %v10443 = vlaneseq
        %v10444 = vshrl.u32 %v10443, 7
        %v10445 = vsub.s32 %v10442, %v10444
        %v10446 = vrot.slane %v10424, %v10445
        %v10448 = vunpack.c.l.s4 1966171168
        %v10449 = vunpack.c.0.s8 %v10448
        %v10450 = vlaneseq
        %v10451 = vshrl.u32 %v10450, 7
        %v10452 = vsub.s32 %v10449, %v10451
        %v10453 = vrot.slane %v10425, %v10452
        %v10454 = vcombine.low %v10432, %v10439
        %v10455 = vcombine.low %v10446, %v10453
        %v10457 = vunpack.c.l.s4 1966171168
        %v10458 = vunpack.c.0.s8 %v10457
        %v10459 = vlaneseq
        %v10460 = vshrl.u32 %v10459, 7
        %v10461 = vsub.s32 %v10458, %v10460
        %v10462 = vrot.slane %v10454, %v10461
        %v10464 = vunpack.c.l.s4 1966171168
        %v10465 = vunpack.c.0.s8 %v10464
        %v10466 = vlaneseq
        %v10467 = vshrl.u32 %v10466, 7
        %v10468 = vsub.s32 %v10465, %v10467
        %v10469 = vrot.slane %v10455, %v10468
        %v10470 = vcombine.low %v10462, %v10469
        %v10471 = vcombine.low %v4457, %v4461
        %v10472 = vcombine.low %v4465, %v4469
        %v10473 = vcombine.low %v4473, %v4477
        %v10474 = vcombine.low %v4481, %v4485
        %v10476 = vunpack.c.l.s4 1966171168
        %v10477 = vunpack.c.0.s8 %v10476
        %v10478 = vlaneseq
        %v10479 = vshrl.u32 %v10478, 7
        %v10480 = vsub.s32 %v10477, %v10479
        %v10481 = vrot.slane %v10471, %v10480
        %v10483 = vunpack.c.l.s4 1966171168
        %v10484 = vunpack.c.0.s8 %v10483
        %v10485 = vlaneseq
        %v10486 = vshrl.u32 %v10485, 7
        %v10487 = vsub.s32 %v10484, %v10486
        %v10488 = vrot.slane %v10472, %v10487
        %v10490 = vunpack.c.l.s4 1966171168
        %v10491 = vunpack.c.0.s8 %v10490
        %v10492 = vlaneseq
        %v10493 = vshrl.u32 %v10492, 7
        %v10494 = vsub.s32 %v10491, %v10493
        %v10495 = vrot.slane %v10473, %v10494
        %v10497 = vunpack.c.l.s4 1966171168
        %v10498 = vunpack.c.0.s8 %v10497
        %v10499 = vlaneseq
        %v10500 = vshrl.u32 %v10499, 7
        %v10501 = vsub.s32 %v10498, %v10500
        %v10502 = vrot.slane %v10474, %v10501
        %v10503 = vcombine.low %v10481, %v10488
        %v10504 = vcombine.low %v10495, %v10502
        %v10506 = vunpack.c.l.s4 1966171168
        %v10507 = vunpack.c.0.s8 %v10506
        %v10508 = vlaneseq
        %v10509 = vshrl.u32 %v10508, 7
        %v10510 = vsub.s32 %v10507, %v10509
        %v10511 = vrot.slane %v10503, %v10510
        %v10513 = vunpack.c.l.s4 1966171168
        %v10514 = vunpack.c.0.s8 %v10513
        %v10515 = vlaneseq
        %v10516 = vshrl.u32 %v10515, 7
        %v10517 = vsub.s32 %v10514, %v10516
        %v10518 = vrot.slane %v10504, %v10517
        %v10519 = vcombine.low %v10511, %v10518
        %v10520 = vcombine.low %v4489, %v4493
        %v10521 = vcombine.low %v4497, %v4501
        %v10522 = vcombine.low %v4505, %v4509
        %v10523 = vcombine.low %v4513, %v4517
        %v10525 = vunpack.c.l.s4 1966171168
        %v10526 = vunpack.c.0.s8 %v10525
        %v10527 = vlaneseq
        %v10528 = vshrl.u32 %v10527, 7
        %v10529 = vsub.s32 %v10526, %v10528
        %v10530 = vrot.slane %v10520, %v10529
        %v10532 = vunpack.c.l.s4 1966171168
        %v10533 = vunpack.c.0.s8 %v10532
        %v10534 = vlaneseq
        %v10535 = vshrl.u32 %v10534, 7
        %v10536 = vsub.s32 %v10533, %v10535
        %v10537 = vrot.slane %v10521, %v10536
        %v10539 = vunpack.c.l.s4 1966171168
        %v10540 = vunpack.c.0.s8 %v10539
        %v10541 = vlaneseq
        %v10542 = vshrl.u32 %v10541, 7
        %v10543 = vsub.s32 %v10540, %v10542
        %v10544 = vrot.slane %v10522, %v10543
        %v10546 = vunpack.c.l.s4 1966171168
        %v10547 = vunpack.c.0.s8 %v10546
        %v10548 = vlaneseq
        %v10549 = vshrl.u32 %v10548, 7
        %v10550 = vsub.s32 %v10547, %v10549
        %v10551 = vrot.slane %v10523, %v10550
        %v10552 = vcombine.low %v10530, %v10537
        %v10553 = vcombine.low %v10544, %v10551
        %v10555 = vunpack.c.l.s4 1966171168
        %v10556 = vunpack.c.0.s8 %v10555
        %v10557 = vlaneseq
        %v10558 = vshrl.u32 %v10557, 7
        %v10559 = vsub.s32 %v10556, %v10558
        %v10560 = vrot.slane %v10552, %v10559
        %v10562 = vunpack.c.l.s4 1966171168
        %v10563 = vunpack.c.0.s8 %v10562
        %v10564 = vlaneseq
        %v10565 = vshrl.u32 %v10564, 7
        %v10566 = vsub.s32 %v10563, %v10565
        %v10567 = vrot.slane %v10553, %v10566
        %v10568 = vcombine.low %v10560, %v10567
        %v10569 = vcombine.low %v4521, %v4525
        %v10570 = vcombine.low %v4529, %v4533
        %v10571 = vcombine.low %v4537, %v4541
        %v10572 = vcombine.low %v4545, %v4549
        %v10574 = vunpack.c.l.s4 1966171168
        %v10575 = vunpack.c.0.s8 %v10574
        %v10576 = vlaneseq
        %v10577 = vshrl.u32 %v10576, 7
        %v10578 = vsub.s32 %v10575, %v10577
        %v10579 = vrot.slane %v10569, %v10578
        %v10581 = vunpack.c.l.s4 1966171168
        %v10582 = vunpack.c.0.s8 %v10581
        %v10583 = vlaneseq
        %v10584 = vshrl.u32 %v10583, 7
        %v10585 = vsub.s32 %v10582, %v10584
        %v10586 = vrot.slane %v10570, %v10585
        %v10588 = vunpack.c.l.s4 1966171168
        %v10589 = vunpack.c.0.s8 %v10588
        %v10590 = vlaneseq
        %v10591 = vshrl.u32 %v10590, 7
        %v10592 = vsub.s32 %v10589, %v10591
        %v10593 = vrot.slane %v10571, %v10592
        %v10595 = vunpack.c.l.s4 1966171168
        %v10596 = vunpack.c.0.s8 %v10595
        %v10597 = vlaneseq
        %v10598 = vshrl.u32 %v10597, 7
        %v10599 = vsub.s32 %v10596, %v10598
        %v10600 = vrot.slane %v10572, %v10599
        %v10601 = vcombine.low %v10579, %v10586
        %v10602 = vcombine.low %v10593, %v10600
        %v10604 = vunpack.c.l.s4 1966171168
        %v10605 = vunpack.c.0.s8 %v10604
        %v10606 = vlaneseq
        %v10607 = vshrl.u32 %v10606, 7
        %v10608 = vsub.s32 %v10605, %v10607
        %v10609 = vrot.slane %v10601, %v10608
        %v10611 = vunpack.c.l.s4 1966171168
        %v10612 = vunpack.c.0.s8 %v10611
        %v10613 = vlaneseq
        %v10614 = vshrl.u32 %v10613, 7
        %v10615 = vsub.s32 %v10612, %v10614
        %v10616 = vrot.slane %v10602, %v10615
        %v10617 = vcombine.low %v10609, %v10616
        %v10618 = vcombine.low %v4553, %v4557
        %v10619 = vcombine.low %v4561, %v4565
        %v10620 = vcombine.low %v4569, %v4573
        %v10621 = vcombine.low %v4577, %v4581
        %v10623 = vunpack.c.l.s4 1966171168
        %v10624 = vunpack.c.0.s8 %v10623
        %v10625 = vlaneseq
        %v10626 = vshrl.u32 %v10625, 7
        %v10627 = vsub.s32 %v10624, %v10626
        %v10628 = vrot.slane %v10618, %v10627
        %v10630 = vunpack.c.l.s4 1966171168
        %v10631 = vunpack.c.0.s8 %v10630
        %v10632 = vlaneseq
        %v10633 = vshrl.u32 %v10632, 7
        %v10634 = vsub.s32 %v10631, %v10633
        %v10635 = vrot.slane %v10619, %v10634
        %v10637 = vunpack.c.l.s4 1966171168
        %v10638 = vunpack.c.0.s8 %v10637
        %v10639 = vlaneseq
        %v10640 = vshrl.u32 %v10639, 7
        %v10641 = vsub.s32 %v10638, %v10640
        %v10642 = vrot.slane %v10620, %v10641
        %v10644 = vunpack.c.l.s4 1966171168
        %v10645 = vunpack.c.0.s8 %v10644
        %v10646 = vlaneseq
        %v10647 = vshrl.u32 %v10646, 7
        %v10648 = vsub.s32 %v10645, %v10647
        %v10649 = vrot.slane %v10621, %v10648
        %v10650 = vcombine.low %v10628, %v10635
        %v10651 = vcombine.low %v10642, %v10649
        %v10653 = vunpack.c.l.s4 1966171168
        %v10654 = vunpack.c.0.s8 %v10653
        %v10655 = vlaneseq
        %v10656 = vshrl.u32 %v10655, 7
        %v10657 = vsub.s32 %v10654, %v10656
        %v10658 = vrot.slane %v10650, %v10657
        %v10660 = vunpack.c.l.s4 1966171168
        %v10661 = vunpack.c.0.s8 %v10660
        %v10662 = vlaneseq
        %v10663 = vshrl.u32 %v10662, 7
        %v10664 = vsub.s32 %v10661, %v10663
        %v10665 = vrot.slane %v10651, %v10664
        %v10666 = vcombine.low %v10658, %v10665
        %v10667 = vcombine.low %v4585, %v4589
        %v10668 = vcombine.low %v4593, %v4597
        %v10669 = vcombine.low %v4601, %v4605
        %v10670 = vcombine.low %v4609, %v4613
        %v10672 = vunpack.c.l.s4 1966171168
        %v10673 = vunpack.c.0.s8 %v10672
        %v10674 = vlaneseq
        %v10675 = vshrl.u32 %v10674, 7
        %v10676 = vsub.s32 %v10673, %v10675
        %v10677 = vrot.slane %v10667, %v10676
        %v10679 = vunpack.c.l.s4 1966171168
        %v10680 = vunpack.c.0.s8 %v10679
        %v10681 = vlaneseq
        %v10682 = vshrl.u32 %v10681, 7
        %v10683 = vsub.s32 %v10680, %v10682
        %v10684 = vrot.slane %v10668, %v10683
        %v10686 = vunpack.c.l.s4 1966171168
        %v10687 = vunpack.c.0.s8 %v10686
        %v10688 = vlaneseq
        %v10689 = vshrl.u32 %v10688, 7
        %v10690 = vsub.s32 %v10687, %v10689
        %v10691 = vrot.slane %v10669, %v10690
        %v10693 = vunpack.c.l.s4 1966171168
        %v10694 = vunpack.c.0.s8 %v10693
        %v10695 = vlaneseq
        %v10696 = vshrl.u32 %v10695, 7
        %v10697 = vsub.s32 %v10694, %v10696
        %v10698 = vrot.slane %v10670, %v10697
        %v10699 = vcombine.low %v10677, %v10684
        %v10700 = vcombine.low %v10691, %v10698
        %v10702 = vunpack.c.l.s4 1966171168
        %v10703 = vunpack.c.0.s8 %v10702
        %v10704 = vlaneseq
        %v10705 = vshrl.u32 %v10704, 7
        %v10706 = vsub.s32 %v10703, %v10705
        %v10707 = vrot.slane %v10699, %v10706
        %v10709 = vunpack.c.l.s4 1966171168
        %v10710 = vunpack.c.0.s8 %v10709
        %v10711 = vlaneseq
        %v10712 = vshrl.u32 %v10711, 7
        %v10713 = vsub.s32 %v10710, %v10712
        %v10714 = vrot.slane %v10700, %v10713
        %v10715 = vcombine.low %v10707, %v10714
        %v10716 = vcombine.low %v4617, %v4621
        %v10717 = vcombine.low %v4625, %v4629
        %v10718 = vcombine.low %v4633, %v4637
        %v10719 = vcombine.low %v4641, %v4645
        %v10721 = vunpack.c.l.s4 1966171168
        %v10722 = vunpack.c.0.s8 %v10721
        %v10723 = vlaneseq
        %v10724 = vshrl.u32 %v10723, 7
        %v10725 = vsub.s32 %v10722, %v10724
        %v10726 = vrot.slane %v10716, %v10725
        %v10728 = vunpack.c.l.s4 1966171168
        %v10729 = vunpack.c.0.s8 %v10728
        %v10730 = vlaneseq
        %v10731 = vshrl.u32 %v10730, 7
        %v10732 = vsub.s32 %v10729, %v10731
        %v10733 = vrot.slane %v10717, %v10732
        %v10735 = vunpack.c.l.s4 1966171168
        %v10736 = vunpack.c.0.s8 %v10735
        %v10737 = vlaneseq
        %v10738 = vshrl.u32 %v10737, 7
        %v10739 = vsub.s32 %v10736, %v10738
        %v10740 = vrot.slane %v10718, %v10739
        %v10742 = vunpack.c.l.s4 1966171168
        %v10743 = vunpack.c.0.s8 %v10742
        %v10744 = vlaneseq
        %v10745 = vshrl.u32 %v10744, 7
        %v10746 = vsub.s32 %v10743, %v10745
        %v10747 = vrot.slane %v10719, %v10746
        %v10748 = vcombine.low %v10726, %v10733
        %v10749 = vcombine.low %v10740, %v10747
        %v10751 = vunpack.c.l.s4 1966171168
        %v10752 = vunpack.c.0.s8 %v10751
        %v10753 = vlaneseq
        %v10754 = vshrl.u32 %v10753, 7
        %v10755 = vsub.s32 %v10752, %v10754
        %v10756 = vrot.slane %v10748, %v10755
        %v10758 = vunpack.c.l.s4 1966171168
        %v10759 = vunpack.c.0.s8 %v10758
        %v10760 = vlaneseq
        %v10761 = vshrl.u32 %v10760, 7
        %v10762 = vsub.s32 %v10759, %v10761
        %v10763 = vrot.slane %v10749, %v10762
        %v10764 = vcombine.low %v10756, %v10763
        %v10765 = vcombine.low %v4649, %v4653
        %v10766 = vcombine.low %v4657, %v4661
        %v10767 = vcombine.low %v4665, %v4669
        %v10768 = vcombine.low %v4673, %v4677
        %v10770 = vunpack.c.l.s4 1966171168
        %v10771 = vunpack.c.0.s8 %v10770
        %v10772 = vlaneseq
        %v10773 = vshrl.u32 %v10772, 7
        %v10774 = vsub.s32 %v10771, %v10773
        %v10775 = vrot.slane %v10765, %v10774
        %v10777 = vunpack.c.l.s4 1966171168
        %v10778 = vunpack.c.0.s8 %v10777
        %v10779 = vlaneseq
        %v10780 = vshrl.u32 %v10779, 7
        %v10781 = vsub.s32 %v10778, %v10780
        %v10782 = vrot.slane %v10766, %v10781
        %v10784 = vunpack.c.l.s4 1966171168
        %v10785 = vunpack.c.0.s8 %v10784
        %v10786 = vlaneseq
        %v10787 = vshrl.u32 %v10786, 7
        %v10788 = vsub.s32 %v10785, %v10787
        %v10789 = vrot.slane %v10767, %v10788
        %v10791 = vunpack.c.l.s4 1966171168
        %v10792 = vunpack.c.0.s8 %v10791
        %v10793 = vlaneseq
        %v10794 = vshrl.u32 %v10793, 7
        %v10795 = vsub.s32 %v10792, %v10794
        %v10796 = vrot.slane %v10768, %v10795
        %v10797 = vcombine.low %v10775, %v10782
        %v10798 = vcombine.low %v10789, %v10796
        %v10800 = vunpack.c.l.s4 1966171168
        %v10801 = vunpack.c.0.s8 %v10800
        %v10802 = vlaneseq
        %v10803 = vshrl.u32 %v10802, 7
        %v10804 = vsub.s32 %v10801, %v10803
        %v10805 = vrot.slane %v10797, %v10804
        %v10807 = vunpack.c.l.s4 1966171168
        %v10808 = vunpack.c.0.s8 %v10807
        %v10809 = vlaneseq
        %v10810 = vshrl.u32 %v10809, 7
        %v10811 = vsub.s32 %v10808, %v10810
        %v10812 = vrot.slane %v10798, %v10811
        %v10813 = vcombine.low %v10805, %v10812
        %v10814 = vcombine.low %v4681, %v4685
        %v10815 = vcombine.low %v4689, %v4693
        %v10816 = vcombine.low %v4697, %v4701
        %v10817 = vcombine.low %v4705, %v4709
        %v10819 = vunpack.c.l.s4 1966171168
        %v10820 = vunpack.c.0.s8 %v10819
        %v10821 = vlaneseq
        %v10822 = vshrl.u32 %v10821, 7
        %v10823 = vsub.s32 %v10820, %v10822
        %v10824 = vrot.slane %v10814, %v10823
        %v10826 = vunpack.c.l.s4 1966171168
        %v10827 = vunpack.c.0.s8 %v10826
        %v10828 = vlaneseq
        %v10829 = vshrl.u32 %v10828, 7
        %v10830 = vsub.s32 %v10827, %v10829
        %v10831 = vrot.slane %v10815, %v10830
        %v10833 = vunpack.c.l.s4 1966171168
        %v10834 = vunpack.c.0.s8 %v10833
        %v10835 = vlaneseq
        %v10836 = vshrl.u32 %v10835, 7
        %v10837 = vsub.s32 %v10834, %v10836
        %v10838 = vrot.slane %v10816, %v10837
        %v10840 = vunpack.c.l.s4 1966171168
        %v10841 = vunpack.c.0.s8 %v10840
        %v10842 = vlaneseq
        %v10843 = vshrl.u32 %v10842, 7
        %v10844 = vsub.s32 %v10841, %v10843
        %v10845 = vrot.slane %v10817, %v10844
        %v10846 = vcombine.low %v10824, %v10831
        %v10847 = vcombine.low %v10838, %v10845
        %v10849 = vunpack.c.l.s4 1966171168
        %v10850 = vunpack.c.0.s8 %v10849
        %v10851 = vlaneseq
        %v10852 = vshrl.u32 %v10851, 7
        %v10853 = vsub.s32 %v10850, %v10852
        %v10854 = vrot.slane %v10846, %v10853
        %v10856 = vunpack.c.l.s4 1966171168
        %v10857 = vunpack.c.0.s8 %v10856
        %v10858 = vlaneseq
        %v10859 = vshrl.u32 %v10858, 7
        %v10860 = vsub.s32 %v10857, %v10859
        %v10861 = vrot.slane %v10847, %v10860
        %v10862 = vcombine.low %v10854, %v10861
        %v10863 = vcombine.low %v4713, %v4717
        %v10864 = vcombine.low %v4721, %v4725
        %v10865 = vcombine.low %v4729, %v4733
        %v10866 = vcombine.low %v4737, %v4741
        %v10868 = vunpack.c.l.s4 1966171168
        %v10869 = vunpack.c.0.s8 %v10868
        %v10870 = vlaneseq
        %v10871 = vshrl.u32 %v10870, 7
        %v10872 = vsub.s32 %v10869, %v10871
        %v10873 = vrot.slane %v10863, %v10872
        %v10875 = vunpack.c.l.s4 1966171168
        %v10876 = vunpack.c.0.s8 %v10875
        %v10877 = vlaneseq
        %v10878 = vshrl.u32 %v10877, 7
        %v10879 = vsub.s32 %v10876, %v10878
        %v10880 = vrot.slane %v10864, %v10879
        %v10882 = vunpack.c.l.s4 1966171168
        %v10883 = vunpack.c.0.s8 %v10882
        %v10884 = vlaneseq
        %v10885 = vshrl.u32 %v10884, 7
        %v10886 = vsub.s32 %v10883, %v10885
        %v10887 = vrot.slane %v10865, %v10886
        %v10889 = vunpack.c.l.s4 1966171168
        %v10890 = vunpack.c.0.s8 %v10889
        %v10891 = vlaneseq
        %v10892 = vshrl.u32 %v10891, 7
        %v10893 = vsub.s32 %v10890, %v10892
        %v10894 = vrot.slane %v10866, %v10893
        %v10895 = vcombine.low %v10873, %v10880
        %v10896 = vcombine.low %v10887, %v10894
        %v10898 = vunpack.c.l.s4 1966171168
        %v10899 = vunpack.c.0.s8 %v10898
        %v10900 = vlaneseq
        %v10901 = vshrl.u32 %v10900, 7
        %v10902 = vsub.s32 %v10899, %v10901
        %v10903 = vrot.slane %v10895, %v10902
        %v10905 = vunpack.c.l.s4 1966171168
        %v10906 = vunpack.c.0.s8 %v10905
        %v10907 = vlaneseq
        %v10908 = vshrl.u32 %v10907, 7
        %v10909 = vsub.s32 %v10906, %v10908
        %v10910 = vrot.slane %v10896, %v10909
        %v10911 = vcombine.low %v10903, %v10910
        %v10912 = vcombine.low %v4745, %v4749
        %v10913 = vcombine.low %v4753, %v4757
        %v10914 = vcombine.low %v4761, %v4765
        %v10915 = vcombine.low %v4769, %v4773
        %v10917 = vunpack.c.l.s4 1966171168
        %v10918 = vunpack.c.0.s8 %v10917
        %v10919 = vlaneseq
        %v10920 = vshrl.u32 %v10919, 7
        %v10921 = vsub.s32 %v10918, %v10920
        %v10922 = vrot.slane %v10912, %v10921
        %v10924 = vunpack.c.l.s4 1966171168
        %v10925 = vunpack.c.0.s8 %v10924
        %v10926 = vlaneseq
        %v10927 = vshrl.u32 %v10926, 7
        %v10928 = vsub.s32 %v10925, %v10927
        %v10929 = vrot.slane %v10913, %v10928
        %v10931 = vunpack.c.l.s4 1966171168
        %v10932 = vunpack.c.0.s8 %v10931
        %v10933 = vlaneseq
        %v10934 = vshrl.u32 %v10933, 7
        %v10935 = vsub.s32 %v10932, %v10934
        %v10936 = vrot.slane %v10914, %v10935
        %v10938 = vunpack.c.l.s4 1966171168
        %v10939 = vunpack.c.0.s8 %v10938
        %v10940 = vlaneseq
        %v10941 = vshrl.u32 %v10940, 7
        %v10942 = vsub.s32 %v10939, %v10941
        %v10943 = vrot.slane %v10915, %v10942
        %v10944 = vcombine.low %v10922, %v10929
        %v10945 = vcombine.low %v10936, %v10943
        %v10947 = vunpack.c.l.s4 1966171168
        %v10948 = vunpack.c.0.s8 %v10947
        %v10949 = vlaneseq
        %v10950 = vshrl.u32 %v10949, 7
        %v10951 = vsub.s32 %v10948, %v10950
        %v10952 = vrot.slane %v10944, %v10951
        %v10954 = vunpack.c.l.s4 1966171168
        %v10955 = vunpack.c.0.s8 %v10954
        %v10956 = vlaneseq
        %v10957 = vshrl.u32 %v10956, 7
        %v10958 = vsub.s32 %v10955, %v10957
        %v10959 = vrot.slane %v10945, %v10958
        %v10960 = vcombine.low %v10952, %v10959
        %v10961 = vcombine.low %v4777, %v4781
        %v10962 = vcombine.low %v4785, %v4789
        %v10963 = vcombine.low %v4793, %v4797
        %v10964 = vcombine.low %v4801, %v4805
        %v10966 = vunpack.c.l.s4 1966171168
        %v10967 = vunpack.c.0.s8 %v10966
        %v10968 = vlaneseq
        %v10969 = vshrl.u32 %v10968, 7
        %v10970 = vsub.s32 %v10967, %v10969
        %v10971 = vrot.slane %v10961, %v10970
        %v10973 = vunpack.c.l.s4 1966171168
        %v10974 = vunpack.c.0.s8 %v10973
        %v10975 = vlaneseq
        %v10976 = vshrl.u32 %v10975, 7
        %v10977 = vsub.s32 %v10974, %v10976
        %v10978 = vrot.slane %v10962, %v10977
        %v10980 = vunpack.c.l.s4 1966171168
        %v10981 = vunpack.c.0.s8 %v10980
        %v10982 = vlaneseq
        %v10983 = vshrl.u32 %v10982, 7
        %v10984 = vsub.s32 %v10981, %v10983
        %v10985 = vrot.slane %v10963, %v10984
        %v10987 = vunpack.c.l.s4 1966171168
        %v10988 = vunpack.c.0.s8 %v10987
        %v10989 = vlaneseq
        %v10990 = vshrl.u32 %v10989, 7
        %v10991 = vsub.s32 %v10988, %v10990
        %v10992 = vrot.slane %v10964, %v10991
        %v10993 = vcombine.low %v10971, %v10978
        %v10994 = vcombine.low %v10985, %v10992
        %v10996 = vunpack.c.l.s4 1966171168
        %v10997 = vunpack.c.0.s8 %v10996
        %v10998 = vlaneseq
        %v10999 = vshrl.u32 %v10998, 7
        %v11000 = vsub.s32 %v10997, %v10999
        %v11001 = vrot.slane %v10993, %v11000
        %v11003 = vunpack.c.l.s4 1966171168
        %v11004 = vunpack.c.0.s8 %v11003
        %v11005 = vlaneseq
        %v11006 = vshrl.u32 %v11005, 7
        %v11007 = vsub.s32 %v11004, %v11006
        %v11008 = vrot.slane %v10994, %v11007
        %v11009 = vcombine.low %v11001, %v11008
        %v11010 = vcombine.low %v4809, %v4813
        %v11011 = vcombine.low %v4817, %v4821
        %v11012 = vcombine.low %v4825, %v4829
        %v11013 = vcombine.low %v4833, %v4837
        %v11015 = vunpack.c.l.s4 1966171168
        %v11016 = vunpack.c.0.s8 %v11015
        %v11017 = vlaneseq
        %v11018 = vshrl.u32 %v11017, 7
        %v11019 = vsub.s32 %v11016, %v11018
        %v11020 = vrot.slane %v11010, %v11019
        %v11022 = vunpack.c.l.s4 1966171168
        %v11023 = vunpack.c.0.s8 %v11022
        %v11024 = vlaneseq
        %v11025 = vshrl.u32 %v11024, 7
        %v11026 = vsub.s32 %v11023, %v11025
        %v11027 = vrot.slane %v11011, %v11026
        %v11029 = vunpack.c.l.s4 1966171168
        %v11030 = vunpack.c.0.s8 %v11029
        %v11031 = vlaneseq
        %v11032 = vshrl.u32 %v11031, 7
        %v11033 = vsub.s32 %v11030, %v11032
        %v11034 = vrot.slane %v11012, %v11033
        %v11036 = vunpack.c.l.s4 1966171168
        %v11037 = vunpack.c.0.s8 %v11036
        %v11038 = vlaneseq
        %v11039 = vshrl.u32 %v11038, 7
        %v11040 = vsub.s32 %v11037, %v11039
        %v11041 = vrot.slane %v11013, %v11040
        %v11042 = vcombine.low %v11020, %v11027
        %v11043 = vcombine.low %v11034, %v11041
        %v11045 = vunpack.c.l.s4 1966171168
        %v11046 = vunpack.c.0.s8 %v11045
        %v11047 = vlaneseq
        %v11048 = vshrl.u32 %v11047, 7
        %v11049 = vsub.s32 %v11046, %v11048
        %v11050 = vrot.slane %v11042, %v11049
        %v11052 = vunpack.c.l.s4 1966171168
        %v11053 = vunpack.c.0.s8 %v11052
        %v11054 = vlaneseq
        %v11055 = vshrl.u32 %v11054, 7
        %v11056 = vsub.s32 %v11053, %v11055
        %v11057 = vrot.slane %v11043, %v11056
        %v11058 = vcombine.low %v11050, %v11057
        %v11059 = vcombine.low %v4841, %v4845
        %v11060 = vcombine.low %v4849, %v4853
        %v11061 = vcombine.low %v4857, %v4861
        %v11062 = vcombine.low %v4865, %v4869
        %v11064 = vunpack.c.l.s4 1966171168
        %v11065 = vunpack.c.0.s8 %v11064
        %v11066 = vlaneseq
        %v11067 = vshrl.u32 %v11066, 7
        %v11068 = vsub.s32 %v11065, %v11067
        %v11069 = vrot.slane %v11059, %v11068
        %v11071 = vunpack.c.l.s4 1966171168
        %v11072 = vunpack.c.0.s8 %v11071
        %v11073 = vlaneseq
        %v11074 = vshrl.u32 %v11073, 7
        %v11075 = vsub.s32 %v11072, %v11074
        %v11076 = vrot.slane %v11060, %v11075
        %v11078 = vunpack.c.l.s4 1966171168
        %v11079 = vunpack.c.0.s8 %v11078
        %v11080 = vlaneseq
        %v11081 = vshrl.u32 %v11080, 7
        %v11082 = vsub.s32 %v11079, %v11081
        %v11083 = vrot.slane %v11061, %v11082
        %v11085 = vunpack.c.l.s4 1966171168
        %v11086 = vunpack.c.0.s8 %v11085
        %v11087 = vlaneseq
        %v11088 = vshrl.u32 %v11087, 7
        %v11089 = vsub.s32 %v11086, %v11088
        %v11090 = vrot.slane %v11062, %v11089
        %v11091 = vcombine.low %v11069, %v11076
        %v11092 = vcombine.low %v11083, %v11090
        %v11094 = vunpack.c.l.s4 1966171168
        %v11095 = vunpack.c.0.s8 %v11094
        %v11096 = vlaneseq
        %v11097 = vshrl.u32 %v11096, 7
        %v11098 = vsub.s32 %v11095, %v11097
        %v11099 = vrot.slane %v11091, %v11098
        %v11101 = vunpack.c.l.s4 1966171168
        %v11102 = vunpack.c.0.s8 %v11101
        %v11103 = vlaneseq
        %v11104 = vshrl.u32 %v11103, 7
        %v11105 = vsub.s32 %v11102, %v11104
        %v11106 = vrot.slane %v11092, %v11105
        %v11107 = vcombine.low %v11099, %v11106
        %v11108 = vcombine.low %v4873, %v4877
        %v11109 = vcombine.low %v4881, %v4885
        %v11110 = vcombine.low %v4889, %v4893
        %v11111 = vcombine.low %v4897, %v4901
        %v11113 = vunpack.c.l.s4 1966171168
        %v11114 = vunpack.c.0.s8 %v11113
        %v11115 = vlaneseq
        %v11116 = vshrl.u32 %v11115, 7
        %v11117 = vsub.s32 %v11114, %v11116
        %v11118 = vrot.slane %v11108, %v11117
        %v11120 = vunpack.c.l.s4 1966171168
        %v11121 = vunpack.c.0.s8 %v11120
        %v11122 = vlaneseq
        %v11123 = vshrl.u32 %v11122, 7
        %v11124 = vsub.s32 %v11121, %v11123
        %v11125 = vrot.slane %v11109, %v11124
        %v11127 = vunpack.c.l.s4 1966171168
        %v11128 = vunpack.c.0.s8 %v11127
        %v11129 = vlaneseq
        %v11130 = vshrl.u32 %v11129, 7
        %v11131 = vsub.s32 %v11128, %v11130
        %v11132 = vrot.slane %v11110, %v11131
        %v11134 = vunpack.c.l.s4 1966171168
        %v11135 = vunpack.c.0.s8 %v11134
        %v11136 = vlaneseq
        %v11137 = vshrl.u32 %v11136, 7
        %v11138 = vsub.s32 %v11135, %v11137
        %v11139 = vrot.slane %v11111, %v11138
        %v11140 = vcombine.low %v11118, %v11125
        %v11141 = vcombine.low %v11132, %v11139
        %v11143 = vunpack.c.l.s4 1966171168
        %v11144 = vunpack.c.0.s8 %v11143
        %v11145 = vlaneseq
        %v11146 = vshrl.u32 %v11145, 7
        %v11147 = vsub.s32 %v11144, %v11146
        %v11148 = vrot.slane %v11140, %v11147
        %v11150 = vunpack.c.l.s4 1966171168
        %v11151 = vunpack.c.0.s8 %v11150
        %v11152 = vlaneseq
        %v11153 = vshrl.u32 %v11152, 7
        %v11154 = vsub.s32 %v11151, %v11153
        %v11155 = vrot.slane %v11141, %v11154
        %v11156 = vcombine.low %v11148, %v11155
        %v11157 = vcombine.low %v4905, %v4909
        %v11158 = vcombine.low %v4913, %v4917
        %v11159 = vcombine.low %v4921, %v4925
        %v11160 = vcombine.low %v4929, %v4933
        %v11162 = vunpack.c.l.s4 1966171168
        %v11163 = vunpack.c.0.s8 %v11162
        %v11164 = vlaneseq
        %v11165 = vshrl.u32 %v11164, 7
        %v11166 = vsub.s32 %v11163, %v11165
        %v11167 = vrot.slane %v11157, %v11166
        %v11169 = vunpack.c.l.s4 1966171168
        %v11170 = vunpack.c.0.s8 %v11169
        %v11171 = vlaneseq
        %v11172 = vshrl.u32 %v11171, 7
        %v11173 = vsub.s32 %v11170, %v11172
        %v11174 = vrot.slane %v11158, %v11173
        %v11176 = vunpack.c.l.s4 1966171168
        %v11177 = vunpack.c.0.s8 %v11176
        %v11178 = vlaneseq
        %v11179 = vshrl.u32 %v11178, 7
        %v11180 = vsub.s32 %v11177, %v11179
        %v11181 = vrot.slane %v11159, %v11180
        %v11183 = vunpack.c.l.s4 1966171168
        %v11184 = vunpack.c.0.s8 %v11183
        %v11185 = vlaneseq
        %v11186 = vshrl.u32 %v11185, 7
        %v11187 = vsub.s32 %v11184, %v11186
        %v11188 = vrot.slane %v11160, %v11187
        %v11189 = vcombine.low %v11167, %v11174
        %v11190 = vcombine.low %v11181, %v11188
        %v11192 = vunpack.c.l.s4 1966171168
        %v11193 = vunpack.c.0.s8 %v11192
        %v11194 = vlaneseq
        %v11195 = vshrl.u32 %v11194, 7
        %v11196 = vsub.s32 %v11193, %v11195
        %v11197 = vrot.slane %v11189, %v11196
        %v11199 = vunpack.c.l.s4 1966171168
        %v11200 = vunpack.c.0.s8 %v11199
        %v11201 = vlaneseq
        %v11202 = vshrl.u32 %v11201, 7
        %v11203 = vsub.s32 %v11200, %v11202
        %v11204 = vrot.slane %v11190, %v11203
        %v11205 = vcombine.low %v11197, %v11204
        %11206 = vset.pattern.permute.xlu0 0
        %11207 = vperm.xlu0 %11206, %v4982
        %v11208 = vpop.permute.xlu0 %11207
        %11209 = vset.pattern.permute.xlu0 0
        %11210 = vperm.xlu0 %11209, %v5031
        %v11211 = vpop.permute.xlu0 %11210
        %11212 = vset.pattern.permute.xlu0 0
        %11213 = vperm.xlu0 %11212, %v5080
        %v11214 = vpop.permute.xlu0 %11213
        %11215 = vset.pattern.permute.xlu0 0
        %11216 = vperm.xlu0 %11215, %v5129
        %v11217 = vpop.permute.xlu0 %11216
        %11218 = vset.pattern.permute.xlu0 0
        %11219 = vperm.xlu0 %11218, %v5178
        %v11220 = vpop.permute.xlu0 %11219
        %11221 = vset.pattern.permute.xlu0 0
        %11222 = vperm.xlu0 %11221, %v5227
        %v11223 = vpop.permute.xlu0 %11222
        %11224 = vset.pattern.permute.xlu0 0
        %11225 = vperm.xlu0 %11224, %v5276
        %v11226 = vpop.permute.xlu0 %11225
        %11227 = vset.pattern.permute.xlu0 0
        %11228 = vperm.xlu0 %11227, %v5325
        %v11229 = vpop.permute.xlu0 %11228
        %11230 = vset.pattern.permute.xlu0 0
        %11231 = vperm.xlu0 %11230, %v5374
        %v11232 = vpop.permute.xlu0 %11231
        %11233 = vset.pattern.permute.xlu0 0
        %11234 = vperm.xlu0 %11233, %v5423
        %v11235 = vpop.permute.xlu0 %11234
        %11236 = vset.pattern.permute.xlu0 0
        %11237 = vperm.xlu0 %11236, %v5472
        %v11238 = vpop.permute.xlu0 %11237
        %11239 = vset.pattern.permute.xlu0 0
        %11240 = vperm.xlu0 %11239, %v5521
        %v11241 = vpop.permute.xlu0 %11240
        %11242 = vset.pattern.permute.xlu0 0
        %11243 = vperm.xlu0 %11242, %v5570
        %v11244 = vpop.permute.xlu0 %11243
        %11245 = vset.pattern.permute.xlu0 0
        %11246 = vperm.xlu0 %11245, %v5619
        %v11247 = vpop.permute.xlu0 %11246
        %11248 = vset.pattern.permute.xlu0 0
        %11249 = vperm.xlu0 %11248, %v5668
        %v11250 = vpop.permute.xlu0 %11249
        %11251 = vset.pattern.permute.xlu0 0
        %11252 = vperm.xlu0 %11251, %v5717
        %v11253 = vpop.permute.xlu0 %11252
        %11254 = vset.pattern.permute.xlu0 0
        %11255 = vperm.xlu0 %11254, %v5766
        %v11256 = vpop.permute.xlu0 %11255
        %11257 = vset.pattern.permute.xlu0 0
        %11258 = vperm.xlu0 %11257, %v5815
        %v11259 = vpop.permute.xlu0 %11258
        %11260 = vset.pattern.permute.xlu0 0
        %11261 = vperm.xlu0 %11260, %v5864
        %v11262 = vpop.permute.xlu0 %11261
        %11263 = vset.pattern.permute.xlu0 0
        %11264 = vperm.xlu0 %11263, %v5913
        %v11265 = vpop.permute.xlu0 %11264
        %11266 = vset.pattern.permute.xlu0 0
        %11267 = vperm.xlu0 %11266, %v5962
        %v11268 = vpop.permute.xlu0 %11267
        %11269 = vset.pattern.permute.xlu0 0
        %11270 = vperm.xlu0 %11269, %v6011
        %v11271 = vpop.permute.xlu0 %11270
        %11272 = vset.pattern.permute.xlu0 0
        %11273 = vperm.xlu0 %11272, %v6060
        %v11274 = vpop.permute.xlu0 %11273
        %11275 = vset.pattern.permute.xlu0 0
        %11276 = vperm.xlu0 %11275, %v6109
        %v11277 = vpop.permute.xlu0 %11276
        %11278 = vset.pattern.permute.xlu0 0
        %11279 = vperm.xlu0 %11278, %v6158
        %v11280 = vpop.permute.xlu0 %11279
        %11281 = vset.pattern.permute.xlu0 0
        %11282 = vperm.xlu0 %11281, %v6207
        %v11283 = vpop.permute.xlu0 %11282
        %11284 = vset.pattern.permute.xlu0 0
        %11285 = vperm.xlu0 %11284, %v6256
        %v11286 = vpop.permute.xlu0 %11285
        %11287 = vset.pattern.permute.xlu0 0
        %11288 = vperm.xlu0 %11287, %v6305
        %v11289 = vpop.permute.xlu0 %11288
        %11290 = vset.pattern.permute.xlu0 0
        %11291 = vperm.xlu0 %11290, %v6354
        %v11292 = vpop.permute.xlu0 %11291
        %11293 = vset.pattern.permute.xlu0 0
        %11294 = vperm.xlu0 %11293, %v6403
        %v11295 = vpop.permute.xlu0 %11294
        %11296 = vset.pattern.permute.xlu0 0
        %11297 = vperm.xlu0 %11296, %v6452
        %v11298 = vpop.permute.xlu0 %11297
        %11299 = vset.pattern.permute.xlu0 0
        %11300 = vperm.xlu0 %11299, %v6501
        %v11301 = vpop.permute.xlu0 %11300
        %11302 = vset.pattern.permute.xlu0 0
        %11303 = vperm.xlu0 %11302, %v6550
        %v11304 = vpop.permute.xlu0 %11303
        %11305 = vset.pattern.permute.xlu0 0
        %11306 = vperm.xlu0 %11305, %v6599
        %v11307 = vpop.permute.xlu0 %11306
        %11308 = vset.pattern.permute.xlu0 0
        %11309 = vperm.xlu0 %11308, %v6648
        %v11310 = vpop.permute.xlu0 %11309
        %11311 = vset.pattern.permute.xlu0 0
        %11312 = vperm.xlu0 %11311, %v6697
        %v11313 = vpop.permute.xlu0 %11312
        %11314 = vset.pattern.permute.xlu0 0
        %11315 = vperm.xlu0 %11314, %v6746
        %v11316 = vpop.permute.xlu0 %11315
        %11317 = vset.pattern.permute.xlu0 0
        %11318 = vperm.xlu0 %11317, %v6795
        %v11319 = vpop.permute.xlu0 %11318
        %11320 = vset.pattern.permute.xlu0 0
        %11321 = vperm.xlu0 %11320, %v6844
        %v11322 = vpop.permute.xlu0 %11321
        %11323 = vset.pattern.permute.xlu0 0
        %11324 = vperm.xlu0 %11323, %v6893
        %v11325 = vpop.permute.xlu0 %11324
        %11326 = vset.pattern.permute.xlu0 0
        %11327 = vperm.xlu0 %11326, %v6942
        %v11328 = vpop.permute.xlu0 %11327
        %11329 = vset.pattern.permute.xlu0 0
        %11330 = vperm.xlu0 %11329, %v6991
        %v11331 = vpop.permute.xlu0 %11330
        %11332 = vset.pattern.permute.xlu0 0
        %11333 = vperm.xlu0 %11332, %v7040
        %v11334 = vpop.permute.xlu0 %11333
        %11335 = vset.pattern.permute.xlu0 0
        %11336 = vperm.xlu0 %11335, %v7089
        %v11337 = vpop.permute.xlu0 %11336
        %11338 = vset.pattern.permute.xlu0 0
        %11339 = vperm.xlu0 %11338, %v7138
        %v11340 = vpop.permute.xlu0 %11339
        %11341 = vset.pattern.permute.xlu0 0
        %11342 = vperm.xlu0 %11341, %v7187
        %v11343 = vpop.permute.xlu0 %11342
        %11344 = vset.pattern.permute.xlu0 0
        %11345 = vperm.xlu0 %11344, %v7236
        %v11346 = vpop.permute.xlu0 %11345
        %11347 = vset.pattern.permute.xlu0 0
        %11348 = vperm.xlu0 %11347, %v7285
        %v11349 = vpop.permute.xlu0 %11348
        %11350 = vset.pattern.permute.xlu0 0
        %11351 = vperm.xlu0 %11350, %v7334
        %v11352 = vpop.permute.xlu0 %11351
        %11353 = vset.pattern.permute.xlu0 0
        %11354 = vperm.xlu0 %11353, %v7383
        %v11355 = vpop.permute.xlu0 %11354
        %11356 = vset.pattern.permute.xlu0 0
        %11357 = vperm.xlu0 %11356, %v7432
        %v11358 = vpop.permute.xlu0 %11357
        %11359 = vset.pattern.permute.xlu0 0
        %11360 = vperm.xlu0 %11359, %v7481
        %v11361 = vpop.permute.xlu0 %11360
        %11362 = vset.pattern.permute.xlu0 0
        %11363 = vperm.xlu0 %11362, %v7530
        %v11364 = vpop.permute.xlu0 %11363
        %11365 = vset.pattern.permute.xlu0 0
        %11366 = vperm.xlu0 %11365, %v7579
        %v11367 = vpop.permute.xlu0 %11366
        %11368 = vset.pattern.permute.xlu0 0
        %11369 = vperm.xlu0 %11368, %v7628
        %v11370 = vpop.permute.xlu0 %11369
        %11371 = vset.pattern.permute.xlu0 0
        %11372 = vperm.xlu0 %11371, %v7677
        %v11373 = vpop.permute.xlu0 %11372
        %11374 = vset.pattern.permute.xlu0 0
        %11375 = vperm.xlu0 %11374, %v7726
        %v11376 = vpop.permute.xlu0 %11375
        %11377 = vset.pattern.permute.xlu0 0
        %11378 = vperm.xlu0 %11377, %v7775
        %v11379 = vpop.permute.xlu0 %11378
        %11380 = vset.pattern.permute.xlu0 0
        %11381 = vperm.xlu0 %11380, %v7824
        %v11382 = vpop.permute.xlu0 %11381
        %11383 = vset.pattern.permute.xlu0 0
        %11384 = vperm.xlu0 %11383, %v7873
        %v11385 = vpop.permute.xlu0 %11384
        %11386 = vset.pattern.permute.xlu0 0
        %11387 = vperm.xlu0 %11386, %v7922
        %v11388 = vpop.permute.xlu0 %11387
        %11389 = vset.pattern.permute.xlu0 0
        %11390 = vperm.xlu0 %11389, %v7971
        %v11391 = vpop.permute.xlu0 %11390
        %11392 = vset.pattern.permute.xlu0 0
        %11393 = vperm.xlu0 %11392, %v8020
        %v11394 = vpop.permute.xlu0 %11393
        %11395 = vset.pattern.permute.xlu0 0
        %11396 = vperm.xlu0 %11395, %v8069
        %v11397 = vpop.permute.xlu0 %11396
        %11398 = vset.pattern.permute.xlu0 0
        %11399 = vperm.xlu0 %11398, %v8118
        %v11400 = vpop.permute.xlu0 %11399
        %11401 = vset.pattern.permute.xlu0 0
        %11402 = vperm.xlu0 %11401, %v8167
        %v11403 = vpop.permute.xlu0 %11402
        %11404 = vset.pattern.permute.xlu0 0
        %11405 = vperm.xlu0 %11404, %v8216
        %v11406 = vpop.permute.xlu0 %11405
        %11407 = vset.pattern.permute.xlu0 0
        %11408 = vperm.xlu0 %11407, %v8265
        %v11409 = vpop.permute.xlu0 %11408
        %11410 = vset.pattern.permute.xlu0 0
        %11411 = vperm.xlu0 %11410, %v8314
        %v11412 = vpop.permute.xlu0 %11411
        %11413 = vset.pattern.permute.xlu0 0
        %11414 = vperm.xlu0 %11413, %v8363
        %v11415 = vpop.permute.xlu0 %11414
        %11416 = vset.pattern.permute.xlu0 0
        %11417 = vperm.xlu0 %11416, %v8412
        %v11418 = vpop.permute.xlu0 %11417
        %11419 = vset.pattern.permute.xlu0 0
        %11420 = vperm.xlu0 %11419, %v8461
        %v11421 = vpop.permute.xlu0 %11420
        %11422 = vset.pattern.permute.xlu0 0
        %11423 = vperm.xlu0 %11422, %v8510
        %v11424 = vpop.permute.xlu0 %11423
        %11425 = vset.pattern.permute.xlu0 0
        %11426 = vperm.xlu0 %11425, %v8559
        %v11427 = vpop.permute.xlu0 %11426
        %11428 = vset.pattern.permute.xlu0 0
        %11429 = vperm.xlu0 %11428, %v8608
        %v11430 = vpop.permute.xlu0 %11429
        %11431 = vset.pattern.permute.xlu0 0
        %11432 = vperm.xlu0 %11431, %v8657
        %v11433 = vpop.permute.xlu0 %11432
        %11434 = vset.pattern.permute.xlu0 0
        %11435 = vperm.xlu0 %11434, %v8706
        %v11436 = vpop.permute.xlu0 %11435
        %11437 = vset.pattern.permute.xlu0 0
        %11438 = vperm.xlu0 %11437, %v8755
        %v11439 = vpop.permute.xlu0 %11438
        %11440 = vset.pattern.permute.xlu0 0
        %11441 = vperm.xlu0 %11440, %v8804
        %v11442 = vpop.permute.xlu0 %11441
        %11443 = vset.pattern.permute.xlu0 0
        %11444 = vperm.xlu0 %11443, %v8853
        %v11445 = vpop.permute.xlu0 %11444
        %11446 = vset.pattern.permute.xlu0 0
        %11447 = vperm.xlu0 %11446, %v8902
        %v11448 = vpop.permute.xlu0 %11447
        %11449 = vset.pattern.permute.xlu0 0
        %11450 = vperm.xlu0 %11449, %v8951
        %v11451 = vpop.permute.xlu0 %11450
        %11452 = vset.pattern.permute.xlu0 0
        %11453 = vperm.xlu0 %11452, %v9000
        %v11454 = vpop.permute.xlu0 %11453
        %11455 = vset.pattern.permute.xlu0 0
        %11456 = vperm.xlu0 %11455, %v9049
        %v11457 = vpop.permute.xlu0 %11456
        %11458 = vset.pattern.permute.xlu0 0
        %11459 = vperm.xlu0 %11458, %v9098
        %v11460 = vpop.permute.xlu0 %11459
        %11461 = vset.pattern.permute.xlu0 0
        %11462 = vperm.xlu0 %11461, %v9147
        %v11463 = vpop.permute.xlu0 %11462
        %11464 = vset.pattern.permute.xlu0 0
        %11465 = vperm.xlu0 %11464, %v9196
        %v11466 = vpop.permute.xlu0 %11465
        %11467 = vset.pattern.permute.xlu0 0
        %11468 = vperm.xlu0 %11467, %v9245
        %v11469 = vpop.permute.xlu0 %11468
        %11470 = vset.pattern.permute.xlu0 0
        %11471 = vperm.xlu0 %11470, %v9294
        %v11472 = vpop.permute.xlu0 %11471
        %11473 = vset.pattern.permute.xlu0 0
        %11474 = vperm.xlu0 %11473, %v9343
        %v11475 = vpop.permute.xlu0 %11474
        %11476 = vset.pattern.permute.xlu0 0
        %11477 = vperm.xlu0 %11476, %v9392
        %v11478 = vpop.permute.xlu0 %11477
        %11479 = vset.pattern.permute.xlu0 0
        %11480 = vperm.xlu0 %11479, %v9441
        %v11481 = vpop.permute.xlu0 %11480
        %11482 = vset.pattern.permute.xlu0 0
        %11483 = vperm.xlu0 %11482, %v9490
        %v11484 = vpop.permute.xlu0 %11483
        %11485 = vset.pattern.permute.xlu0 0
        %11486 = vperm.xlu0 %11485, %v9539
        %v11487 = vpop.permute.xlu0 %11486
        %11488 = vset.pattern.permute.xlu0 0
        %11489 = vperm.xlu0 %11488, %v9588
        %v11490 = vpop.permute.xlu0 %11489
        %11491 = vset.pattern.permute.xlu0 0
        %11492 = vperm.xlu0 %11491, %v9637
        %v11493 = vpop.permute.xlu0 %11492
        %11494 = vset.pattern.permute.xlu0 0
        %11495 = vperm.xlu0 %11494, %v9686
        %v11496 = vpop.permute.xlu0 %11495
        %11497 = vset.pattern.permute.xlu0 0
        %11498 = vperm.xlu0 %11497, %v9735
        %v11499 = vpop.permute.xlu0 %11498
        %11500 = vset.pattern.permute.xlu0 0
        %11501 = vperm.xlu0 %11500, %v9784
        %v11502 = vpop.permute.xlu0 %11501
        %11503 = vset.pattern.permute.xlu0 0
        %11504 = vperm.xlu0 %11503, %v9833
        %v11505 = vpop.permute.xlu0 %11504
        %11506 = vset.pattern.permute.xlu0 0
        %11507 = vperm.xlu0 %11506, %v9882
        %v11508 = vpop.permute.xlu0 %11507
        %11509 = vset.pattern.permute.xlu0 0
        %11510 = vperm.xlu0 %11509, %v9931
        %v11511 = vpop.permute.xlu0 %11510
        %11512 = vset.pattern.permute.xlu0 0
        %11513 = vperm.xlu0 %11512, %v9980
        %v11514 = vpop.permute.xlu0 %11513
        %11515 = vset.pattern.permute.xlu0 0
        %11516 = vperm.xlu0 %11515, %v10029
        %v11517 = vpop.permute.xlu0 %11516
        %11518 = vset.pattern.permute.xlu0 0
        %11519 = vperm.xlu0 %11518, %v10078
        %v11520 = vpop.permute.xlu0 %11519
        %11521 = vset.pattern.permute.xlu0 0
        %11522 = vperm.xlu0 %11521, %v10127
        %v11523 = vpop.permute.xlu0 %11522
        %11524 = vset.pattern.permute.xlu0 0
        %11525 = vperm.xlu0 %11524, %v10176
        %v11526 = vpop.permute.xlu0 %11525
        %11527 = vset.pattern.permute.xlu0 0
        %11528 = vperm.xlu0 %11527, %v10225
        %v11529 = vpop.permute.xlu0 %11528
        %11530 = vset.pattern.permute.xlu0 0
        %11531 = vperm.xlu0 %11530, %v10274
        %v11532 = vpop.permute.xlu0 %11531
        %11533 = vset.pattern.permute.xlu0 0
        %11534 = vperm.xlu0 %11533, %v10323
        %v11535 = vpop.permute.xlu0 %11534
        %11536 = vset.pattern.permute.xlu0 0
        %11537 = vperm.xlu0 %11536, %v10372
        %v11538 = vpop.permute.xlu0 %11537
        %11539 = vset.pattern.permute.xlu0 0
        %11540 = vperm.xlu0 %11539, %v10421
        %v11541 = vpop.permute.xlu0 %11540
        %11542 = vset.pattern.permute.xlu0 0
        %11543 = vperm.xlu0 %11542, %v10470
        %v11544 = vpop.permute.xlu0 %11543
        %11545 = vset.pattern.permute.xlu0 0
        %11546 = vperm.xlu0 %11545, %v10519
        %v11547 = vpop.permute.xlu0 %11546
        %11548 = vset.pattern.permute.xlu0 0
        %11549 = vperm.xlu0 %11548, %v10568
        %v11550 = vpop.permute.xlu0 %11549
        %11551 = vset.pattern.permute.xlu0 0
        %11552 = vperm.xlu0 %11551, %v10617
        %v11553 = vpop.permute.xlu0 %11552
        %11554 = vset.pattern.permute.xlu0 0
        %11555 = vperm.xlu0 %11554, %v10666
        %v11556 = vpop.permute.xlu0 %11555
        %11557 = vset.pattern.permute.xlu0 0
        %11558 = vperm.xlu0 %11557, %v10715
        %v11559 = vpop.permute.xlu0 %11558
        %11560 = vset.pattern.permute.xlu0 0
        %11561 = vperm.xlu0 %11560, %v10764
        %v11562 = vpop.permute.xlu0 %11561
        %11563 = vset.pattern.permute.xlu0 0
        %11564 = vperm.xlu0 %11563, %v10813
        %v11565 = vpop.permute.xlu0 %11564
        %11566 = vset.pattern.permute.xlu0 0
        %11567 = vperm.xlu0 %11566, %v10862
        %v11568 = vpop.permute.xlu0 %11567
        %11569 = vset.pattern.permute.xlu0 0
        %11570 = vperm.xlu0 %11569, %v10911
        %v11571 = vpop.permute.xlu0 %11570
        %11572 = vset.pattern.permute.xlu0 0
        %11573 = vperm.xlu0 %11572, %v10960
        %v11574 = vpop.permute.xlu0 %11573
        %11575 = vset.pattern.permute.xlu0 0
        %11576 = vperm.xlu0 %11575, %v11009
        %v11577 = vpop.permute.xlu0 %11576
        %11578 = vset.pattern.permute.xlu0 0
        %11579 = vperm.xlu0 %11578, %v11058
        %v11580 = vpop.permute.xlu0 %11579
        %11581 = vset.pattern.permute.xlu0 0
        %11582 = vperm.xlu0 %11581, %v11107
        %v11583 = vpop.permute.xlu0 %11582
        %11584 = vset.pattern.permute.xlu0 0
        %11585 = vperm.xlu0 %11584, %v11156
        %v11586 = vpop.permute.xlu0 %11585
        %11587 = vset.pattern.permute.xlu0 0
        %11588 = vperm.xlu0 %11587, %v11205
        %v11589 = vpop.permute.xlu0 %11588
        %v11590 = vlaneseq
        %v11591 = vand.u32 %v11590, 127
        %v11592 = vlaneseq
        %v11593 = vshrl.u32 %v11592, 7
        %v11594 = vsub.s32 %v11591, %v11593
        %v11595 = vrot.slane %v11208, %v11594
        %v11596 = vadd.s32 %v11591, 4294967288
        %v11597 = vlaneseq
        %v11598 = vshrl.u32 %v11597, 7
        %v11599 = vsub.s32 %v11596, %v11598
        %v11600 = vrot.slane %v11211, %v11599
        %vm11601 = vcmask 130112
        %v11602 = vsel %vm11601, %v11600, %v11595
        %v11603 = vadd.s32 %v11591, 4294967280
        %v11604 = vlaneseq
        %v11605 = vshrl.u32 %v11604, 7
        %v11606 = vsub.s32 %v11603, %v11605
        %v11607 = vrot.slane %v11214, %v11606
        %vm11608 = vcmask 195712
        %v11609 = vsel %vm11608, %v11607, %v11602
        %v11610 = vadd.s32 %v11591, 4294967272
        %v11611 = vlaneseq
        %v11612 = vshrl.u32 %v11611, 7
        %v11613 = vsub.s32 %v11610, %v11612
        %v11614 = vrot.slane %v11217, %v11613
        %vm11615 = vcmask 261312
        %v11616 = vsel %vm11615, %v11614, %v11609
        %v11617 = vadd.s32 %v11591, 4294967264
        %v11618 = vlaneseq
        %v11619 = vshrl.u32 %v11618, 7
        %v11620 = vsub.s32 %v11617, %v11619
        %v11621 = vrot.slane %v11220, %v11620
        %vm11622 = vcmask 326912
        %v11623 = vsel %vm11622, %v11621, %v11616
        %v11624 = vadd.s32 %v11591, 4294967256
        %v11625 = vlaneseq
        %v11626 = vshrl.u32 %v11625, 7
        %v11627 = vsub.s32 %v11624, %v11626
        %v11628 = vrot.slane %v11223, %v11627
        %vm11629 = vcmask 392512
        %v11630 = vsel %vm11629, %v11628, %v11623
        %v11631 = vadd.s32 %v11591, 4294967248
        %v11632 = vlaneseq
        %v11633 = vshrl.u32 %v11632, 7
        %v11634 = vsub.s32 %v11631, %v11633
        %v11635 = vrot.slane %v11226, %v11634
        %vm11636 = vcmask 458112
        %v11637 = vsel %vm11636, %v11635, %v11630
        %v11638 = vadd.s32 %v11591, 4294967240
        %v11639 = vlaneseq
        %v11640 = vshrl.u32 %v11639, 7
        %v11641 = vsub.s32 %v11638, %v11640
        %v11642 = vrot.slane %v11229, %v11641
        %vm11643 = vcmask 523712
        %v11644 = vsel %vm11643, %v11642, %v11637
        %v11645 = vadd.s32 %v11591, 4294967232
        %v11646 = vlaneseq
        %v11647 = vshrl.u32 %v11646, 7
        %v11648 = vsub.s32 %v11645, %v11647
        %v11649 = vrot.slane %v11232, %v11648
        %vm11650 = vcmask 589312
        %v11651 = vsel %vm11650, %v11649, %v11644
        %v11652 = vadd.s32 %v11591, 4294967224
        %v11653 = vlaneseq
        %v11654 = vshrl.u32 %v11653, 7
        %v11655 = vsub.s32 %v11652, %v11654
        %v11656 = vrot.slane %v11235, %v11655
        %vm11657 = vcmask 654912
        %v11658 = vsel %vm11657, %v11656, %v11651
        %v11659 = vadd.s32 %v11591, 4294967216
        %v11660 = vlaneseq
        %v11661 = vshrl.u32 %v11660, 7
        %v11662 = vsub.s32 %v11659, %v11661
        %v11663 = vrot.slane %v11238, %v11662
        %vm11664 = vcmask 720512
        %v11665 = vsel %vm11664, %v11663, %v11658
        %v11666 = vadd.s32 %v11591, 4294967208
        %v11667 = vlaneseq
        %v11668 = vshrl.u32 %v11667, 7
        %v11669 = vsub.s32 %v11666, %v11668
        %v11670 = vrot.slane %v11241, %v11669
        %vm11671 = vcmask 786112
        %v11672 = vsel %vm11671, %v11670, %v11665
        %v11673 = vadd.s32 %v11591, 4294967200
        %v11674 = vlaneseq
        %v11675 = vshrl.u32 %v11674, 7
        %v11676 = vsub.s32 %v11673, %v11675
        %v11677 = vrot.slane %v11244, %v11676
        %vm11678 = vcmask 851712
        %v11679 = vsel %vm11678, %v11677, %v11672
        %v11680 = vadd.s32 %v11591, 4294967192
        %v11681 = vlaneseq
        %v11682 = vshrl.u32 %v11681, 7
        %v11683 = vsub.s32 %v11680, %v11682
        %v11684 = vrot.slane %v11247, %v11683
        %vm11685 = vcmask 917312
        %v11686 = vsel %vm11685, %v11684, %v11679
        %v11687 = vadd.s32 %v11591, 4294967184
        %v11688 = vlaneseq
        %v11689 = vshrl.u32 %v11688, 7
        %v11690 = vsub.s32 %v11687, %v11689
        %v11691 = vrot.slane %v11250, %v11690
        %vm11692 = vcmask 982912
        %v11693 = vsel %vm11692, %v11691, %v11686
        %v11694 = vadd.s32 %v11591, 4294967176
        %v11695 = vlaneseq
        %v11696 = vshrl.u32 %v11695, 7
        %v11697 = vsub.s32 %v11694, %v11696
        %v11698 = vrot.slane %v11253, %v11697
        %vm11699 = vcmask 1048512
        %v11700 = vsel %vm11699, %v11698, %v11693
        %v11701 = vlaneseq
        %v11702 = vshrl.u32 %v11701, 7
        %v11703 = vsub.s32 %v11591, %v11702
        %v11704 = vrot.slane %v11256, %v11703
        %v11705 = vlaneseq
        %v11706 = vshrl.u32 %v11705, 7
        %v11707 = vsub.s32 %v11596, %v11706
        %v11708 = vrot.slane %v11259, %v11707
        %v11709 = vsel %vm11601, %v11708, %v11704
        %v11710 = vlaneseq
        %v11711 = vshrl.u32 %v11710, 7
        %v11712 = vsub.s32 %v11603, %v11711
        %v11713 = vrot.slane %v11262, %v11712
        %v11714 = vsel %vm11608, %v11713, %v11709
        %v11715 = vlaneseq
        %v11716 = vshrl.u32 %v11715, 7
        %v11717 = vsub.s32 %v11610, %v11716
        %v11718 = vrot.slane %v11265, %v11717
        %v11719 = vsel %vm11615, %v11718, %v11714
        %v11720 = vlaneseq
        %v11721 = vshrl.u32 %v11720, 7
        %v11722 = vsub.s32 %v11617, %v11721
        %v11723 = vrot.slane %v11268, %v11722
        %v11724 = vsel %vm11622, %v11723, %v11719
        %v11725 = vlaneseq
        %v11726 = vshrl.u32 %v11725, 7
        %v11727 = vsub.s32 %v11624, %v11726
        %v11728 = vrot.slane %v11271, %v11727
        %v11729 = vsel %vm11629, %v11728, %v11724
        %v11730 = vlaneseq
        %v11731 = vshrl.u32 %v11730, 7
        %v11732 = vsub.s32 %v11631, %v11731
        %v11733 = vrot.slane %v11274, %v11732
        %v11734 = vsel %vm11636, %v11733, %v11729
        %v11735 = vlaneseq
        %v11736 = vshrl.u32 %v11735, 7
        %v11737 = vsub.s32 %v11638, %v11736
        %v11738 = vrot.slane %v11277, %v11737
        %v11739 = vsel %vm11643, %v11738, %v11734
        %v11740 = vlaneseq
        %v11741 = vshrl.u32 %v11740, 7
        %v11742 = vsub.s32 %v11645, %v11741
        %v11743 = vrot.slane %v11280, %v11742
        %v11744 = vsel %vm11650, %v11743, %v11739
        %v11745 = vlaneseq
        %v11746 = vshrl.u32 %v11745, 7
        %v11747 = vsub.s32 %v11652, %v11746
        %v11748 = vrot.slane %v11283, %v11747
        %v11749 = vsel %vm11657, %v11748, %v11744
        %v11750 = vlaneseq
        %v11751 = vshrl.u32 %v11750, 7
        %v11752 = vsub.s32 %v11659, %v11751
        %v11753 = vrot.slane %v11286, %v11752
        %v11754 = vsel %vm11664, %v11753, %v11749
        %v11755 = vlaneseq
        %v11756 = vshrl.u32 %v11755, 7
        %v11757 = vsub.s32 %v11666, %v11756
        %v11758 = vrot.slane %v11289, %v11757
        %v11759 = vsel %vm11671, %v11758, %v11754
        %v11760 = vlaneseq
        %v11761 = vshrl.u32 %v11760, 7
        %v11762 = vsub.s32 %v11673, %v11761
        %v11763 = vrot.slane %v11292, %v11762
        %v11764 = vsel %vm11678, %v11763, %v11759
        %v11765 = vlaneseq
        %v11766 = vshrl.u32 %v11765, 7
        %v11767 = vsub.s32 %v11680, %v11766
        %v11768 = vrot.slane %v11295, %v11767
        %v11769 = vsel %vm11685, %v11768, %v11764
        %v11770 = vlaneseq
        %v11771 = vshrl.u32 %v11770, 7
        %v11772 = vsub.s32 %v11687, %v11771
        %v11773 = vrot.slane %v11298, %v11772
        %v11774 = vsel %vm11692, %v11773, %v11769
        %v11775 = vlaneseq
        %v11776 = vshrl.u32 %v11775, 7
        %v11777 = vsub.s32 %v11694, %v11776
        %v11778 = vrot.slane %v11301, %v11777
        %v11779 = vsel %vm11699, %v11778, %v11774
        %v11780 = vlaneseq
        %v11781 = vshrl.u32 %v11780, 7
        %v11782 = vsub.s32 %v11591, %v11781
        %v11783 = vrot.slane %v11304, %v11782
        %v11784 = vlaneseq
        %v11785 = vshrl.u32 %v11784, 7
        %v11786 = vsub.s32 %v11596, %v11785
        %v11787 = vrot.slane %v11307, %v11786
        %v11788 = vsel %vm11601, %v11787, %v11783
        %v11789 = vlaneseq
        %v11790 = vshrl.u32 %v11789, 7
        %v11791 = vsub.s32 %v11603, %v11790
        %v11792 = vrot.slane %v11310, %v11791
        %v11793 = vsel %vm11608, %v11792, %v11788
        %v11794 = vlaneseq
        %v11795 = vshrl.u32 %v11794, 7
        %v11796 = vsub.s32 %v11610, %v11795
        %v11797 = vrot.slane %v11313, %v11796
        %v11798 = vsel %vm11615, %v11797, %v11793
        %v11799 = vlaneseq
        %v11800 = vshrl.u32 %v11799, 7
        %v11801 = vsub.s32 %v11617, %v11800
        %v11802 = vrot.slane %v11316, %v11801
        %v11803 = vsel %vm11622, %v11802, %v11798
        %v11804 = vlaneseq
        %v11805 = vshrl.u32 %v11804, 7
        %v11806 = vsub.s32 %v11624, %v11805
        %v11807 = vrot.slane %v11319, %v11806
        %v11808 = vsel %vm11629, %v11807, %v11803
        %v11809 = vlaneseq
        %v11810 = vshrl.u32 %v11809, 7
        %v11811 = vsub.s32 %v11631, %v11810
        %v11812 = vrot.slane %v11322, %v11811
        %v11813 = vsel %vm11636, %v11812, %v11808
        %v11814 = vlaneseq
        %v11815 = vshrl.u32 %v11814, 7
        %v11816 = vsub.s32 %v11638, %v11815
        %v11817 = vrot.slane %v11325, %v11816
        %v11818 = vsel %vm11643, %v11817, %v11813
        %v11819 = vlaneseq
        %v11820 = vshrl.u32 %v11819, 7
        %v11821 = vsub.s32 %v11645, %v11820
        %v11822 = vrot.slane %v11328, %v11821
        %v11823 = vsel %vm11650, %v11822, %v11818
        %v11824 = vlaneseq
        %v11825 = vshrl.u32 %v11824, 7
        %v11826 = vsub.s32 %v11652, %v11825
        %v11827 = vrot.slane %v11331, %v11826
        %v11828 = vsel %vm11657, %v11827, %v11823
        %v11829 = vlaneseq
        %v11830 = vshrl.u32 %v11829, 7
        %v11831 = vsub.s32 %v11659, %v11830
        %v11832 = vrot.slane %v11334, %v11831
        %v11833 = vsel %vm11664, %v11832, %v11828
        %v11834 = vlaneseq
        %v11835 = vshrl.u32 %v11834, 7
        %v11836 = vsub.s32 %v11666, %v11835
        %v11837 = vrot.slane %v11337, %v11836
        %v11838 = vsel %vm11671, %v11837, %v11833
        %v11839 = vlaneseq
        %v11840 = vshrl.u32 %v11839, 7
        %v11841 = vsub.s32 %v11673, %v11840
        %v11842 = vrot.slane %v11340, %v11841
        %v11843 = vsel %vm11678, %v11842, %v11838
        %v11844 = vlaneseq
        %v11845 = vshrl.u32 %v11844, 7
        %v11846 = vsub.s32 %v11680, %v11845
        %v11847 = vrot.slane %v11343, %v11846
        %v11848 = vsel %vm11685, %v11847, %v11843
        %v11849 = vlaneseq
        %v11850 = vshrl.u32 %v11849, 7
        %v11851 = vsub.s32 %v11687, %v11850
        %v11852 = vrot.slane %v11346, %v11851
        %v11853 = vsel %vm11692, %v11852, %v11848
        %v11854 = vlaneseq
        %v11855 = vshrl.u32 %v11854, 7
        %v11856 = vsub.s32 %v11694, %v11855
        %v11857 = vrot.slane %v11349, %v11856
        %v11858 = vsel %vm11699, %v11857, %v11853
        %v11859 = vlaneseq
        %v11860 = vshrl.u32 %v11859, 7
        %v11861 = vsub.s32 %v11591, %v11860
        %v11862 = vrot.slane %v11352, %v11861
        %v11863 = vlaneseq
        %v11864 = vshrl.u32 %v11863, 7
        %v11865 = vsub.s32 %v11596, %v11864
        %v11866 = vrot.slane %v11355, %v11865
        %v11867 = vsel %vm11601, %v11866, %v11862
        %v11868 = vlaneseq
        %v11869 = vshrl.u32 %v11868, 7
        %v11870 = vsub.s32 %v11603, %v11869
        %v11871 = vrot.slane %v11358, %v11870
        %v11872 = vsel %vm11608, %v11871, %v11867
        %v11873 = vlaneseq
        %v11874 = vshrl.u32 %v11873, 7
        %v11875 = vsub.s32 %v11610, %v11874
        %v11876 = vrot.slane %v11361, %v11875
        %v11877 = vsel %vm11615, %v11876, %v11872
        %v11878 = vlaneseq
        %v11879 = vshrl.u32 %v11878, 7
        %v11880 = vsub.s32 %v11617, %v11879
        %v11881 = vrot.slane %v11364, %v11880
        %v11882 = vsel %vm11622, %v11881, %v11877
        %v11883 = vlaneseq
        %v11884 = vshrl.u32 %v11883, 7
        %v11885 = vsub.s32 %v11624, %v11884
        %v11886 = vrot.slane %v11367, %v11885
        %v11887 = vsel %vm11629, %v11886, %v11882
        %v11888 = vlaneseq
        %v11889 = vshrl.u32 %v11888, 7
        %v11890 = vsub.s32 %v11631, %v11889
        %v11891 = vrot.slane %v11370, %v11890
        %v11892 = vsel %vm11636, %v11891, %v11887
        %v11893 = vlaneseq
        %v11894 = vshrl.u32 %v11893, 7
        %v11895 = vsub.s32 %v11638, %v11894
        %v11896 = vrot.slane %v11373, %v11895
        %v11897 = vsel %vm11643, %v11896, %v11892
        %v11898 = vlaneseq
        %v11899 = vshrl.u32 %v11898, 7
        %v11900 = vsub.s32 %v11645, %v11899
        %v11901 = vrot.slane %v11376, %v11900
        %v11902 = vsel %vm11650, %v11901, %v11897
        %v11903 = vlaneseq
        %v11904 = vshrl.u32 %v11903, 7
        %v11905 = vsub.s32 %v11652, %v11904
        %v11906 = vrot.slane %v11379, %v11905
        %v11907 = vsel %vm11657, %v11906, %v11902
        %v11908 = vlaneseq
        %v11909 = vshrl.u32 %v11908, 7
        %v11910 = vsub.s32 %v11659, %v11909
        %v11911 = vrot.slane %v11382, %v11910
        %v11912 = vsel %vm11664, %v11911, %v11907
        %v11913 = vlaneseq
        %v11914 = vshrl.u32 %v11913, 7
        %v11915 = vsub.s32 %v11666, %v11914
        %v11916 = vrot.slane %v11385, %v11915
        %v11917 = vsel %vm11671, %v11916, %v11912
        %v11918 = vlaneseq
        %v11919 = vshrl.u32 %v11918, 7
        %v11920 = vsub.s32 %v11673, %v11919
        %v11921 = vrot.slane %v11388, %v11920
        %v11922 = vsel %vm11678, %v11921, %v11917
        %v11923 = vlaneseq
        %v11924 = vshrl.u32 %v11923, 7
        %v11925 = vsub.s32 %v11680, %v11924
        %v11926 = vrot.slane %v11391, %v11925
        %v11927 = vsel %vm11685, %v11926, %v11922
        %v11928 = vlaneseq
        %v11929 = vshrl.u32 %v11928, 7
        %v11930 = vsub.s32 %v11687, %v11929
        %v11931 = vrot.slane %v11394, %v11930
        %v11932 = vsel %vm11692, %v11931, %v11927
        %v11933 = vlaneseq
        %v11934 = vshrl.u32 %v11933, 7
        %v11935 = vsub.s32 %v11694, %v11934
        %v11936 = vrot.slane %v11397, %v11935
        %v11937 = vsel %vm11699, %v11936, %v11932
        %v11938 = vlaneseq
        %v11939 = vshrl.u32 %v11938, 7
        %v11940 = vsub.s32 %v11591, %v11939
        %v11941 = vrot.slane %v11400, %v11940
        %v11942 = vlaneseq
        %v11943 = vshrl.u32 %v11942, 7
        %v11944 = vsub.s32 %v11596, %v11943
        %v11945 = vrot.slane %v11403, %v11944
        %v11946 = vsel %vm11601, %v11945, %v11941
        %v11947 = vlaneseq
        %v11948 = vshrl.u32 %v11947, 7
        %v11949 = vsub.s32 %v11603, %v11948
        %v11950 = vrot.slane %v11406, %v11949
        %v11951 = vsel %vm11608, %v11950, %v11946
        %v11952 = vlaneseq
        %v11953 = vshrl.u32 %v11952, 7
        %v11954 = vsub.s32 %v11610, %v11953
        %v11955 = vrot.slane %v11409, %v11954
        %v11956 = vsel %vm11615, %v11955, %v11951
        %v11957 = vlaneseq
        %v11958 = vshrl.u32 %v11957, 7
        %v11959 = vsub.s32 %v11617, %v11958
        %v11960 = vrot.slane %v11412, %v11959
        %v11961 = vsel %vm11622, %v11960, %v11956
        %v11962 = vlaneseq
        %v11963 = vshrl.u32 %v11962, 7
        %v11964 = vsub.s32 %v11624, %v11963
        %v11965 = vrot.slane %v11415, %v11964
        %v11966 = vsel %vm11629, %v11965, %v11961
        %v11967 = vlaneseq
        %v11968 = vshrl.u32 %v11967, 7
        %v11969 = vsub.s32 %v11631, %v11968
        %v11970 = vrot.slane %v11418, %v11969
        %v11971 = vsel %vm11636, %v11970, %v11966
        %v11972 = vlaneseq
        %v11973 = vshrl.u32 %v11972, 7
        %v11974 = vsub.s32 %v11638, %v11973
        %v11975 = vrot.slane %v11421, %v11974
        %v11976 = vsel %vm11643, %v11975, %v11971
        %v11977 = vlaneseq
        %v11978 = vshrl.u32 %v11977, 7
        %v11979 = vsub.s32 %v11645, %v11978
        %v11980 = vrot.slane %v11424, %v11979
        %v11981 = vsel %vm11650, %v11980, %v11976
        %v11982 = vlaneseq
        %v11983 = vshrl.u32 %v11982, 7
        %v11984 = vsub.s32 %v11652, %v11983
        %v11985 = vrot.slane %v11427, %v11984
        %v11986 = vsel %vm11657, %v11985, %v11981
        %v11987 = vlaneseq
        %v11988 = vshrl.u32 %v11987, 7
        %v11989 = vsub.s32 %v11659, %v11988
        %v11990 = vrot.slane %v11430, %v11989
        %v11991 = vsel %vm11664, %v11990, %v11986
        %v11992 = vlaneseq
        %v11993 = vshrl.u32 %v11992, 7
        %v11994 = vsub.s32 %v11666, %v11993
        %v11995 = vrot.slane %v11433, %v11994
        %v11996 = vsel %vm11671, %v11995, %v11991
        %v11997 = vlaneseq
        %v11998 = vshrl.u32 %v11997, 7
        %v11999 = vsub.s32 %v11673, %v11998
        %v12000 = vrot.slane %v11436, %v11999
        %v12001 = vsel %vm11678, %v12000, %v11996
        %v12002 = vlaneseq
        %v12003 = vshrl.u32 %v12002, 7
        %v12004 = vsub.s32 %v11680, %v12003
        %v12005 = vrot.slane %v11439, %v12004
        %v12006 = vsel %vm11685, %v12005, %v12001
        %v12007 = vlaneseq
        %v12008 = vshrl.u32 %v12007, 7
        %v12009 = vsub.s32 %v11687, %v12008
        %v12010 = vrot.slane %v11442, %v12009
        %v12011 = vsel %vm11692, %v12010, %v12006
        %v12012 = vlaneseq
        %v12013 = vshrl.u32 %v12012, 7
        %v12014 = vsub.s32 %v11694, %v12013
        %v12015 = vrot.slane %v11445, %v12014
        %v12016 = vsel %vm11699, %v12015, %v12011
        %v12017 = vlaneseq
        %v12018 = vshrl.u32 %v12017, 7
        %v12019 = vsub.s32 %v11591, %v12018
        %v12020 = vrot.slane %v11448, %v12019
        %v12021 = vlaneseq
        %v12022 = vshrl.u32 %v12021, 7
        %v12023 = vsub.s32 %v11596, %v12022
        %v12024 = vrot.slane %v11451, %v12023
        %v12025 = vsel %vm11601, %v12024, %v12020
        %v12026 = vlaneseq
        %v12027 = vshrl.u32 %v12026, 7
        %v12028 = vsub.s32 %v11603, %v12027
        %v12029 = vrot.slane %v11454, %v12028
        %v12030 = vsel %vm11608, %v12029, %v12025
        %v12031 = vlaneseq
        %v12032 = vshrl.u32 %v12031, 7
        %v12033 = vsub.s32 %v11610, %v12032
        %v12034 = vrot.slane %v11457, %v12033
        %v12035 = vsel %vm11615, %v12034, %v12030
        %v12036 = vlaneseq
        %v12037 = vshrl.u32 %v12036, 7
        %v12038 = vsub.s32 %v11617, %v12037
        %v12039 = vrot.slane %v11460, %v12038
        %v12040 = vsel %vm11622, %v12039, %v12035
        %v12041 = vlaneseq
        %v12042 = vshrl.u32 %v12041, 7
        %v12043 = vsub.s32 %v11624, %v12042
        %v12044 = vrot.slane %v11463, %v12043
        %v12045 = vsel %vm11629, %v12044, %v12040
        %v12046 = vlaneseq
        %v12047 = vshrl.u32 %v12046, 7
        %v12048 = vsub.s32 %v11631, %v12047
        %v12049 = vrot.slane %v11466, %v12048
        %v12050 = vsel %vm11636, %v12049, %v12045
        %v12051 = vlaneseq
        %v12052 = vshrl.u32 %v12051, 7
        %v12053 = vsub.s32 %v11638, %v12052
        %v12054 = vrot.slane %v11469, %v12053
        %v12055 = vsel %vm11643, %v12054, %v12050
        %v12056 = vlaneseq
        %v12057 = vshrl.u32 %v12056, 7
        %v12058 = vsub.s32 %v11645, %v12057
        %v12059 = vrot.slane %v11472, %v12058
        %v12060 = vsel %vm11650, %v12059, %v12055
        %v12061 = vlaneseq
        %v12062 = vshrl.u32 %v12061, 7
        %v12063 = vsub.s32 %v11652, %v12062
        %v12064 = vrot.slane %v11475, %v12063
        %v12065 = vsel %vm11657, %v12064, %v12060
        %v12066 = vlaneseq
        %v12067 = vshrl.u32 %v12066, 7
        %v12068 = vsub.s32 %v11659, %v12067
        %v12069 = vrot.slane %v11478, %v12068
        %v12070 = vsel %vm11664, %v12069, %v12065
        %v12071 = vlaneseq
        %v12072 = vshrl.u32 %v12071, 7
        %v12073 = vsub.s32 %v11666, %v12072
        %v12074 = vrot.slane %v11481, %v12073
        %v12075 = vsel %vm11671, %v12074, %v12070
        %v12076 = vlaneseq
        %v12077 = vshrl.u32 %v12076, 7
        %v12078 = vsub.s32 %v11673, %v12077
        %v12079 = vrot.slane %v11484, %v12078
        %v12080 = vsel %vm11678, %v12079, %v12075
        %v12081 = vlaneseq
        %v12082 = vshrl.u32 %v12081, 7
        %v12083 = vsub.s32 %v11680, %v12082
        %v12084 = vrot.slane %v11487, %v12083
        %v12085 = vsel %vm11685, %v12084, %v12080
        %v12086 = vlaneseq
        %v12087 = vshrl.u32 %v12086, 7
        %v12088 = vsub.s32 %v11687, %v12087
        %v12089 = vrot.slane %v11490, %v12088
        %v12090 = vsel %vm11692, %v12089, %v12085
        %v12091 = vlaneseq
        %v12092 = vshrl.u32 %v12091, 7
        %v12093 = vsub.s32 %v11694, %v12092
        %v12094 = vrot.slane %v11493, %v12093
        %v12095 = vsel %vm11699, %v12094, %v12090
        %v12096 = vlaneseq
        %v12097 = vshrl.u32 %v12096, 7
        %v12098 = vsub.s32 %v11591, %v12097
        %v12099 = vrot.slane %v11496, %v12098
        %v12100 = vlaneseq
        %v12101 = vshrl.u32 %v12100, 7
        %v12102 = vsub.s32 %v11596, %v12101
        %v12103 = vrot.slane %v11499, %v12102
        %v12104 = vsel %vm11601, %v12103, %v12099
        %v12105 = vlaneseq
        %v12106 = vshrl.u32 %v12105, 7
        %v12107 = vsub.s32 %v11603, %v12106
        %v12108 = vrot.slane %v11502, %v12107
        %v12109 = vsel %vm11608, %v12108, %v12104
        %v12110 = vlaneseq
        %v12111 = vshrl.u32 %v12110, 7
        %v12112 = vsub.s32 %v11610, %v12111
        %v12113 = vrot.slane %v11505, %v12112
        %v12114 = vsel %vm11615, %v12113, %v12109
        %v12115 = vlaneseq
        %v12116 = vshrl.u32 %v12115, 7
        %v12117 = vsub.s32 %v11617, %v12116
        %v12118 = vrot.slane %v11508, %v12117
        %v12119 = vsel %vm11622, %v12118, %v12114
        %v12120 = vlaneseq
        %v12121 = vshrl.u32 %v12120, 7
        %v12122 = vsub.s32 %v11624, %v12121
        %v12123 = vrot.slane %v11511, %v12122
        %v12124 = vsel %vm11629, %v12123, %v12119
        %v12125 = vlaneseq
        %v12126 = vshrl.u32 %v12125, 7
        %v12127 = vsub.s32 %v11631, %v12126
        %v12128 = vrot.slane %v11514, %v12127
        %v12129 = vsel %vm11636, %v12128, %v12124
        %v12130 = vlaneseq
        %v12131 = vshrl.u32 %v12130, 7
        %v12132 = vsub.s32 %v11638, %v12131
        %v12133 = vrot.slane %v11517, %v12132
        %v12134 = vsel %vm11643, %v12133, %v12129
        %v12135 = vlaneseq
        %v12136 = vshrl.u32 %v12135, 7
        %v12137 = vsub.s32 %v11645, %v12136
        %v12138 = vrot.slane %v11520, %v12137
        %v12139 = vsel %vm11650, %v12138, %v12134
        %v12140 = vlaneseq
        %v12141 = vshrl.u32 %v12140, 7
        %v12142 = vsub.s32 %v11652, %v12141
        %v12143 = vrot.slane %v11523, %v12142
        %v12144 = vsel %vm11657, %v12143, %v12139
        %v12145 = vlaneseq
        %v12146 = vshrl.u32 %v12145, 7
        %v12147 = vsub.s32 %v11659, %v12146
        %v12148 = vrot.slane %v11526, %v12147
        %v12149 = vsel %vm11664, %v12148, %v12144
        %v12150 = vlaneseq
        %v12151 = vshrl.u32 %v12150, 7
        %v12152 = vsub.s32 %v11666, %v12151
        %v12153 = vrot.slane %v11529, %v12152
        %v12154 = vsel %vm11671, %v12153, %v12149
        %v12155 = vlaneseq
        %v12156 = vshrl.u32 %v12155, 7
        %v12157 = vsub.s32 %v11673, %v12156
        %v12158 = vrot.slane %v11532, %v12157
        %v12159 = vsel %vm11678, %v12158, %v12154
        %v12160 = vlaneseq
        %v12161 = vshrl.u32 %v12160, 7
        %v12162 = vsub.s32 %v11680, %v12161
        %v12163 = vrot.slane %v11535, %v12162
        %v12164 = vsel %vm11685, %v12163, %v12159
        %v12165 = vlaneseq
        %v12166 = vshrl.u32 %v12165, 7
        %v12167 = vsub.s32 %v11687, %v12166
        %v12168 = vrot.slane %v11538, %v12167
        %v12169 = vsel %vm11692, %v12168, %v12164
        %v12170 = vlaneseq
        %v12171 = vshrl.u32 %v12170, 7
        %v12172 = vsub.s32 %v11694, %v12171
        %v12173 = vrot.slane %v11541, %v12172
        %v12174 = vsel %vm11699, %v12173, %v12169
        %v12175 = vlaneseq
        %v12176 = vshrl.u32 %v12175, 7
        %v12177 = vsub.s32 %v11591, %v12176
        %v12178 = vrot.slane %v11544, %v12177
        %v12179 = vlaneseq
        %v12180 = vshrl.u32 %v12179, 7
        %v12181 = vsub.s32 %v11596, %v12180
        %v12182 = vrot.slane %v11547, %v12181
        %v12183 = vsel %vm11601, %v12182, %v12178
        %v12184 = vlaneseq
        %v12185 = vshrl.u32 %v12184, 7
        %v12186 = vsub.s32 %v11603, %v12185
        %v12187 = vrot.slane %v11550, %v12186
        %v12188 = vsel %vm11608, %v12187, %v12183
        %v12189 = vlaneseq
        %v12190 = vshrl.u32 %v12189, 7
        %v12191 = vsub.s32 %v11610, %v12190
        %v12192 = vrot.slane %v11553, %v12191
        %v12193 = vsel %vm11615, %v12192, %v12188
        %v12194 = vlaneseq
        %v12195 = vshrl.u32 %v12194, 7
        %v12196 = vsub.s32 %v11617, %v12195
        %v12197 = vrot.slane %v11556, %v12196
        %v12198 = vsel %vm11622, %v12197, %v12193
        %v12199 = vlaneseq
        %v12200 = vshrl.u32 %v12199, 7
        %v12201 = vsub.s32 %v11624, %v12200
        %v12202 = vrot.slane %v11559, %v12201
        %v12203 = vsel %vm11629, %v12202, %v12198
        %v12204 = vlaneseq
        %v12205 = vshrl.u32 %v12204, 7
        %v12206 = vsub.s32 %v11631, %v12205
        %v12207 = vrot.slane %v11562, %v12206
        %v12208 = vsel %vm11636, %v12207, %v12203
        %v12209 = vlaneseq
        %v12210 = vshrl.u32 %v12209, 7
        %v12211 = vsub.s32 %v11638, %v12210
        %v12212 = vrot.slane %v11565, %v12211
        %v12213 = vsel %vm11643, %v12212, %v12208
        %v12214 = vlaneseq
        %v12215 = vshrl.u32 %v12214, 7
        %v12216 = vsub.s32 %v11645, %v12215
        %v12217 = vrot.slane %v11568, %v12216
        %v12218 = vsel %vm11650, %v12217, %v12213
        %v12219 = vlaneseq
        %v12220 = vshrl.u32 %v12219, 7
        %v12221 = vsub.s32 %v11652, %v12220
        %v12222 = vrot.slane %v11571, %v12221
        %v12223 = vsel %vm11657, %v12222, %v12218
        %v12224 = vlaneseq
        %v12225 = vshrl.u32 %v12224, 7
        %v12226 = vsub.s32 %v11659, %v12225
        %v12227 = vrot.slane %v11574, %v12226
        %v12228 = vsel %vm11664, %v12227, %v12223
        %v12229 = vlaneseq
        %v12230 = vshrl.u32 %v12229, 7
        %v12231 = vsub.s32 %v11666, %v12230
        %v12232 = vrot.slane %v11577, %v12231
        %v12233 = vsel %vm11671, %v12232, %v12228
        %v12234 = vlaneseq
        %v12235 = vshrl.u32 %v12234, 7
        %v12236 = vsub.s32 %v11673, %v12235
        %v12237 = vrot.slane %v11580, %v12236
        %v12238 = vsel %vm11678, %v12237, %v12233
        %v12239 = vlaneseq
        %v12240 = vshrl.u32 %v12239, 7
        %v12241 = vsub.s32 %v11680, %v12240
        %v12242 = vrot.slane %v11583, %v12241
        %v12243 = vsel %vm11685, %v12242, %v12238
        %v12244 = vlaneseq
        %v12245 = vshrl.u32 %v12244, 7
        %v12246 = vsub.s32 %v11687, %v12245
        %v12247 = vrot.slane %v11586, %v12246
        %v12248 = vsel %vm11692, %v12247, %v12243
        %v12249 = vlaneseq
        %v12250 = vshrl.u32 %v12249, 7
        %v12251 = vsub.s32 %v11694, %v12250
        %v12252 = vrot.slane %v11589, %v12251
        %v12253 = vsel %vm11699, %v12252, %v12248
        %v12254 = vcombine.low %v11700, %v11779
        %v12255 = vcombine.low %v11858, %v11937
        %v12256 = vcombine.low %v12016, %v12095
        %v12257 = vcombine.low %v12174, %v12253
        %v12259 = vunpack.c.l.s4 1966171168
        %v12260 = vunpack.c.0.s8 %v12259
        %v12261 = vlaneseq
        %v12262 = vshrl.u32 %v12261, 7
        %v12263 = vsub.s32 %v12260, %v12262
        %v12264 = vrot.slane %v12254, %v12263
        %v12266 = vunpack.c.l.s4 1966171168
        %v12267 = vunpack.c.0.s8 %v12266
        %v12268 = vlaneseq
        %v12269 = vshrl.u32 %v12268, 7
        %v12270 = vsub.s32 %v12267, %v12269
        %v12271 = vrot.slane %v12255, %v12270
        %v12273 = vunpack.c.l.s4 1966171168
        %v12274 = vunpack.c.0.s8 %v12273
        %v12275 = vlaneseq
        %v12276 = vshrl.u32 %v12275, 7
        %v12277 = vsub.s32 %v12274, %v12276
        %v12278 = vrot.slane %v12256, %v12277
        %v12280 = vunpack.c.l.s4 1966171168
        %v12281 = vunpack.c.0.s8 %v12280
        %v12282 = vlaneseq
        %v12283 = vshrl.u32 %v12282, 7
        %v12284 = vsub.s32 %v12281, %v12283
        %v12285 = vrot.slane %v12257, %v12284
        %v12286 = vcombine.low %v12264, %v12271
        %v12287 = vcombine.low %v12278, %v12285
        %v12289 = vunpack.c.l.s4 1966171168
        %v12290 = vunpack.c.0.s8 %v12289
        %v12291 = vlaneseq
        %v12292 = vshrl.u32 %v12291, 7
        %v12293 = vsub.s32 %v12290, %v12292
        %v12294 = vrot.slane %v12286, %v12293
        %v12296 = vunpack.c.l.s4 1966171168
        %v12297 = vunpack.c.0.s8 %v12296
        %v12298 = vlaneseq
        %v12299 = vshrl.u32 %v12298, 7
        %v12300 = vsub.s32 %v12297, %v12299
        %v12301 = vrot.slane %v12287, %v12300
        %v12302 = vcombine.low %v12294, %v12301
        %v12304 = vmax.f32 %v709, %v12302
        %12305 = vst [vmem:[#allocation2] sm:$0xff] %v12304
        // Predicated region
        $region37: #{confidence_forward.1} parent=31 // pred_check
          %p12306 = pneg %p191
        $region38: #{confidence_forward.1} parent=31 // pred_check_branch
          %12308 = sbr.rel (%p12306) target = $region40
        $region39: #{confidence_forward.1} parent=31 // pred_region
          %v12309 = vld [vmem:[#allocation2] sm:$0xff]
          %v12310 = vld [vmem:[%s1] sm:$0xff]
          %v12311 = vld [vmem:[%s1 + $0x8] sm:$0xff]
          %v12312 = vld [vmem:[%s1 + $0x10] sm:$0xff]
          %v12313 = vld [vmem:[%s1 + $0x18] sm:$0xff]
          %v12314 = vld [vmem:[%s1 + $0x20] sm:$0xff]
          %v12315 = vld [vmem:[%s1 + $0x28] sm:$0xff]
          %v12316 = vld [vmem:[%s1 + $0x30] sm:$0xff]
          %v12317 = vld [vmem:[%s1 + $0x38] sm:$0xff]
          %v12318 = vld [vmem:[%s2] sm:$0x1]
          %v12320 = vlaneseq
          %v12321 = vshrl.u32 %v12320, 7
          %v12322 = vsub.s32 0, %v12321
          %v12323 = vrot.slane %v12309, %v12322
          %v12324 = vlaneseq
          %v12325 = vshrl.u32 %v12324, 7
          %v12326 = vsub.s32 1, %v12325
          %v12327 = vrot.slane %v12309, %v12326
          %v12328 = vlaneseq
          %v12329 = vshrl.u32 %v12328, 7
          %v12330 = vsub.s32 2, %v12329
          %v12331 = vrot.slane %v12309, %v12330
          %v12332 = vlaneseq
          %v12333 = vshrl.u32 %v12332, 7
          %v12334 = vsub.s32 3, %v12333
          %v12335 = vrot.slane %v12309, %v12334
          %v12336 = vlaneseq
          %v12337 = vshrl.u32 %v12336, 7
          %v12338 = vsub.s32 4, %v12337
          %v12339 = vrot.slane %v12309, %v12338
          %v12340 = vlaneseq
          %v12341 = vshrl.u32 %v12340, 7
          %v12342 = vsub.s32 5, %v12341
          %v12343 = vrot.slane %v12309, %v12342
          %v12344 = vlaneseq
          %v12345 = vshrl.u32 %v12344, 7
          %v12346 = vsub.s32 6, %v12345
          %v12347 = vrot.slane %v12309, %v12346
          %v12348 = vlaneseq
          %v12349 = vshrl.u32 %v12348, 7
          %v12350 = vsub.s32 7, %v12349
          %v12351 = vrot.slane %v12309, %v12350
          %12360 = vmatprep.subr.mxu0 0.0
          %12361 = vmatpush1.xpose.msra.mxu0 0.0
          %12362 = vmatprep.subr.mxu0 0.0
          %12363 = vmatpush1.xpose.msra.mxu0 0.0
          %12364 = vmatprep.subr.mxu0 0.0
          %12365 = vmatpush1.xpose.msra.mxu0 0.0
          %12366 = vmatprep.subr.mxu0 0.0
          %12367 = vmatpush1.xpose.msra.mxu0 0.0
          %12368 = vmatprep.subr.mxu0 0.0
          %12369 = vmatpush1.xpose.msra.mxu0 0.0
          %12370 = vmatprep.subr.mxu0 0.0
          %12371 = vmatpush1.xpose.msra.mxu0 0.0
          %12372 = vmatprep.subr.mxu0 0.0
          %12373 = vmatpush1.xpose.msra.mxu0 0.0
          %12374 = vmatprep.subr.mxu0 0.0
          %12375 = vmatpush1.xpose.msra.mxu0 0.0
          %12376 = vmatprep.subr.mxu0 0.0
          %12377 = vmatpush1.xpose.msra.mxu0 0.0
          %12378 = vmatprep.subr.mxu0 0.0
          %12379 = vmatpush1.xpose.msra.mxu0 0.0
          %12380 = vmatprep.subr.mxu0 0.0
          %12381 = vmatpush1.xpose.msra.mxu0 0.0
          %12382 = vmatprep.subr.mxu0 0.0
          %12383 = vmatpush1.xpose.msra.mxu0 0.0
          %12384 = vmatprep.subr.mxu0 0.0
          %12385 = vmatpush1.xpose.msra.mxu0 0.0
          %12386 = vmatprep.subr.mxu0 0.0
          %12387 = vmatpush1.xpose.msra.mxu0 0.0
          %12388 = vmatprep.subr.mxu0 0.0
          %12389 = vmatpush1.xpose.msra.mxu0 0.0
          %12390 = vmatprep.subr.mxu0 %v12311
          %12391 = vmatpush1.xpose.msra.mxu0 %v12310
          %12392 = vmatprep.subr.mxu0 0.0
          %12393 = vmatpush2.xpose.msra.mxu0 0.0
          %12394 = vmatprep.subr.mxu0 0.0
          %12395 = vmatpush2.xpose.msra.mxu0 0.0
          %12396 = vmatprep.subr.mxu0 0.0
          %12397 = vmatpush2.xpose.msra.mxu0 0.0
          %12398 = vmatprep.subr.mxu0 0.0
          %12399 = vmatpush2.xpose.msra.mxu0 0.0
          %12400 = vmatprep.subr.mxu0 0.0
          %12401 = vmatpush2.xpose.msra.mxu0 0.0
          %12402 = vmatprep.subr.mxu0 0.0
          %12403 = vmatpush2.xpose.msra.mxu0 0.0
          %12404 = vmatprep.subr.mxu0 0.0
          %12405 = vmatpush2.xpose.msra.mxu0 0.0
          %12406 = vmatprep.subr.mxu0 0.0
          %12407 = vmatpush2.xpose.msra.mxu0 0.0
          %12408 = vmatprep.subr.mxu0 0.0
          %12409 = vmatpush2.xpose.msra.mxu0 0.0
          %12410 = vmatprep.subr.mxu0 0.0
          %12411 = vmatpush2.xpose.msra.mxu0 0.0
          %12412 = vmatprep.subr.mxu0 0.0
          %12413 = vmatpush2.xpose.msra.mxu0 0.0
          %12414 = vmatprep.subr.mxu0 0.0
          %12415 = vmatpush2.xpose.msra.mxu0 0.0
          %12416 = vmatprep.subr.mxu0 0.0
          %12417 = vmatpush2.xpose.msra.mxu0 0.0
          %12418 = vmatprep.subr.mxu0 0.0
          %12419 = vmatpush2.xpose.msra.mxu0 0.0
          %12420 = vmatprep.subr.mxu0 0.0
          %12421 = vmatpush2.xpose.msra.mxu0 0.0
          %12422 = vmatprep.subr.mxu0 0.0
          %12423 = vmatpush2.xpose.msra.mxu0 0.0
          %12424 = vmatprep.mubr.f32.mxu0 %v12327
          %12425 = vmatmul.mubr.f32.gmra.mxu0 %v12323
          %v12426 = vpop.f32.mrf.mxu0
          %v12427 = vadd.f32 %v12318, %v12426
          %v12428 = vpop.f32.mrf.mxu0
          %12429 = vdwg.mxu0
          %12430 = vmatprep.subr.mxu0 0.0
          %12431 = vmatpush1.xpose.msra.mxu0 0.0
          %12432 = vmatprep.subr.mxu0 0.0
          %12433 = vmatpush1.xpose.msra.mxu0 0.0
          %12434 = vmatprep.subr.mxu0 0.0
          %12435 = vmatpush1.xpose.msra.mxu0 0.0
          %12436 = vmatprep.subr.mxu0 0.0
          %12437 = vmatpush1.xpose.msra.mxu0 0.0
          %12438 = vmatprep.subr.mxu0 0.0
          %12439 = vmatpush1.xpose.msra.mxu0 0.0
          %12440 = vmatprep.subr.mxu0 0.0
          %12441 = vmatpush1.xpose.msra.mxu0 0.0
          %12442 = vmatprep.subr.mxu0 0.0
          %12443 = vmatpush1.xpose.msra.mxu0 0.0
          %12444 = vmatprep.subr.mxu0 0.0
          %12445 = vmatpush1.xpose.msra.mxu0 0.0
          %12446 = vmatprep.subr.mxu0 0.0
          %12447 = vmatpush1.xpose.msra.mxu0 0.0
          %12448 = vmatprep.subr.mxu0 0.0
          %12449 = vmatpush1.xpose.msra.mxu0 0.0
          %12450 = vmatprep.subr.mxu0 0.0
          %12451 = vmatpush1.xpose.msra.mxu0 0.0
          %12452 = vmatprep.subr.mxu0 0.0
          %12453 = vmatpush1.xpose.msra.mxu0 0.0
          %12454 = vmatprep.subr.mxu0 0.0
          %12455 = vmatpush1.xpose.msra.mxu0 0.0
          %12456 = vmatprep.subr.mxu0 0.0
          %12457 = vmatpush1.xpose.msra.mxu0 0.0
          %12458 = vmatprep.subr.mxu0 0.0
          %12459 = vmatpush1.xpose.msra.mxu0 0.0
          %12460 = vmatprep.subr.mxu0 %v12313
          %12461 = vmatpush1.xpose.msra.mxu0 %v12312
          %12462 = vmatprep.subr.mxu0 0.0
          %12463 = vmatpush2.xpose.msra.mxu0 0.0
          %12464 = vmatprep.subr.mxu0 0.0
          %12465 = vmatpush2.xpose.msra.mxu0 0.0
          %12466 = vmatprep.subr.mxu0 0.0
          %12467 = vmatpush2.xpose.msra.mxu0 0.0
          %12468 = vmatprep.subr.mxu0 0.0
          %12469 = vmatpush2.xpose.msra.mxu0 0.0
          %12470 = vmatprep.subr.mxu0 0.0
          %12471 = vmatpush2.xpose.msra.mxu0 0.0
          %12472 = vmatprep.subr.mxu0 0.0
          %12473 = vmatpush2.xpose.msra.mxu0 0.0
          %12474 = vmatprep.subr.mxu0 0.0
          %12475 = vmatpush2.xpose.msra.mxu0 0.0
          %12476 = vmatprep.subr.mxu0 0.0
          %12477 = vmatpush2.xpose.msra.mxu0 0.0
          %12478 = vmatprep.subr.mxu0 0.0
          %12479 = vmatpush2.xpose.msra.mxu0 0.0
          %12480 = vmatprep.subr.mxu0 0.0
          %12481 = vmatpush2.xpose.msra.mxu0 0.0
          %12482 = vmatprep.subr.mxu0 0.0
          %12483 = vmatpush2.xpose.msra.mxu0 0.0
          %12484 = vmatprep.subr.mxu0 0.0
          %12485 = vmatpush2.xpose.msra.mxu0 0.0
          %12486 = vmatprep.subr.mxu0 0.0
          %12487 = vmatpush2.xpose.msra.mxu0 0.0
          %12488 = vmatprep.subr.mxu0 0.0
          %12489 = vmatpush2.xpose.msra.mxu0 0.0
          %12490 = vmatprep.subr.mxu0 0.0
          %12491 = vmatpush2.xpose.msra.mxu0 0.0
          %12492 = vmatprep.subr.mxu0 0.0
          %12493 = vmatpush2.xpose.msra.mxu0 0.0
          %12494 = vmatprep.mubr.f32.mxu0 %v12335
          %12495 = vmatmul.mubr.f32.gmra.mxu0 %v12331
          %v12496 = vpop.f32.mrf.mxu0
          %v12497 = vadd.f32 %v12427, %v12496
          %v12498 = vpop.f32.mrf.mxu0
          %12499 = vdwg.mxu0
          %12500 = vmatprep.subr.mxu0 0.0
          %12501 = vmatpush1.xpose.msra.mxu0 0.0
          %12502 = vmatprep.subr.mxu0 0.0
          %12503 = vmatpush1.xpose.msra.mxu0 0.0
          %12504 = vmatprep.subr.mxu0 0.0
          %12505 = vmatpush1.xpose.msra.mxu0 0.0
          %12506 = vmatprep.subr.mxu0 0.0
          %12507 = vmatpush1.xpose.msra.mxu0 0.0
          %12508 = vmatprep.subr.mxu0 0.0
          %12509 = vmatpush1.xpose.msra.mxu0 0.0
          %12510 = vmatprep.subr.mxu0 0.0
          %12511 = vmatpush1.xpose.msra.mxu0 0.0
          %12512 = vmatprep.subr.mxu0 0.0
          %12513 = vmatpush1.xpose.msra.mxu0 0.0
          %12514 = vmatprep.subr.mxu0 0.0
          %12515 = vmatpush1.xpose.msra.mxu0 0.0
          %12516 = vmatprep.subr.mxu0 0.0
          %12517 = vmatpush1.xpose.msra.mxu0 0.0
          %12518 = vmatprep.subr.mxu0 0.0
          %12519 = vmatpush1.xpose.msra.mxu0 0.0
          %12520 = vmatprep.subr.mxu0 0.0
          %12521 = vmatpush1.xpose.msra.mxu0 0.0
          %12522 = vmatprep.subr.mxu0 0.0
          %12523 = vmatpush1.xpose.msra.mxu0 0.0
          %12524 = vmatprep.subr.mxu0 0.0
          %12525 = vmatpush1.xpose.msra.mxu0 0.0
          %12526 = vmatprep.subr.mxu0 0.0
          %12527 = vmatpush1.xpose.msra.mxu0 0.0
          %12528 = vmatprep.subr.mxu0 0.0
          %12529 = vmatpush1.xpose.msra.mxu0 0.0
          %12530 = vmatprep.subr.mxu0 %v12315
          %12531 = vmatpush1.xpose.msra.mxu0 %v12314
          %12532 = vmatprep.subr.mxu0 0.0
          %12533 = vmatpush2.xpose.msra.mxu0 0.0
          %12534 = vmatprep.subr.mxu0 0.0
          %12535 = vmatpush2.xpose.msra.mxu0 0.0
          %12536 = vmatprep.subr.mxu0 0.0
          %12537 = vmatpush2.xpose.msra.mxu0 0.0
          %12538 = vmatprep.subr.mxu0 0.0
          %12539 = vmatpush2.xpose.msra.mxu0 0.0
          %12540 = vmatprep.subr.mxu0 0.0
          %12541 = vmatpush2.xpose.msra.mxu0 0.0
          %12542 = vmatprep.subr.mxu0 0.0
          %12543 = vmatpush2.xpose.msra.mxu0 0.0
          %12544 = vmatprep.subr.mxu0 0.0
          %12545 = vmatpush2.xpose.msra.mxu0 0.0
          %12546 = vmatprep.subr.mxu0 0.0
          %12547 = vmatpush2.xpose.msra.mxu0 0.0
          %12548 = vmatprep.subr.mxu0 0.0
          %12549 = vmatpush2.xpose.msra.mxu0 0.0
          %12550 = vmatprep.subr.mxu0 0.0
          %12551 = vmatpush2.xpose.msra.mxu0 0.0
          %12552 = vmatprep.subr.mxu0 0.0
          %12553 = vmatpush2.xpose.msra.mxu0 0.0
          %12554 = vmatprep.subr.mxu0 0.0
          %12555 = vmatpush2.xpose.msra.mxu0 0.0
          %12556 = vmatprep.subr.mxu0 0.0
          %12557 = vmatpush2.xpose.msra.mxu0 0.0
          %12558 = vmatprep.subr.mxu0 0.0
          %12559 = vmatpush2.xpose.msra.mxu0 0.0
          %12560 = vmatprep.subr.mxu0 0.0
          %12561 = vmatpush2.xpose.msra.mxu0 0.0
          %12562 = vmatprep.subr.mxu0 0.0
          %12563 = vmatpush2.xpose.msra.mxu0 0.0
          %12564 = vmatprep.mubr.f32.mxu0 %v12343
          %12565 = vmatmul.mubr.f32.gmra.mxu0 %v12339
          %v12566 = vpop.f32.mrf.mxu0
          %v12567 = vadd.f32 %v12497, %v12566
          %v12568 = vpop.f32.mrf.mxu0
          %12569 = vdwg.mxu0
          %12570 = vmatprep.subr.mxu0 0.0
          %12571 = vmatpush1.xpose.msra.mxu0 0.0
          %12572 = vmatprep.subr.mxu0 0.0
          %12573 = vmatpush1.xpose.msra.mxu0 0.0
          %12574 = vmatprep.subr.mxu0 0.0
          %12575 = vmatpush1.xpose.msra.mxu0 0.0
          %12576 = vmatprep.subr.mxu0 0.0
          %12577 = vmatpush1.xpose.msra.mxu0 0.0
          %12578 = vmatprep.subr.mxu0 0.0
          %12579 = vmatpush1.xpose.msra.mxu0 0.0
          %12580 = vmatprep.subr.mxu0 0.0
          %12581 = vmatpush1.xpose.msra.mxu0 0.0
          %12582 = vmatprep.subr.mxu0 0.0
          %12583 = vmatpush1.xpose.msra.mxu0 0.0
          %12584 = vmatprep.subr.mxu0 0.0
          %12585 = vmatpush1.xpose.msra.mxu0 0.0
          %12586 = vmatprep.subr.mxu0 0.0
          %12587 = vmatpush1.xpose.msra.mxu0 0.0
          %12588 = vmatprep.subr.mxu0 0.0
          %12589 = vmatpush1.xpose.msra.mxu0 0.0
          %12590 = vmatprep.subr.mxu0 0.0
          %12591 = vmatpush1.xpose.msra.mxu0 0.0
          %12592 = vmatprep.subr.mxu0 0.0
          %12593 = vmatpush1.xpose.msra.mxu0 0.0
          %12594 = vmatprep.subr.mxu0 0.0
          %12595 = vmatpush1.xpose.msra.mxu0 0.0
          %12596 = vmatprep.subr.mxu0 0.0
          %12597 = vmatpush1.xpose.msra.mxu0 0.0
          %12598 = vmatprep.subr.mxu0 0.0
          %12599 = vmatpush1.xpose.msra.mxu0 0.0
          %12600 = vmatprep.subr.mxu0 %v12317
          %12601 = vmatpush1.xpose.msra.mxu0 %v12316
          %12602 = vmatprep.subr.mxu0 0.0
          %12603 = vmatpush2.xpose.msra.mxu0 0.0
          %12604 = vmatprep.subr.mxu0 0.0
          %12605 = vmatpush2.xpose.msra.mxu0 0.0
          %12606 = vmatprep.subr.mxu0 0.0
          %12607 = vmatpush2.xpose.msra.mxu0 0.0
          %12608 = vmatprep.subr.mxu0 0.0
          %12609 = vmatpush2.xpose.msra.mxu0 0.0
          %12610 = vmatprep.subr.mxu0 0.0
          %12611 = vmatpush2.xpose.msra.mxu0 0.0
          %12612 = vmatprep.subr.mxu0 0.0
          %12613 = vmatpush2.xpose.msra.mxu0 0.0
          %12614 = vmatprep.subr.mxu0 0.0
          %12615 = vmatpush2.xpose.msra.mxu0 0.0
          %12616 = vmatprep.subr.mxu0 0.0
          %12617 = vmatpush2.xpose.msra.mxu0 0.0
          %12618 = vmatprep.subr.mxu0 0.0
          %12619 = vmatpush2.xpose.msra.mxu0 0.0
          %12620 = vmatprep.subr.mxu0 0.0
          %12621 = vmatpush2.xpose.msra.mxu0 0.0
          %12622 = vmatprep.subr.mxu0 0.0
          %12623 = vmatpush2.xpose.msra.mxu0 0.0
          %12624 = vmatprep.subr.mxu0 0.0
          %12625 = vmatpush2.xpose.msra.mxu0 0.0
          %12626 = vmatprep.subr.mxu0 0.0
          %12627 = vmatpush2.xpose.msra.mxu0 0.0
          %12628 = vmatprep.subr.mxu0 0.0
          %12629 = vmatpush2.xpose.msra.mxu0 0.0
          %12630 = vmatprep.subr.mxu0 0.0
          %12631 = vmatpush2.xpose.msra.mxu0 0.0
          %12632 = vmatprep.subr.mxu0 0.0
          %12633 = vmatpush2.xpose.msra.mxu0 0.0
          %12634 = vmatprep.mubr.f32.mxu0 %v12351
          %12635 = vmatmul.mubr.f32.gmra.mxu0 %v12347
          %v12636 = vpop.f32.mrf.mxu0
          %v12637 = vadd.f32 %v12567, %v12636
          %v12638 = vpop.f32.mrf.mxu0
          %12639 = vdwg.mxu0
          %v12640 = vxor.u32 %v12637, 2147483648
          %v12641 = vmul.f32 %v12640, 1.442695
          %v12642 = vpow.pop %v12641
          %v12643 = vadd.f32 %v12642, 1.0
          %v12644 = vrcp.pop %v12643
          %v12645 = vmul.f32 1.0, %v12644
          %vm12646 = vcmask 57344
          %12647 = vst.msk [vmem:[%s182] sm:$0x1] %vm12646, %v12645
        $region40: #{confidence_forward.1} parent=31 // pred_fallthru
          _
        %s12648 = sand.u32 %s107, 1
        %s12649 = scalar_lea.sflag [#allocation4], %s12648
        %s12650 = sand.u32 %s107, 1
        %s12651 = scalar_lea.vmem [#allocation3], %s12650
        // Predicated region
        $region41: #{confidence_forward.1} parent=31 // pred_check
          %p12652 = pneg %p117
        $region42: #{confidence_forward.1} parent=31 // pred_check_branch
          %12654 = sbr.rel (%p12652) target = $region44
        $region43: #{confidence_forward.1} parent=31 // pred_region
          %s12656 = ssub.s32 16, 16
          %12657 = vsyncadd %s12649, %s12656
          %s12658 = smul.addr %s21, 16
          %s12659 = scalar_lea.hbm %s3, %s12658
          %s12661 = sshll.u32 %s12651, 4
          %s12662 = int_to_ptr.vmem [resolvable:$true] %s12661
          %12664 = dma.vmem_to_hbm [thread:$0]  %s12662, 16, %s12659, %s12649
        $region44: #{confidence_forward.1} parent=31 // pred_fallthru
          _
      $region32: #{confidence_forward.1} parent=5 // pred_fallthru
        _
      %p12665 = scmp.le.s32.totalorder 2, %s12
      // Predicated region
      $region45: #{confidence_forward.1} parent=5 // pred_check
        %p12666 = pneg %p12665
      $region46: #{confidence_forward.1} parent=5 // pred_check_branch
        %12668 = sbr.rel (%p12666) target = $region48
      $region47: #{confidence_forward.1} parent=5 // pred_region
        %s12669 = ssub.s32 %s12, 2
        // Predicated region
        $region49: #{confidence_forward.1} parent=47 // pred_check
          %p12670 = pneg %p123
        $region50: #{confidence_forward.1} parent=47 // pred_check_branch
          %12672 = sbr.rel (%p12670) target = $region52
        $region51: #{confidence_forward.1} parent=47 // pred_region
          %s12673 = sand.u32 %s108, 1
          %s12674 = scalar_lea.sflag [#allocation4], %s12673
          %s12675 = sand.u32 %s108, 1
          %s12676 = scalar_lea.vmem [#allocation3], %s12675
          %12677 = dma.done %s12674, 16
        $region52: #{confidence_forward.1} parent=47 // pred_fallthru
          _
      $region48: #{confidence_forward.1} parent=5 // pred_fallthru
        _
    $region6: #{confidence_forward.1} parent=1 // loop_footer
      %s16 = sadd.s32 1, %s12
    $region7: #{confidence_forward.1} parent=1 // loop_footer_branch
      %11 = sbr.rel target = $region3
    $region8: #{confidence_forward.1} parent=1 // loop_exit
      _
    %12678 = vsyncpa [#allocation4], 1
    %s12679 = scalar_lea.sflag [#allocation4], 1
    %12680 = vsyncpa %s12679, 1

</llo_original>
